<compile_context>
chip_gen: v7x
topology: tpu7x:2x2x1
jax: 0.10.0
libtpu: 0.0.40
codegen_flags: <defaults>
</compile_context>

<pallas_src>
import jax
import jax.numpy as jnp
from jax import lax
from jax.experimental import pallas as pl
from jax.experimental.pallas import tpu as pltpu

_LANE = 128
_SUBLANE = 8


# ------------------------------------------------------------------ helpers --
def _ceil_to(x, m):
    return ((x + m - 1) // m) * m


def _full_spec(shape):
    nd = len(shape)
    return pl.BlockSpec(shape, lambda i, _nd=nd: (0,) * _nd)


def _pad2(x, rows, cols):
    return jnp.pad(x, ((0, rows - x.shape[0]), (0, cols - x.shape[1])))


def _pad_gates(x, rows, h, h_pad):
    """Pad a (r, 3h) gate-stacked (r|z|n) weight/bias to (rows, 3*h_pad),
    padding each gate block separately so gate slicing stays aligned."""
    blocks = [_pad2(x[:, g * h:(g + 1) * h], rows, h_pad) for g in range(3)]
    return jnp.concatenate(blocks, axis=1)


def _gru_cell(x_gates, h, w_hh, b_hh):
    """PyTorch GRU gate order (r, z, n); gate math kept in float32 (VPU/EUP)."""
    H = h.shape[-1]
    gh = jnp.dot(h, w_hh, preferred_element_type=jnp.float32) + b_hh
    r = jax.nn.sigmoid(x_gates[:, :H] + gh[:, :H])
    z = jax.nn.sigmoid(x_gates[:, H:2 * H] + gh[:, H:2 * H])
    n = jnp.tanh(x_gates[:, 2 * H:] + r * gh[:, 2 * H:])
    return (1.0 - z) * n + z * h


def _argmax_last(x):
    """argmax over the last (lane) axis, returned as (B, 1) int32."""
    V = x.shape[-1]
    m = jnp.max(x, axis=-1, keepdims=True)
    iota = lax.broadcasted_iota(jnp.int32, x.shape, x.ndim - 1)
    cand = jnp.where(x == m, iota, V)
    return jnp.min(cand, axis=-1, keepdims=True)


# ----------------------------------------------------------- encoder kernel --
def encoder_gru_kernel(src2_ref, w_ih_ref, w_hh_ref, b_ih_ref, b_hh_ref,
                       h_out_ref, gi_scr):
    Bp, Hp = h_out_ref.shape
    T = src2_ref.shape[0] // Bp
    H3 = w_ih_ref.shape[1]

    # Batched input projection across all timesteps: one big MXU matmul.
    gi_scr[...] = (jnp.dot(src2_ref[...], w_ih_ref[...],
                           preferred_element_type=jnp.float32)
                   + b_ih_ref[...])

    # Hoist recurrent weights and the bias broadcast out of the loop.
    w_hh = w_hh_ref[...]
    b_hh = jnp.broadcast_to(b_hh_ref[...], (Bp, H3))

    def step(t, h):
        off = pl.multiple_of(t * Bp, Bp)
        gi = gi_scr[pl.ds(off, Bp), :]
        return _gru_cell(gi, h, w_hh, b_hh)

    h_out_ref[...] = lax.fori_loop(0, T, step,
                                   jnp.zeros((Bp, Hp), jnp.float32),
                                   unroll=True)


def encode(src2, p, b_pad, h_pad):
    return pl.pallas_call(
        encoder_gru_kernel,
        grid=(1,),
        in_specs=[_full_spec(src2.shape),
                  _full_spec(p["w_ih"].shape),
                  _full_spec(p["w_hh"].shape),
                  _full_spec(p["b_ih"].shape),
                  _full_spec(p["b_hh"].shape)],
        out_specs=_full_spec((b_pad, h_pad)),
        out_shape=jax.ShapeDtypeStruct((b_pad, h_pad), jnp.float32),
        scratch_shapes=[pltpu.VMEM((src2.shape[0], p["w_ih"].shape[1]),
                                   jnp.float32)],
        compiler_params=pltpu.CompilerParams(
            dimension_semantics=("arbitrary",),
            vmem_limit_bytes=64 << 20),
    )(src2, p["w_ih"], p["w_hh"], p["b_ih"], p["b_hh"])


# ----------------------------------------------- fused decoder-loop kernel --
def decoder_fused_kernel(ids0_ref, ctx_ref, emb_ref,
                         w_ih_e_ref, w_ih_c_ref, w_hh_ref, b_ih_ref, b_hh_ref,
                         w_out_e_ref, w_out_h_ref, w_out_c_ref, b_out_ref,
                         gumbel_ref, logits_ref):
    S, Bp, Vp = logits_ref.shape

    ctx = ctx_ref[...]
    # Context is constant over decoding: hoist its two matmuls (+ biases) once.
    gi_ctx = (jnp.dot(ctx, w_ih_c_ref[...], preferred_element_type=jnp.float32)
              + b_ih_ref[...])
    logit_ctx = (jnp.dot(ctx, w_out_c_ref[...],
                         preferred_element_type=jnp.float32)
                 + b_out_ref[...])

    # Weights stay resident in VMEM/vregs for the whole decode loop.
    emb_tab = emb_ref[...]
    w_ih_e = w_ih_e_ref[...]
    w_hh = w_hh_ref[...]
    b_hh = jnp.broadcast_to(b_hh_ref[...], (Bp, w_hh.shape[1]))
    w_out_e = w_out_e_ref[...]
    w_out_h = w_out_h_ref[...]

    def step(t, carry):
        ids, h = carry                                           # (Bp,1) i32, (Bp,Hp) f32
        # Embedding lookup as one-hot matmul (MXU-friendly, no in-kernel gather).
        # TODO(synk): at production vocab sizes replace with a scalar-prefetched
        # row gather and tile the vocab axis of w_out_* / logits with a grid dim.
        one_hot = (ids == lax.broadcasted_iota(jnp.int32, (Bp, Vp), 1)
                   ).astype(jnp.float32)
        e = jnp.dot(one_hot, emb_tab, preferred_element_type=jnp.float32)
        gi = jnp.dot(e, w_ih_e, preferred_element_type=jnp.float32) + gi_ctx
        h_new = _gru_cell(gi, h, w_hh, b_hh)
        logits = (jnp.dot(e, w_out_e, preferred_element_type=jnp.float32)
                  + jnp.dot(h_new, w_out_h, preferred_element_type=jnp.float32)
                  + logit_ctx)
        logits_ref[t] = logits
        # Gumbel-max == Categorical(logits).sample(); padded vocab lanes carry
        # -1e30 noise so they can never win the argmax.
        nxt = _argmax_last(logits + gumbel_ref[t])
        return (nxt, h_new)

    lax.fori_loop(0, S, step, (ids0_ref[...], ctx), unroll=True)


def decode_all(ids0, context, gumbel, p):
    S, Bp, Vp = gumbel.shape
    args = (ids0, context, p["emb"],
            p["w_ih_e"], p["w_ih_c"], p["w_hh"], p["b_ih"], p["b_hh"],
            p["w_out_e"], p["w_out_h"], p["w_out_c"], p["b_out"],
            gumbel)
    return pl.pallas_call(
        decoder_fused_kernel,
        grid=(1,),
        in_specs=[_full_spec(a.shape) for a in args],
        out_specs=_full_spec((S, Bp, Vp)),
        out_shape=jax.ShapeDtypeStruct((S, Bp, Vp), jnp.float32),
        compiler_params=pltpu.CompilerParams(
            dimension_semantics=("arbitrary",),
            vmem_limit_bytes=64 << 20),
    )(*args)


# ------------------------------------------------------------------ forward --
def seq2seq_forward(src, params, *, max_label_len, key, start_symbol_value=1):
    """Inference path (trg=None): input starts at start_symbol_value, each next
    input is a categorical sample from the decoder logits (Gumbel-max in-kernel;
    same distribution as Categorical(logits).sample(), different random stream).
    # TODO(synk): teacher-forcing branch (trg provided + python random.random
    # gate) is host-side control flow with no clean in-kernel equivalent; only
    # the trg=None forward is implemented.
    """
    T, B, F = src.shape
    V, E = params["dec"]["emb"].shape
    H = params["enc"]["w_hh"].shape[0]

    Bp = _ceil_to(B, _SUBLANE)
    Fp = _ceil_to(F, _LANE)
    Ep = _ceil_to(E, _LANE)
    Hp = _ceil_to(H, _LANE)
    Vp = _ceil_to(V, _LANE)

    enc = params["enc"]
    enc_p = dict(
        w_ih=_pad_gates(enc["w_ih"], Fp, H, Hp),
        w_hh=_pad_gates(enc["w_hh"], Hp, H, Hp),
        b_ih=_pad_gates(enc["b_ih"], 1, H, Hp),
        b_hh=_pad_gates(enc["b_hh"], 1, H, Hp),
    )
    dec = params["dec"]
    dec_p = dict(
        emb=_pad2(dec["emb"], Vp, Ep),
        w_ih_e=_pad_gates(dec["w_ih_e"], Ep, H, Hp),
        w_ih_c=_pad_gates(dec["w_ih_c"], Hp, H, Hp),
        w_hh=_pad_gates(dec["w_hh"], Hp, H, Hp),
        b_ih=_pad_gates(dec["b_ih"], 1, H, Hp),
        b_hh=_pad_gates(dec["b_hh"], 1, H, Hp),
        w_out_e=_pad2(dec["w_out_e"], Ep, Vp),
        w_out_h=_pad2(dec["w_out_h"], Hp, Vp),
        w_out_c=_pad2(dec["w_out_c"], Hp, Vp),
        b_out=_pad2(dec["b_out"], 1, Vp),
    )

    # Pad to (8,128) tiles; flatten time*batch for the batched input projection.
    src_p = jnp.pad(src, ((0, 0), (0, Bp - B), (0, Fp - F)))
    src2 = src_p.reshape(T * Bp, Fp)

    context = encode(src2, enc_p, Bp, Hp)                       # (Bp, Hp)

    S = max_label_len - 1
    gumbel = jax.random.gumbel(key, (S, Bp, Vp), dtype=jnp.float32)
    if Vp > V:
        gumbel = gumbel.at[:, :, V:].set(-1e30)                 # mask padded lanes
    ids0 = jnp.full((Bp, 1), int(start_symbol_value), dtype=jnp.int32)

    logits_seq = decode_all(ids0, context, gumbel, dec_p)       # (S, Bp, Vp)
    logits_seq = logits_seq[:, :B, :V]

    out0 = jnp.zeros((1, B, V), jnp.float32).at[0, :, 1].set(1.0)  # outputs[0]=0; outputs[0,:,1]=1
    return jnp.concatenate([out0, logits_seq], axis=0)          # (max_len, B, V)


# --------------------------------------------------------------- param init --
def init_params(key, *, input_dim, emb_dim, hid_dim, output_dim):
    ks = jax.random.split(key, 16)
    s = 0.1

    def rnd(k, shape):
        return (s * jax.random.normal(k, shape)).astype(jnp.float32)

    enc = dict(
        w_ih=rnd(ks[0], (input_dim, 3 * hid_dim)),
        w_hh=rnd(ks[1], (hid_dim, 3 * hid_dim)),
        b_ih=rnd(ks[2], (1, 3 * hid_dim)),
        b_hh=rnd(ks[3], (1, 3 * hid_dim)),
    )
    dec = dict(
        emb=rnd(ks[4], (output_dim, emb_dim)),
        w_ih_e=rnd(ks[5], (emb_dim, 3 * hid_dim)),
        w_ih_c=rnd(ks[6], (hid_dim, 3 * hid_dim)),
        w_hh=rnd(ks[7], (hid_dim, 3 * hid_dim)),
        b_ih=rnd(ks[8], (1, 3 * hid_dim)),
        b_hh=rnd(ks[9], (1, 3 * hid_dim)),
        w_out_e=rnd(ks[10], (emb_dim, output_dim)),
        w_out_h=rnd(ks[11], (hid_dim, output_dim)),
        w_out_c=rnd(ks[12], (hid_dim, output_dim)),
        b_out=rnd(ks[13], (1, output_dim)),
    )
    return dict(enc=enc, dec=dec)


# --------------------------------------------------------------------- main --
if __name__ == "__main__":
    # Small shapes: src_len=8, batch=2, input feature dim=16, hid=32, vocab=10.
    T, B, F = 8, 2, 16
    EMB, HID, VOCAB = 16, 32, 10
    MAX_LABEL_LEN = 8

    root = jax.random.PRNGKey(0)
    k_param, k_src, k_sample = jax.random.split(root, 3)

    params = init_params(k_param, input_dim=F, emb_dim=EMB,
                         hid_dim=HID, output_dim=VOCAB)
    src = jax.random.normal(k_src, (T, B, F), dtype=jnp.float32)

    fwd = jax.jit(seq2seq_forward,
                  static_argnames=("max_label_len", "start_symbol_value"))
    outputs = fwd(src, params, max_label_len=MAX_LABEL_LEN,
                  key=k_sample, start_symbol_value=1)
    outputs = jax.block_until_ready(outputs)

    assert outputs.shape == (MAX_LABEL_LEN, B, VOCAB)
    assert bool(jnp.all(outputs[0, :, 1] == 1.0))
    assert bool(jnp.all(outputs[0, :, 0] == 0.0))
    assert bool(jnp.all(jnp.isfinite(outputs)))
    print("KERNEL_OK")
</pallas_src>

<mosaic_0001>
module attributes {stable_mosaic.version = 11 : i64} {
  func.func @encoder_gru_kernel(%arg0: i32, %arg1: memref<64x128xf32, #tpu.memory_space<vmem>>, %arg2: memref<128x384xf32, #tpu.memory_space<vmem>>, %arg3: memref<128x384xf32, #tpu.memory_space<vmem>>, %arg4: memref<1x384xf32, #tpu.memory_space<vmem>>, %arg5: memref<1x384xf32, #tpu.memory_space<vmem>>, %arg6: memref<8x128xf32, #tpu.memory_space<vmem>>, %arg7: memref<64x384xf32, #tpu.memory_space<vmem>>) attributes {dimension_semantics = [#tpu.dimension_semantics<arbitrary>], iteration_bounds = array<i64: 1>, scalar_prefetch = 0 : i64, scratch_operands = 1 : i64, tpu.core_type = #tpu.core_type<tc>, window_params = [{pipeline_mode = #tpu.pipeline_mode<synchronous>, transform_indices = @transform_0, window_bounds = array<i64: 64, 128>}, {pipeline_mode = #tpu.pipeline_mode<synchronous>, transform_indices = @transform_1, window_bounds = array<i64: 128, 384>}, {pipeline_mode = #tpu.pipeline_mode<synchronous>, transform_indices = @transform_2, window_bounds = array<i64: 128, 384>}, {pipeline_mode = #tpu.pipeline_mode<synchronous>, transform_indices = @transform_3, window_bounds = array<i64: 1, 384>}, {pipeline_mode = #tpu.pipeline_mode<synchronous>, transform_indices = @transform_4, window_bounds = array<i64: 1, 384>}, {pipeline_mode = #tpu.pipeline_mode<synchronous>, transform_indices = @transform_5, window_bounds = array<i64: 8, 128>}]} {
    %c0 = arith.constant 0 : index
    %c0_0 = arith.constant 0 : index
    %0 = vector.load %arg1[%c0, %c0_0] : memref<64x128xf32, #tpu.memory_space<vmem>>, vector<64x128xf32>
    %c0_1 = arith.constant 0 : index
    %c0_2 = arith.constant 0 : index
    %1 = vector.load %arg2[%c0_1, %c0_2] : memref<128x384xf32, #tpu.memory_space<vmem>>, vector<128x384xf32>
    %cst = arith.constant dense<0.000000e+00> : vector<64x384xf32>
    %2 = tpu.matmul %0, %1, %cst {dimension_numbers = #tpu.dot_dimension_numbers<[1], [0], [0], [1], [0, 0, 1, 1], [], []>} : vector<64x128xf32>, vector<128x384xf32>, vector<64x384xf32> -> vector<64x384xf32>
    %c0_3 = arith.constant 0 : index
    %c0_4 = arith.constant 0 : index
    %3 = vector.load %arg4[%c0_3, %c0_4] : memref<1x384xf32, #tpu.memory_space<vmem>>, vector<1x384xf32>
    %4 = vector.broadcast %3 : vector<1x384xf32> to vector<64x384xf32>
    %5 = arith.addf %2, %4 : vector<64x384xf32>
    %c0_5 = arith.constant 0 : index
    %c0_6 = arith.constant 0 : index
    %6 = vector.load %arg7[%c0_5, %c0_6] : memref<64x384xf32, #tpu.memory_space<vmem>>, vector<64x384xf32>
    tpu.vector_store %arg7[%c0_5, %c0_6], %5 {strides = array<i32>} : memref<64x384xf32, #tpu.memory_space<vmem>>, vector<64x384xf32>,
    %c0_7 = arith.constant 0 : index
    %c0_8 = arith.constant 0 : index
    %7 = vector.load %arg3[%c0_7, %c0_8] : memref<128x384xf32, #tpu.memory_space<vmem>>, vector<128x384xf32>
    %c0_9 = arith.constant 0 : index
    %c0_10 = arith.constant 0 : index
    %8 = vector.load %arg5[%c0_9, %c0_10] : memref<1x384xf32, #tpu.memory_space<vmem>>, vector<1x384xf32>
    %9 = vector.shape_cast %8 : vector<1x384xf32> to vector<1x384xf32>
    %10 = vector.broadcast %9 : vector<1x384xf32> to vector<8x384xf32>
    %cst_11 = arith.constant 0.000000e+00 : f32
    %11 = vector.broadcast %cst_11 : f32 to vector<8x128xf32>
    %c0_i32 = arith.constant 0 : i32
    %c8_i32 = arith.constant 8 : i32
    %12 = arith.muli %c0_i32, %c8_i32 : i32
    %13 = tpu.assume_multiple %12, 8 : i32
    %14 = arith.index_cast %13 : i32 to index
    %c0_12 = arith.constant 0 : index
    %15 = vector.load %arg7[%14, %c0_12] : memref<64x384xf32, #tpu.memory_space<vmem>>, vector<8x384xf32>
    %cst_13 = arith.constant dense<0.000000e+00> : vector<8x384xf32>
    %16 = tpu.matmul %11, %7, %cst_13 {dimension_numbers = #tpu.dot_dimension_numbers<[1], [0], [0], [1], [0, 0, 1, 1], [], []>} : vector<8x128xf32>, vector<128x384xf32>, vector<8x384xf32> -> vector<8x384xf32>
    %17 = arith.addf %16, %10 : vector<8x384xf32>
    %18 = vector.extract_strided_slice %15 {offsets = [0, 0], sizes = [8, 128], strides = [1, 1]} : vector<8x384xf32> to vector<8x128xf32>
    %19 = vector.extract_strided_slice %17 {offsets = [0, 0], sizes = [8, 128], strides = [1, 1]} : vector<8x384xf32> to vector<8x128xf32>
    %20 = arith.addf %18, %19 : vector<8x128xf32>
    %21 = arith.negf %20 : vector<8x128xf32>
    %22 = math.exp %21 : vector<8x128xf32>
    %cst_14 = arith.constant 1.000000e+00 : f32
    %23 = vector.broadcast %cst_14 : f32 to vector<8x128xf32>
    %24 = arith.addf %23, %22 : vector<8x128xf32>
    %25 = arith.divf %23, %24 : vector<8x128xf32>
    %26 = vector.extract_strided_slice %15 {offsets = [0, 128], sizes = [8, 128], strides = [1, 1]} : vector<8x384xf32> to vector<8x128xf32>
    %27 = vector.extract_strided_slice %17 {offsets = [0, 128], sizes = [8, 128], strides = [1, 1]} : vector<8x384xf32> to vector<8x128xf32>
    %28 = arith.addf %26, %27 : vector<8x128xf32>
    %29 = arith.negf %28 : vector<8x128xf32>
    %30 = math.exp %29 : vector<8x128xf32>
    %cst_15 = arith.constant 1.000000e+00 : f32
    %31 = vector.broadcast %cst_15 : f32 to vector<8x128xf32>
    %32 = arith.addf %31, %30 : vector<8x128xf32>
    %33 = arith.divf %31, %32 : vector<8x128xf32>
    %34 = vector.extract_strided_slice %15 {offsets = [0, 256], sizes = [8, 128], strides = [1, 1]} : vector<8x384xf32> to vector<8x128xf32>
    %35 = vector.extract_strided_slice %17 {offsets = [0, 256], sizes = [8, 128], strides = [1, 1]} : vector<8x384xf32> to vector<8x128xf32>
    %36 = arith.mulf %25, %35 : vector<8x128xf32>
    %37 = arith.addf %34, %36 : vector<8x128xf32>
    %38 = math.tanh %37 : vector<8x128xf32>
    %cst_16 = arith.constant 1.000000e+00 : f32
    %39 = vector.broadcast %cst_16 : f32 to vector<8x128xf32>
    %40 = arith.subf %39, %33 : vector<8x128xf32>
    %41 = arith.mulf %40, %38 : vector<8x128xf32>
    %42 = arith.mulf %33, %11 : vector<8x128xf32>
    %43 = arith.addf %41, %42 : vector<8x128xf32>
    %c1_i32 = arith.constant 1 : i32
    %c8_i32_17 = arith.constant 8 : i32
    %44 = arith.muli %c1_i32, %c8_i32_17 : i32
    %45 = tpu.assume_multiple %44, 8 : i32
    %46 = arith.index_cast %45 : i32 to index
    %c0_18 = arith.constant 0 : index
    %47 = vector.load %arg7[%46, %c0_18] : memref<64x384xf32, #tpu.memory_space<vmem>>, vector<8x384xf32>
    %cst_19 = arith.constant dense<0.000000e+00> : vector<8x384xf32>
    %48 = tpu.matmul %43, %7, %cst_19 {dimension_numbers = #tpu.dot_dimension_numbers<[1], [0], [0], [1], [0, 0, 1, 1], [], []>} : vector<8x128xf32>, vector<128x384xf32>, vector<8x384xf32> -> vector<8x384xf32>
    %49 = arith.addf %48, %10 : vector<8x384xf32>
    %50 = vector.extract_strided_slice %47 {offsets = [0, 0], sizes = [8, 128], strides = [1, 1]} : vector<8x384xf32> to vector<8x128xf32>
    %51 = vector.extract_strided_slice %49 {offsets = [0, 0], sizes = [8, 128], strides = [1, 1]} : vector<8x384xf32> to vector<8x128xf32>
    %52 = arith.addf %50, %51 : vector<8x128xf32>
    %53 = arith.negf %52 : vector<8x128xf32>
    %54 = math.exp %53 : vector<8x128xf32>
    %cst_20 = arith.constant 1.000000e+00 : f32
    %55 = vector.broadcast %cst_20 : f32 to vector<8x128xf32>
    %56 = arith.addf %55, %54 : vector<8x128xf32>
    %57 = arith.divf %55, %56 : vector<8x128xf32>
    %58 = vector.extract_strided_slice %47 {offsets = [0, 128], sizes = [8, 128], strides = [1, 1]} : vector<8x384xf32> to vector<8x128xf32>
    %59 = vector.extract_strided_slice %49 {offsets = [0, 128], sizes = [8, 128], strides = [1, 1]} : vector<8x384xf32> to vector<8x128xf32>
    %60 = arith.addf %58, %59 : vector<8x128xf32>
    %61 = arith.negf %60 : vector<8x128xf32>
    %62 = math.exp %61 : vector<8x128xf32>
    %cst_21 = arith.constant 1.000000e+00 : f32
    %63 = vector.broadcast %cst_21 : f32 to vector<8x128xf32>
    %64 = arith.addf %63, %62 : vector<8x128xf32>
    %65 = arith.divf %63, %64 : vector<8x128xf32>
    %66 = vector.extract_strided_slice %47 {offsets = [0, 256], sizes = [8, 128], strides = [1, 1]} : vector<8x384xf32> to vector<8x128xf32>
    %67 = vector.extract_strided_slice %49 {offsets = [0, 256], sizes = [8, 128], strides = [1, 1]} : vector<8x384xf32> to vector<8x128xf32>
    %68 = arith.mulf %57, %67 : vector<8x128xf32>
    %69 = arith.addf %66, %68 : vector<8x128xf32>
    %70 = math.tanh %69 : vector<8x128xf32>
    %cst_22 = arith.constant 1.000000e+00 : f32
    %71 = vector.broadcast %cst_22 : f32 to vector<8x128xf32>
    %72 = arith.subf %71, %65 : vector<8x128xf32>
    %73 = arith.mulf %72, %70 : vector<8x128xf32>
    %74 = arith.mulf %65, %43 : vector<8x128xf32>
    %75 = arith.addf %73, %74 : vector<8x128xf32>
    %c2_i32 = arith.constant 2 : i32
    %c8_i32_23 = arith.constant 8 : i32
    %76 = arith.muli %c2_i32, %c8_i32_23 : i32
    %77 = tpu.assume_multiple %76, 8 : i32
    %78 = arith.index_cast %77 : i32 to index
    %c0_24 = arith.constant 0 : index
    %79 = vector.load %arg7[%78, %c0_24] : memref<64x384xf32, #tpu.memory_space<vmem>>, vector<8x384xf32>
    %cst_25 = arith.constant dense<0.000000e+00> : vector<8x384xf32>
    %80 = tpu.matmul %75, %7, %cst_25 {dimension_numbers = #tpu.dot_dimension_numbers<[1], [0], [0], [1], [0, 0, 1, 1], [], []>} : vector<8x128xf32>, vector<128x384xf32>, vector<8x384xf32> -> vector<8x384xf32>
    %81 = arith.addf %80, %10 : vector<8x384xf32>
    %82 = vector.extract_strided_slice %79 {offsets = [0, 0], sizes = [8, 128], strides = [1, 1]} : vector<8x384xf32> to vector<8x128xf32>
    %83 = vector.extract_strided_slice %81 {offsets = [0, 0], sizes = [8, 128], strides = [1, 1]} : vector<8x384xf32> to vector<8x128xf32>
    %84 = arith.addf %82, %83 : vector<8x128xf32>
    %85 = arith.negf %84 : vector<8x128xf32>
    %86 = math.exp %85 : vector<8x128xf32>
    %cst_26 = arith.constant 1.000000e+00 : f32
    %87 = vector.broadcast %cst_26 : f32 to vector<8x128xf32>
    %88 = arith.addf %87, %86 : vector<8x128xf32>
    %89 = arith.divf %87, %88 : vector<8x128xf32>
    %90 = vector.extract_strided_slice %79 {offsets = [0, 128], sizes = [8, 128], strides = [1, 1]} : vector<8x384xf32> to vector<8x128xf32>
    %91 = vector.extract_strided_slice %81 {offsets = [0, 128], sizes = [8, 128], strides = [1, 1]} : vector<8x384xf32> to vector<8x128xf32>
    %92 = arith.addf %90, %91 : vector<8x128xf32>
    %93 = arith.negf %92 : vector<8x128xf32>
    %94 = math.exp %93 : vector<8x128xf32>
    %cst_27 = arith.constant 1.000000e+00 : f32
    %95 = vector.broadcast %cst_27 : f32 to vector<8x128xf32>
    %96 = arith.addf %95, %94 : vector<8x128xf32>
    %97 = arith.divf %95, %96 : vector<8x128xf32>
    %98 = vector.extract_strided_slice %79 {offsets = [0, 256], sizes = [8, 128], strides = [1, 1]} : vector<8x384xf32> to vector<8x128xf32>
    %99 = vector.extract_strided_slice %81 {offsets = [0, 256], sizes = [8, 128], strides = [1, 1]} : vector<8x384xf32> to vector<8x128xf32>
    %100 = arith.mulf %89, %99 : vector<8x128xf32>
    %101 = arith.addf %98, %100 : vector<8x128xf32>
    %102 = math.tanh %101 : vector<8x128xf32>
    %cst_28 = arith.constant 1.000000e+00 : f32
    %103 = vector.broadcast %cst_28 : f32 to vector<8x128xf32>
    %104 = arith.subf %103, %97 : vector<8x128xf32>
    %105 = arith.mulf %104, %102 : vector<8x128xf32>
    %106 = arith.mulf %97, %75 : vector<8x128xf32>
    %107 = arith.addf %105, %106 : vector<8x128xf32>
    %c3_i32 = arith.constant 3 : i32
    %c8_i32_29 = arith.constant 8 : i32
    %108 = arith.muli %c3_i32, %c8_i32_29 : i32
    %109 = tpu.assume_multiple %108, 8 : i32
    %110 = arith.index_cast %109 : i32 to index
    %c0_30 = arith.constant 0 : index
    %111 = vector.load %arg7[%110, %c0_30] : memref<64x384xf32, #tpu.memory_space<vmem>>, vector<8x384xf32>
    %cst_31 = arith.constant dense<0.000000e+00> : vector<8x384xf32>
    %112 = tpu.matmul %107, %7, %cst_31 {dimension_numbers = #tpu.dot_dimension_numbers<[1], [0], [0], [1], [0, 0, 1, 1], [], []>} : vector<8x128xf32>, vector<128x384xf32>, vector<8x384xf32> -> vector<8x384xf32>
    %113 = arith.addf %112, %10 : vector<8x384xf32>
    %114 = vector.extract_strided_slice %111 {offsets = [0, 0], sizes = [8, 128], strides = [1, 1]} : vector<8x384xf32> to vector<8x128xf32>
    %115 = vector.extract_strided_slice %113 {offsets = [0, 0], sizes = [8, 128], strides = [1, 1]} : vector<8x384xf32> to vector<8x128xf32>
    %116 = arith.addf %114, %115 : vector<8x128xf32>
    %117 = arith.negf %116 : vector<8x128xf32>
    %118 = math.exp %117 : vector<8x128xf32>
    %cst_32 = arith.constant 1.000000e+00 : f32
    %119 = vector.broadcast %cst_32 : f32 to vector<8x128xf32>
    %120 = arith.addf %119, %118 : vector<8x128xf32>
    %121 = arith.divf %119, %120 : vector<8x128xf32>
    %122 = vector.extract_strided_slice %111 {offsets = [0, 128], sizes = [8, 128], strides = [1, 1]} : vector<8x384xf32> to vector<8x128xf32>
    %123 = vector.extract_strided_slice %113 {offsets = [0, 128], sizes = [8, 128], strides = [1, 1]} : vector<8x384xf32> to vector<8x128xf32>
    %124 = arith.addf %122, %123 : vector<8x128xf32>
    %125 = arith.negf %124 : vector<8x128xf32>
    %126 = math.exp %125 : vector<8x128xf32>
    %cst_33 = arith.constant 1.000000e+00 : f32
    %127 = vector.broadcast %cst_33 : f32 to vector<8x128xf32>
    %128 = arith.addf %127, %126 : vector<8x128xf32>
    %129 = arith.divf %127, %128 : vector<8x128xf32>
    %130 = vector.extract_strided_slice %111 {offsets = [0, 256], sizes = [8, 128], strides = [1, 1]} : vector<8x384xf32> to vector<8x128xf32>
    %131 = vector.extract_strided_slice %113 {offsets = [0, 256], sizes = [8, 128], strides = [1, 1]} : vector<8x384xf32> to vector<8x128xf32>
    %132 = arith.mulf %121, %131 : vector<8x128xf32>
    %133 = arith.addf %130, %132 : vector<8x128xf32>
    %134 = math.tanh %133 : vector<8x128xf32>
    %cst_34 = arith.constant 1.000000e+00 : f32
    %135 = vector.broadcast %cst_34 : f32 to vector<8x128xf32>
    %136 = arith.subf %135, %129 : vector<8x128xf32>
    %137 = arith.mulf %136, %134 : vector<8x128xf32>
    %138 = arith.mulf %129, %107 : vector<8x128xf32>
    %139 = arith.addf %137, %138 : vector<8x128xf32>
    %c4_i32 = arith.constant 4 : i32
    %c8_i32_35 = arith.constant 8 : i32
    %140 = arith.muli %c4_i32, %c8_i32_35 : i32
    %141 = tpu.assume_multiple %140, 8 : i32
    %142 = arith.index_cast %141 : i32 to index
    %c0_36 = arith.constant 0 : index
    %143 = vector.load %arg7[%142, %c0_36] : memref<64x384xf32, #tpu.memory_space<vmem>>, vector<8x384xf32>
    %cst_37 = arith.constant dense<0.000000e+00> : vector<8x384xf32>
    %144 = tpu.matmul %139, %7, %cst_37 {dimension_numbers = #tpu.dot_dimension_numbers<[1], [0], [0], [1], [0, 0, 1, 1], [], []>} : vector<8x128xf32>, vector<128x384xf32>, vector<8x384xf32> -> vector<8x384xf32>
    %145 = arith.addf %144, %10 : vector<8x384xf32>
    %146 = vector.extract_strided_slice %143 {offsets = [0, 0], sizes = [8, 128], strides = [1, 1]} : vector<8x384xf32> to vector<8x128xf32>
    %147 = vector.extract_strided_slice %145 {offsets = [0, 0], sizes = [8, 128], strides = [1, 1]} : vector<8x384xf32> to vector<8x128xf32>
    %148 = arith.addf %146, %147 : vector<8x128xf32>
    %149 = arith.negf %148 : vector<8x128xf32>
    %150 = math.exp %149 : vector<8x128xf32>
    %cst_38 = arith.constant 1.000000e+00 : f32
    %151 = vector.broadcast %cst_38 : f32 to vector<8x128xf32>
    %152 = arith.addf %151, %150 : vector<8x128xf32>
    %153 = arith.divf %151, %152 : vector<8x128xf32>
    %154 = vector.extract_strided_slice %143 {offsets = [0, 128], sizes = [8, 128], strides = [1, 1]} : vector<8x384xf32> to vector<8x128xf32>
    %155 = vector.extract_strided_slice %145 {offsets = [0, 128], sizes = [8, 128], strides = [1, 1]} : vector<8x384xf32> to vector<8x128xf32>
    %156 = arith.addf %154, %155 : vector<8x128xf32>
    %157 = arith.negf %156 : vector<8x128xf32>
    %158 = math.exp %157 : vector<8x128xf32>
    %cst_39 = arith.constant 1.000000e+00 : f32
    %159 = vector.broadcast %cst_39 : f32 to vector<8x128xf32>
    %160 = arith.addf %159, %158 : vector<8x128xf32>
    %161 = arith.divf %159, %160 : vector<8x128xf32>
    %162 = vector.extract_strided_slice %143 {offsets = [0, 256], sizes = [8, 128], strides = [1, 1]} : vector<8x384xf32> to vector<8x128xf32>
    %163 = vector.extract_strided_slice %145 {offsets = [0, 256], sizes = [8, 128], strides = [1, 1]} : vector<8x384xf32> to vector<8x128xf32>
    %164 = arith.mulf %153, %163 : vector<8x128xf32>
    %165 = arith.addf %162, %164 : vector<8x128xf32>
    %166 = math.tanh %165 : vector<8x128xf32>
    %cst_40 = arith.constant 1.000000e+00 : f32
    %167 = vector.broadcast %cst_40 : f32 to vector<8x128xf32>
    %168 = arith.subf %167, %161 : vector<8x128xf32>
    %169 = arith.mulf %168, %166 : vector<8x128xf32>
    %170 = arith.mulf %161, %139 : vector<8x128xf32>
    %171 = arith.addf %169, %170 : vector<8x128xf32>
    %c5_i32 = arith.constant 5 : i32
    %c8_i32_41 = arith.constant 8 : i32
    %172 = arith.muli %c5_i32, %c8_i32_41 : i32
    %173 = tpu.assume_multiple %172, 8 : i32
    %174 = arith.index_cast %173 : i32 to index
    %c0_42 = arith.constant 0 : index
    %175 = vector.load %arg7[%174, %c0_42] : memref<64x384xf32, #tpu.memory_space<vmem>>, vector<8x384xf32>
    %cst_43 = arith.constant dense<0.000000e+00> : vector<8x384xf32>
    %176 = tpu.matmul %171, %7, %cst_43 {dimension_numbers = #tpu.dot_dimension_numbers<[1], [0], [0], [1], [0, 0, 1, 1], [], []>} : vector<8x128xf32>, vector<128x384xf32>, vector<8x384xf32> -> vector<8x384xf32>
    %177 = arith.addf %176, %10 : vector<8x384xf32>
    %178 = vector.extract_strided_slice %175 {offsets = [0, 0], sizes = [8, 128], strides = [1, 1]} : vector<8x384xf32> to vector<8x128xf32>
    %179 = vector.extract_strided_slice %177 {offsets = [0, 0], sizes = [8, 128], strides = [1, 1]} : vector<8x384xf32> to vector<8x128xf32>
    %180 = arith.addf %178, %179 : vector<8x128xf32>
    %181 = arith.negf %180 : vector<8x128xf32>
    %182 = math.exp %181 : vector<8x128xf32>
    %cst_44 = arith.constant 1.000000e+00 : f32
    %183 = vector.broadcast %cst_44 : f32 to vector<8x128xf32>
    %184 = arith.addf %183, %182 : vector<8x128xf32>
    %185 = arith.divf %183, %184 : vector<8x128xf32>
    %186 = vector.extract_strided_slice %175 {offsets = [0, 128], sizes = [8, 128], strides = [1, 1]} : vector<8x384xf32> to vector<8x128xf32>
    %187 = vector.extract_strided_slice %177 {offsets = [0, 128], sizes = [8, 128], strides = [1, 1]} : vector<8x384xf32> to vector<8x128xf32>
    %188 = arith.addf %186, %187 : vector<8x128xf32>
    %189 = arith.negf %188 : vector<8x128xf32>
    %190 = math.exp %189 : vector<8x128xf32>
    %cst_45 = arith.constant 1.000000e+00 : f32
    %191 = vector.broadcast %cst_45 : f32 to vector<8x128xf32>
    %192 = arith.addf %191, %190 : vector<8x128xf32>
    %193 = arith.divf %191, %192 : vector<8x128xf32>
    %194 = vector.extract_strided_slice %175 {offsets = [0, 256], sizes = [8, 128], strides = [1, 1]} : vector<8x384xf32> to vector<8x128xf32>
    %195 = vector.extract_strided_slice %177 {offsets = [0, 256], sizes = [8, 128], strides = [1, 1]} : vector<8x384xf32> to vector<8x128xf32>
    %196 = arith.mulf %185, %195 : vector<8x128xf32>
    %197 = arith.addf %194, %196 : vector<8x128xf32>
    %198 = math.tanh %197 : vector<8x128xf32>
    %cst_46 = arith.constant 1.000000e+00 : f32
    %199 = vector.broadcast %cst_46 : f32 to vector<8x128xf32>
    %200 = arith.subf %199, %193 : vector<8x128xf32>
    %201 = arith.mulf %200, %198 : vector<8x128xf32>
    %202 = arith.mulf %193, %171 : vector<8x128xf32>
    %203 = arith.addf %201, %202 : vector<8x128xf32>
    %c6_i32 = arith.constant 6 : i32
    %c8_i32_47 = arith.constant 8 : i32
    %204 = arith.muli %c6_i32, %c8_i32_47 : i32
    %205 = tpu.assume_multiple %204, 8 : i32
    %206 = arith.index_cast %205 : i32 to index
    %c0_48 = arith.constant 0 : index
    %207 = vector.load %arg7[%206, %c0_48] : memref<64x384xf32, #tpu.memory_space<vmem>>, vector<8x384xf32>
    %cst_49 = arith.constant dense<0.000000e+00> : vector<8x384xf32>
    %208 = tpu.matmul %203, %7, %cst_49 {dimension_numbers = #tpu.dot_dimension_numbers<[1], [0], [0], [1], [0, 0, 1, 1], [], []>} : vector<8x128xf32>, vector<128x384xf32>, vector<8x384xf32> -> vector<8x384xf32>
    %209 = arith.addf %208, %10 : vector<8x384xf32>
    %210 = vector.extract_strided_slice %207 {offsets = [0, 0], sizes = [8, 128], strides = [1, 1]} : vector<8x384xf32> to vector<8x128xf32>
    %211 = vector.extract_strided_slice %209 {offsets = [0, 0], sizes = [8, 128], strides = [1, 1]} : vector<8x384xf32> to vector<8x128xf32>
    %212 = arith.addf %210, %211 : vector<8x128xf32>
    %213 = arith.negf %212 : vector<8x128xf32>
    %214 = math.exp %213 : vector<8x128xf32>
    %cst_50 = arith.constant 1.000000e+00 : f32
    %215 = vector.broadcast %cst_50 : f32 to vector<8x128xf32>
    %216 = arith.addf %215, %214 : vector<8x128xf32>
    %217 = arith.divf %215, %216 : vector<8x128xf32>
    %218 = vector.extract_strided_slice %207 {offsets = [0, 128], sizes = [8, 128], strides = [1, 1]} : vector<8x384xf32> to vector<8x128xf32>
    %219 = vector.extract_strided_slice %209 {offsets = [0, 128], sizes = [8, 128], strides = [1, 1]} : vector<8x384xf32> to vector<8x128xf32>
    %220 = arith.addf %218, %219 : vector<8x128xf32>
    %221 = arith.negf %220 : vector<8x128xf32>
    %222 = math.exp %221 : vector<8x128xf32>
    %cst_51 = arith.constant 1.000000e+00 : f32
    %223 = vector.broadcast %cst_51 : f32 to vector<8x128xf32>
    %224 = arith.addf %223, %222 : vector<8x128xf32>
    %225 = arith.divf %223, %224 : vector<8x128xf32>
    %226 = vector.extract_strided_slice %207 {offsets = [0, 256], sizes = [8, 128], strides = [1, 1]} : vector<8x384xf32> to vector<8x128xf32>
    %227 = vector.extract_strided_slice %209 {offsets = [0, 256], sizes = [8, 128], strides = [1, 1]} : vector<8x384xf32> to vector<8x128xf32>
    %228 = arith.mulf %217, %227 : vector<8x128xf32>
    %229 = arith.addf %226, %228 : vector<8x128xf32>
    %230 = math.tanh %229 : vector<8x128xf32>
    %cst_52 = arith.constant 1.000000e+00 : f32
    %231 = vector.broadcast %cst_52 : f32 to vector<8x128xf32>
    %232 = arith.subf %231, %225 : vector<8x128xf32>
    %233 = arith.mulf %232, %230 : vector<8x128xf32>
    %234 = arith.mulf %225, %203 : vector<8x128xf32>
    %235 = arith.addf %233, %234 : vector<8x128xf32>
    %c7_i32 = arith.constant 7 : i32
    %c8_i32_53 = arith.constant 8 : i32
    %236 = arith.muli %c7_i32, %c8_i32_53 : i32
    %237 = tpu.assume_multiple %236, 8 : i32
    %238 = arith.index_cast %237 : i32 to index
    %c0_54 = arith.constant 0 : index
    %239 = vector.load %arg7[%238, %c0_54] : memref<64x384xf32, #tpu.memory_space<vmem>>, vector<8x384xf32>
    %cst_55 = arith.constant dense<0.000000e+00> : vector<8x384xf32>
    %240 = tpu.matmul %235, %7, %cst_55 {dimension_numbers = #tpu.dot_dimension_numbers<[1], [0], [0], [1], [0, 0, 1, 1], [], []>} : vector<8x128xf32>, vector<128x384xf32>, vector<8x384xf32> -> vector<8x384xf32>
    %241 = arith.addf %240, %10 : vector<8x384xf32>
    %242 = vector.extract_strided_slice %239 {offsets = [0, 0], sizes = [8, 128], strides = [1, 1]} : vector<8x384xf32> to vector<8x128xf32>
    %243 = vector.extract_strided_slice %241 {offsets = [0, 0], sizes = [8, 128], strides = [1, 1]} : vector<8x384xf32> to vector<8x128xf32>
    %244 = arith.addf %242, %243 : vector<8x128xf32>
    %245 = arith.negf %244 : vector<8x128xf32>
    %246 = math.exp %245 : vector<8x128xf32>
    %cst_56 = arith.constant 1.000000e+00 : f32
    %247 = vector.broadcast %cst_56 : f32 to vector<8x128xf32>
    %248 = arith.addf %247, %246 : vector<8x128xf32>
    %249 = arith.divf %247, %248 : vector<8x128xf32>
    %250 = vector.extract_strided_slice %239 {offsets = [0, 128], sizes = [8, 128], strides = [1, 1]} : vector<8x384xf32> to vector<8x128xf32>
    %251 = vector.extract_strided_slice %241 {offsets = [0, 128], sizes = [8, 128], strides = [1, 1]} : vector<8x384xf32> to vector<8x128xf32>
    %252 = arith.addf %250, %251 : vector<8x128xf32>
    %253 = arith.negf %252 : vector<8x128xf32>
    %254 = math.exp %253 : vector<8x128xf32>
    %cst_57 = arith.constant 1.000000e+00 : f32
    %255 = vector.broadcast %cst_57 : f32 to vector<8x128xf32>
    %256 = arith.addf %255, %254 : vector<8x128xf32>
    %257 = arith.divf %255, %256 : vector<8x128xf32>
    %258 = vector.extract_strided_slice %239 {offsets = [0, 256], sizes = [8, 128], strides = [1, 1]} : vector<8x384xf32> to vector<8x128xf32>
    %259 = vector.extract_strided_slice %241 {offsets = [0, 256], sizes = [8, 128], strides = [1, 1]} : vector<8x384xf32> to vector<8x128xf32>
    %260 = arith.mulf %249, %259 : vector<8x128xf32>
    %261 = arith.addf %258, %260 : vector<8x128xf32>
    %262 = math.tanh %261 : vector<8x128xf32>
    %cst_58 = arith.constant 1.000000e+00 : f32
    %263 = vector.broadcast %cst_58 : f32 to vector<8x128xf32>
    %264 = arith.subf %263, %257 : vector<8x128xf32>
    %265 = arith.mulf %264, %262 : vector<8x128xf32>
    %266 = arith.mulf %257, %235 : vector<8x128xf32>
    %267 = arith.addf %265, %266 : vector<8x128xf32>
    %c8_i32_59 = arith.constant 8 : i32
    %c0_60 = arith.constant 0 : index
    %c0_61 = arith.constant 0 : index
    %268 = vector.load %arg6[%c0_60, %c0_61] : memref<8x128xf32, #tpu.memory_space<vmem>>, vector<8x128xf32>
    tpu.vector_store %arg6[%c0_60, %c0_61], %267 {strides = array<i32>} : memref<8x128xf32, #tpu.memory_space<vmem>>, vector<8x128xf32>,
    return
  }
  func.func @transform_0(%arg0: i32) -> (i32, i32) {
    %c0_i32 = arith.constant 0 : i32
    %c0_i32_0 = arith.constant 0 : i32
    %c0_i32_1 = arith.constant 0 : i32
    return %c0_i32, %c0_i32_0 : i32, i32
  }
  func.func @transform_1(%arg0: i32) -> (i32, i32) {
    %c0_i32 = arith.constant 0 : i32
    %c0_i32_0 = arith.constant 0 : i32
    %c0_i32_1 = arith.constant 0 : i32
    return %c0_i32, %c0_i32_0 : i32, i32
  }
  func.func @transform_2(%arg0: i32) -> (i32, i32) {
    %c0_i32 = arith.constant 0 : i32
    %c0_i32_0 = arith.constant 0 : i32
    %c0_i32_1 = arith.constant 0 : i32
    return %c0_i32, %c0_i32_0 : i32, i32
  }
  func.func @transform_3(%arg0: i32) -> (i32, i32) {
    %c0_i32 = arith.constant 0 : i32
    %c0_i32_0 = arith.constant 0 : i32
    %c0_i32_1 = arith.constant 0 : i32
    return %c0_i32, %c0_i32_0 : i32, i32
  }
  func.func @transform_4(%arg0: i32) -> (i32, i32) {
    %c0_i32 = arith.constant 0 : i32
    %c0_i32_0 = arith.constant 0 : i32
    %c0_i32_1 = arith.constant 0 : i32
    return %c0_i32, %c0_i32_0 : i32, i32
  }
  func.func @transform_5(%arg0: i32) -> (i32, i32) {
    %c0_i32 = arith.constant 0 : i32
    %c0_i32_0 = arith.constant 0 : i32
    %c0_i32_1 = arith.constant 0 : i32
    return %c0_i32, %c0_i32_0 : i32, i32
  }
}

module attributes {stable_mosaic.version = 11 : i64} {
  func.func @decoder_fused_kernel(%arg0: i32, %arg1: memref<8x1xi32, #tpu.memory_space<vmem>>, %arg2: memref<8x128xf32, #tpu.memory_space<vmem>>, %arg3: memref<128x128xf32, #tpu.memory_space<vmem>>, %arg4: memref<128x384xf32, #tpu.memory_space<vmem>>, %arg5: memref<128x384xf32, #tpu.memory_space<vmem>>, %arg6: memref<128x384xf32, #tpu.memory_space<vmem>>, %arg7: memref<1x384xf32, #tpu.memory_space<vmem>>, %arg8: memref<1x384xf32, #tpu.memory_space<vmem>>, %arg9: memref<128x128xf32, #tpu.memory_space<vmem>>, %arg10: memref<128x128xf32, #tpu.memory_space<vmem>>, %arg11: memref<128x128xf32, #tpu.memory_space<vmem>>, %arg12: memref<1x128xf32, #tpu.memory_space<vmem>>, %arg13: memref<7x8x128xf32, #tpu.memory_space<vmem>>, %arg14: memref<7x8x128xf32, #tpu.memory_space<vmem>>) attributes {dimension_semantics = [#tpu.dimension_semantics<arbitrary>], iteration_bounds = array<i64: 1>, scalar_prefetch = 0 : i64, scratch_operands = 0 : i64, tpu.core_type = #tpu.core_type<tc>, window_params = [{pipeline_mode = #tpu.pipeline_mode<synchronous>, transform_indices = @transform_0, window_bounds = array<i64: 8, 1>}, {pipeline_mode = #tpu.pipeline_mode<synchronous>, transform_indices = @transform_1, window_bounds = array<i64: 8, 128>}, {pipeline_mode = #tpu.pipeline_mode<synchronous>, transform_indices = @transform_2, window_bounds = array<i64: 128, 128>}, {pipeline_mode = #tpu.pipeline_mode<synchronous>, transform_indices = @transform_3, window_bounds = array<i64: 128, 384>}, {pipeline_mode = #tpu.pipeline_mode<synchronous>, transform_indices = @transform_4, window_bounds = array<i64: 128, 384>}, {pipeline_mode = #tpu.pipeline_mode<synchronous>, transform_indices = @transform_5, window_bounds = array<i64: 128, 384>}, {pipeline_mode = #tpu.pipeline_mode<synchronous>, transform_indices = @transform_6, window_bounds = array<i64: 1, 384>}, {pipeline_mode = #tpu.pipeline_mode<synchronous>, transform_indices = @transform_7, window_bounds = array<i64: 1, 384>}, {pipeline_mode = #tpu.pipeline_mode<synchronous>, transform_indices = @transform_8, window_bounds = array<i64: 128, 128>}, {pipeline_mode = #tpu.pipeline_mode<synchronous>, transform_indices = @transform_9, window_bounds = array<i64: 128, 128>}, {pipeline_mode = #tpu.pipeline_mode<synchronous>, transform_indices = @transform_10, window_bounds = array<i64: 128, 128>}, {pipeline_mode = #tpu.pipeline_mode<synchronous>, transform_indices = @transform_11, window_bounds = array<i64: 1, 128>}, {pipeline_mode = #tpu.pipeline_mode<synchronous>, transform_indices = @transform_12, window_bounds = array<i64: 7, 8, 128>}, {pipeline_mode = #tpu.pipeline_mode<synchronous>, transform_indices = @transform_13, window_bounds = array<i64: 7, 8, 128>}]} {
    %c0 = arith.constant 0 : index
    %c0_0 = arith.constant 0 : index
    %0 = vector.load %arg2[%c0, %c0_0] : memref<8x128xf32, #tpu.memory_space<vmem>>, vector<8x128xf32>
    %c0_1 = arith.constant 0 : index
    %c0_2 = arith.constant 0 : index
    %1 = vector.load %arg5[%c0_1, %c0_2] : memref<128x384xf32, #tpu.memory_space<vmem>>, vector<128x384xf32>
    %cst = arith.constant dense<0.000000e+00> : vector<8x384xf32>
    %2 = tpu.matmul %0, %1, %cst {dimension_numbers = #tpu.dot_dimension_numbers<[1], [0], [0], [1], [0, 0, 1, 1], [], []>} : vector<8x128xf32>, vector<128x384xf32>, vector<8x384xf32> -> vector<8x384xf32>
    %c0_3 = arith.constant 0 : index
    %c0_4 = arith.constant 0 : index
    %3 = vector.load %arg7[%c0_3, %c0_4] : memref<1x384xf32, #tpu.memory_space<vmem>>, vector<1x384xf32>
    %4 = vector.broadcast %3 : vector<1x384xf32> to vector<8x384xf32>
    %5 = arith.addf %2, %4 : vector<8x384xf32>
    %c0_5 = arith.constant 0 : index
    %c0_6 = arith.constant 0 : index
    %6 = vector.load %arg11[%c0_5, %c0_6] : memref<128x128xf32, #tpu.memory_space<vmem>>, vector<128x128xf32>
    %cst_7 = arith.constant dense<0.000000e+00> : vector<8x128xf32>
    %7 = tpu.matmul %0, %6, %cst_7 {dimension_numbers = #tpu.dot_dimension_numbers<[1], [0], [0], [1], [0, 0, 1, 1], [], []>} : vector<8x128xf32>, vector<128x128xf32>, vector<8x128xf32> -> vector<8x128xf32>
    %c0_8 = arith.constant 0 : index
    %c0_9 = arith.constant 0 : index
    %8 = vector.load %arg12[%c0_8, %c0_9] : memref<1x128xf32, #tpu.memory_space<vmem>>, vector<1x128xf32>
    %9 = vector.broadcast %8 : vector<1x128xf32> to vector<8x128xf32>
    %10 = arith.addf %7, %9 : vector<8x128xf32>
    %c0_10 = arith.constant 0 : index
    %c0_11 = arith.constant 0 : index
    %11 = vector.load %arg3[%c0_10, %c0_11] : memref<128x128xf32, #tpu.memory_space<vmem>>, vector<128x128xf32>
    %c0_12 = arith.constant 0 : index
    %c0_13 = arith.constant 0 : index
    %12 = vector.load %arg4[%c0_12, %c0_13] : memref<128x384xf32, #tpu.memory_space<vmem>>, vector<128x384xf32>
    %c0_14 = arith.constant 0 : index
    %c0_15 = arith.constant 0 : index
    %13 = vector.load %arg6[%c0_14, %c0_15] : memref<128x384xf32, #tpu.memory_space<vmem>>, vector<128x384xf32>
    %c0_16 = arith.constant 0 : index
    %c0_17 = arith.constant 0 : index
    %14 = vector.load %arg8[%c0_16, %c0_17] : memref<1x384xf32, #tpu.memory_space<vmem>>, vector<1x384xf32>
    %15 = vector.shape_cast %14 : vector<1x384xf32> to vector<1x384xf32>
    %16 = vector.broadcast %15 : vector<1x384xf32> to vector<8x384xf32>
    %c0_18 = arith.constant 0 : index
    %c0_19 = arith.constant 0 : index
    %17 = vector.load %arg9[%c0_18, %c0_19] : memref<128x128xf32, #tpu.memory_space<vmem>>, vector<128x128xf32>
    %c0_20 = arith.constant 0 : index
    %c0_21 = arith.constant 0 : index
    %18 = vector.load %arg10[%c0_20, %c0_21] : memref<128x128xf32, #tpu.memory_space<vmem>>, vector<128x128xf32>
    %c0_22 = arith.constant 0 : index
    %c0_23 = arith.constant 0 : index
    %19 = vector.load %arg1[%c0_22, %c0_23] : memref<8x1xi32, #tpu.memory_space<vmem>>, vector<8x1xi32>
    %c0_i32 = arith.constant 0 : i32
    %20 = tpu.iota {dimensions = array<i32: 1>} : vector<8x128xi32>
    %21 = vector.broadcast %19 : vector<8x1xi32> to vector<8x128xi32>
    %22 = arith.cmpi eq, %21, %20 : vector<8x128xi32>
    %23 = arith.extui %22 : vector<8x128xi1> to vector<8x128xi32>
    %24 = arith.sitofp %23 : vector<8x128xi32> to vector<8x128xf32>
    %cst_24 = arith.constant dense<0.000000e+00> : vector<8x128xf32>
    %25 = tpu.matmul %24, %11, %cst_24 {dimension_numbers = #tpu.dot_dimension_numbers<[1], [0], [0], [1], [0, 0, 1, 1], [], []>} : vector<8x128xf32>, vector<128x128xf32>, vector<8x128xf32> -> vector<8x128xf32>
    %cst_25 = arith.constant dense<0.000000e+00> : vector<8x384xf32>
    %26 = tpu.matmul %25, %12, %cst_25 {dimension_numbers = #tpu.dot_dimension_numbers<[1], [0], [0], [1], [0, 0, 1, 1], [], []>} : vector<8x128xf32>, vector<128x384xf32>, vector<8x384xf32> -> vector<8x384xf32>
    %27 = arith.addf %26, %5 : vector<8x384xf32>
    %cst_26 = arith.constant dense<0.000000e+00> : vector<8x384xf32>
    %28 = tpu.matmul %0, %13, %cst_26 {dimension_numbers = #tpu.dot_dimension_numbers<[1], [0], [0], [1], [0, 0, 1, 1], [], []>} : vector<8x128xf32>, vector<128x384xf32>, vector<8x384xf32> -> vector<8x384xf32>
    %29 = arith.addf %28, %16 : vector<8x384xf32>
    %30 = vector.extract_strided_slice %27 {offsets = [0, 0], sizes = [8, 128], strides = [1, 1]} : vector<8x384xf32> to vector<8x128xf32>
    %31 = vector.extract_strided_slice %29 {offsets = [0, 0], sizes = [8, 128], strides = [1, 1]} : vector<8x384xf32> to vector<8x128xf32>
    %32 = arith.addf %30, %31 : vector<8x128xf32>
    %33 = arith.negf %32 : vector<8x128xf32>
    %34 = math.exp %33 : vector<8x128xf32>
    %cst_27 = arith.constant 1.000000e+00 : f32
    %35 = vector.broadcast %cst_27 : f32 to vector<8x128xf32>
    %36 = arith.addf %35, %34 : vector<8x128xf32>
    %37 = arith.divf %35, %36 : vector<8x128xf32>
    %38 = vector.extract_strided_slice %27 {offsets = [0, 128], sizes = [8, 128], strides = [1, 1]} : vector<8x384xf32> to vector<8x128xf32>
    %39 = vector.extract_strided_slice %29 {offsets = [0, 128], sizes = [8, 128], strides = [1, 1]} : vector<8x384xf32> to vector<8x128xf32>
    %40 = arith.addf %38, %39 : vector<8x128xf32>
    %41 = arith.negf %40 : vector<8x128xf32>
    %42 = math.exp %41 : vector<8x128xf32>
    %cst_28 = arith.constant 1.000000e+00 : f32
    %43 = vector.broadcast %cst_28 : f32 to vector<8x128xf32>
    %44 = arith.addf %43, %42 : vector<8x128xf32>
    %45 = arith.divf %43, %44 : vector<8x128xf32>
    %46 = vector.extract_strided_slice %27 {offsets = [0, 256], sizes = [8, 128], strides = [1, 1]} : vector<8x384xf32> to vector<8x128xf32>
    %47 = vector.extract_strided_slice %29 {offsets = [0, 256], sizes = [8, 128], strides = [1, 1]} : vector<8x384xf32> to vector<8x128xf32>
    %48 = arith.mulf %37, %47 : vector<8x128xf32>
    %49 = arith.addf %46, %48 : vector<8x128xf32>
    %50 = math.tanh %49 : vector<8x128xf32>
    %cst_29 = arith.constant 1.000000e+00 : f32
    %51 = vector.broadcast %cst_29 : f32 to vector<8x128xf32>
    %52 = arith.subf %51, %45 : vector<8x128xf32>
    %53 = arith.mulf %52, %50 : vector<8x128xf32>
    %54 = arith.mulf %45, %0 : vector<8x128xf32>
    %55 = arith.addf %53, %54 : vector<8x128xf32>
    %cst_30 = arith.constant dense<0.000000e+00> : vector<8x128xf32>
    %56 = tpu.matmul %25, %17, %cst_30 {dimension_numbers = #tpu.dot_dimension_numbers<[1], [0], [0], [1], [0, 0, 1, 1], [], []>} : vector<8x128xf32>, vector<128x128xf32>, vector<8x128xf32> -> vector<8x128xf32>
    %cst_31 = arith.constant dense<0.000000e+00> : vector<8x128xf32>
    %57 = tpu.matmul %55, %18, %cst_31 {dimension_numbers = #tpu.dot_dimension_numbers<[1], [0], [0], [1], [0, 0, 1, 1], [], []>} : vector<8x128xf32>, vector<128x128xf32>, vector<8x128xf32> -> vector<8x128xf32>
    %58 = arith.addf %56, %57 : vector<8x128xf32>
    %59 = arith.addf %58, %10 : vector<8x128xf32>
    %60 = arith.index_cast %c0_i32 : i32 to index
    %c0_32 = arith.constant 0 : index
    %c0_33 = arith.constant 0 : index
    %61 = vector.load %arg14[%60, %c0_32, %c0_33] : memref<7x8x128xf32, #tpu.memory_space<vmem>>, vector<1x8x128xf32>
    %62 = vector.shape_cast %61 : vector<1x8x128xf32> to vector<8x128xf32>
    %63 = vector.shape_cast %59 : vector<8x128xf32> to vector<1x8x128xf32>
    tpu.vector_store %arg14[%60, %c0_32, %c0_33], %63 {strides = array<i32>} : memref<7x8x128xf32, #tpu.memory_space<vmem>>, vector<1x8x128xf32>,
    %64 = arith.index_cast %c0_i32 : i32 to index
    %c0_34 = arith.constant 0 : index
    %c0_35 = arith.constant 0 : index
    %65 = vector.load %arg13[%64, %c0_34, %c0_35] : memref<7x8x128xf32, #tpu.memory_space<vmem>>, vector<1x8x128xf32>
    %66 = vector.shape_cast %65 : vector<1x8x128xf32> to vector<8x128xf32>
    %67 = arith.addf %59, %66 : vector<8x128xf32>
    %cst_36 = arith.constant dense<0xFF800000> : vector<8xf32>
    %68 = vector.multi_reduction <maximumf>, %67, %cst_36 [1] : vector<8x128xf32> to vector<8xf32>
    %69 = vector.shape_cast %68 : vector<8xf32> to vector<8x1xf32>
    %70 = tpu.iota {dimensions = array<i32: 1>} : vector<8x128xi32>
    %71 = vector.broadcast %69 : vector<8x1xf32> to vector<8x128xf32>
    %72 = arith.cmpf oeq, %67, %71 : vector<8x128xf32>
    %c128_i32 = arith.constant 128 : i32
    %73 = vector.broadcast %c128_i32 : i32 to vector<8x128xi32>
    %74 = arith.select %72, %70, %73 : vector<8x128xi1>, vector<8x128xi32>
    %cst_37 = arith.constant dense<2147483647> : vector<8xi32>
    %75 = vector.multi_reduction <minsi>, %74, %cst_37 [1] : vector<8x128xi32> to vector<8xi32>
    %76 = vector.shape_cast %75 : vector<8xi32> to vector<8x1xi32>
    %c1_i32 = arith.constant 1 : i32
    %77 = tpu.iota {dimensions = array<i32: 1>} : vector<8x128xi32>
    %78 = vector.broadcast %76 : vector<8x1xi32> to vector<8x128xi32>
    %79 = arith.cmpi eq, %78, %77 : vector<8x128xi32>
    %80 = arith.extui %79 : vector<8x128xi1> to vector<8x128xi32>
    %81 = arith.sitofp %80 : vector<8x128xi32> to vector<8x128xf32>
    %cst_38 = arith.constant dense<0.000000e+00> : vector<8x128xf32>
    %82 = tpu.matmul %81, %11, %cst_38 {dimension_numbers = #tpu.dot_dimension_numbers<[1], [0], [0], [1], [0, 0, 1, 1], [], []>} : vector<8x128xf32>, vector<128x128xf32>, vector<8x128xf32> -> vector<8x128xf32>
    %cst_39 = arith.constant dense<0.000000e+00> : vector<8x384xf32>
    %83 = tpu.matmul %82, %12, %cst_39 {dimension_numbers = #tpu.dot_dimension_numbers<[1], [0], [0], [1], [0, 0, 1, 1], [], []>} : vector<8x128xf32>, vector<128x384xf32>, vector<8x384xf32> -> vector<8x384xf32>
    %84 = arith.addf %83, %5 : vector<8x384xf32>
    %cst_40 = arith.constant dense<0.000000e+00> : vector<8x384xf32>
    %85 = tpu.matmul %55, %13, %cst_40 {dimension_numbers = #tpu.dot_dimension_numbers<[1], [0], [0], [1], [0, 0, 1, 1], [], []>} : vector<8x128xf32>, vector<128x384xf32>, vector<8x384xf32> -> vector<8x384xf32>
    %86 = arith.addf %85, %16 : vector<8x384xf32>
    %87 = vector.extract_strided_slice %84 {offsets = [0, 0], sizes = [8, 128], strides = [1, 1]} : vector<8x384xf32> to vector<8x128xf32>
    %88 = vector.extract_strided_slice %86 {offsets = [0, 0], sizes = [8, 128], strides = [1, 1]} : vector<8x384xf32> to vector<8x128xf32>
    %89 = arith.addf %87, %88 : vector<8x128xf32>
    %90 = arith.negf %89 : vector<8x128xf32>
    %91 = math.exp %90 : vector<8x128xf32>
    %cst_41 = arith.constant 1.000000e+00 : f32
    %92 = vector.broadcast %cst_41 : f32 to vector<8x128xf32>
    %93 = arith.addf %92, %91 : vector<8x128xf32>
    %94 = arith.divf %92, %93 : vector<8x128xf32>
    %95 = vector.extract_strided_slice %84 {offsets = [0, 128], sizes = [8, 128], strides = [1, 1]} : vector<8x384xf32> to vector<8x128xf32>
    %96 = vector.extract_strided_slice %86 {offsets = [0, 128], sizes = [8, 128], strides = [1, 1]} : vector<8x384xf32> to vector<8x128xf32>
    %97 = arith.addf %95, %96 : vector<8x128xf32>
    %98 = arith.negf %97 : vector<8x128xf32>
    %99 = math.exp %98 : vector<8x128xf32>
    %cst_42 = arith.constant 1.000000e+00 : f32
    %100 = vector.broadcast %cst_42 : f32 to vector<8x128xf32>
    %101 = arith.addf %100, %99 : vector<8x128xf32>
    %102 = arith.divf %100, %101 : vector<8x128xf32>
    %103 = vector.extract_strided_slice %84 {offsets = [0, 256], sizes = [8, 128], strides = [1, 1]} : vector<8x384xf32> to vector<8x128xf32>
    %104 = vector.extract_strided_slice %86 {offsets = [0, 256], sizes = [8, 128], strides = [1, 1]} : vector<8x384xf32> to vector<8x128xf32>
    %105 = arith.mulf %94, %104 : vector<8x128xf32>
    %106 = arith.addf %103, %105 : vector<8x128xf32>
    %107 = math.tanh %106 : vector<8x128xf32>
    %cst_43 = arith.constant 1.000000e+00 : f32
    %108 = vector.broadcast %cst_43 : f32 to vector<8x128xf32>
    %109 = arith.subf %108, %102 : vector<8x128xf32>
    %110 = arith.mulf %109, %107 : vector<8x128xf32>
    %111 = arith.mulf %102, %55 : vector<8x128xf32>
    %112 = arith.addf %110, %111 : vector<8x128xf32>
    %cst_44 = arith.constant dense<0.000000e+00> : vector<8x128xf32>
    %113 = tpu.matmul %82, %17, %cst_44 {dimension_numbers = #tpu.dot_dimension_numbers<[1], [0], [0], [1], [0, 0, 1, 1], [], []>} : vector<8x128xf32>, vector<128x128xf32>, vector<8x128xf32> -> vector<8x128xf32>
    %cst_45 = arith.constant dense<0.000000e+00> : vector<8x128xf32>
    %114 = tpu.matmul %112, %18, %cst_45 {dimension_numbers = #tpu.dot_dimension_numbers<[1], [0], [0], [1], [0, 0, 1, 1], [], []>} : vector<8x128xf32>, vector<128x128xf32>, vector<8x128xf32> -> vector<8x128xf32>
    %115 = arith.addf %113, %114 : vector<8x128xf32>
    %116 = arith.addf %115, %10 : vector<8x128xf32>
    %117 = arith.index_cast %c1_i32 : i32 to index
    %c0_46 = arith.constant 0 : index
    %c0_47 = arith.constant 0 : index
    %118 = vector.load %arg14[%117, %c0_46, %c0_47] : memref<7x8x128xf32, #tpu.memory_space<vmem>>, vector<1x8x128xf32>
    %119 = vector.shape_cast %118 : vector<1x8x128xf32> to vector<8x128xf32>
    %120 = vector.shape_cast %116 : vector<8x128xf32> to vector<1x8x128xf32>
    tpu.vector_store %arg14[%117, %c0_46, %c0_47], %120 {strides = array<i32>} : memref<7x8x128xf32, #tpu.memory_space<vmem>>, vector<1x8x128xf32>,
    %121 = arith.index_cast %c1_i32 : i32 to index
    %c0_48 = arith.constant 0 : index
    %c0_49 = arith.constant 0 : index
    %122 = vector.load %arg13[%121, %c0_48, %c0_49] : memref<7x8x128xf32, #tpu.memory_space<vmem>>, vector<1x8x128xf32>
    %123 = vector.shape_cast %122 : vector<1x8x128xf32> to vector<8x128xf32>
    %124 = arith.addf %116, %123 : vector<8x128xf32>
    %cst_50 = arith.constant dense<0xFF800000> : vector<8xf32>
    %125 = vector.multi_reduction <maximumf>, %124, %cst_50 [1] : vector<8x128xf32> to vector<8xf32>
    %126 = vector.shape_cast %125 : vector<8xf32> to vector<8x1xf32>
    %127 = tpu.iota {dimensions = array<i32: 1>} : vector<8x128xi32>
    %128 = vector.broadcast %126 : vector<8x1xf32> to vector<8x128xf32>
    %129 = arith.cmpf oeq, %124, %128 : vector<8x128xf32>
    %c128_i32_51 = arith.constant 128 : i32
    %130 = vector.broadcast %c128_i32_51 : i32 to vector<8x128xi32>
    %131 = arith.select %129, %127, %130 : vector<8x128xi1>, vector<8x128xi32>
    %cst_52 = arith.constant dense<2147483647> : vector<8xi32>
    %132 = vector.multi_reduction <minsi>, %131, %cst_52 [1] : vector<8x128xi32> to vector<8xi32>
    %133 = vector.shape_cast %132 : vector<8xi32> to vector<8x1xi32>
    %c2_i32 = arith.constant 2 : i32
    %134 = tpu.iota {dimensions = array<i32: 1>} : vector<8x128xi32>
    %135 = vector.broadcast %133 : vector<8x1xi32> to vector<8x128xi32>
    %136 = arith.cmpi eq, %135, %134 : vector<8x128xi32>
    %137 = arith.extui %136 : vector<8x128xi1> to vector<8x128xi32>
    %138 = arith.sitofp %137 : vector<8x128xi32> to vector<8x128xf32>
    %cst_53 = arith.constant dense<0.000000e+00> : vector<8x128xf32>
    %139 = tpu.matmul %138, %11, %cst_53 {dimension_numbers = #tpu.dot_dimension_numbers<[1], [0], [0], [1], [0, 0, 1, 1], [], []>} : vector<8x128xf32>, vector<128x128xf32>, vector<8x128xf32> -> vector<8x128xf32>
    %cst_54 = arith.constant dense<0.000000e+00> : vector<8x384xf32>
    %140 = tpu.matmul %139, %12, %cst_54 {dimension_numbers = #tpu.dot_dimension_numbers<[1], [0], [0], [1], [0, 0, 1, 1], [], []>} : vector<8x128xf32>, vector<128x384xf32>, vector<8x384xf32> -> vector<8x384xf32>
    %141 = arith.addf %140, %5 : vector<8x384xf32>
    %cst_55 = arith.constant dense<0.000000e+00> : vector<8x384xf32>
    %142 = tpu.matmul %112, %13, %cst_55 {dimension_numbers = #tpu.dot_dimension_numbers<[1], [0], [0], [1], [0, 0, 1, 1], [], []>} : vector<8x128xf32>, vector<128x384xf32>, vector<8x384xf32> -> vector<8x384xf32>
    %143 = arith.addf %142, %16 : vector<8x384xf32>
    %144 = vector.extract_strided_slice %141 {offsets = [0, 0], sizes = [8, 128], strides = [1, 1]} : vector<8x384xf32> to vector<8x128xf32>
    %145 = vector.extract_strided_slice %143 {offsets = [0, 0], sizes = [8, 128], strides = [1, 1]} : vector<8x384xf32> to vector<8x128xf32>
    %146 = arith.addf %144, %145 : vector<8x128xf32>
    %147 = arith.negf %146 : vector<8x128xf32>
    %148 = math.exp %147 : vector<8x128xf32>
    %cst_56 = arith.constant 1.000000e+00 : f32
    %149 = vector.broadcast %cst_56 : f32 to vector<8x128xf32>
    %150 = arith.addf %149, %148 : vector<8x128xf32>
    %151 = arith.divf %149, %150 : vector<8x128xf32>
    %152 = vector.extract_strided_slice %141 {offsets = [0, 128], sizes = [8, 128], strides = [1, 1]} : vector<8x384xf32> to vector<8x128xf32>
    %153 = vector.extract_strided_slice %143 {offsets = [0, 128], sizes = [8, 128], strides = [1, 1]} : vector<8x384xf32> to vector<8x128xf32>
    %154 = arith.addf %152, %153 : vector<8x128xf32>
    %155 = arith.negf %154 : vector<8x128xf32>
    %156 = math.exp %155 : vector<8x128xf32>
    %cst_57 = arith.constant 1.000000e+00 : f32
    %157 = vector.broadcast %cst_57 : f32 to vector<8x128xf32>
    %158 = arith.addf %157, %156 : vector<8x128xf32>
    %159 = arith.divf %157, %158 : vector<8x128xf32>
    %160 = vector.extract_strided_slice %141 {offsets = [0, 256], sizes = [8, 128], strides = [1, 1]} : vector<8x384xf32> to vector<8x128xf32>
    %161 = vector.extract_strided_slice %143 {offsets = [0, 256], sizes = [8, 128], strides = [1, 1]} : vector<8x384xf32> to vector<8x128xf32>
    %162 = arith.mulf %151, %161 : vector<8x128xf32>
    %163 = arith.addf %160, %162 : vector<8x128xf32>
    %164 = math.tanh %163 : vector<8x128xf32>
    %cst_58 = arith.constant 1.000000e+00 : f32
    %165 = vector.broadcast %cst_58 : f32 to vector<8x128xf32>
    %166 = arith.subf %165, %159 : vector<8x128xf32>
    %167 = arith.mulf %166, %164 : vector<8x128xf32>
    %168 = arith.mulf %159, %112 : vector<8x128xf32>
    %169 = arith.addf %167, %168 : vector<8x128xf32>
    %cst_59 = arith.constant dense<0.000000e+00> : vector<8x128xf32>
    %170 = tpu.matmul %139, %17, %cst_59 {dimension_numbers = #tpu.dot_dimension_numbers<[1], [0], [0], [1], [0, 0, 1, 1], [], []>} : vector<8x128xf32>, vector<128x128xf32>, vector<8x128xf32> -> vector<8x128xf32>
    %cst_60 = arith.constant dense<0.000000e+00> : vector<8x128xf32>
    %171 = tpu.matmul %169, %18, %cst_60 {dimension_numbers = #tpu.dot_dimension_numbers<[1], [0], [0], [1], [0, 0, 1, 1], [], []>} : vector<8x128xf32>, vector<128x128xf32>, vector<8x128xf32> -> vector<8x128xf32>
    %172 = arith.addf %170, %171 : vector<8x128xf32>
    %173 = arith.addf %172, %10 : vector<8x128xf32>
    %174 = arith.index_cast %c2_i32 : i32 to index
    %c0_61 = arith.constant 0 : index
    %c0_62 = arith.constant 0 : index
    %175 = vector.load %arg14[%174, %c0_61, %c0_62] : memref<7x8x128xf32, #tpu.memory_space<vmem>>, vector<1x8x128xf32>
    %176 = vector.shape_cast %175 : vector<1x8x128xf32> to vector<8x128xf32>
    %177 = vector.shape_cast %173 : vector<8x128xf32> to vector<1x8x128xf32>
    tpu.vector_store %arg14[%174, %c0_61, %c0_62], %177 {strides = array<i32>} : memref<7x8x128xf32, #tpu.memory_space<vmem>>, vector<1x8x128xf32>,
    %178 = arith.index_cast %c2_i32 : i32 to index
    %c0_63 = arith.constant 0 : index
    %c0_64 = arith.constant 0 : index
    %179 = vector.load %arg13[%178, %c0_63, %c0_64] : memref<7x8x128xf32, #tpu.memory_space<vmem>>, vector<1x8x128xf32>
    %180 = vector.shape_cast %179 : vector<1x8x128xf32> to vector<8x128xf32>
    %181 = arith.addf %173, %180 : vector<8x128xf32>
    %cst_65 = arith.constant dense<0xFF800000> : vector<8xf32>
    %182 = vector.multi_reduction <maximumf>, %181, %cst_65 [1] : vector<8x128xf32> to vector<8xf32>
    %183 = vector.shape_cast %182 : vector<8xf32> to vector<8x1xf32>
    %184 = tpu.iota {dimensions = array<i32: 1>} : vector<8x128xi32>
    %185 = vector.broadcast %183 : vector<8x1xf32> to vector<8x128xf32>
    %186 = arith.cmpf oeq, %181, %185 : vector<8x128xf32>
    %c128_i32_66 = arith.constant 128 : i32
    %187 = vector.broadcast %c128_i32_66 : i32 to vector<8x128xi32>
    %188 = arith.select %186, %184, %187 : vector<8x128xi1>, vector<8x128xi32>
    %cst_67 = arith.constant dense<2147483647> : vector<8xi32>
    %189 = vector.multi_reduction <minsi>, %188, %cst_67 [1] : vector<8x128xi32> to vector<8xi32>
    %190 = vector.shape_cast %189 : vector<8xi32> to vector<8x1xi32>
    %c3_i32 = arith.constant 3 : i32
    %191 = tpu.iota {dimensions = array<i32: 1>} : vector<8x128xi32>
    %192 = vector.broadcast %190 : vector<8x1xi32> to vector<8x128xi32>
    %193 = arith.cmpi eq, %192, %191 : vector<8x128xi32>
    %194 = arith.extui %193 : vector<8x128xi1> to vector<8x128xi32>
    %195 = arith.sitofp %194 : vector<8x128xi32> to vector<8x128xf32>
    %cst_68 = arith.constant dense<0.000000e+00> : vector<8x128xf32>
    %196 = tpu.matmul %195, %11, %cst_68 {dimension_numbers = #tpu.dot_dimension_numbers<[1], [0], [0], [1], [0, 0, 1, 1], [], []>} : vector<8x128xf32>, vector<128x128xf32>, vector<8x128xf32> -> vector<8x128xf32>
    %cst_69 = arith.constant dense<0.000000e+00> : vector<8x384xf32>
    %197 = tpu.matmul %196, %12, %cst_69 {dimension_numbers = #tpu.dot_dimension_numbers<[1], [0], [0], [1], [0, 0, 1, 1], [], []>} : vector<8x128xf32>, vector<128x384xf32>, vector<8x384xf32> -> vector<8x384xf32>
    %198 = arith.addf %197, %5 : vector<8x384xf32>
    %cst_70 = arith.constant dense<0.000000e+00> : vector<8x384xf32>
    %199 = tpu.matmul %169, %13, %cst_70 {dimension_numbers = #tpu.dot_dimension_numbers<[1], [0], [0], [1], [0, 0, 1, 1], [], []>} : vector<8x128xf32>, vector<128x384xf32>, vector<8x384xf32> -> vector<8x384xf32>
    %200 = arith.addf %199, %16 : vector<8x384xf32>
    %201 = vector.extract_strided_slice %198 {offsets = [0, 0], sizes = [8, 128], strides = [1, 1]} : vector<8x384xf32> to vector<8x128xf32>
    %202 = vector.extract_strided_slice %200 {offsets = [0, 0], sizes = [8, 128], strides = [1, 1]} : vector<8x384xf32> to vector<8x128xf32>
    %203 = arith.addf %201, %202 : vector<8x128xf32>
    %204 = arith.negf %203 : vector<8x128xf32>
    %205 = math.exp %204 : vector<8x128xf32>
    %cst_71 = arith.constant 1.000000e+00 : f32
    %206 = vector.broadcast %cst_71 : f32 to vector<8x128xf32>
    %207 = arith.addf %206, %205 : vector<8x128xf32>
    %208 = arith.divf %206, %207 : vector<8x128xf32>
    %209 = vector.extract_strided_slice %198 {offsets = [0, 128], sizes = [8, 128], strides = [1, 1]} : vector<8x384xf32> to vector<8x128xf32>
    %210 = vector.extract_strided_slice %200 {offsets = [0, 128], sizes = [8, 128], strides = [1, 1]} : vector<8x384xf32> to vector<8x128xf32>
    %211 = arith.addf %209, %210 : vector<8x128xf32>
    %212 = arith.negf %211 : vector<8x128xf32>
    %213 = math.exp %212 : vector<8x128xf32>
    %cst_72 = arith.constant 1.000000e+00 : f32
    %214 = vector.broadcast %cst_72 : f32 to vector<8x128xf32>
    %215 = arith.addf %214, %213 : vector<8x128xf32>
    %216 = arith.divf %214, %215 : vector<8x128xf32>
    %217 = vector.extract_strided_slice %198 {offsets = [0, 256], sizes = [8, 128], strides = [1, 1]} : vector<8x384xf32> to vector<8x128xf32>
    %218 = vector.extract_strided_slice %200 {offsets = [0, 256], sizes = [8, 128], strides = [1, 1]} : vector<8x384xf32> to vector<8x128xf32>
    %219 = arith.mulf %208, %218 : vector<8x128xf32>
    %220 = arith.addf %217, %219 : vector<8x128xf32>
    %221 = math.tanh %220 : vector<8x128xf32>
    %cst_73 = arith.constant 1.000000e+00 : f32
    %222 = vector.broadcast %cst_73 : f32 to vector<8x128xf32>
    %223 = arith.subf %222, %216 : vector<8x128xf32>
    %224 = arith.mulf %223, %221 : vector<8x128xf32>
    %225 = arith.mulf %216, %169 : vector<8x128xf32>
    %226 = arith.addf %224, %225 : vector<8x128xf32>
    %cst_74 = arith.constant dense<0.000000e+00> : vector<8x128xf32>
    %227 = tpu.matmul %196, %17, %cst_74 {dimension_numbers = #tpu.dot_dimension_numbers<[1], [0], [0], [1], [0, 0, 1, 1], [], []>} : vector<8x128xf32>, vector<128x128xf32>, vector<8x128xf32> -> vector<8x128xf32>
    %cst_75 = arith.constant dense<0.000000e+00> : vector<8x128xf32>
    %228 = tpu.matmul %226, %18, %cst_75 {dimension_numbers = #tpu.dot_dimension_numbers<[1], [0], [0], [1], [0, 0, 1, 1], [], []>} : vector<8x128xf32>, vector<128x128xf32>, vector<8x128xf32> -> vector<8x128xf32>
    %229 = arith.addf %227, %228 : vector<8x128xf32>
    %230 = arith.addf %229, %10 : vector<8x128xf32>
    %231 = arith.index_cast %c3_i32 : i32 to index
    %c0_76 = arith.constant 0 : index
    %c0_77 = arith.constant 0 : index
    %232 = vector.load %arg14[%231, %c0_76, %c0_77] : memref<7x8x128xf32, #tpu.memory_space<vmem>>, vector<1x8x128xf32>
    %233 = vector.shape_cast %232 : vector<1x8x128xf32> to vector<8x128xf32>
    %234 = vector.shape_cast %230 : vector<8x128xf32> to vector<1x8x128xf32>
    tpu.vector_store %arg14[%231, %c0_76, %c0_77], %234 {strides = array<i32>} : memref<7x8x128xf32, #tpu.memory_space<vmem>>, vector<1x8x128xf32>,
    %235 = arith.index_cast %c3_i32 : i32 to index
    %c0_78 = arith.constant 0 : index
    %c0_79 = arith.constant 0 : index
    %236 = vector.load %arg13[%235, %c0_78, %c0_79] : memref<7x8x128xf32, #tpu.memory_space<vmem>>, vector<1x8x128xf32>
    %237 = vector.shape_cast %236 : vector<1x8x128xf32> to vector<8x128xf32>
    %238 = arith.addf %230, %237 : vector<8x128xf32>
    %cst_80 = arith.constant dense<0xFF800000> : vector<8xf32>
    %239 = vector.multi_reduction <maximumf>, %238, %cst_80 [1] : vector<8x128xf32> to vector<8xf32>
    %240 = vector.shape_cast %239 : vector<8xf32> to vector<8x1xf32>
    %241 = tpu.iota {dimensions = array<i32: 1>} : vector<8x128xi32>
    %242 = vector.broadcast %240 : vector<8x1xf32> to vector<8x128xf32>
    %243 = arith.cmpf oeq, %238, %242 : vector<8x128xf32>
    %c128_i32_81 = arith.constant 128 : i32
    %244 = vector.broadcast %c128_i32_81 : i32 to vector<8x128xi32>
    %245 = arith.select %243, %241, %244 : vector<8x128xi1>, vector<8x128xi32>
    %cst_82 = arith.constant dense<2147483647> : vector<8xi32>
    %246 = vector.multi_reduction <minsi>, %245, %cst_82 [1] : vector<8x128xi32> to vector<8xi32>
    %247 = vector.shape_cast %246 : vector<8xi32> to vector<8x1xi32>
    %c4_i32 = arith.constant 4 : i32
    %248 = tpu.iota {dimensions = array<i32: 1>} : vector<8x128xi32>
    %249 = vector.broadcast %247 : vector<8x1xi32> to vector<8x128xi32>
    %250 = arith.cmpi eq, %249, %248 : vector<8x128xi32>
    %251 = arith.extui %250 : vector<8x128xi1> to vector<8x128xi32>
    %252 = arith.sitofp %251 : vector<8x128xi32> to vector<8x128xf32>
    %cst_83 = arith.constant dense<0.000000e+00> : vector<8x128xf32>
    %253 = tpu.matmul %252, %11, %cst_83 {dimension_numbers = #tpu.dot_dimension_numbers<[1], [0], [0], [1], [0, 0, 1, 1], [], []>} : vector<8x128xf32>, vector<128x128xf32>, vector<8x128xf32> -> vector<8x128xf32>
    %cst_84 = arith.constant dense<0.000000e+00> : vector<8x384xf32>
    %254 = tpu.matmul %253, %12, %cst_84 {dimension_numbers = #tpu.dot_dimension_numbers<[1], [0], [0], [1], [0, 0, 1, 1], [], []>} : vector<8x128xf32>, vector<128x384xf32>, vector<8x384xf32> -> vector<8x384xf32>
    %255 = arith.addf %254, %5 : vector<8x384xf32>
    %cst_85 = arith.constant dense<0.000000e+00> : vector<8x384xf32>
    %256 = tpu.matmul %226, %13, %cst_85 {dimension_numbers = #tpu.dot_dimension_numbers<[1], [0], [0], [1], [0, 0, 1, 1], [], []>} : vector<8x128xf32>, vector<128x384xf32>, vector<8x384xf32> -> vector<8x384xf32>
    %257 = arith.addf %256, %16 : vector<8x384xf32>
    %258 = vector.extract_strided_slice %255 {offsets = [0, 0], sizes = [8, 128], strides = [1, 1]} : vector<8x384xf32> to vector<8x128xf32>
    %259 = vector.extract_strided_slice %257 {offsets = [0, 0], sizes = [8, 128], strides = [1, 1]} : vector<8x384xf32> to vector<8x128xf32>
    %260 = arith.addf %258, %259 : vector<8x128xf32>
    %261 = arith.negf %260 : vector<8x128xf32>
    %262 = math.exp %261 : vector<8x128xf32>
    %cst_86 = arith.constant 1.000000e+00 : f32
    %263 = vector.broadcast %cst_86 : f32 to vector<8x128xf32>
    %264 = arith.addf %263, %262 : vector<8x128xf32>
    %265 = arith.divf %263, %264 : vector<8x128xf32>
    %266 = vector.extract_strided_slice %255 {offsets = [0, 128], sizes = [8, 128], strides = [1, 1]} : vector<8x384xf32> to vector<8x128xf32>
    %267 = vector.extract_strided_slice %257 {offsets = [0, 128], sizes = [8, 128], strides = [1, 1]} : vector<8x384xf32> to vector<8x128xf32>
    %268 = arith.addf %266, %267 : vector<8x128xf32>
    %269 = arith.negf %268 : vector<8x128xf32>
    %270 = math.exp %269 : vector<8x128xf32>
    %cst_87 = arith.constant 1.000000e+00 : f32
    %271 = vector.broadcast %cst_87 : f32 to vector<8x128xf32>
    %272 = arith.addf %271, %270 : vector<8x128xf32>
    %273 = arith.divf %271, %272 : vector<8x128xf32>
    %274 = vector.extract_strided_slice %255 {offsets = [0, 256], sizes = [8, 128], strides = [1, 1]} : vector<8x384xf32> to vector<8x128xf32>
    %275 = vector.extract_strided_slice %257 {offsets = [0, 256], sizes = [8, 128], strides = [1, 1]} : vector<8x384xf32> to vector<8x128xf32>
    %276 = arith.mulf %265, %275 : vector<8x128xf32>
    %277 = arith.addf %274, %276 : vector<8x128xf32>
    %278 = math.tanh %277 : vector<8x128xf32>
    %cst_88 = arith.constant 1.000000e+00 : f32
    %279 = vector.broadcast %cst_88 : f32 to vector<8x128xf32>
    %280 = arith.subf %279, %273 : vector<8x128xf32>
    %281 = arith.mulf %280, %278 : vector<8x128xf32>
    %282 = arith.mulf %273, %226 : vector<8x128xf32>
    %283 = arith.addf %281, %282 : vector<8x128xf32>
    %cst_89 = arith.constant dense<0.000000e+00> : vector<8x128xf32>
    %284 = tpu.matmul %253, %17, %cst_89 {dimension_numbers = #tpu.dot_dimension_numbers<[1], [0], [0], [1], [0, 0, 1, 1], [], []>} : vector<8x128xf32>, vector<128x128xf32>, vector<8x128xf32> -> vector<8x128xf32>
    %cst_90 = arith.constant dense<0.000000e+00> : vector<8x128xf32>
    %285 = tpu.matmul %283, %18, %cst_90 {dimension_numbers = #tpu.dot_dimension_numbers<[1], [0], [0], [1], [0, 0, 1, 1], [], []>} : vector<8x128xf32>, vector<128x128xf32>, vector<8x128xf32> -> vector<8x128xf32>
    %286 = arith.addf %284, %285 : vector<8x128xf32>
    %287 = arith.addf %286, %10 : vector<8x128xf32>
    %288 = arith.index_cast %c4_i32 : i32 to index
    %c0_91 = arith.constant 0 : index
    %c0_92 = arith.constant 0 : index
    %289 = vector.load %arg14[%288, %c0_91, %c0_92] : memref<7x8x128xf32, #tpu.memory_space<vmem>>, vector<1x8x128xf32>
    %290 = vector.shape_cast %289 : vector<1x8x128xf32> to vector<8x128xf32>
    %291 = vector.shape_cast %287 : vector<8x128xf32> to vector<1x8x128xf32>
    tpu.vector_store %arg14[%288, %c0_91, %c0_92], %291 {strides = array<i32>} : memref<7x8x128xf32, #tpu.memory_space<vmem>>, vector<1x8x128xf32>,
    %292 = arith.index_cast %c4_i32 : i32 to index
    %c0_93 = arith.constant 0 : index
    %c0_94 = arith.constant 0 : index
    %293 = vector.load %arg13[%292, %c0_93, %c0_94] : memref<7x8x128xf32, #tpu.memory_space<vmem>>, vector<1x8x128xf32>
    %294 = vector.shape_cast %293 : vector<1x8x128xf32> to vector<8x128xf32>
    %295 = arith.addf %287, %294 : vector<8x128xf32>
    %cst_95 = arith.constant dense<0xFF800000> : vector<8xf32>
    %296 = vector.multi_reduction <maximumf>, %295, %cst_95 [1] : vector<8x128xf32> to vector<8xf32>
    %297 = vector.shape_cast %296 : vector<8xf32> to vector<8x1xf32>
    %298 = tpu.iota {dimensions = array<i32: 1>} : vector<8x128xi32>
    %299 = vector.broadcast %297 : vector<8x1xf32> to vector<8x128xf32>
    %300 = arith.cmpf oeq, %295, %299 : vector<8x128xf32>
    %c128_i32_96 = arith.constant 128 : i32
    %301 = vector.broadcast %c128_i32_96 : i32 to vector<8x128xi32>
    %302 = arith.select %300, %298, %301 : vector<8x128xi1>, vector<8x128xi32>
    %cst_97 = arith.constant dense<2147483647> : vector<8xi32>
    %303 = vector.multi_reduction <minsi>, %302, %cst_97 [1] : vector<8x128xi32> to vector<8xi32>
    %304 = vector.shape_cast %303 : vector<8xi32> to vector<8x1xi32>
    %c5_i32 = arith.constant 5 : i32
    %305 = tpu.iota {dimensions = array<i32: 1>} : vector<8x128xi32>
    %306 = vector.broadcast %304 : vector<8x1xi32> to vector<8x128xi32>
    %307 = arith.cmpi eq, %306, %305 : vector<8x128xi32>
    %308 = arith.extui %307 : vector<8x128xi1> to vector<8x128xi32>
    %309 = arith.sitofp %308 : vector<8x128xi32> to vector<8x128xf32>
    %cst_98 = arith.constant dense<0.000000e+00> : vector<8x128xf32>
    %310 = tpu.matmul %309, %11, %cst_98 {dimension_numbers = #tpu.dot_dimension_numbers<[1], [0], [0], [1], [0, 0, 1, 1], [], []>} : vector<8x128xf32>, vector<128x128xf32>, vector<8x128xf32> -> vector<8x128xf32>
    %cst_99 = arith.constant dense<0.000000e+00> : vector<8x384xf32>
    %311 = tpu.matmul %310, %12, %cst_99 {dimension_numbers = #tpu.dot_dimension_numbers<[1], [0], [0], [1], [0, 0, 1, 1], [], []>} : vector<8x128xf32>, vector<128x384xf32>, vector<8x384xf32> -> vector<8x384xf32>
    %312 = arith.addf %311, %5 : vector<8x384xf32>
    %cst_100 = arith.constant dense<0.000000e+00> : vector<8x384xf32>
    %313 = tpu.matmul %283, %13, %cst_100 {dimension_numbers = #tpu.dot_dimension_numbers<[1], [0], [0], [1], [0, 0, 1, 1], [], []>} : vector<8x128xf32>, vector<128x384xf32>, vector<8x384xf32> -> vector<8x384xf32>
    %314 = arith.addf %313, %16 : vector<8x384xf32>
    %315 = vector.extract_strided_slice %312 {offsets = [0, 0], sizes = [8, 128], strides = [1, 1]} : vector<8x384xf32> to vector<8x128xf32>
    %316 = vector.extract_strided_slice %314 {offsets = [0, 0], sizes = [8, 128], strides = [1, 1]} : vector<8x384xf32> to vector<8x128xf32>
    %317 = arith.addf %315, %316 : vector<8x128xf32>
    %318 = arith.negf %317 : vector<8x128xf32>
    %319 = math.exp %318 : vector<8x128xf32>
    %cst_101 = arith.constant 1.000000e+00 : f32
    %320 = vector.broadcast %cst_101 : f32 to vector<8x128xf32>
    %321 = arith.addf %320, %319 : vector<8x128xf32>
    %322 = arith.divf %320, %321 : vector<8x128xf32>
    %323 = vector.extract_strided_slice %312 {offsets = [0, 128], sizes = [8, 128], strides = [1, 1]} : vector<8x384xf32> to vector<8x128xf32>
    %324 = vector.extract_strided_slice %314 {offsets = [0, 128], sizes = [8, 128], strides = [1, 1]} : vector<8x384xf32> to vector<8x128xf32>
    %325 = arith.addf %323, %324 : vector<8x128xf32>
    %326 = arith.negf %325 : vector<8x128xf32>
    %327 = math.exp %326 : vector<8x128xf32>
    %cst_102 = arith.constant 1.000000e+00 : f32
    %328 = vector.broadcast %cst_102 : f32 to vector<8x128xf32>
    %329 = arith.addf %328, %327 : vector<8x128xf32>
    %330 = arith.divf %328, %329 : vector<8x128xf32>
    %331 = vector.extract_strided_slice %312 {offsets = [0, 256], sizes = [8, 128], strides = [1, 1]} : vector<8x384xf32> to vector<8x128xf32>
    %332 = vector.extract_strided_slice %314 {offsets = [0, 256], sizes = [8, 128], strides = [1, 1]} : vector<8x384xf32> to vector<8x128xf32>
    %333 = arith.mulf %322, %332 : vector<8x128xf32>
    %334 = arith.addf %331, %333 : vector<8x128xf32>
    %335 = math.tanh %334 : vector<8x128xf32>
    %cst_103 = arith.constant 1.000000e+00 : f32
    %336 = vector.broadcast %cst_103 : f32 to vector<8x128xf32>
    %337 = arith.subf %336, %330 : vector<8x128xf32>
    %338 = arith.mulf %337, %335 : vector<8x128xf32>
    %339 = arith.mulf %330, %283 : vector<8x128xf32>
    %340 = arith.addf %338, %339 : vector<8x128xf32>
    %cst_104 = arith.constant dense<0.000000e+00> : vector<8x128xf32>
    %341 = tpu.matmul %310, %17, %cst_104 {dimension_numbers = #tpu.dot_dimension_numbers<[1], [0], [0], [1], [0, 0, 1, 1], [], []>} : vector<8x128xf32>, vector<128x128xf32>, vector<8x128xf32> -> vector<8x128xf32>
    %cst_105 = arith.constant dense<0.000000e+00> : vector<8x128xf32>
    %342 = tpu.matmul %340, %18, %cst_105 {dimension_numbers = #tpu.dot_dimension_numbers<[1], [0], [0], [1], [0, 0, 1, 1], [], []>} : vector<8x128xf32>, vector<128x128xf32>, vector<8x128xf32> -> vector<8x128xf32>
    %343 = arith.addf %341, %342 : vector<8x128xf32>
    %344 = arith.addf %343, %10 : vector<8x128xf32>
    %345 = arith.index_cast %c5_i32 : i32 to index
    %c0_106 = arith.constant 0 : index
    %c0_107 = arith.constant 0 : index
    %346 = vector.load %arg14[%345, %c0_106, %c0_107] : memref<7x8x128xf32, #tpu.memory_space<vmem>>, vector<1x8x128xf32>
    %347 = vector.shape_cast %346 : vector<1x8x128xf32> to vector<8x128xf32>
    %348 = vector.shape_cast %344 : vector<8x128xf32> to vector<1x8x128xf32>
    tpu.vector_store %arg14[%345, %c0_106, %c0_107], %348 {strides = array<i32>} : memref<7x8x128xf32, #tpu.memory_space<vmem>>, vector<1x8x128xf32>,
    %349 = arith.index_cast %c5_i32 : i32 to index
    %c0_108 = arith.constant 0 : index
    %c0_109 = arith.constant 0 : index
    %350 = vector.load %arg13[%349, %c0_108, %c0_109] : memref<7x8x128xf32, #tpu.memory_space<vmem>>, vector<1x8x128xf32>
    %351 = vector.shape_cast %350 : vector<1x8x128xf32> to vector<8x128xf32>
    %352 = arith.addf %344, %351 : vector<8x128xf32>
    %cst_110 = arith.constant dense<0xFF800000> : vector<8xf32>
    %353 = vector.multi_reduction <maximumf>, %352, %cst_110 [1] : vector<8x128xf32> to vector<8xf32>
    %354 = vector.shape_cast %353 : vector<8xf32> to vector<8x1xf32>
    %355 = tpu.iota {dimensions = array<i32: 1>} : vector<8x128xi32>
    %356 = vector.broadcast %354 : vector<8x1xf32> to vector<8x128xf32>
    %357 = arith.cmpf oeq, %352, %356 : vector<8x128xf32>
    %c128_i32_111 = arith.constant 128 : i32
    %358 = vector.broadcast %c128_i32_111 : i32 to vector<8x128xi32>
    %359 = arith.select %357, %355, %358 : vector<8x128xi1>, vector<8x128xi32>
    %cst_112 = arith.constant dense<2147483647> : vector<8xi32>
    %360 = vector.multi_reduction <minsi>, %359, %cst_112 [1] : vector<8x128xi32> to vector<8xi32>
    %361 = vector.shape_cast %360 : vector<8xi32> to vector<8x1xi32>
    %c6_i32 = arith.constant 6 : i32
    %362 = tpu.iota {dimensions = array<i32: 1>} : vector<8x128xi32>
    %363 = vector.broadcast %361 : vector<8x1xi32> to vector<8x128xi32>
    %364 = arith.cmpi eq, %363, %362 : vector<8x128xi32>
    %365 = arith.extui %364 : vector<8x128xi1> to vector<8x128xi32>
    %366 = arith.sitofp %365 : vector<8x128xi32> to vector<8x128xf32>
    %cst_113 = arith.constant dense<0.000000e+00> : vector<8x128xf32>
    %367 = tpu.matmul %366, %11, %cst_113 {dimension_numbers = #tpu.dot_dimension_numbers<[1], [0], [0], [1], [0, 0, 1, 1], [], []>} : vector<8x128xf32>, vector<128x128xf32>, vector<8x128xf32> -> vector<8x128xf32>
    %cst_114 = arith.constant dense<0.000000e+00> : vector<8x384xf32>
    %368 = tpu.matmul %367, %12, %cst_114 {dimension_numbers = #tpu.dot_dimension_numbers<[1], [0], [0], [1], [0, 0, 1, 1], [], []>} : vector<8x128xf32>, vector<128x384xf32>, vector<8x384xf32> -> vector<8x384xf32>
    %369 = arith.addf %368, %5 : vector<8x384xf32>
    %cst_115 = arith.constant dense<0.000000e+00> : vector<8x384xf32>
    %370 = tpu.matmul %340, %13, %cst_115 {dimension_numbers = #tpu.dot_dimension_numbers<[1], [0], [0], [1], [0, 0, 1, 1], [], []>} : vector<8x128xf32>, vector<128x384xf32>, vector<8x384xf32> -> vector<8x384xf32>
    %371 = arith.addf %370, %16 : vector<8x384xf32>
    %372 = vector.extract_strided_slice %369 {offsets = [0, 0], sizes = [8, 128], strides = [1, 1]} : vector<8x384xf32> to vector<8x128xf32>
    %373 = vector.extract_strided_slice %371 {offsets = [0, 0], sizes = [8, 128], strides = [1, 1]} : vector<8x384xf32> to vector<8x128xf32>
    %374 = arith.addf %372, %373 : vector<8x128xf32>
    %375 = arith.negf %374 : vector<8x128xf32>
    %376 = math.exp %375 : vector<8x128xf32>
    %cst_116 = arith.constant 1.000000e+00 : f32
    %377 = vector.broadcast %cst_116 : f32 to vector<8x128xf32>
    %378 = arith.addf %377, %376 : vector<8x128xf32>
    %379 = arith.divf %377, %378 : vector<8x128xf32>
    %380 = vector.extract_strided_slice %369 {offsets = [0, 128], sizes = [8, 128], strides = [1, 1]} : vector<8x384xf32> to vector<8x128xf32>
    %381 = vector.extract_strided_slice %371 {offsets = [0, 128], sizes = [8, 128], strides = [1, 1]} : vector<8x384xf32> to vector<8x128xf32>
    %382 = arith.addf %380, %381 : vector<8x128xf32>
    %383 = arith.negf %382 : vector<8x128xf32>
    %384 = math.exp %383 : vector<8x128xf32>
    %cst_117 = arith.constant 1.000000e+00 : f32
    %385 = vector.broadcast %cst_117 : f32 to vector<8x128xf32>
    %386 = arith.addf %385, %384 : vector<8x128xf32>
    %387 = arith.divf %385, %386 : vector<8x128xf32>
    %388 = vector.extract_strided_slice %369 {offsets = [0, 256], sizes = [8, 128], strides = [1, 1]} : vector<8x384xf32> to vector<8x128xf32>
    %389 = vector.extract_strided_slice %371 {offsets = [0, 256], sizes = [8, 128], strides = [1, 1]} : vector<8x384xf32> to vector<8x128xf32>
    %390 = arith.mulf %379, %389 : vector<8x128xf32>
    %391 = arith.addf %388, %390 : vector<8x128xf32>
    %392 = math.tanh %391 : vector<8x128xf32>
    %cst_118 = arith.constant 1.000000e+00 : f32
    %393 = vector.broadcast %cst_118 : f32 to vector<8x128xf32>
    %394 = arith.subf %393, %387 : vector<8x128xf32>
    %395 = arith.mulf %394, %392 : vector<8x128xf32>
    %396 = arith.mulf %387, %340 : vector<8x128xf32>
    %397 = arith.addf %395, %396 : vector<8x128xf32>
    %cst_119 = arith.constant dense<0.000000e+00> : vector<8x128xf32>
    %398 = tpu.matmul %367, %17, %cst_119 {dimension_numbers = #tpu.dot_dimension_numbers<[1], [0], [0], [1], [0, 0, 1, 1], [], []>} : vector<8x128xf32>, vector<128x128xf32>, vector<8x128xf32> -> vector<8x128xf32>
    %cst_120 = arith.constant dense<0.000000e+00> : vector<8x128xf32>
    %399 = tpu.matmul %397, %18, %cst_120 {dimension_numbers = #tpu.dot_dimension_numbers<[1], [0], [0], [1], [0, 0, 1, 1], [], []>} : vector<8x128xf32>, vector<128x128xf32>, vector<8x128xf32> -> vector<8x128xf32>
    %400 = arith.addf %398, %399 : vector<8x128xf32>
    %401 = arith.addf %400, %10 : vector<8x128xf32>
    %402 = arith.index_cast %c6_i32 : i32 to index
    %c0_121 = arith.constant 0 : index
    %c0_122 = arith.constant 0 : index
    %403 = vector.load %arg14[%402, %c0_121, %c0_122] : memref<7x8x128xf32, #tpu.memory_space<vmem>>, vector<1x8x128xf32>
    %404 = vector.shape_cast %403 : vector<1x8x128xf32> to vector<8x128xf32>
    %405 = vector.shape_cast %401 : vector<8x128xf32> to vector<1x8x128xf32>
    tpu.vector_store %arg14[%402, %c0_121, %c0_122], %405 {strides = array<i32>} : memref<7x8x128xf32, #tpu.memory_space<vmem>>, vector<1x8x128xf32>,
    %406 = arith.index_cast %c6_i32 : i32 to index
    %c0_123 = arith.constant 0 : index
    %c0_124 = arith.constant 0 : index
    %407 = vector.load %arg13[%406, %c0_123, %c0_124] : memref<7x8x128xf32, #tpu.memory_space<vmem>>, vector<1x8x128xf32>
    %408 = vector.shape_cast %407 : vector<1x8x128xf32> to vector<8x128xf32>
    %409 = arith.addf %401, %408 : vector<8x128xf32>
    %cst_125 = arith.constant dense<0xFF800000> : vector<8xf32>
    %410 = vector.multi_reduction <maximumf>, %409, %cst_125 [1] : vector<8x128xf32> to vector<8xf32>
    %411 = vector.shape_cast %410 : vector<8xf32> to vector<8x1xf32>
    %412 = tpu.iota {dimensions = array<i32: 1>} : vector<8x128xi32>
    %413 = vector.broadcast %411 : vector<8x1xf32> to vector<8x128xf32>
    %414 = arith.cmpf oeq, %409, %413 : vector<8x128xf32>
    %c128_i32_126 = arith.constant 128 : i32
    %415 = vector.broadcast %c128_i32_126 : i32 to vector<8x128xi32>
    %416 = arith.select %414, %412, %415 : vector<8x128xi1>, vector<8x128xi32>
    %cst_127 = arith.constant dense<2147483647> : vector<8xi32>
    %417 = vector.multi_reduction <minsi>, %416, %cst_127 [1] : vector<8x128xi32> to vector<8xi32>
    %418 = vector.shape_cast %417 : vector<8xi32> to vector<8x1xi32>
    %c7_i32 = arith.constant 7 : i32
    return
  }
  func.func @transform_0(%arg0: i32) -> (i32, i32) {
    %c0_i32 = arith.constant 0 : i32
    %c0_i32_0 = arith.constant 0 : i32
    %c0_i32_1 = arith.constant 0 : i32
    return %c0_i32, %c0_i32_0 : i32, i32
  }
  func.func @transform_1(%arg0: i32) -> (i32, i32) {
    %c0_i32 = arith.constant 0 : i32
    %c0_i32_0 = arith.constant 0 : i32
    %c0_i32_1 = arith.constant 0 : i32
    return %c0_i32, %c0_i32_0 : i32, i32
  }
  func.func @transform_2(%arg0: i32) -> (i32, i32) {
    %c0_i32 = arith.constant 0 : i32
    %c0_i32_0 = arith.constant 0 : i32
    %c0_i32_1 = arith.constant 0 : i32
    return %c0_i32, %c0_i32_0 : i32, i32
  }
  func.func @transform_3(%arg0: i32) -> (i32, i32) {
    %c0_i32 = arith.constant 0 : i32
    %c0_i32_0 = arith.constant 0 : i32
    %c0_i32_1 = arith.constant 0 : i32
    return %c0_i32, %c0_i32_0 : i32, i32
  }
  func.func @transform_4(%arg0: i32) -> (i32, i32) {
    %c0_i32 = arith.constant 0 : i32
    %c0_i32_0 = arith.constant 0 : i32
    %c0_i32_1 = arith.constant 0 : i32
    return %c0_i32, %c0_i32_0 : i32, i32
  }
  func.func @transform_5(%arg0: i32) -> (i32, i32) {
    %c0_i32 = arith.constant 0 : i32
    %c0_i32_0 = arith.constant 0 : i32
    %c0_i32_1 = arith.constant 0 : i32
    return %c0_i32, %c0_i32_0 : i32, i32
  }
  func.func @transform_6(%arg0: i32) -> (i32, i32) {
    %c0_i32 = arith.constant 0 : i32
    %c0_i32_0 = arith.constant 0 : i32
    %c0_i32_1 = arith.constant 0 : i32
    return %c0_i32, %c0_i32_0 : i32, i32
  }
  func.func @transform_7(%arg0: i32) -> (i32, i32) {
    %c0_i32 = arith.constant 0 : i32
    %c0_i32_0 = arith.constant 0 : i32
    %c0_i32_1 = arith.constant 0 : i32
    return %c0_i32, %c0_i32_0 : i32, i32
  }
  func.func @transform_8(%arg0: i32) -> (i32, i32) {
    %c0_i32 = arith.constant 0 : i32
    %c0_i32_0 = arith.constant 0 : i32
    %c0_i32_1 = arith.constant 0 : i32
    return %c0_i32, %c0_i32_0 : i32, i32
  }
  func.func @transform_9(%arg0: i32) -> (i32, i32) {
    %c0_i32 = arith.constant 0 : i32
    %c0_i32_0 = arith.constant 0 : i32
    %c0_i32_1 = arith.constant 0 : i32
    return %c0_i32, %c0_i32_0 : i32, i32
  }
  func.func @transform_10(%arg0: i32) -> (i32, i32) {
    %c0_i32 = arith.constant 0 : i32
    %c0_i32_0 = arith.constant 0 : i32
    %c0_i32_1 = arith.constant 0 : i32
    return %c0_i32, %c0_i32_0 : i32, i32
  }
  func.func @transform_11(%arg0: i32) -> (i32, i32) {
    %c0_i32 = arith.constant 0 : i32
    %c0_i32_0 = arith.constant 0 : i32
    %c0_i32_1 = arith.constant 0 : i32
    return %c0_i32, %c0_i32_0 : i32, i32
  }
  func.func @transform_12(%arg0: i32) -> (i32, i32, i32) {
    %c0_i32 = arith.constant 0 : i32
    %c0_i32_0 = arith.constant 0 : i32
    %c0_i32_1 = arith.constant 0 : i32
    %c0_i32_2 = arith.constant 0 : i32
    return %c0_i32, %c0_i32_0, %c0_i32_1 : i32, i32, i32
  }
  func.func @transform_13(%arg0: i32) -> (i32, i32, i32) {
    %c0_i32 = arith.constant 0 : i32
    %c0_i32_0 = arith.constant 0 : i32
    %c0_i32_1 = arith.constant 0 : i32
    %c0_i32_2 = arith.constant 0 : i32
    return %c0_i32, %c0_i32_0, %c0_i32_1 : i32, i32, i32
  }
}

</mosaic_0001>

<llo_original>
// kernel: seq2seq_forward.2
$region0: #{seq2seq_forward.2}
  #allocation0 [shape = 'u32[]', space=smem, size = 0x4, offset = 0x4, fixed_abs, tag = 'smem constant byte address 0x4 - core index']
  #allocation1 [shape = 'u32[144,128]{1,0:T(1,128)}', space=vmem, size = 0x12000, scoped, tag = 'internal scratch']
  #allocation2 [shape = 'f32[64,384]{1,0:T(8,128)}', space=vmem, size = 0x18000, scoped, tag = 'scratch operand']
  %s0 = inlined_call_operand.hbm [shape: f32[64,128], index: 0, kind: input, shape index: {}]
  %s1 = inlined_call_operand.hbm [shape: f32[128,384], index: 1, kind: input, shape index: {}]
  %s2 = inlined_call_operand.hbm [shape: f32[128,384], index: 2, kind: input, shape index: {}]
  %s3 = inlined_call_operand.hbm [shape: f32[1,384], index: 3, kind: input, shape index: {}]
  %s4 = inlined_call_operand.hbm [shape: f32[1,384], index: 4, kind: input, shape index: {}]
  %s5 = inlined_call_operand.hbm [shape: f32[8,128], index: 5, kind: output, shape index: {}]
  %s6 = sld [smem:[#allocation0]]
  $region50: #{seq2seq_forward.2} parent=0
    _
  %s8 = ssub.s32 1, %s6
  %s9 = scalar_select 0, %s8, %s6
  $region1: #{seq2seq_forward.2} parent=0
    #allocation3 [shape = 'u8[32768]{0}', space=vmem, size = 0x8000, scoped, tag = 'input window, operand 0, single buffered']
    #allocation4 [shape = 's32[1]{0}', space=sflag, size = 0x4, scoped, tag = 'scoped memory for seq2seq_forward.2']
    #allocation5 [shape = 's32[1]{0}', space=sflag, size = 0x4, scoped, tag = 'scoped memory for seq2seq_forward.2']
    #allocation6 [shape = 'u8[196608]{0}', space=vmem, size = 0x30000, scoped, tag = 'input window, operand 1, single buffered']
    #allocation7 [shape = 's32[1]{0}', space=sflag, size = 0x4, scoped, tag = 'scoped memory for seq2seq_forward.2']
    #allocation8 [shape = 'u8[196608]{0}', space=vmem, size = 0x30000, scoped, tag = 'input window, operand 2, single buffered']
    #allocation9 [shape = 'u8[1536]{0}', space=vmem, size = 0x800, scoped, tag = 'input window, operand 3, single buffered']
    #allocation10 [shape = 's32[1]{0}', space=sflag, size = 0x4, scoped, tag = 'scoped memory for seq2seq_forward.2']
    #allocation11 [shape = 'u8[1536]{0}', space=vmem, size = 0x800, scoped, tag = 'input window, operand 4, single buffered']
    #allocation12 [shape = 'u8[4096]{0}', space=vmem, size = 0x1000, scoped, tag = 'output window, operand 0, single buffered']
    %10 = vsyncpa [#allocation4], 0
    %11 = vsyncpa [#allocation7], 0
    %12 = vsyncpa [#allocation10], 0
    %13 = vsyncpa [#allocation5], 0
    // Predicated region
    $region2: #{seq2seq_forward.2} parent=1 // pred_check
      _
    $region3: #{seq2seq_forward.2} parent=1 // pred_check_branch
      %15 = sbr.rel (0) target = $region5
    $region4: #{seq2seq_forward.2} parent=1 // pred_region
      %s17 = ssub.s32 1024, 1024
      %18 = vsyncadd [#allocation4], %s17
      %s19 = sshll.u32 [#allocation3], 4
      %s20 = int_to_ptr.vmem [resolvable:$true] %s19
      %25 = dma.hbm_to_vmem [thread:$0]  %s0, 1024, %s20, [#allocation4], 128, 128, 8
    $region5: #{seq2seq_forward.2} parent=1 // pred_fallthru
      _
    // Predicated region
    $region6: #{seq2seq_forward.2} parent=1 // pred_check
      _
    $region7: #{seq2seq_forward.2} parent=1 // pred_check_branch
      %27 = sbr.rel (0) target = $region9
    $region8: #{seq2seq_forward.2} parent=1 // pred_region
      %s29 = ssub.s32 6144, 6144
      %30 = vsyncadd [#allocation7], %s29
      %s31 = sshll.u32 [#allocation6], 4
      %s32 = int_to_ptr.vmem [resolvable:$true] %s31
      %37 = dma.hbm_to_vmem [thread:$0]  %s1, 6144, %s32, [#allocation7], 384, 384, 24
    $region9: #{seq2seq_forward.2} parent=1 // pred_fallthru
      _
    // Predicated region
    $region10: #{seq2seq_forward.2} parent=1 // pred_check
      _
    $region11: #{seq2seq_forward.2} parent=1 // pred_check_branch
      %39 = sbr.rel (0) target = $region13
    $region12: #{seq2seq_forward.2} parent=1 // pred_region
      %s41 = ssub.s32 6144, 6144
      %42 = vsyncadd [#allocation7], %s41
      %s43 = sshll.u32 [#allocation8], 4
      %s44 = int_to_ptr.vmem [resolvable:$true] %s43
      %49 = dma.hbm_to_vmem [thread:$0]  %s2, 6144, %s44, [#allocation7], 384, 384, 24
    $region13: #{seq2seq_forward.2} parent=1 // pred_fallthru
      _
    // Predicated region
    $region14: #{seq2seq_forward.2} parent=1 // pred_check
      _
    $region15: #{seq2seq_forward.2} parent=1 // pred_check_branch
      %51 = sbr.rel (0) target = $region17
    $region16: #{seq2seq_forward.2} parent=1 // pred_region
      %s53 = ssub.s32 48, 48
      %54 = vsyncadd [#allocation10], %s53
      %s56 = sshll.u32 [#allocation9], 4
      %s57 = int_to_ptr.vmem [resolvable:$true] %s56
      %59 = dma.hbm_to_vmem [thread:$0]  %s3, 48, %s57, [#allocation10]
    $region17: #{seq2seq_forward.2} parent=1 // pred_fallthru
      _
    // Predicated region
    $region18: #{seq2seq_forward.2} parent=1 // pred_check
      _
    $region19: #{seq2seq_forward.2} parent=1 // pred_check_branch
      %61 = sbr.rel (0) target = $region21
    $region20: #{seq2seq_forward.2} parent=1 // pred_region
      %s63 = ssub.s32 48, 48
      %64 = vsyncadd [#allocation10], %s63
      %s66 = sshll.u32 [#allocation11], 4
      %s67 = int_to_ptr.vmem [resolvable:$true] %s66
      %69 = dma.hbm_to_vmem [thread:$0]  %s4, 48, %s67, [#allocation10]
    $region21: #{seq2seq_forward.2} parent=1 // pred_fallthru
      _
    // Predicated region
    $region22: #{seq2seq_forward.2} parent=1 // pred_check
      _
    $region23: #{seq2seq_forward.2} parent=1 // pred_check_branch
      %71 = sbr.rel (0) target = $region25
    $region24: #{seq2seq_forward.2} parent=1 // pred_region
      %72 = dma.done [#allocation4], 1024
    $region25: #{seq2seq_forward.2} parent=1 // pred_fallthru
      _
    // Predicated region
    $region26: #{seq2seq_forward.2} parent=1 // pred_check
      _
    $region27: #{seq2seq_forward.2} parent=1 // pred_check_branch
      %74 = sbr.rel (0) target = $region29
    $region28: #{seq2seq_forward.2} parent=1 // pred_region
      %75 = dma.done [#allocation7], 6144
    $region29: #{seq2seq_forward.2} parent=1 // pred_fallthru
      _
    // Predicated region
    $region30: #{seq2seq_forward.2} parent=1 // pred_check
      _
    $region31: #{seq2seq_forward.2} parent=1 // pred_check_branch
      %77 = sbr.rel (0) target = $region33
    $region32: #{seq2seq_forward.2} parent=1 // pred_region
      %78 = dma.done [#allocation7], 6144
    $region33: #{seq2seq_forward.2} parent=1 // pred_fallthru
      _
    // Predicated region
    $region34: #{seq2seq_forward.2} parent=1 // pred_check
      _
    $region35: #{seq2seq_forward.2} parent=1 // pred_check_branch
      %80 = sbr.rel (0) target = $region37
    $region36: #{seq2seq_forward.2} parent=1 // pred_region
      %81 = dma.done [#allocation10], 48
    $region37: #{seq2seq_forward.2} parent=1 // pred_fallthru
      _
    // Predicated region
    $region38: #{seq2seq_forward.2} parent=1 // pred_check
      _
    $region39: #{seq2seq_forward.2} parent=1 // pred_check_branch
      %83 = sbr.rel (0) target = $region41
    $region40: #{seq2seq_forward.2} parent=1 // pred_region
      %84 = dma.done [#allocation10], 48
    $region41: #{seq2seq_forward.2} parent=1 // pred_fallthru
      _
    %v85 = vld [vmem:[#allocation3] sm:$0xff]
    %v86 = vld [vmem:[#allocation3 + $0x8] sm:$0xff]
    %v87 = vld [vmem:[#allocation3 + $0x10] sm:$0xff]
    %v88 = vld [vmem:[#allocation3 + $0x18] sm:$0xff]
    %v89 = vld [vmem:[#allocation3 + $0x20] sm:$0xff]
    %v90 = vld [vmem:[#allocation3 + $0x28] sm:$0xff]
    %v91 = vld [vmem:[#allocation3 + $0x30] sm:$0xff]
    %v92 = vld [vmem:[#allocation3 + $0x38] sm:$0xff]
    %v93 = vld [vmem:[#allocation6] sm:$0xff]
    %v94 = vld [vmem:[#allocation6 + $0x8] sm:$0xff]
    %v95 = vld [vmem:[#allocation6 + $0x10] sm:$0xff]
    %v96 = vld [vmem:[#allocation6 + $0x18] sm:$0xff]
    %v97 = vld [vmem:[#allocation6 + $0x20] sm:$0xff]
    %v98 = vld [vmem:[#allocation6 + $0x28] sm:$0xff]
    %v99 = vld [vmem:[#allocation6 + $0x30] sm:$0xff]
    %v100 = vld [vmem:[#allocation6 + $0x38] sm:$0xff]
    %v101 = vld [vmem:[#allocation6 + $0x40] sm:$0xff]
    %v102 = vld [vmem:[#allocation6 + $0x48] sm:$0xff]
    %v103 = vld [vmem:[#allocation6 + $0x50] sm:$0xff]
    %v104 = vld [vmem:[#allocation6 + $0x58] sm:$0xff]
    %v105 = vld [vmem:[#allocation6 + $0x60] sm:$0xff]
    %v106 = vld [vmem:[#allocation6 + $0x68] sm:$0xff]
    %v107 = vld [vmem:[#allocation6 + $0x70] sm:$0xff]
    %v108 = vld [vmem:[#allocation6 + $0x78] sm:$0xff]
    %v109 = vld [vmem:[#allocation6 + $0x80] sm:$0xff]
    %v110 = vld [vmem:[#allocation6 + $0x88] sm:$0xff]
    %v111 = vld [vmem:[#allocation6 + $0x90] sm:$0xff]
    %v112 = vld [vmem:[#allocation6 + $0x98] sm:$0xff]
    %v113 = vld [vmem:[#allocation6 + $0xa0] sm:$0xff]
    %v114 = vld [vmem:[#allocation6 + $0xa8] sm:$0xff]
    %v115 = vld [vmem:[#allocation6 + $0xb0] sm:$0xff]
    %v116 = vld [vmem:[#allocation6 + $0xb8] sm:$0xff]
    %v117 = vld [vmem:[#allocation6 + $0xc0] sm:$0xff]
    %v118 = vld [vmem:[#allocation6 + $0xc8] sm:$0xff]
    %v119 = vld [vmem:[#allocation6 + $0xd0] sm:$0xff]
    %v120 = vld [vmem:[#allocation6 + $0xd8] sm:$0xff]
    %v121 = vld [vmem:[#allocation6 + $0xe0] sm:$0xff]
    %v122 = vld [vmem:[#allocation6 + $0xe8] sm:$0xff]
    %v123 = vld [vmem:[#allocation6 + $0xf0] sm:$0xff]
    %v124 = vld [vmem:[#allocation6 + $0xf8] sm:$0xff]
    %v125 = vld [vmem:[#allocation6 + $0x100] sm:$0xff]
    %v126 = vld [vmem:[#allocation6 + $0x108] sm:$0xff]
    %v127 = vld [vmem:[#allocation6 + $0x110] sm:$0xff]
    %v128 = vld [vmem:[#allocation6 + $0x118] sm:$0xff]
    %v129 = vld [vmem:[#allocation6 + $0x120] sm:$0xff]
    %v130 = vld [vmem:[#allocation6 + $0x128] sm:$0xff]
    %v131 = vld [vmem:[#allocation6 + $0x130] sm:$0xff]
    %v132 = vld [vmem:[#allocation6 + $0x138] sm:$0xff]
    %v133 = vld [vmem:[#allocation6 + $0x140] sm:$0xff]
    %v134 = vld [vmem:[#allocation6 + $0x148] sm:$0xff]
    %v135 = vld [vmem:[#allocation6 + $0x150] sm:$0xff]
    %v136 = vld [vmem:[#allocation6 + $0x158] sm:$0xff]
    %v137 = vld [vmem:[#allocation6 + $0x160] sm:$0xff]
    %v138 = vld [vmem:[#allocation6 + $0x168] sm:$0xff]
    %v139 = vld [vmem:[#allocation6 + $0x170] sm:$0xff]
    %v140 = vld [vmem:[#allocation6 + $0x178] sm:$0xff]
    %v141 = vld [vmem:[#allocation9] sm:$0x7]
    %v143 = vlaneseq
    %v144 = vshrl.u32 %v143, 7
    %v145 = vsub.s32 0, %v144
    %v146 = vrot.slane %v141, %v145
    %v147 = vlaneseq
    %v148 = vshrl.u32 %v147, 7
    %v149 = vsub.s32 1, %v148
    %v150 = vrot.slane %v141, %v149
    %v151 = vlaneseq
    %v152 = vshrl.u32 %v151, 7
    %v153 = vsub.s32 2, %v152
    %v154 = vrot.slane %v141, %v153
    %158 = vmatprep.subr.mxu0 %v94
    %159 = vmatpush1.msra.mxu0 %v93
    %160 = vmatprep.subr.mxu0 %v97
    %161 = vmatpush1.msra.mxu0 %v96
    %162 = vmatprep.subr.mxu0 %v100
    %163 = vmatpush1.msra.mxu0 %v99
    %164 = vmatprep.subr.mxu0 %v103
    %165 = vmatpush1.msra.mxu0 %v102
    %166 = vmatprep.subr.mxu0 %v106
    %167 = vmatpush1.msra.mxu0 %v105
    %168 = vmatprep.subr.mxu0 %v109
    %169 = vmatpush1.msra.mxu0 %v108
    %170 = vmatprep.subr.mxu0 %v112
    %171 = vmatpush1.msra.mxu0 %v111
    %172 = vmatprep.subr.mxu0 %v115
    %173 = vmatpush1.msra.mxu0 %v114
    %174 = vmatprep.subr.mxu0 %v118
    %175 = vmatpush1.msra.mxu0 %v117
    %176 = vmatprep.subr.mxu0 %v121
    %177 = vmatpush1.msra.mxu0 %v120
    %178 = vmatprep.subr.mxu0 %v124
    %179 = vmatpush1.msra.mxu0 %v123
    %180 = vmatprep.subr.mxu0 %v127
    %181 = vmatpush1.msra.mxu0 %v126
    %182 = vmatprep.subr.mxu0 %v130
    %183 = vmatpush1.msra.mxu0 %v129
    %184 = vmatprep.subr.mxu0 %v133
    %185 = vmatpush1.msra.mxu0 %v132
    %186 = vmatprep.subr.mxu0 %v136
    %187 = vmatpush1.msra.mxu0 %v135
    %188 = vmatprep.subr.mxu0 %v139
    %189 = vmatpush1.msra.mxu0 %v138
    %190 = vmatprep.subr.mxu0 0.0
    %191 = vmatpush1.msra.mxu0 0.0
    %192 = vmatprep.subr.mxu0 0.0
    %193 = vmatpush1.msra.mxu0 0.0
    %194 = vmatprep.subr.mxu0 0.0
    %195 = vmatpush1.msra.mxu0 0.0
    %196 = vmatprep.subr.mxu0 0.0
    %197 = vmatpush1.msra.mxu0 0.0
    %198 = vmatprep.subr.mxu0 0.0
    %199 = vmatpush1.msra.mxu0 0.0
    %200 = vmatprep.subr.mxu0 0.0
    %201 = vmatpush1.msra.mxu0 0.0
    %202 = vmatprep.subr.mxu0 0.0
    %203 = vmatpush1.msra.mxu0 0.0
    %204 = vmatprep.subr.mxu0 0.0
    %205 = vmatpush1.msra.mxu0 0.0
    %206 = vmatprep.subr.mxu0 0.0
    %207 = vmatpush1.msra.mxu0 0.0
    %208 = vmatprep.subr.mxu0 0.0
    %209 = vmatpush1.msra.mxu0 0.0
    %210 = vmatprep.subr.mxu0 0.0
    %211 = vmatpush1.msra.mxu0 0.0
    %212 = vmatprep.subr.mxu0 0.0
    %213 = vmatpush1.msra.mxu0 0.0
    %214 = vmatprep.subr.mxu0 0.0
    %215 = vmatpush1.msra.mxu0 0.0
    %216 = vmatprep.subr.mxu0 0.0
    %217 = vmatpush1.msra.mxu0 0.0
    %218 = vmatprep.subr.mxu0 0.0
    %219 = vmatpush1.msra.mxu0 0.0
    %220 = vmatprep.subr.mxu0 0.0
    %221 = vmatpush1.msra.mxu0 0.0
    %222 = vmatprep.mubr.f32.mxu0 0.0
    %223 = vmatmul.mubr.f32.gmra.mrb[0].mxu0 %v85
    %v224 = vpop.f32.mrb[0].mxu0
    %v225 = vadd.f32 %v146, %v224
    %v226 = vpop.f32.mrb[0].mxu0
    %v227 = vadd.f32 %v150, %v226
    %228 = vmatprep.mubr.f32.mxu0 0.0
    %229 = vmatmul.mubr.f32.gmra.mrb[0].mxu0 %v86
    %v230 = vpop.f32.mrb[0].mxu0
    %v231 = vadd.f32 %v146, %v230
    %v232 = vpop.f32.mrb[0].mxu0
    %v233 = vadd.f32 %v150, %v232
    %234 = vmatprep.mubr.f32.mxu0 0.0
    %235 = vmatmul.mubr.f32.gmra.mrb[0].mxu0 %v87
    %v236 = vpop.f32.mrb[0].mxu0
    %v237 = vadd.f32 %v146, %v236
    %v238 = vpop.f32.mrb[0].mxu0
    %v239 = vadd.f32 %v150, %v238
    %240 = vmatprep.mubr.f32.mxu0 0.0
    %241 = vmatmul.mubr.f32.gmra.mrb[0].mxu0 %v88
    %v242 = vpop.f32.mrb[0].mxu0
    %v243 = vadd.f32 %v146, %v242
    %v244 = vpop.f32.mrb[0].mxu0
    %v245 = vadd.f32 %v150, %v244
    %246 = vmatprep.mubr.f32.mxu0 0.0
    %247 = vmatmul.mubr.f32.gmra.mrb[0].mxu0 %v89
    %v248 = vpop.f32.mrb[0].mxu0
    %v249 = vadd.f32 %v146, %v248
    %v250 = vpop.f32.mrb[0].mxu0
    %v251 = vadd.f32 %v150, %v250
    %252 = vmatprep.mubr.f32.mxu0 0.0
    %253 = vmatmul.mubr.f32.gmra.mrb[0].mxu0 %v90
    %v254 = vpop.f32.mrb[0].mxu0
    %v255 = vadd.f32 %v146, %v254
    %v256 = vpop.f32.mrb[0].mxu0
    %v257 = vadd.f32 %v150, %v256
    %258 = vmatprep.mubr.f32.mxu0 0.0
    %259 = vmatmul.mubr.f32.gmra.mrb[0].mxu0 %v91
    %v260 = vpop.f32.mrb[0].mxu0
    %v261 = vadd.f32 %v146, %v260
    %v262 = vpop.f32.mrb[0].mxu0
    %v263 = vadd.f32 %v150, %v262
    %264 = vmatprep.mubr.f32.mxu0 0.0
    %265 = vmatmul.mubr.f32.gmra.mrb[0].mxu0 %v92
    %v266 = vpop.f32.mrb[0].mxu0
    %v267 = vadd.f32 %v146, %v266
    %v268 = vpop.f32.mrb[0].mxu0
    %v269 = vadd.f32 %v150, %v268
    %270 = vdwg.mxu0
    %271 = vmatprep.subr.mxu0 0.0
    %272 = vmatpush1.msra.mxu0 %v95
    %273 = vmatprep.subr.mxu0 0.0
    %274 = vmatpush1.msra.mxu0 %v98
    %275 = vmatprep.subr.mxu0 0.0
    %276 = vmatpush1.msra.mxu0 %v101
    %277 = vmatprep.subr.mxu0 0.0
    %278 = vmatpush1.msra.mxu0 %v104
    %279 = vmatprep.subr.mxu0 0.0
    %280 = vmatpush1.msra.mxu0 %v107
    %281 = vmatprep.subr.mxu0 0.0
    %282 = vmatpush1.msra.mxu0 %v110
    %283 = vmatprep.subr.mxu0 0.0
    %284 = vmatpush1.msra.mxu0 %v113
    %285 = vmatprep.subr.mxu0 0.0
    %286 = vmatpush1.msra.mxu0 %v116
    %287 = vmatprep.subr.mxu0 0.0
    %288 = vmatpush1.msra.mxu0 %v119
    %289 = vmatprep.subr.mxu0 0.0
    %290 = vmatpush1.msra.mxu0 %v122
    %291 = vmatprep.subr.mxu0 0.0
    %292 = vmatpush1.msra.mxu0 %v125
    %293 = vmatprep.subr.mxu0 0.0
    %294 = vmatpush1.msra.mxu0 %v128
    %295 = vmatprep.subr.mxu0 0.0
    %296 = vmatpush1.msra.mxu0 %v131
    %297 = vmatprep.subr.mxu0 0.0
    %298 = vmatpush1.msra.mxu0 %v134
    %299 = vmatprep.subr.mxu0 0.0
    %300 = vmatpush1.msra.mxu0 %v137
    %301 = vmatprep.subr.mxu0 0.0
    %302 = vmatpush1.msra.mxu0 %v140
    %303 = vmatprep.subr.mxu0 0.0
    %304 = vmatpush1.msra.mxu0 0.0
    %305 = vmatprep.subr.mxu0 0.0
    %306 = vmatpush1.msra.mxu0 0.0
    %307 = vmatprep.subr.mxu0 0.0
    %308 = vmatpush1.msra.mxu0 0.0
    %309 = vmatprep.subr.mxu0 0.0
    %310 = vmatpush1.msra.mxu0 0.0
    %311 = vmatprep.subr.mxu0 0.0
    %312 = vmatpush1.msra.mxu0 0.0
    %313 = vmatprep.subr.mxu0 0.0
    %314 = vmatpush1.msra.mxu0 0.0
    %315 = vmatprep.subr.mxu0 0.0
    %316 = vmatpush1.msra.mxu0 0.0
    %317 = vmatprep.subr.mxu0 0.0
    %318 = vmatpush1.msra.mxu0 0.0
    %319 = vmatprep.subr.mxu0 0.0
    %320 = vmatpush1.msra.mxu0 0.0
    %321 = vmatprep.subr.mxu0 0.0
    %322 = vmatpush1.msra.mxu0 0.0
    %323 = vmatprep.subr.mxu0 0.0
    %324 = vmatpush1.msra.mxu0 0.0
    %325 = vmatprep.subr.mxu0 0.0
    %326 = vmatpush1.msra.mxu0 0.0
    %327 = vmatprep.subr.mxu0 0.0
    %328 = vmatpush1.msra.mxu0 0.0
    %329 = vmatprep.subr.mxu0 0.0
    %330 = vmatpush1.msra.mxu0 0.0
    %331 = vmatprep.subr.mxu0 0.0
    %332 = vmatpush1.msra.mxu0 0.0
    %333 = vmatprep.subr.mxu0 0.0
    %334 = vmatpush1.msra.mxu0 0.0
    %335 = vmatprep.mubr.f32.mxu0 0.0
    %336 = vmatmul.mubr.f32.gmra.mrb[0].mxu0 %v85
    %v337 = vpop.f32.mrb[0].mxu0
    %v338 = vadd.f32 %v154, %v337
    %v339 = vpop.f32.mrb[0].mxu0
    %340 = vmatprep.mubr.f32.mxu0 0.0
    %341 = vmatmul.mubr.f32.gmra.mrb[0].mxu0 %v86
    %v342 = vpop.f32.mrb[0].mxu0
    %v343 = vadd.f32 %v154, %v342
    %v344 = vpop.f32.mrb[0].mxu0
    %345 = vmatprep.mubr.f32.mxu0 0.0
    %346 = vmatmul.mubr.f32.gmra.mrb[0].mxu0 %v87
    %v347 = vpop.f32.mrb[0].mxu0
    %v348 = vadd.f32 %v154, %v347
    %v349 = vpop.f32.mrb[0].mxu0
    %350 = vmatprep.mubr.f32.mxu0 0.0
    %351 = vmatmul.mubr.f32.gmra.mrb[0].mxu0 %v88
    %v352 = vpop.f32.mrb[0].mxu0
    %v353 = vadd.f32 %v154, %v352
    %v354 = vpop.f32.mrb[0].mxu0
    %355 = vmatprep.mubr.f32.mxu0 0.0
    %356 = vmatmul.mubr.f32.gmra.mrb[0].mxu0 %v89
    %v357 = vpop.f32.mrb[0].mxu0
    %v358 = vadd.f32 %v154, %v357
    %v359 = vpop.f32.mrb[0].mxu0
    %360 = vmatprep.mubr.f32.mxu0 0.0
    %361 = vmatmul.mubr.f32.gmra.mrb[0].mxu0 %v90
    %v362 = vpop.f32.mrb[0].mxu0
    %v363 = vadd.f32 %v154, %v362
    %v364 = vpop.f32.mrb[0].mxu0
    %365 = vmatprep.mubr.f32.mxu0 0.0
    %366 = vmatmul.mubr.f32.gmra.mrb[0].mxu0 %v91
    %v367 = vpop.f32.mrb[0].mxu0
    %v368 = vadd.f32 %v154, %v367
    %v369 = vpop.f32.mrb[0].mxu0
    %370 = vmatprep.mubr.f32.mxu0 0.0
    %371 = vmatmul.mubr.f32.gmra.mrb[0].mxu0 %v92
    %v372 = vpop.f32.mrb[0].mxu0
    %v373 = vadd.f32 %v154, %v372
    %v374 = vpop.f32.mrb[0].mxu0
    %375 = vdwg.mxu0
    %376 = vst [vmem:[#allocation2] sm:$0xff] %v225
    %377 = vst [vmem:[#allocation2 + $0x8] sm:$0xff] %v227
    %378 = vst [vmem:[#allocation2 + $0x10] sm:$0xff] %v338
    %379 = vst [vmem:[#allocation2 + $0x18] sm:$0xff] %v231
    %380 = vst [vmem:[#allocation2 + $0x20] sm:$0xff] %v233
    %381 = vst [vmem:[#allocation2 + $0x28] sm:$0xff] %v343
    %382 = vst [vmem:[#allocation2 + $0x30] sm:$0xff] %v237
    %383 = vst [vmem:[#allocation2 + $0x38] sm:$0xff] %v239
    %384 = vst [vmem:[#allocation2 + $0x40] sm:$0xff] %v348
    %385 = vst [vmem:[#allocation2 + $0x48] sm:$0xff] %v243
    %386 = vst [vmem:[#allocation2 + $0x50] sm:$0xff] %v245
    %387 = vst [vmem:[#allocation2 + $0x58] sm:$0xff] %v353
    %388 = vst [vmem:[#allocation2 + $0x60] sm:$0xff] %v249
    %389 = vst [vmem:[#allocation2 + $0x68] sm:$0xff] %v251
    %390 = vst [vmem:[#allocation2 + $0x70] sm:$0xff] %v358
    %391 = vst [vmem:[#allocation2 + $0x78] sm:$0xff] %v255
    %392 = vst [vmem:[#allocation2 + $0x80] sm:$0xff] %v257
    %393 = vst [vmem:[#allocation2 + $0x88] sm:$0xff] %v363
    %394 = vst [vmem:[#allocation2 + $0x90] sm:$0xff] %v261
    %395 = vst [vmem:[#allocation2 + $0x98] sm:$0xff] %v263
    %396 = vst [vmem:[#allocation2 + $0xa0] sm:$0xff] %v368
    %397 = vst [vmem:[#allocation2 + $0xa8] sm:$0xff] %v267
    %398 = vst [vmem:[#allocation2 + $0xb0] sm:$0xff] %v269
    %399 = vst [vmem:[#allocation2 + $0xb8] sm:$0xff] %v373
    %v400 = vld [vmem:[#allocation8] sm:$0xff]
    %v401 = vld [vmem:[#allocation8 + $0x8] sm:$0xff]
    %v402 = vld [vmem:[#allocation8 + $0x10] sm:$0xff]
    %v403 = vld [vmem:[#allocation8 + $0x18] sm:$0xff]
    %v404 = vld [vmem:[#allocation8 + $0x20] sm:$0xff]
    %v405 = vld [vmem:[#allocation8 + $0x28] sm:$0xff]
    %v406 = vld [vmem:[#allocation8 + $0x30] sm:$0xff]
    %v407 = vld [vmem:[#allocation8 + $0x38] sm:$0xff]
    %v408 = vld [vmem:[#allocation8 + $0x40] sm:$0xff]
    %v409 = vld [vmem:[#allocation8 + $0x48] sm:$0xff]
    %v410 = vld [vmem:[#allocation8 + $0x50] sm:$0xff]
    %v411 = vld [vmem:[#allocation8 + $0x58] sm:$0xff]
    %v412 = vld [vmem:[#allocation8 + $0x60] sm:$0xff]
    %v413 = vld [vmem:[#allocation8 + $0x68] sm:$0xff]
    %v414 = vld [vmem:[#allocation8 + $0x70] sm:$0xff]
    %v415 = vld [vmem:[#allocation8 + $0x78] sm:$0xff]
    %v416 = vld [vmem:[#allocation8 + $0x80] sm:$0xff]
    %v417 = vld [vmem:[#allocation8 + $0x88] sm:$0xff]
    %v418 = vld [vmem:[#allocation8 + $0x90] sm:$0xff]
    %v419 = vld [vmem:[#allocation8 + $0x98] sm:$0xff]
    %v420 = vld [vmem:[#allocation8 + $0xa0] sm:$0xff]
    %v421 = vld [vmem:[#allocation8 + $0xa8] sm:$0xff]
    %v422 = vld [vmem:[#allocation8 + $0xb0] sm:$0xff]
    %v423 = vld [vmem:[#allocation8 + $0xb8] sm:$0xff]
    %v424 = vld [vmem:[#allocation8 + $0xc0] sm:$0xff]
    %v425 = vld [vmem:[#allocation8 + $0xc8] sm:$0xff]
    %v426 = vld [vmem:[#allocation8 + $0xd0] sm:$0xff]
    %v427 = vld [vmem:[#allocation8 + $0xd8] sm:$0xff]
    %v428 = vld [vmem:[#allocation8 + $0xe0] sm:$0xff]
    %v429 = vld [vmem:[#allocation8 + $0xe8] sm:$0xff]
    %v430 = vld [vmem:[#allocation8 + $0xf0] sm:$0xff]
    %v431 = vld [vmem:[#allocation8 + $0xf8] sm:$0xff]
    %v432 = vld [vmem:[#allocation8 + $0x100] sm:$0xff]
    %v433 = vld [vmem:[#allocation8 + $0x108] sm:$0xff]
    %v434 = vld [vmem:[#allocation8 + $0x110] sm:$0xff]
    %v435 = vld [vmem:[#allocation8 + $0x118] sm:$0xff]
    %v436 = vld [vmem:[#allocation8 + $0x120] sm:$0xff]
    %v437 = vld [vmem:[#allocation8 + $0x128] sm:$0xff]
    %v438 = vld [vmem:[#allocation8 + $0x130] sm:$0xff]
    %v439 = vld [vmem:[#allocation8 + $0x138] sm:$0xff]
    %v440 = vld [vmem:[#allocation8 + $0x140] sm:$0xff]
    %v441 = vld [vmem:[#allocation8 + $0x148] sm:$0xff]
    %v442 = vld [vmem:[#allocation8 + $0x150] sm:$0xff]
    %v443 = vld [vmem:[#allocation8 + $0x158] sm:$0xff]
    %v444 = vld [vmem:[#allocation8 + $0x160] sm:$0xff]
    %v445 = vld [vmem:[#allocation8 + $0x168] sm:$0xff]
    %v446 = vld [vmem:[#allocation8 + $0x170] sm:$0xff]
    %v447 = vld [vmem:[#allocation8 + $0x178] sm:$0xff]
    %v448 = vld [vmem:[#allocation11] sm:$0x7]
    %v450 = vlaneseq
    %v451 = vshrl.u32 %v450, 7
    %v452 = vsub.s32 0, %v451
    %v453 = vrot.slane %v448, %v452
    %v454 = vlaneseq
    %v455 = vshrl.u32 %v454, 7
    %v456 = vsub.s32 1, %v455
    %v457 = vrot.slane %v448, %v456
    %v458 = vlaneseq
    %v459 = vshrl.u32 %v458, 7
    %v460 = vsub.s32 2, %v459
    %v461 = vrot.slane %v448, %v460
    %s465 = smul.u32 0, 3
    %s466 = smul.addr %s465, 8
    %s467 = scalar_lea.vmem [#allocation2], %s466
    %v468 = vld [vmem:[%s467] sm:$0xff]
    %v469 = vld [vmem:[%s467 + $0x8] sm:$0xff]
    %v470 = vld [vmem:[%s467 + $0x10] sm:$0xff]
    %471 = vmatprep.subr.mxu0 %v401
    %472 = vmatpush1.msra.mxu0 %v400
    %473 = vmatprep.subr.mxu0 %v404
    %474 = vmatpush1.msra.mxu0 %v403
    %475 = vmatprep.subr.mxu0 %v407
    %476 = vmatpush1.msra.mxu0 %v406
    %477 = vmatprep.subr.mxu0 %v410
    %478 = vmatpush1.msra.mxu0 %v409
    %479 = vmatprep.subr.mxu0 %v413
    %480 = vmatpush1.msra.mxu0 %v412
    %481 = vmatprep.subr.mxu0 %v416
    %482 = vmatpush1.msra.mxu0 %v415
    %483 = vmatprep.subr.mxu0 %v419
    %484 = vmatpush1.msra.mxu0 %v418
    %485 = vmatprep.subr.mxu0 %v422
    %486 = vmatpush1.msra.mxu0 %v421
    %487 = vmatprep.subr.mxu0 %v425
    %488 = vmatpush1.msra.mxu0 %v424
    %489 = vmatprep.subr.mxu0 %v428
    %490 = vmatpush1.msra.mxu0 %v427
    %491 = vmatprep.subr.mxu0 %v431
    %492 = vmatpush1.msra.mxu0 %v430
    %493 = vmatprep.subr.mxu0 %v434
    %494 = vmatpush1.msra.mxu0 %v433
    %495 = vmatprep.subr.mxu0 %v437
    %496 = vmatpush1.msra.mxu0 %v436
    %497 = vmatprep.subr.mxu0 %v440
    %498 = vmatpush1.msra.mxu0 %v439
    %499 = vmatprep.subr.mxu0 %v443
    %500 = vmatpush1.msra.mxu0 %v442
    %501 = vmatprep.subr.mxu0 %v446
    %502 = vmatpush1.msra.mxu0 %v445
    %503 = vmatprep.subr.mxu0 0.0
    %504 = vmatpush1.msra.mxu0 0.0
    %505 = vmatprep.subr.mxu0 0.0
    %506 = vmatpush1.msra.mxu0 0.0
    %507 = vmatprep.subr.mxu0 0.0
    %508 = vmatpush1.msra.mxu0 0.0
    %509 = vmatprep.subr.mxu0 0.0
    %510 = vmatpush1.msra.mxu0 0.0
    %511 = vmatprep.subr.mxu0 0.0
    %512 = vmatpush1.msra.mxu0 0.0
    %513 = vmatprep.subr.mxu0 0.0
    %514 = vmatpush1.msra.mxu0 0.0
    %515 = vmatprep.subr.mxu0 0.0
    %516 = vmatpush1.msra.mxu0 0.0
    %517 = vmatprep.subr.mxu0 0.0
    %518 = vmatpush1.msra.mxu0 0.0
    %519 = vmatprep.subr.mxu0 0.0
    %520 = vmatpush1.msra.mxu0 0.0
    %521 = vmatprep.subr.mxu0 0.0
    %522 = vmatpush1.msra.mxu0 0.0
    %523 = vmatprep.subr.mxu0 0.0
    %524 = vmatpush1.msra.mxu0 0.0
    %525 = vmatprep.subr.mxu0 0.0
    %526 = vmatpush1.msra.mxu0 0.0
    %527 = vmatprep.subr.mxu0 0.0
    %528 = vmatpush1.msra.mxu0 0.0
    %529 = vmatprep.subr.mxu0 0.0
    %530 = vmatpush1.msra.mxu0 0.0
    %531 = vmatprep.subr.mxu0 0.0
    %532 = vmatpush1.msra.mxu0 0.0
    %533 = vmatprep.subr.mxu0 0.0
    %534 = vmatpush1.msra.mxu0 0.0
    %535 = vmatprep.mubr.f32.mxu0 0.0
    %536 = vmatmul.mubr.f32.gmra.mrb[0].mxu0 0.0
    %v537 = vpop.f32.mrb[0].mxu0
    %v538 = vadd.f32 %v453, %v537
    %v539 = vpop.f32.mrb[0].mxu0
    %v540 = vadd.f32 %v457, %v539
    %541 = vdwg.mxu0
    %542 = vmatprep.subr.mxu0 0.0
    %543 = vmatpush1.msra.mxu0 %v402
    %544 = vmatprep.subr.mxu0 0.0
    %545 = vmatpush1.msra.mxu0 %v405
    %546 = vmatprep.subr.mxu0 0.0
    %547 = vmatpush1.msra.mxu0 %v408
    %548 = vmatprep.subr.mxu0 0.0
    %549 = vmatpush1.msra.mxu0 %v411
    %550 = vmatprep.subr.mxu0 0.0
    %551 = vmatpush1.msra.mxu0 %v414
    %552 = vmatprep.subr.mxu0 0.0
    %553 = vmatpush1.msra.mxu0 %v417
    %554 = vmatprep.subr.mxu0 0.0
    %555 = vmatpush1.msra.mxu0 %v420
    %556 = vmatprep.subr.mxu0 0.0
    %557 = vmatpush1.msra.mxu0 %v423
    %558 = vmatprep.subr.mxu0 0.0
    %559 = vmatpush1.msra.mxu0 %v426
    %560 = vmatprep.subr.mxu0 0.0
    %561 = vmatpush1.msra.mxu0 %v429
    %562 = vmatprep.subr.mxu0 0.0
    %563 = vmatpush1.msra.mxu0 %v432
    %564 = vmatprep.subr.mxu0 0.0
    %565 = vmatpush1.msra.mxu0 %v435
    %566 = vmatprep.subr.mxu0 0.0
    %567 = vmatpush1.msra.mxu0 %v438
    %568 = vmatprep.subr.mxu0 0.0
    %569 = vmatpush1.msra.mxu0 %v441
    %570 = vmatprep.subr.mxu0 0.0
    %571 = vmatpush1.msra.mxu0 %v444
    %572 = vmatprep.subr.mxu0 0.0
    %573 = vmatpush1.msra.mxu0 %v447
    %574 = vmatprep.subr.mxu0 0.0
    %575 = vmatpush1.msra.mxu0 0.0
    %576 = vmatprep.subr.mxu0 0.0
    %577 = vmatpush1.msra.mxu0 0.0
    %578 = vmatprep.subr.mxu0 0.0
    %579 = vmatpush1.msra.mxu0 0.0
    %580 = vmatprep.subr.mxu0 0.0
    %581 = vmatpush1.msra.mxu0 0.0
    %582 = vmatprep.subr.mxu0 0.0
    %583 = vmatpush1.msra.mxu0 0.0
    %584 = vmatprep.subr.mxu0 0.0
    %585 = vmatpush1.msra.mxu0 0.0
    %586 = vmatprep.subr.mxu0 0.0
    %587 = vmatpush1.msra.mxu0 0.0
    %588 = vmatprep.subr.mxu0 0.0
    %589 = vmatpush1.msra.mxu0 0.0
    %590 = vmatprep.subr.mxu0 0.0
    %591 = vmatpush1.msra.mxu0 0.0
    %592 = vmatprep.subr.mxu0 0.0
    %593 = vmatpush1.msra.mxu0 0.0
    %594 = vmatprep.subr.mxu0 0.0
    %595 = vmatpush1.msra.mxu0 0.0
    %596 = vmatprep.subr.mxu0 0.0
    %597 = vmatpush1.msra.mxu0 0.0
    %598 = vmatprep.subr.mxu0 0.0
    %599 = vmatpush1.msra.mxu0 0.0
    %600 = vmatprep.subr.mxu0 0.0
    %601 = vmatpush1.msra.mxu0 0.0
    %602 = vmatprep.subr.mxu0 0.0
    %603 = vmatpush1.msra.mxu0 0.0
    %604 = vmatprep.subr.mxu0 0.0
    %605 = vmatpush1.msra.mxu0 0.0
    %606 = vmatprep.mubr.f32.mxu0 0.0
    %607 = vmatmul.mubr.f32.gmra.mrb[0].mxu0 0.0
    %v608 = vpop.f32.mrb[0].mxu0
    %v609 = vadd.f32 %v461, %v608
    %v610 = vpop.f32.mrb[0].mxu0
    %611 = vdwg.mxu0
    %v612 = vadd.f32 %v468, %v538
    %v613 = vxor.u32 %v612, 2147483648
    %v614 = vmul.f32 %v613, 1.442695
    %v615 = vpow.pop %v614
    %v616 = vadd.f32 %v615, 1.0
    %v617 = vrcp.pop %v616
    %v618 = vmul.f32 1.0, %v617
    %v619 = vadd.f32 %v469, %v540
    %v620 = vxor.u32 %v619, 2147483648
    %v621 = vmul.f32 %v620, 1.442695
    %v622 = vpow.pop %v621
    %v623 = vadd.f32 %v622, 1.0
    %v624 = vrcp.pop %v623
    %v625 = vmul.f32 1.0, %v624
    %v626 = vmul.f32 %v618, %v609
    %v627 = vadd.f32 %v470, %v626
    %v628 = vtanh.pop %v627
    %v629 = vsub.f32 1.0, %v625
    %v630 = vmul.f32 %v629, %v628
    %v631 = vmul.f32 %v625, 0.0
    %v632 = vadd.f32 %v630, %v631
    %s633 = smul.u32 1, 3
    %s634 = smul.addr %s633, 8
    %s635 = scalar_lea.vmem [#allocation2], %s634
    %v636 = vld [vmem:[%s635] sm:$0xff]
    %v637 = vld [vmem:[%s635 + $0x8] sm:$0xff]
    %v638 = vld [vmem:[%s635 + $0x10] sm:$0xff]
    %639 = vmatprep.subr.mxu0 %v401
    %640 = vmatpush1.msra.mxu0 %v400
    %641 = vmatprep.subr.mxu0 %v404
    %642 = vmatpush1.msra.mxu0 %v403
    %643 = vmatprep.subr.mxu0 %v407
    %644 = vmatpush1.msra.mxu0 %v406
    %645 = vmatprep.subr.mxu0 %v410
    %646 = vmatpush1.msra.mxu0 %v409
    %647 = vmatprep.subr.mxu0 %v413
    %648 = vmatpush1.msra.mxu0 %v412
    %649 = vmatprep.subr.mxu0 %v416
    %650 = vmatpush1.msra.mxu0 %v415
    %651 = vmatprep.subr.mxu0 %v419
    %652 = vmatpush1.msra.mxu0 %v418
    %653 = vmatprep.subr.mxu0 %v422
    %654 = vmatpush1.msra.mxu0 %v421
    %655 = vmatprep.subr.mxu0 %v425
    %656 = vmatpush1.msra.mxu0 %v424
    %657 = vmatprep.subr.mxu0 %v428
    %658 = vmatpush1.msra.mxu0 %v427
    %659 = vmatprep.subr.mxu0 %v431
    %660 = vmatpush1.msra.mxu0 %v430
    %661 = vmatprep.subr.mxu0 %v434
    %662 = vmatpush1.msra.mxu0 %v433
    %663 = vmatprep.subr.mxu0 %v437
    %664 = vmatpush1.msra.mxu0 %v436
    %665 = vmatprep.subr.mxu0 %v440
    %666 = vmatpush1.msra.mxu0 %v439
    %667 = vmatprep.subr.mxu0 %v443
    %668 = vmatpush1.msra.mxu0 %v442
    %669 = vmatprep.subr.mxu0 %v446
    %670 = vmatpush1.msra.mxu0 %v445
    %671 = vmatprep.subr.mxu0 0.0
    %672 = vmatpush1.msra.mxu0 0.0
    %673 = vmatprep.subr.mxu0 0.0
    %674 = vmatpush1.msra.mxu0 0.0
    %675 = vmatprep.subr.mxu0 0.0
    %676 = vmatpush1.msra.mxu0 0.0
    %677 = vmatprep.subr.mxu0 0.0
    %678 = vmatpush1.msra.mxu0 0.0
    %679 = vmatprep.subr.mxu0 0.0
    %680 = vmatpush1.msra.mxu0 0.0
    %681 = vmatprep.subr.mxu0 0.0
    %682 = vmatpush1.msra.mxu0 0.0
    %683 = vmatprep.subr.mxu0 0.0
    %684 = vmatpush1.msra.mxu0 0.0
    %685 = vmatprep.subr.mxu0 0.0
    %686 = vmatpush1.msra.mxu0 0.0
    %687 = vmatprep.subr.mxu0 0.0
    %688 = vmatpush1.msra.mxu0 0.0
    %689 = vmatprep.subr.mxu0 0.0
    %690 = vmatpush1.msra.mxu0 0.0
    %691 = vmatprep.subr.mxu0 0.0
    %692 = vmatpush1.msra.mxu0 0.0
    %693 = vmatprep.subr.mxu0 0.0
    %694 = vmatpush1.msra.mxu0 0.0
    %695 = vmatprep.subr.mxu0 0.0
    %696 = vmatpush1.msra.mxu0 0.0
    %697 = vmatprep.subr.mxu0 0.0
    %698 = vmatpush1.msra.mxu0 0.0
    %699 = vmatprep.subr.mxu0 0.0
    %700 = vmatpush1.msra.mxu0 0.0
    %701 = vmatprep.subr.mxu0 0.0
    %702 = vmatpush1.msra.mxu0 0.0
    %703 = vmatprep.mubr.f32.mxu0 0.0
    %704 = vmatmul.mubr.f32.gmra.mrb[0].mxu0 %v632
    %v705 = vpop.f32.mrb[0].mxu0
    %v706 = vadd.f32 %v453, %v705
    %v707 = vpop.f32.mrb[0].mxu0
    %v708 = vadd.f32 %v457, %v707
    %709 = vdwg.mxu0
    %710 = vmatprep.subr.mxu0 0.0
    %711 = vmatpush1.msra.mxu0 %v402
    %712 = vmatprep.subr.mxu0 0.0
    %713 = vmatpush1.msra.mxu0 %v405
    %714 = vmatprep.subr.mxu0 0.0
    %715 = vmatpush1.msra.mxu0 %v408
    %716 = vmatprep.subr.mxu0 0.0
    %717 = vmatpush1.msra.mxu0 %v411
    %718 = vmatprep.subr.mxu0 0.0
    %719 = vmatpush1.msra.mxu0 %v414
    %720 = vmatprep.subr.mxu0 0.0
    %721 = vmatpush1.msra.mxu0 %v417
    %722 = vmatprep.subr.mxu0 0.0
    %723 = vmatpush1.msra.mxu0 %v420
    %724 = vmatprep.subr.mxu0 0.0
    %725 = vmatpush1.msra.mxu0 %v423
    %726 = vmatprep.subr.mxu0 0.0
    %727 = vmatpush1.msra.mxu0 %v426
    %728 = vmatprep.subr.mxu0 0.0
    %729 = vmatpush1.msra.mxu0 %v429
    %730 = vmatprep.subr.mxu0 0.0
    %731 = vmatpush1.msra.mxu0 %v432
    %732 = vmatprep.subr.mxu0 0.0
    %733 = vmatpush1.msra.mxu0 %v435
    %734 = vmatprep.subr.mxu0 0.0
    %735 = vmatpush1.msra.mxu0 %v438
    %736 = vmatprep.subr.mxu0 0.0
    %737 = vmatpush1.msra.mxu0 %v441
    %738 = vmatprep.subr.mxu0 0.0
    %739 = vmatpush1.msra.mxu0 %v444
    %740 = vmatprep.subr.mxu0 0.0
    %741 = vmatpush1.msra.mxu0 %v447
    %742 = vmatprep.subr.mxu0 0.0
    %743 = vmatpush1.msra.mxu0 0.0
    %744 = vmatprep.subr.mxu0 0.0
    %745 = vmatpush1.msra.mxu0 0.0
    %746 = vmatprep.subr.mxu0 0.0
    %747 = vmatpush1.msra.mxu0 0.0
    %748 = vmatprep.subr.mxu0 0.0
    %749 = vmatpush1.msra.mxu0 0.0
    %750 = vmatprep.subr.mxu0 0.0
    %751 = vmatpush1.msra.mxu0 0.0
    %752 = vmatprep.subr.mxu0 0.0
    %753 = vmatpush1.msra.mxu0 0.0
    %754 = vmatprep.subr.mxu0 0.0
    %755 = vmatpush1.msra.mxu0 0.0
    %756 = vmatprep.subr.mxu0 0.0
    %757 = vmatpush1.msra.mxu0 0.0
    %758 = vmatprep.subr.mxu0 0.0
    %759 = vmatpush1.msra.mxu0 0.0
    %760 = vmatprep.subr.mxu0 0.0
    %761 = vmatpush1.msra.mxu0 0.0
    %762 = vmatprep.subr.mxu0 0.0
    %763 = vmatpush1.msra.mxu0 0.0
    %764 = vmatprep.subr.mxu0 0.0
    %765 = vmatpush1.msra.mxu0 0.0
    %766 = vmatprep.subr.mxu0 0.0
    %767 = vmatpush1.msra.mxu0 0.0
    %768 = vmatprep.subr.mxu0 0.0
    %769 = vmatpush1.msra.mxu0 0.0
    %770 = vmatprep.subr.mxu0 0.0
    %771 = vmatpush1.msra.mxu0 0.0
    %772 = vmatprep.subr.mxu0 0.0
    %773 = vmatpush1.msra.mxu0 0.0
    %774 = vmatprep.mubr.f32.mxu0 0.0
    %775 = vmatmul.mubr.f32.gmra.mrb[0].mxu0 %v632
    %v776 = vpop.f32.mrb[0].mxu0
    %v777 = vadd.f32 %v461, %v776
    %v778 = vpop.f32.mrb[0].mxu0
    %779 = vdwg.mxu0
    %v780 = vadd.f32 %v636, %v706
    %v781 = vxor.u32 %v780, 2147483648
    %v782 = vmul.f32 %v781, 1.442695
    %v783 = vpow.pop %v782
    %v784 = vadd.f32 %v783, 1.0
    %v785 = vrcp.pop %v784
    %v786 = vmul.f32 1.0, %v785
    %v787 = vadd.f32 %v637, %v708
    %v788 = vxor.u32 %v787, 2147483648
    %v789 = vmul.f32 %v788, 1.442695
    %v790 = vpow.pop %v789
    %v791 = vadd.f32 %v790, 1.0
    %v792 = vrcp.pop %v791
    %v793 = vmul.f32 1.0, %v792
    %v794 = vmul.f32 %v786, %v777
    %v795 = vadd.f32 %v638, %v794
    %v796 = vtanh.pop %v795
    %v797 = vsub.f32 1.0, %v793
    %v798 = vmul.f32 %v797, %v796
    %v799 = vmul.f32 %v793, %v632
    %v800 = vadd.f32 %v798, %v799
    %s801 = smul.u32 2, 3
    %s802 = smul.addr %s801, 8
    %s803 = scalar_lea.vmem [#allocation2], %s802
    %v804 = vld [vmem:[%s803] sm:$0xff]
    %v805 = vld [vmem:[%s803 + $0x8] sm:$0xff]
    %v806 = vld [vmem:[%s803 + $0x10] sm:$0xff]
    %807 = vmatprep.subr.mxu0 %v401
    %808 = vmatpush1.msra.mxu0 %v400
    %809 = vmatprep.subr.mxu0 %v404
    %810 = vmatpush1.msra.mxu0 %v403
    %811 = vmatprep.subr.mxu0 %v407
    %812 = vmatpush1.msra.mxu0 %v406
    %813 = vmatprep.subr.mxu0 %v410
    %814 = vmatpush1.msra.mxu0 %v409
    %815 = vmatprep.subr.mxu0 %v413
    %816 = vmatpush1.msra.mxu0 %v412
    %817 = vmatprep.subr.mxu0 %v416
    %818 = vmatpush1.msra.mxu0 %v415
    %819 = vmatprep.subr.mxu0 %v419
    %820 = vmatpush1.msra.mxu0 %v418
    %821 = vmatprep.subr.mxu0 %v422
    %822 = vmatpush1.msra.mxu0 %v421
    %823 = vmatprep.subr.mxu0 %v425
    %824 = vmatpush1.msra.mxu0 %v424
    %825 = vmatprep.subr.mxu0 %v428
    %826 = vmatpush1.msra.mxu0 %v427
    %827 = vmatprep.subr.mxu0 %v431
    %828 = vmatpush1.msra.mxu0 %v430
    %829 = vmatprep.subr.mxu0 %v434
    %830 = vmatpush1.msra.mxu0 %v433
    %831 = vmatprep.subr.mxu0 %v437
    %832 = vmatpush1.msra.mxu0 %v436
    %833 = vmatprep.subr.mxu0 %v440
    %834 = vmatpush1.msra.mxu0 %v439
    %835 = vmatprep.subr.mxu0 %v443
    %836 = vmatpush1.msra.mxu0 %v442
    %837 = vmatprep.subr.mxu0 %v446
    %838 = vmatpush1.msra.mxu0 %v445
    %839 = vmatprep.subr.mxu0 0.0
    %840 = vmatpush1.msra.mxu0 0.0
    %841 = vmatprep.subr.mxu0 0.0
    %842 = vmatpush1.msra.mxu0 0.0
    %843 = vmatprep.subr.mxu0 0.0
    %844 = vmatpush1.msra.mxu0 0.0
    %845 = vmatprep.subr.mxu0 0.0
    %846 = vmatpush1.msra.mxu0 0.0
    %847 = vmatprep.subr.mxu0 0.0
    %848 = vmatpush1.msra.mxu0 0.0
    %849 = vmatprep.subr.mxu0 0.0
    %850 = vmatpush1.msra.mxu0 0.0
    %851 = vmatprep.subr.mxu0 0.0
    %852 = vmatpush1.msra.mxu0 0.0
    %853 = vmatprep.subr.mxu0 0.0
    %854 = vmatpush1.msra.mxu0 0.0
    %855 = vmatprep.subr.mxu0 0.0
    %856 = vmatpush1.msra.mxu0 0.0
    %857 = vmatprep.subr.mxu0 0.0
    %858 = vmatpush1.msra.mxu0 0.0
    %859 = vmatprep.subr.mxu0 0.0
    %860 = vmatpush1.msra.mxu0 0.0
    %861 = vmatprep.subr.mxu0 0.0
    %862 = vmatpush1.msra.mxu0 0.0
    %863 = vmatprep.subr.mxu0 0.0
    %864 = vmatpush1.msra.mxu0 0.0
    %865 = vmatprep.subr.mxu0 0.0
    %866 = vmatpush1.msra.mxu0 0.0
    %867 = vmatprep.subr.mxu0 0.0
    %868 = vmatpush1.msra.mxu0 0.0
    %869 = vmatprep.subr.mxu0 0.0
    %870 = vmatpush1.msra.mxu0 0.0
    %871 = vmatprep.mubr.f32.mxu0 0.0
    %872 = vmatmul.mubr.f32.gmra.mrb[0].mxu0 %v800
    %v873 = vpop.f32.mrb[0].mxu0
    %v874 = vadd.f32 %v453, %v873
    %v875 = vpop.f32.mrb[0].mxu0
    %v876 = vadd.f32 %v457, %v875
    %877 = vdwg.mxu0
    %878 = vmatprep.subr.mxu0 0.0
    %879 = vmatpush1.msra.mxu0 %v402
    %880 = vmatprep.subr.mxu0 0.0
    %881 = vmatpush1.msra.mxu0 %v405
    %882 = vmatprep.subr.mxu0 0.0
    %883 = vmatpush1.msra.mxu0 %v408
    %884 = vmatprep.subr.mxu0 0.0
    %885 = vmatpush1.msra.mxu0 %v411
    %886 = vmatprep.subr.mxu0 0.0
    %887 = vmatpush1.msra.mxu0 %v414
    %888 = vmatprep.subr.mxu0 0.0
    %889 = vmatpush1.msra.mxu0 %v417
    %890 = vmatprep.subr.mxu0 0.0
    %891 = vmatpush1.msra.mxu0 %v420
    %892 = vmatprep.subr.mxu0 0.0
    %893 = vmatpush1.msra.mxu0 %v423
    %894 = vmatprep.subr.mxu0 0.0
    %895 = vmatpush1.msra.mxu0 %v426
    %896 = vmatprep.subr.mxu0 0.0
    %897 = vmatpush1.msra.mxu0 %v429
    %898 = vmatprep.subr.mxu0 0.0
    %899 = vmatpush1.msra.mxu0 %v432
    %900 = vmatprep.subr.mxu0 0.0
    %901 = vmatpush1.msra.mxu0 %v435
    %902 = vmatprep.subr.mxu0 0.0
    %903 = vmatpush1.msra.mxu0 %v438
    %904 = vmatprep.subr.mxu0 0.0
    %905 = vmatpush1.msra.mxu0 %v441
    %906 = vmatprep.subr.mxu0 0.0
    %907 = vmatpush1.msra.mxu0 %v444
    %908 = vmatprep.subr.mxu0 0.0
    %909 = vmatpush1.msra.mxu0 %v447
    %910 = vmatprep.subr.mxu0 0.0
    %911 = vmatpush1.msra.mxu0 0.0
    %912 = vmatprep.subr.mxu0 0.0
    %913 = vmatpush1.msra.mxu0 0.0
    %914 = vmatprep.subr.mxu0 0.0
    %915 = vmatpush1.msra.mxu0 0.0
    %916 = vmatprep.subr.mxu0 0.0
    %917 = vmatpush1.msra.mxu0 0.0
    %918 = vmatprep.subr.mxu0 0.0
    %919 = vmatpush1.msra.mxu0 0.0
    %920 = vmatprep.subr.mxu0 0.0
    %921 = vmatpush1.msra.mxu0 0.0
    %922 = vmatprep.subr.mxu0 0.0
    %923 = vmatpush1.msra.mxu0 0.0
    %924 = vmatprep.subr.mxu0 0.0
    %925 = vmatpush1.msra.mxu0 0.0
    %926 = vmatprep.subr.mxu0 0.0
    %927 = vmatpush1.msra.mxu0 0.0
    %928 = vmatprep.subr.mxu0 0.0
    %929 = vmatpush1.msra.mxu0 0.0
    %930 = vmatprep.subr.mxu0 0.0
    %931 = vmatpush1.msra.mxu0 0.0
    %932 = vmatprep.subr.mxu0 0.0
    %933 = vmatpush1.msra.mxu0 0.0
    %934 = vmatprep.subr.mxu0 0.0
    %935 = vmatpush1.msra.mxu0 0.0
    %936 = vmatprep.subr.mxu0 0.0
    %937 = vmatpush1.msra.mxu0 0.0
    %938 = vmatprep.subr.mxu0 0.0
    %939 = vmatpush1.msra.mxu0 0.0
    %940 = vmatprep.subr.mxu0 0.0
    %941 = vmatpush1.msra.mxu0 0.0
    %942 = vmatprep.mubr.f32.mxu0 0.0
    %943 = vmatmul.mubr.f32.gmra.mrb[0].mxu0 %v800
    %v944 = vpop.f32.mrb[0].mxu0
    %v945 = vadd.f32 %v461, %v944
    %v946 = vpop.f32.mrb[0].mxu0
    %947 = vdwg.mxu0
    %v948 = vadd.f32 %v804, %v874
    %v949 = vxor.u32 %v948, 2147483648
    %v950 = vmul.f32 %v949, 1.442695
    %v951 = vpow.pop %v950
    %v952 = vadd.f32 %v951, 1.0
    %v953 = vrcp.pop %v952
    %v954 = vmul.f32 1.0, %v953
    %v955 = vadd.f32 %v805, %v876
    %v956 = vxor.u32 %v955, 2147483648
    %v957 = vmul.f32 %v956, 1.442695
    %v958 = vpow.pop %v957
    %v959 = vadd.f32 %v958, 1.0
    %v960 = vrcp.pop %v959
    %v961 = vmul.f32 1.0, %v960
    %v962 = vmul.f32 %v954, %v945
    %v963 = vadd.f32 %v806, %v962
    %v964 = vtanh.pop %v963
    %v965 = vsub.f32 1.0, %v961
    %v966 = vmul.f32 %v965, %v964
    %v967 = vmul.f32 %v961, %v800
    %v968 = vadd.f32 %v966, %v967
    %s969 = smul.u32 3, 3
    %s970 = smul.addr %s969, 8
    %s971 = scalar_lea.vmem [#allocation2], %s970
    %v972 = vld [vmem:[%s971] sm:$0xff]
    %v973 = vld [vmem:[%s971 + $0x8] sm:$0xff]
    %v974 = vld [vmem:[%s971 + $0x10] sm:$0xff]
    %975 = vmatprep.subr.mxu0 %v401
    %976 = vmatpush1.msra.mxu0 %v400
    %977 = vmatprep.subr.mxu0 %v404
    %978 = vmatpush1.msra.mxu0 %v403
    %979 = vmatprep.subr.mxu0 %v407
    %980 = vmatpush1.msra.mxu0 %v406
    %981 = vmatprep.subr.mxu0 %v410
    %982 = vmatpush1.msra.mxu0 %v409
    %983 = vmatprep.subr.mxu0 %v413
    %984 = vmatpush1.msra.mxu0 %v412
    %985 = vmatprep.subr.mxu0 %v416
    %986 = vmatpush1.msra.mxu0 %v415
    %987 = vmatprep.subr.mxu0 %v419
    %988 = vmatpush1.msra.mxu0 %v418
    %989 = vmatprep.subr.mxu0 %v422
    %990 = vmatpush1.msra.mxu0 %v421
    %991 = vmatprep.subr.mxu0 %v425
    %992 = vmatpush1.msra.mxu0 %v424
    %993 = vmatprep.subr.mxu0 %v428
    %994 = vmatpush1.msra.mxu0 %v427
    %995 = vmatprep.subr.mxu0 %v431
    %996 = vmatpush1.msra.mxu0 %v430
    %997 = vmatprep.subr.mxu0 %v434
    %998 = vmatpush1.msra.mxu0 %v433
    %999 = vmatprep.subr.mxu0 %v437
    %1000 = vmatpush1.msra.mxu0 %v436
    %1001 = vmatprep.subr.mxu0 %v440
    %1002 = vmatpush1.msra.mxu0 %v439
    %1003 = vmatprep.subr.mxu0 %v443
    %1004 = vmatpush1.msra.mxu0 %v442
    %1005 = vmatprep.subr.mxu0 %v446
    %1006 = vmatpush1.msra.mxu0 %v445
    %1007 = vmatprep.subr.mxu0 0.0
    %1008 = vmatpush1.msra.mxu0 0.0
    %1009 = vmatprep.subr.mxu0 0.0
    %1010 = vmatpush1.msra.mxu0 0.0
    %1011 = vmatprep.subr.mxu0 0.0
    %1012 = vmatpush1.msra.mxu0 0.0
    %1013 = vmatprep.subr.mxu0 0.0
    %1014 = vmatpush1.msra.mxu0 0.0
    %1015 = vmatprep.subr.mxu0 0.0
    %1016 = vmatpush1.msra.mxu0 0.0
    %1017 = vmatprep.subr.mxu0 0.0
    %1018 = vmatpush1.msra.mxu0 0.0
    %1019 = vmatprep.subr.mxu0 0.0
    %1020 = vmatpush1.msra.mxu0 0.0
    %1021 = vmatprep.subr.mxu0 0.0
    %1022 = vmatpush1.msra.mxu0 0.0
    %1023 = vmatprep.subr.mxu0 0.0
    %1024 = vmatpush1.msra.mxu0 0.0
    %1025 = vmatprep.subr.mxu0 0.0
    %1026 = vmatpush1.msra.mxu0 0.0
    %1027 = vmatprep.subr.mxu0 0.0
    %1028 = vmatpush1.msra.mxu0 0.0
    %1029 = vmatprep.subr.mxu0 0.0
    %1030 = vmatpush1.msra.mxu0 0.0
    %1031 = vmatprep.subr.mxu0 0.0
    %1032 = vmatpush1.msra.mxu0 0.0
    %1033 = vmatprep.subr.mxu0 0.0
    %1034 = vmatpush1.msra.mxu0 0.0
    %1035 = vmatprep.subr.mxu0 0.0
    %1036 = vmatpush1.msra.mxu0 0.0
    %1037 = vmatprep.subr.mxu0 0.0
    %1038 = vmatpush1.msra.mxu0 0.0
    %1039 = vmatprep.mubr.f32.mxu0 0.0
    %1040 = vmatmul.mubr.f32.gmra.mrb[0].mxu0 %v968
    %v1041 = vpop.f32.mrb[0].mxu0
    %v1042 = vadd.f32 %v453, %v1041
    %v1043 = vpop.f32.mrb[0].mxu0
    %v1044 = vadd.f32 %v457, %v1043
    %1045 = vdwg.mxu0
    %1046 = vmatprep.subr.mxu0 0.0
    %1047 = vmatpush1.msra.mxu0 %v402
    %1048 = vmatprep.subr.mxu0 0.0
    %1049 = vmatpush1.msra.mxu0 %v405
    %1050 = vmatprep.subr.mxu0 0.0
    %1051 = vmatpush1.msra.mxu0 %v408
    %1052 = vmatprep.subr.mxu0 0.0
    %1053 = vmatpush1.msra.mxu0 %v411
    %1054 = vmatprep.subr.mxu0 0.0
    %1055 = vmatpush1.msra.mxu0 %v414
    %1056 = vmatprep.subr.mxu0 0.0
    %1057 = vmatpush1.msra.mxu0 %v417
    %1058 = vmatprep.subr.mxu0 0.0
    %1059 = vmatpush1.msra.mxu0 %v420
    %1060 = vmatprep.subr.mxu0 0.0
    %1061 = vmatpush1.msra.mxu0 %v423
    %1062 = vmatprep.subr.mxu0 0.0
    %1063 = vmatpush1.msra.mxu0 %v426
    %1064 = vmatprep.subr.mxu0 0.0
    %1065 = vmatpush1.msra.mxu0 %v429
    %1066 = vmatprep.subr.mxu0 0.0
    %1067 = vmatpush1.msra.mxu0 %v432
    %1068 = vmatprep.subr.mxu0 0.0
    %1069 = vmatpush1.msra.mxu0 %v435
    %1070 = vmatprep.subr.mxu0 0.0
    %1071 = vmatpush1.msra.mxu0 %v438
    %1072 = vmatprep.subr.mxu0 0.0
    %1073 = vmatpush1.msra.mxu0 %v441
    %1074 = vmatprep.subr.mxu0 0.0
    %1075 = vmatpush1.msra.mxu0 %v444
    %1076 = vmatprep.subr.mxu0 0.0
    %1077 = vmatpush1.msra.mxu0 %v447
    %1078 = vmatprep.subr.mxu0 0.0
    %1079 = vmatpush1.msra.mxu0 0.0
    %1080 = vmatprep.subr.mxu0 0.0
    %1081 = vmatpush1.msra.mxu0 0.0
    %1082 = vmatprep.subr.mxu0 0.0
    %1083 = vmatpush1.msra.mxu0 0.0
    %1084 = vmatprep.subr.mxu0 0.0
    %1085 = vmatpush1.msra.mxu0 0.0
    %1086 = vmatprep.subr.mxu0 0.0
    %1087 = vmatpush1.msra.mxu0 0.0
    %1088 = vmatprep.subr.mxu0 0.0
    %1089 = vmatpush1.msra.mxu0 0.0
    %1090 = vmatprep.subr.mxu0 0.0
    %1091 = vmatpush1.msra.mxu0 0.0
    %1092 = vmatprep.subr.mxu0 0.0
    %1093 = vmatpush1.msra.mxu0 0.0
    %1094 = vmatprep.subr.mxu0 0.0
    %1095 = vmatpush1.msra.mxu0 0.0
    %1096 = vmatprep.subr.mxu0 0.0
    %1097 = vmatpush1.msra.mxu0 0.0
    %1098 = vmatprep.subr.mxu0 0.0
    %1099 = vmatpush1.msra.mxu0 0.0
    %1100 = vmatprep.subr.mxu0 0.0
    %1101 = vmatpush1.msra.mxu0 0.0
    %1102 = vmatprep.subr.mxu0 0.0
    %1103 = vmatpush1.msra.mxu0 0.0
    %1104 = vmatprep.subr.mxu0 0.0
    %1105 = vmatpush1.msra.mxu0 0.0
    %1106 = vmatprep.subr.mxu0 0.0
    %1107 = vmatpush1.msra.mxu0 0.0
    %1108 = vmatprep.subr.mxu0 0.0
    %1109 = vmatpush1.msra.mxu0 0.0
    %1110 = vmatprep.mubr.f32.mxu0 0.0
    %1111 = vmatmul.mubr.f32.gmra.mrb[0].mxu0 %v968
    %v1112 = vpop.f32.mrb[0].mxu0
    %v1113 = vadd.f32 %v461, %v1112
    %v1114 = vpop.f32.mrb[0].mxu0
    %1115 = vdwg.mxu0
    %v1116 = vadd.f32 %v972, %v1042
    %v1117 = vxor.u32 %v1116, 2147483648
    %v1118 = vmul.f32 %v1117, 1.442695
    %v1119 = vpow.pop %v1118
    %v1120 = vadd.f32 %v1119, 1.0
    %v1121 = vrcp.pop %v1120
    %v1122 = vmul.f32 1.0, %v1121
    %v1123 = vadd.f32 %v973, %v1044
    %v1124 = vxor.u32 %v1123, 2147483648
    %v1125 = vmul.f32 %v1124, 1.442695
    %v1126 = vpow.pop %v1125
    %v1127 = vadd.f32 %v1126, 1.0
    %v1128 = vrcp.pop %v1127
    %v1129 = vmul.f32 1.0, %v1128
    %v1130 = vmul.f32 %v1122, %v1113
    %v1131 = vadd.f32 %v974, %v1130
    %v1132 = vtanh.pop %v1131
    %v1133 = vsub.f32 1.0, %v1129
    %v1134 = vmul.f32 %v1133, %v1132
    %v1135 = vmul.f32 %v1129, %v968
    %v1136 = vadd.f32 %v1134, %v1135
    %s1137 = smul.u32 4, 3
    %s1138 = smul.addr %s1137, 8
    %s1139 = scalar_lea.vmem [#allocation2], %s1138
    %v1140 = vld [vmem:[%s1139] sm:$0xff]
    %v1141 = vld [vmem:[%s1139 + $0x8] sm:$0xff]
    %v1142 = vld [vmem:[%s1139 + $0x10] sm:$0xff]
    %1143 = vmatprep.subr.mxu0 %v401
    %1144 = vmatpush1.msra.mxu0 %v400
    %1145 = vmatprep.subr.mxu0 %v404
    %1146 = vmatpush1.msra.mxu0 %v403
    %1147 = vmatprep.subr.mxu0 %v407
    %1148 = vmatpush1.msra.mxu0 %v406
    %1149 = vmatprep.subr.mxu0 %v410
    %1150 = vmatpush1.msra.mxu0 %v409
    %1151 = vmatprep.subr.mxu0 %v413
    %1152 = vmatpush1.msra.mxu0 %v412
    %1153 = vmatprep.subr.mxu0 %v416
    %1154 = vmatpush1.msra.mxu0 %v415
    %1155 = vmatprep.subr.mxu0 %v419
    %1156 = vmatpush1.msra.mxu0 %v418
    %1157 = vmatprep.subr.mxu0 %v422
    %1158 = vmatpush1.msra.mxu0 %v421
    %1159 = vmatprep.subr.mxu0 %v425
    %1160 = vmatpush1.msra.mxu0 %v424
    %1161 = vmatprep.subr.mxu0 %v428
    %1162 = vmatpush1.msra.mxu0 %v427
    %1163 = vmatprep.subr.mxu0 %v431
    %1164 = vmatpush1.msra.mxu0 %v430
    %1165 = vmatprep.subr.mxu0 %v434
    %1166 = vmatpush1.msra.mxu0 %v433
    %1167 = vmatprep.subr.mxu0 %v437
    %1168 = vmatpush1.msra.mxu0 %v436
    %1169 = vmatprep.subr.mxu0 %v440
    %1170 = vmatpush1.msra.mxu0 %v439
    %1171 = vmatprep.subr.mxu0 %v443
    %1172 = vmatpush1.msra.mxu0 %v442
    %1173 = vmatprep.subr.mxu0 %v446
    %1174 = vmatpush1.msra.mxu0 %v445
    %1175 = vmatprep.subr.mxu0 0.0
    %1176 = vmatpush1.msra.mxu0 0.0
    %1177 = vmatprep.subr.mxu0 0.0
    %1178 = vmatpush1.msra.mxu0 0.0
    %1179 = vmatprep.subr.mxu0 0.0
    %1180 = vmatpush1.msra.mxu0 0.0
    %1181 = vmatprep.subr.mxu0 0.0
    %1182 = vmatpush1.msra.mxu0 0.0
    %1183 = vmatprep.subr.mxu0 0.0
    %1184 = vmatpush1.msra.mxu0 0.0
    %1185 = vmatprep.subr.mxu0 0.0
    %1186 = vmatpush1.msra.mxu0 0.0
    %1187 = vmatprep.subr.mxu0 0.0
    %1188 = vmatpush1.msra.mxu0 0.0
    %1189 = vmatprep.subr.mxu0 0.0
    %1190 = vmatpush1.msra.mxu0 0.0
    %1191 = vmatprep.subr.mxu0 0.0
    %1192 = vmatpush1.msra.mxu0 0.0
    %1193 = vmatprep.subr.mxu0 0.0
    %1194 = vmatpush1.msra.mxu0 0.0
    %1195 = vmatprep.subr.mxu0 0.0
    %1196 = vmatpush1.msra.mxu0 0.0
    %1197 = vmatprep.subr.mxu0 0.0
    %1198 = vmatpush1.msra.mxu0 0.0
    %1199 = vmatprep.subr.mxu0 0.0
    %1200 = vmatpush1.msra.mxu0 0.0
    %1201 = vmatprep.subr.mxu0 0.0
    %1202 = vmatpush1.msra.mxu0 0.0
    %1203 = vmatprep.subr.mxu0 0.0
    %1204 = vmatpush1.msra.mxu0 0.0
    %1205 = vmatprep.subr.mxu0 0.0
    %1206 = vmatpush1.msra.mxu0 0.0
    %1207 = vmatprep.mubr.f32.mxu0 0.0
    %1208 = vmatmul.mubr.f32.gmra.mrb[0].mxu0 %v1136
    %v1209 = vpop.f32.mrb[0].mxu0
    %v1210 = vadd.f32 %v453, %v1209
    %v1211 = vpop.f32.mrb[0].mxu0
    %v1212 = vadd.f32 %v457, %v1211
    %1213 = vdwg.mxu0
    %1214 = vmatprep.subr.mxu0 0.0
    %1215 = vmatpush1.msra.mxu0 %v402
    %1216 = vmatprep.subr.mxu0 0.0
    %1217 = vmatpush1.msra.mxu0 %v405
    %1218 = vmatprep.subr.mxu0 0.0
    %1219 = vmatpush1.msra.mxu0 %v408
    %1220 = vmatprep.subr.mxu0 0.0
    %1221 = vmatpush1.msra.mxu0 %v411
    %1222 = vmatprep.subr.mxu0 0.0
    %1223 = vmatpush1.msra.mxu0 %v414
    %1224 = vmatprep.subr.mxu0 0.0
    %1225 = vmatpush1.msra.mxu0 %v417
    %1226 = vmatprep.subr.mxu0 0.0
    %1227 = vmatpush1.msra.mxu0 %v420
    %1228 = vmatprep.subr.mxu0 0.0
    %1229 = vmatpush1.msra.mxu0 %v423
    %1230 = vmatprep.subr.mxu0 0.0
    %1231 = vmatpush1.msra.mxu0 %v426
    %1232 = vmatprep.subr.mxu0 0.0
    %1233 = vmatpush1.msra.mxu0 %v429
    %1234 = vmatprep.subr.mxu0 0.0
    %1235 = vmatpush1.msra.mxu0 %v432
    %1236 = vmatprep.subr.mxu0 0.0
    %1237 = vmatpush1.msra.mxu0 %v435
    %1238 = vmatprep.subr.mxu0 0.0
    %1239 = vmatpush1.msra.mxu0 %v438
    %1240 = vmatprep.subr.mxu0 0.0
    %1241 = vmatpush1.msra.mxu0 %v441
    %1242 = vmatprep.subr.mxu0 0.0
    %1243 = vmatpush1.msra.mxu0 %v444
    %1244 = vmatprep.subr.mxu0 0.0
    %1245 = vmatpush1.msra.mxu0 %v447
    %1246 = vmatprep.subr.mxu0 0.0
    %1247 = vmatpush1.msra.mxu0 0.0
    %1248 = vmatprep.subr.mxu0 0.0
    %1249 = vmatpush1.msra.mxu0 0.0
    %1250 = vmatprep.subr.mxu0 0.0
    %1251 = vmatpush1.msra.mxu0 0.0
    %1252 = vmatprep.subr.mxu0 0.0
    %1253 = vmatpush1.msra.mxu0 0.0
    %1254 = vmatprep.subr.mxu0 0.0
    %1255 = vmatpush1.msra.mxu0 0.0
    %1256 = vmatprep.subr.mxu0 0.0
    %1257 = vmatpush1.msra.mxu0 0.0
    %1258 = vmatprep.subr.mxu0 0.0
    %1259 = vmatpush1.msra.mxu0 0.0
    %1260 = vmatprep.subr.mxu0 0.0
    %1261 = vmatpush1.msra.mxu0 0.0
    %1262 = vmatprep.subr.mxu0 0.0
    %1263 = vmatpush1.msra.mxu0 0.0
    %1264 = vmatprep.subr.mxu0 0.0
    %1265 = vmatpush1.msra.mxu0 0.0
    %1266 = vmatprep.subr.mxu0 0.0
    %1267 = vmatpush1.msra.mxu0 0.0
    %1268 = vmatprep.subr.mxu0 0.0
    %1269 = vmatpush1.msra.mxu0 0.0
    %1270 = vmatprep.subr.mxu0 0.0
    %1271 = vmatpush1.msra.mxu0 0.0
    %1272 = vmatprep.subr.mxu0 0.0
    %1273 = vmatpush1.msra.mxu0 0.0
    %1274 = vmatprep.subr.mxu0 0.0
    %1275 = vmatpush1.msra.mxu0 0.0
    %1276 = vmatprep.subr.mxu0 0.0
    %1277 = vmatpush1.msra.mxu0 0.0
    %1278 = vmatprep.mubr.f32.mxu0 0.0
    %1279 = vmatmul.mubr.f32.gmra.mrb[0].mxu0 %v1136
    %v1280 = vpop.f32.mrb[0].mxu0
    %v1281 = vadd.f32 %v461, %v1280
    %v1282 = vpop.f32.mrb[0].mxu0
    %1283 = vdwg.mxu0
    %v1284 = vadd.f32 %v1140, %v1210
    %v1285 = vxor.u32 %v1284, 2147483648
    %v1286 = vmul.f32 %v1285, 1.442695
    %v1287 = vpow.pop %v1286
    %v1288 = vadd.f32 %v1287, 1.0
    %v1289 = vrcp.pop %v1288
    %v1290 = vmul.f32 1.0, %v1289
    %v1291 = vadd.f32 %v1141, %v1212
    %v1292 = vxor.u32 %v1291, 2147483648
    %v1293 = vmul.f32 %v1292, 1.442695
    %v1294 = vpow.pop %v1293
    %v1295 = vadd.f32 %v1294, 1.0
    %v1296 = vrcp.pop %v1295
    %v1297 = vmul.f32 1.0, %v1296
    %v1298 = vmul.f32 %v1290, %v1281
    %v1299 = vadd.f32 %v1142, %v1298
    %v1300 = vtanh.pop %v1299
    %v1301 = vsub.f32 1.0, %v1297
    %v1302 = vmul.f32 %v1301, %v1300
    %v1303 = vmul.f32 %v1297, %v1136
    %v1304 = vadd.f32 %v1302, %v1303
    %s1305 = smul.u32 5, 3
    %s1306 = smul.addr %s1305, 8
    %s1307 = scalar_lea.vmem [#allocation2], %s1306
    %v1308 = vld [vmem:[%s1307] sm:$0xff]
    %v1309 = vld [vmem:[%s1307 + $0x8] sm:$0xff]
    %v1310 = vld [vmem:[%s1307 + $0x10] sm:$0xff]
    %1311 = vmatprep.subr.mxu0 %v401
    %1312 = vmatpush1.msra.mxu0 %v400
    %1313 = vmatprep.subr.mxu0 %v404
    %1314 = vmatpush1.msra.mxu0 %v403
    %1315 = vmatprep.subr.mxu0 %v407
    %1316 = vmatpush1.msra.mxu0 %v406
    %1317 = vmatprep.subr.mxu0 %v410
    %1318 = vmatpush1.msra.mxu0 %v409
    %1319 = vmatprep.subr.mxu0 %v413
    %1320 = vmatpush1.msra.mxu0 %v412
    %1321 = vmatprep.subr.mxu0 %v416
    %1322 = vmatpush1.msra.mxu0 %v415
    %1323 = vmatprep.subr.mxu0 %v419
    %1324 = vmatpush1.msra.mxu0 %v418
    %1325 = vmatprep.subr.mxu0 %v422
    %1326 = vmatpush1.msra.mxu0 %v421
    %1327 = vmatprep.subr.mxu0 %v425
    %1328 = vmatpush1.msra.mxu0 %v424
    %1329 = vmatprep.subr.mxu0 %v428
    %1330 = vmatpush1.msra.mxu0 %v427
    %1331 = vmatprep.subr.mxu0 %v431
    %1332 = vmatpush1.msra.mxu0 %v430
    %1333 = vmatprep.subr.mxu0 %v434
    %1334 = vmatpush1.msra.mxu0 %v433
    %1335 = vmatprep.subr.mxu0 %v437
    %1336 = vmatpush1.msra.mxu0 %v436
    %1337 = vmatprep.subr.mxu0 %v440
    %1338 = vmatpush1.msra.mxu0 %v439
    %1339 = vmatprep.subr.mxu0 %v443
    %1340 = vmatpush1.msra.mxu0 %v442
    %1341 = vmatprep.subr.mxu0 %v446
    %1342 = vmatpush1.msra.mxu0 %v445
    %1343 = vmatprep.subr.mxu0 0.0
    %1344 = vmatpush1.msra.mxu0 0.0
    %1345 = vmatprep.subr.mxu0 0.0
    %1346 = vmatpush1.msra.mxu0 0.0
    %1347 = vmatprep.subr.mxu0 0.0
    %1348 = vmatpush1.msra.mxu0 0.0
    %1349 = vmatprep.subr.mxu0 0.0
    %1350 = vmatpush1.msra.mxu0 0.0
    %1351 = vmatprep.subr.mxu0 0.0
    %1352 = vmatpush1.msra.mxu0 0.0
    %1353 = vmatprep.subr.mxu0 0.0
    %1354 = vmatpush1.msra.mxu0 0.0
    %1355 = vmatprep.subr.mxu0 0.0
    %1356 = vmatpush1.msra.mxu0 0.0
    %1357 = vmatprep.subr.mxu0 0.0
    %1358 = vmatpush1.msra.mxu0 0.0
    %1359 = vmatprep.subr.mxu0 0.0
    %1360 = vmatpush1.msra.mxu0 0.0
    %1361 = vmatprep.subr.mxu0 0.0
    %1362 = vmatpush1.msra.mxu0 0.0
    %1363 = vmatprep.subr.mxu0 0.0
    %1364 = vmatpush1.msra.mxu0 0.0
    %1365 = vmatprep.subr.mxu0 0.0
    %1366 = vmatpush1.msra.mxu0 0.0
    %1367 = vmatprep.subr.mxu0 0.0
    %1368 = vmatpush1.msra.mxu0 0.0
    %1369 = vmatprep.subr.mxu0 0.0
    %1370 = vmatpush1.msra.mxu0 0.0
    %1371 = vmatprep.subr.mxu0 0.0
    %1372 = vmatpush1.msra.mxu0 0.0
    %1373 = vmatprep.subr.mxu0 0.0
    %1374 = vmatpush1.msra.mxu0 0.0
    %1375 = vmatprep.mubr.f32.mxu0 0.0
    %1376 = vmatmul.mubr.f32.gmra.mrb[0].mxu0 %v1304
    %v1377 = vpop.f32.mrb[0].mxu0
    %v1378 = vadd.f32 %v453, %v1377
    %v1379 = vpop.f32.mrb[0].mxu0
    %v1380 = vadd.f32 %v457, %v1379
    %1381 = vdwg.mxu0
    %1382 = vmatprep.subr.mxu0 0.0
    %1383 = vmatpush1.msra.mxu0 %v402
    %1384 = vmatprep.subr.mxu0 0.0
    %1385 = vmatpush1.msra.mxu0 %v405
    %1386 = vmatprep.subr.mxu0 0.0
    %1387 = vmatpush1.msra.mxu0 %v408
    %1388 = vmatprep.subr.mxu0 0.0
    %1389 = vmatpush1.msra.mxu0 %v411
    %1390 = vmatprep.subr.mxu0 0.0
    %1391 = vmatpush1.msra.mxu0 %v414
    %1392 = vmatprep.subr.mxu0 0.0
    %1393 = vmatpush1.msra.mxu0 %v417
    %1394 = vmatprep.subr.mxu0 0.0
    %1395 = vmatpush1.msra.mxu0 %v420
    %1396 = vmatprep.subr.mxu0 0.0
    %1397 = vmatpush1.msra.mxu0 %v423
    %1398 = vmatprep.subr.mxu0 0.0
    %1399 = vmatpush1.msra.mxu0 %v426
    %1400 = vmatprep.subr.mxu0 0.0
    %1401 = vmatpush1.msra.mxu0 %v429
    %1402 = vmatprep.subr.mxu0 0.0
    %1403 = vmatpush1.msra.mxu0 %v432
    %1404 = vmatprep.subr.mxu0 0.0
    %1405 = vmatpush1.msra.mxu0 %v435
    %1406 = vmatprep.subr.mxu0 0.0
    %1407 = vmatpush1.msra.mxu0 %v438
    %1408 = vmatprep.subr.mxu0 0.0
    %1409 = vmatpush1.msra.mxu0 %v441
    %1410 = vmatprep.subr.mxu0 0.0
    %1411 = vmatpush1.msra.mxu0 %v444
    %1412 = vmatprep.subr.mxu0 0.0
    %1413 = vmatpush1.msra.mxu0 %v447
    %1414 = vmatprep.subr.mxu0 0.0
    %1415 = vmatpush1.msra.mxu0 0.0
    %1416 = vmatprep.subr.mxu0 0.0
    %1417 = vmatpush1.msra.mxu0 0.0
    %1418 = vmatprep.subr.mxu0 0.0
    %1419 = vmatpush1.msra.mxu0 0.0
    %1420 = vmatprep.subr.mxu0 0.0
    %1421 = vmatpush1.msra.mxu0 0.0
    %1422 = vmatprep.subr.mxu0 0.0
    %1423 = vmatpush1.msra.mxu0 0.0
    %1424 = vmatprep.subr.mxu0 0.0
    %1425 = vmatpush1.msra.mxu0 0.0
    %1426 = vmatprep.subr.mxu0 0.0
    %1427 = vmatpush1.msra.mxu0 0.0
    %1428 = vmatprep.subr.mxu0 0.0
    %1429 = vmatpush1.msra.mxu0 0.0
    %1430 = vmatprep.subr.mxu0 0.0
    %1431 = vmatpush1.msra.mxu0 0.0
    %1432 = vmatprep.subr.mxu0 0.0
    %1433 = vmatpush1.msra.mxu0 0.0
    %1434 = vmatprep.subr.mxu0 0.0
    %1435 = vmatpush1.msra.mxu0 0.0
    %1436 = vmatprep.subr.mxu0 0.0
    %1437 = vmatpush1.msra.mxu0 0.0
    %1438 = vmatprep.subr.mxu0 0.0
    %1439 = vmatpush1.msra.mxu0 0.0
    %1440 = vmatprep.subr.mxu0 0.0
    %1441 = vmatpush1.msra.mxu0 0.0
    %1442 = vmatprep.subr.mxu0 0.0
    %1443 = vmatpush1.msra.mxu0 0.0
    %1444 = vmatprep.subr.mxu0 0.0
    %1445 = vmatpush1.msra.mxu0 0.0
    %1446 = vmatprep.mubr.f32.mxu0 0.0
    %1447 = vmatmul.mubr.f32.gmra.mrb[0].mxu0 %v1304
    %v1448 = vpop.f32.mrb[0].mxu0
    %v1449 = vadd.f32 %v461, %v1448
    %v1450 = vpop.f32.mrb[0].mxu0
    %1451 = vdwg.mxu0
    %v1452 = vadd.f32 %v1308, %v1378
    %v1453 = vxor.u32 %v1452, 2147483648
    %v1454 = vmul.f32 %v1453, 1.442695
    %v1455 = vpow.pop %v1454
    %v1456 = vadd.f32 %v1455, 1.0
    %v1457 = vrcp.pop %v1456
    %v1458 = vmul.f32 1.0, %v1457
    %v1459 = vadd.f32 %v1309, %v1380
    %v1460 = vxor.u32 %v1459, 2147483648
    %v1461 = vmul.f32 %v1460, 1.442695
    %v1462 = vpow.pop %v1461
    %v1463 = vadd.f32 %v1462, 1.0
    %v1464 = vrcp.pop %v1463
    %v1465 = vmul.f32 1.0, %v1464
    %v1466 = vmul.f32 %v1458, %v1449
    %v1467 = vadd.f32 %v1310, %v1466
    %v1468 = vtanh.pop %v1467
    %v1469 = vsub.f32 1.0, %v1465
    %v1470 = vmul.f32 %v1469, %v1468
    %v1471 = vmul.f32 %v1465, %v1304
    %v1472 = vadd.f32 %v1470, %v1471
    %s1473 = smul.u32 6, 3
    %s1474 = smul.addr %s1473, 8
    %s1475 = scalar_lea.vmem [#allocation2], %s1474
    %v1476 = vld [vmem:[%s1475] sm:$0xff]
    %v1477 = vld [vmem:[%s1475 + $0x8] sm:$0xff]
    %v1478 = vld [vmem:[%s1475 + $0x10] sm:$0xff]
    %1479 = vmatprep.subr.mxu0 %v401
    %1480 = vmatpush1.msra.mxu0 %v400
    %1481 = vmatprep.subr.mxu0 %v404
    %1482 = vmatpush1.msra.mxu0 %v403
    %1483 = vmatprep.subr.mxu0 %v407
    %1484 = vmatpush1.msra.mxu0 %v406
    %1485 = vmatprep.subr.mxu0 %v410
    %1486 = vmatpush1.msra.mxu0 %v409
    %1487 = vmatprep.subr.mxu0 %v413
    %1488 = vmatpush1.msra.mxu0 %v412
    %1489 = vmatprep.subr.mxu0 %v416
    %1490 = vmatpush1.msra.mxu0 %v415
    %1491 = vmatprep.subr.mxu0 %v419
    %1492 = vmatpush1.msra.mxu0 %v418
    %1493 = vmatprep.subr.mxu0 %v422
    %1494 = vmatpush1.msra.mxu0 %v421
    %1495 = vmatprep.subr.mxu0 %v425
    %1496 = vmatpush1.msra.mxu0 %v424
    %1497 = vmatprep.subr.mxu0 %v428
    %1498 = vmatpush1.msra.mxu0 %v427
    %1499 = vmatprep.subr.mxu0 %v431
    %1500 = vmatpush1.msra.mxu0 %v430
    %1501 = vmatprep.subr.mxu0 %v434
    %1502 = vmatpush1.msra.mxu0 %v433
    %1503 = vmatprep.subr.mxu0 %v437
    %1504 = vmatpush1.msra.mxu0 %v436
    %1505 = vmatprep.subr.mxu0 %v440
    %1506 = vmatpush1.msra.mxu0 %v439
    %1507 = vmatprep.subr.mxu0 %v443
    %1508 = vmatpush1.msra.mxu0 %v442
    %1509 = vmatprep.subr.mxu0 %v446
    %1510 = vmatpush1.msra.mxu0 %v445
    %1511 = vmatprep.subr.mxu0 0.0
    %1512 = vmatpush1.msra.mxu0 0.0
    %1513 = vmatprep.subr.mxu0 0.0
    %1514 = vmatpush1.msra.mxu0 0.0
    %1515 = vmatprep.subr.mxu0 0.0
    %1516 = vmatpush1.msra.mxu0 0.0
    %1517 = vmatprep.subr.mxu0 0.0
    %1518 = vmatpush1.msra.mxu0 0.0
    %1519 = vmatprep.subr.mxu0 0.0
    %1520 = vmatpush1.msra.mxu0 0.0
    %1521 = vmatprep.subr.mxu0 0.0
    %1522 = vmatpush1.msra.mxu0 0.0
    %1523 = vmatprep.subr.mxu0 0.0
    %1524 = vmatpush1.msra.mxu0 0.0
    %1525 = vmatprep.subr.mxu0 0.0
    %1526 = vmatpush1.msra.mxu0 0.0
    %1527 = vmatprep.subr.mxu0 0.0
    %1528 = vmatpush1.msra.mxu0 0.0
    %1529 = vmatprep.subr.mxu0 0.0
    %1530 = vmatpush1.msra.mxu0 0.0
    %1531 = vmatprep.subr.mxu0 0.0
    %1532 = vmatpush1.msra.mxu0 0.0
    %1533 = vmatprep.subr.mxu0 0.0
    %1534 = vmatpush1.msra.mxu0 0.0
    %1535 = vmatprep.subr.mxu0 0.0
    %1536 = vmatpush1.msra.mxu0 0.0
    %1537 = vmatprep.subr.mxu0 0.0
    %1538 = vmatpush1.msra.mxu0 0.0
    %1539 = vmatprep.subr.mxu0 0.0
    %1540 = vmatpush1.msra.mxu0 0.0
    %1541 = vmatprep.subr.mxu0 0.0
    %1542 = vmatpush1.msra.mxu0 0.0
    %1543 = vmatprep.mubr.f32.mxu0 0.0
    %1544 = vmatmul.mubr.f32.gmra.mrb[0].mxu0 %v1472
    %v1545 = vpop.f32.mrb[0].mxu0
    %v1546 = vadd.f32 %v453, %v1545
    %v1547 = vpop.f32.mrb[0].mxu0
    %v1548 = vadd.f32 %v457, %v1547
    %1549 = vdwg.mxu0
    %1550 = vmatprep.subr.mxu0 0.0
    %1551 = vmatpush1.msra.mxu0 %v402
    %1552 = vmatprep.subr.mxu0 0.0
    %1553 = vmatpush1.msra.mxu0 %v405
    %1554 = vmatprep.subr.mxu0 0.0
    %1555 = vmatpush1.msra.mxu0 %v408
    %1556 = vmatprep.subr.mxu0 0.0
    %1557 = vmatpush1.msra.mxu0 %v411
    %1558 = vmatprep.subr.mxu0 0.0
    %1559 = vmatpush1.msra.mxu0 %v414
    %1560 = vmatprep.subr.mxu0 0.0
    %1561 = vmatpush1.msra.mxu0 %v417
    %1562 = vmatprep.subr.mxu0 0.0
    %1563 = vmatpush1.msra.mxu0 %v420
    %1564 = vmatprep.subr.mxu0 0.0
    %1565 = vmatpush1.msra.mxu0 %v423
    %1566 = vmatprep.subr.mxu0 0.0
    %1567 = vmatpush1.msra.mxu0 %v426
    %1568 = vmatprep.subr.mxu0 0.0
    %1569 = vmatpush1.msra.mxu0 %v429
    %1570 = vmatprep.subr.mxu0 0.0
    %1571 = vmatpush1.msra.mxu0 %v432
    %1572 = vmatprep.subr.mxu0 0.0
    %1573 = vmatpush1.msra.mxu0 %v435
    %1574 = vmatprep.subr.mxu0 0.0
    %1575 = vmatpush1.msra.mxu0 %v438
    %1576 = vmatprep.subr.mxu0 0.0
    %1577 = vmatpush1.msra.mxu0 %v441
    %1578 = vmatprep.subr.mxu0 0.0
    %1579 = vmatpush1.msra.mxu0 %v444
    %1580 = vmatprep.subr.mxu0 0.0
    %1581 = vmatpush1.msra.mxu0 %v447
    %1582 = vmatprep.subr.mxu0 0.0
    %1583 = vmatpush1.msra.mxu0 0.0
    %1584 = vmatprep.subr.mxu0 0.0
    %1585 = vmatpush1.msra.mxu0 0.0
    %1586 = vmatprep.subr.mxu0 0.0
    %1587 = vmatpush1.msra.mxu0 0.0
    %1588 = vmatprep.subr.mxu0 0.0
    %1589 = vmatpush1.msra.mxu0 0.0
    %1590 = vmatprep.subr.mxu0 0.0
    %1591 = vmatpush1.msra.mxu0 0.0
    %1592 = vmatprep.subr.mxu0 0.0
    %1593 = vmatpush1.msra.mxu0 0.0
    %1594 = vmatprep.subr.mxu0 0.0
    %1595 = vmatpush1.msra.mxu0 0.0
    %1596 = vmatprep.subr.mxu0 0.0
    %1597 = vmatpush1.msra.mxu0 0.0
    %1598 = vmatprep.subr.mxu0 0.0
    %1599 = vmatpush1.msra.mxu0 0.0
    %1600 = vmatprep.subr.mxu0 0.0
    %1601 = vmatpush1.msra.mxu0 0.0
    %1602 = vmatprep.subr.mxu0 0.0
    %1603 = vmatpush1.msra.mxu0 0.0
    %1604 = vmatprep.subr.mxu0 0.0
    %1605 = vmatpush1.msra.mxu0 0.0
    %1606 = vmatprep.subr.mxu0 0.0
    %1607 = vmatpush1.msra.mxu0 0.0
    %1608 = vmatprep.subr.mxu0 0.0
    %1609 = vmatpush1.msra.mxu0 0.0
    %1610 = vmatprep.subr.mxu0 0.0
    %1611 = vmatpush1.msra.mxu0 0.0
    %1612 = vmatprep.subr.mxu0 0.0
    %1613 = vmatpush1.msra.mxu0 0.0
    %1614 = vmatprep.mubr.f32.mxu0 0.0
    %1615 = vmatmul.mubr.f32.gmra.mrb[0].mxu0 %v1472
    %v1616 = vpop.f32.mrb[0].mxu0
    %v1617 = vadd.f32 %v461, %v1616
    %v1618 = vpop.f32.mrb[0].mxu0
    %1619 = vdwg.mxu0
    %v1620 = vadd.f32 %v1476, %v1546
    %v1621 = vxor.u32 %v1620, 2147483648
    %v1622 = vmul.f32 %v1621, 1.442695
    %v1623 = vpow.pop %v1622
    %v1624 = vadd.f32 %v1623, 1.0
    %v1625 = vrcp.pop %v1624
    %v1626 = vmul.f32 1.0, %v1625
    %v1627 = vadd.f32 %v1477, %v1548
    %v1628 = vxor.u32 %v1627, 2147483648
    %v1629 = vmul.f32 %v1628, 1.442695
    %v1630 = vpow.pop %v1629
    %v1631 = vadd.f32 %v1630, 1.0
    %v1632 = vrcp.pop %v1631
    %v1633 = vmul.f32 1.0, %v1632
    %v1634 = vmul.f32 %v1626, %v1617
    %v1635 = vadd.f32 %v1478, %v1634
    %v1636 = vtanh.pop %v1635
    %v1637 = vsub.f32 1.0, %v1633
    %v1638 = vmul.f32 %v1637, %v1636
    %v1639 = vmul.f32 %v1633, %v1472
    %v1640 = vadd.f32 %v1638, %v1639
    %s1641 = smul.u32 7, 3
    %s1642 = smul.addr %s1641, 8
    %s1643 = scalar_lea.vmem [#allocation2], %s1642
    %v1644 = vld [vmem:[%s1643] sm:$0xff]
    %v1645 = vld [vmem:[%s1643 + $0x8] sm:$0xff]
    %v1646 = vld [vmem:[%s1643 + $0x10] sm:$0xff]
    %1647 = vmatprep.subr.mxu0 %v401
    %1648 = vmatpush1.msra.mxu0 %v400
    %1649 = vmatprep.subr.mxu0 %v404
    %1650 = vmatpush1.msra.mxu0 %v403
    %1651 = vmatprep.subr.mxu0 %v407
    %1652 = vmatpush1.msra.mxu0 %v406
    %1653 = vmatprep.subr.mxu0 %v410
    %1654 = vmatpush1.msra.mxu0 %v409
    %1655 = vmatprep.subr.mxu0 %v413
    %1656 = vmatpush1.msra.mxu0 %v412
    %1657 = vmatprep.subr.mxu0 %v416
    %1658 = vmatpush1.msra.mxu0 %v415
    %1659 = vmatprep.subr.mxu0 %v419
    %1660 = vmatpush1.msra.mxu0 %v418
    %1661 = vmatprep.subr.mxu0 %v422
    %1662 = vmatpush1.msra.mxu0 %v421
    %1663 = vmatprep.subr.mxu0 %v425
    %1664 = vmatpush1.msra.mxu0 %v424
    %1665 = vmatprep.subr.mxu0 %v428
    %1666 = vmatpush1.msra.mxu0 %v427
    %1667 = vmatprep.subr.mxu0 %v431
    %1668 = vmatpush1.msra.mxu0 %v430
    %1669 = vmatprep.subr.mxu0 %v434
    %1670 = vmatpush1.msra.mxu0 %v433
    %1671 = vmatprep.subr.mxu0 %v437
    %1672 = vmatpush1.msra.mxu0 %v436
    %1673 = vmatprep.subr.mxu0 %v440
    %1674 = vmatpush1.msra.mxu0 %v439
    %1675 = vmatprep.subr.mxu0 %v443
    %1676 = vmatpush1.msra.mxu0 %v442
    %1677 = vmatprep.subr.mxu0 %v446
    %1678 = vmatpush1.msra.mxu0 %v445
    %1679 = vmatprep.subr.mxu0 0.0
    %1680 = vmatpush1.msra.mxu0 0.0
    %1681 = vmatprep.subr.mxu0 0.0
    %1682 = vmatpush1.msra.mxu0 0.0
    %1683 = vmatprep.subr.mxu0 0.0
    %1684 = vmatpush1.msra.mxu0 0.0
    %1685 = vmatprep.subr.mxu0 0.0
    %1686 = vmatpush1.msra.mxu0 0.0
    %1687 = vmatprep.subr.mxu0 0.0
    %1688 = vmatpush1.msra.mxu0 0.0
    %1689 = vmatprep.subr.mxu0 0.0
    %1690 = vmatpush1.msra.mxu0 0.0
    %1691 = vmatprep.subr.mxu0 0.0
    %1692 = vmatpush1.msra.mxu0 0.0
    %1693 = vmatprep.subr.mxu0 0.0
    %1694 = vmatpush1.msra.mxu0 0.0
    %1695 = vmatprep.subr.mxu0 0.0
    %1696 = vmatpush1.msra.mxu0 0.0
    %1697 = vmatprep.subr.mxu0 0.0
    %1698 = vmatpush1.msra.mxu0 0.0
    %1699 = vmatprep.subr.mxu0 0.0
    %1700 = vmatpush1.msra.mxu0 0.0
    %1701 = vmatprep.subr.mxu0 0.0
    %1702 = vmatpush1.msra.mxu0 0.0
    %1703 = vmatprep.subr.mxu0 0.0
    %1704 = vmatpush1.msra.mxu0 0.0
    %1705 = vmatprep.subr.mxu0 0.0
    %1706 = vmatpush1.msra.mxu0 0.0
    %1707 = vmatprep.subr.mxu0 0.0
    %1708 = vmatpush1.msra.mxu0 0.0
    %1709 = vmatprep.subr.mxu0 0.0
    %1710 = vmatpush1.msra.mxu0 0.0
    %1711 = vmatprep.mubr.f32.mxu0 0.0
    %1712 = vmatmul.mubr.f32.gmra.mrb[0].mxu0 %v1640
    %v1713 = vpop.f32.mrb[0].mxu0
    %v1714 = vadd.f32 %v453, %v1713
    %v1715 = vpop.f32.mrb[0].mxu0
    %v1716 = vadd.f32 %v457, %v1715
    %1717 = vdwg.mxu0
    %1718 = vmatprep.subr.mxu0 0.0
    %1719 = vmatpush1.msra.mxu0 %v402
    %1720 = vmatprep.subr.mxu0 0.0
    %1721 = vmatpush1.msra.mxu0 %v405
    %1722 = vmatprep.subr.mxu0 0.0
    %1723 = vmatpush1.msra.mxu0 %v408
    %1724 = vmatprep.subr.mxu0 0.0
    %1725 = vmatpush1.msra.mxu0 %v411
    %1726 = vmatprep.subr.mxu0 0.0
    %1727 = vmatpush1.msra.mxu0 %v414
    %1728 = vmatprep.subr.mxu0 0.0
    %1729 = vmatpush1.msra.mxu0 %v417
    %1730 = vmatprep.subr.mxu0 0.0
    %1731 = vmatpush1.msra.mxu0 %v420
    %1732 = vmatprep.subr.mxu0 0.0
    %1733 = vmatpush1.msra.mxu0 %v423
    %1734 = vmatprep.subr.mxu0 0.0
    %1735 = vmatpush1.msra.mxu0 %v426
    %1736 = vmatprep.subr.mxu0 0.0
    %1737 = vmatpush1.msra.mxu0 %v429
    %1738 = vmatprep.subr.mxu0 0.0
    %1739 = vmatpush1.msra.mxu0 %v432
    %1740 = vmatprep.subr.mxu0 0.0
    %1741 = vmatpush1.msra.mxu0 %v435
    %1742 = vmatprep.subr.mxu0 0.0
    %1743 = vmatpush1.msra.mxu0 %v438
    %1744 = vmatprep.subr.mxu0 0.0
    %1745 = vmatpush1.msra.mxu0 %v441
    %1746 = vmatprep.subr.mxu0 0.0
    %1747 = vmatpush1.msra.mxu0 %v444
    %1748 = vmatprep.subr.mxu0 0.0
    %1749 = vmatpush1.msra.mxu0 %v447
    %1750 = vmatprep.subr.mxu0 0.0
    %1751 = vmatpush1.msra.mxu0 0.0
    %1752 = vmatprep.subr.mxu0 0.0
    %1753 = vmatpush1.msra.mxu0 0.0
    %1754 = vmatprep.subr.mxu0 0.0
    %1755 = vmatpush1.msra.mxu0 0.0
    %1756 = vmatprep.subr.mxu0 0.0
    %1757 = vmatpush1.msra.mxu0 0.0
    %1758 = vmatprep.subr.mxu0 0.0
    %1759 = vmatpush1.msra.mxu0 0.0
    %1760 = vmatprep.subr.mxu0 0.0
    %1761 = vmatpush1.msra.mxu0 0.0
    %1762 = vmatprep.subr.mxu0 0.0
    %1763 = vmatpush1.msra.mxu0 0.0
    %1764 = vmatprep.subr.mxu0 0.0
    %1765 = vmatpush1.msra.mxu0 0.0
    %1766 = vmatprep.subr.mxu0 0.0
    %1767 = vmatpush1.msra.mxu0 0.0
    %1768 = vmatprep.subr.mxu0 0.0
    %1769 = vmatpush1.msra.mxu0 0.0
    %1770 = vmatprep.subr.mxu0 0.0
    %1771 = vmatpush1.msra.mxu0 0.0
    %1772 = vmatprep.subr.mxu0 0.0
    %1773 = vmatpush1.msra.mxu0 0.0
    %1774 = vmatprep.subr.mxu0 0.0
    %1775 = vmatpush1.msra.mxu0 0.0
    %1776 = vmatprep.subr.mxu0 0.0
    %1777 = vmatpush1.msra.mxu0 0.0
    %1778 = vmatprep.subr.mxu0 0.0
    %1779 = vmatpush1.msra.mxu0 0.0
    %1780 = vmatprep.subr.mxu0 0.0
    %1781 = vmatpush1.msra.mxu0 0.0
    %1782 = vmatprep.mubr.f32.mxu0 0.0
    %1783 = vmatmul.mubr.f32.gmra.mrb[0].mxu0 %v1640
    %v1784 = vpop.f32.mrb[0].mxu0
    %v1785 = vadd.f32 %v461, %v1784
    %v1786 = vpop.f32.mrb[0].mxu0
    %1787 = vdwg.mxu0
    %v1788 = vadd.f32 %v1644, %v1714
    %v1789 = vxor.u32 %v1788, 2147483648
    %v1790 = vmul.f32 %v1789, 1.442695
    %v1791 = vpow.pop %v1790
    %v1792 = vadd.f32 %v1791, 1.0
    %v1793 = vrcp.pop %v1792
    %v1794 = vmul.f32 1.0, %v1793
    %v1795 = vadd.f32 %v1645, %v1716
    %v1796 = vxor.u32 %v1795, 2147483648
    %v1797 = vmul.f32 %v1796, 1.442695
    %v1798 = vpow.pop %v1797
    %v1799 = vadd.f32 %v1798, 1.0
    %v1800 = vrcp.pop %v1799
    %v1801 = vmul.f32 1.0, %v1800
    %v1802 = vmul.f32 %v1794, %v1785
    %v1803 = vadd.f32 %v1646, %v1802
    %v1804 = vtanh.pop %v1803
    %v1805 = vsub.f32 1.0, %v1801
    %v1806 = vmul.f32 %v1805, %v1804
    %v1807 = vmul.f32 %v1801, %v1640
    %v1808 = vadd.f32 %v1806, %v1807
    %1809 = vst [vmem:[#allocation12] sm:$0xff] %v1808
    // Predicated region
    $region42: #{seq2seq_forward.2} parent=1 // pred_check
      _
    $region43: #{seq2seq_forward.2} parent=1 // pred_check_branch
      %1811 = sbr.rel (0) target = $region45
    $region44: #{seq2seq_forward.2} parent=1 // pred_region
      %s1813 = ssub.s32 128, 128
      %1814 = vsyncadd [#allocation5], %s1813
      %s1816 = sshll.u32 [#allocation12], 4
      %s1817 = int_to_ptr.vmem [resolvable:$true] %s1816
      %1819 = dma.vmem_to_hbm [thread:$0]  %s1817, 128, %s5, [#allocation5]
    $region45: #{seq2seq_forward.2} parent=1 // pred_fallthru
      _
    // Predicated region
    $region46: #{seq2seq_forward.2} parent=1 // pred_check
      _
    $region47: #{seq2seq_forward.2} parent=1 // pred_check_branch
      %1821 = sbr.rel (0) target = $region49
    $region48: #{seq2seq_forward.2} parent=1 // pred_region
      %1822 = dma.done [#allocation5], 128
    $region49: #{seq2seq_forward.2} parent=1 // pred_fallthru
      _
    %1823 = vsyncpa [#allocation4], 1
    %1824 = vsyncpa [#allocation7], 1
    %1825 = vsyncpa [#allocation10], 1
    %1826 = vsyncpa [#allocation5], 1

// kernel: seq2seq_forward.3
$region0: #{seq2seq_forward.3}
  #allocation0 [shape = 'u32[]', space=smem, size = 0x4, offset = 0x4, fixed_abs, tag = 'smem constant byte address 0x4 - core index']
  #allocation1 [shape = 'u32[144,128]{1,0:T(1,128)}', space=vmem, size = 0x12000, scoped, tag = 'internal scratch']
  %s0 = inlined_call_operand.hbm [shape: s32[8,1], index: 0, kind: input, shape index: {}]
  %s1 = inlined_call_operand.hbm [shape: f32[8,128], index: 1, kind: input, shape index: {}]
  %s2 = inlined_call_operand.hbm [shape: f32[128,128], index: 2, kind: input, shape index: {}]
  %s3 = inlined_call_operand.hbm [shape: f32[128,384], index: 3, kind: input, shape index: {}]
  %s4 = inlined_call_operand.hbm [shape: f32[128,384], index: 4, kind: input, shape index: {}]
  %s5 = inlined_call_operand.hbm [shape: f32[128,384], index: 5, kind: input, shape index: {}]
  %s6 = inlined_call_operand.hbm [shape: f32[1,384], index: 6, kind: input, shape index: {}]
  %s7 = inlined_call_operand.hbm [shape: f32[1,384], index: 7, kind: input, shape index: {}]
  %s8 = inlined_call_operand.hbm [shape: f32[128,128], index: 8, kind: input, shape index: {}]
  %s9 = inlined_call_operand.hbm [shape: f32[128,128], index: 9, kind: input, shape index: {}]
  %s10 = inlined_call_operand.hbm [shape: f32[128,128], index: 10, kind: input, shape index: {}]
  %s11 = inlined_call_operand.hbm [shape: f32[1,128], index: 11, kind: input, shape index: {}]
  %s12 = inlined_call_operand.hbm [shape: f32[7,8,128], index: 12, kind: input, shape index: {}]
  %s13 = inlined_call_operand.hbm [shape: f32[7,8,128], index: 13, kind: output, shape index: {}]
  %s14 = sld [smem:[#allocation0]]
  $region114: #{seq2seq_forward.3} parent=0
    _
  %s16 = ssub.s32 1, %s14
  %s17 = scalar_select 0, %s16, %s14
  $region1: #{seq2seq_forward.3} parent=0
    #allocation2 [shape = 'u8[4096]{0}', space=vmem, size = 0x1000, scoped, tag = 'input window, operand 0, single buffered']
    #allocation3 [shape = 's32[1]{0}', space=sflag, size = 0x4, scoped, tag = 'scoped memory for seq2seq_forward.3']
    #allocation4 [shape = 's32[1]{0}', space=sflag, size = 0x4, scoped, tag = 'scoped memory for seq2seq_forward.3']
    #allocation5 [shape = 'u8[4096]{0}', space=vmem, size = 0x1000, scoped, tag = 'input window, operand 1, single buffered']
    #allocation6 [shape = 's32[1]{0}', space=sflag, size = 0x4, scoped, tag = 'scoped memory for seq2seq_forward.3']
    #allocation7 [shape = 'u8[65536]{0}', space=vmem, size = 0x10000, scoped, tag = 'input window, operand 2, single buffered']
    #allocation8 [shape = 'u8[196608]{0}', space=vmem, size = 0x30000, scoped, tag = 'input window, operand 3, single buffered']
    #allocation9 [shape = 's32[1]{0}', space=sflag, size = 0x4, scoped, tag = 'scoped memory for seq2seq_forward.3']
    #allocation10 [shape = 'u8[196608]{0}', space=vmem, size = 0x30000, scoped, tag = 'input window, operand 4, single buffered']
    #allocation11 [shape = 'u8[196608]{0}', space=vmem, size = 0x30000, scoped, tag = 'input window, operand 5, single buffered']
    #allocation12 [shape = 's32[1]{0}', space=sflag, size = 0x4, scoped, tag = 'scoped memory for seq2seq_forward.3']
    #allocation13 [shape = 'u8[1536]{0}', space=vmem, size = 0x800, scoped, tag = 'input window, operand 6, single buffered']
    #allocation14 [shape = 'u8[1536]{0}', space=vmem, size = 0x800, scoped, tag = 'input window, operand 7, single buffered']
    #allocation15 [shape = 's32[1]{0}', space=sflag, size = 0x4, scoped, tag = 'scoped memory for seq2seq_forward.3']
    #allocation16 [shape = 'u8[65536]{0}', space=vmem, size = 0x10000, scoped, tag = 'input window, operand 8, single buffered']
    #allocation17 [shape = 'u8[65536]{0}', space=vmem, size = 0x10000, scoped, tag = 'input window, operand 9, single buffered']
    #allocation18 [shape = 's32[1]{0}', space=sflag, size = 0x4, scoped, tag = 'scoped memory for seq2seq_forward.3']
    #allocation19 [shape = 'u8[65536]{0}', space=vmem, size = 0x10000, scoped, tag = 'input window, operand 10, single buffered']
    #allocation20 [shape = 'u8[512]{0}', space=vmem, size = 0x400, scoped, tag = 'input window, operand 11, single buffered']
    #allocation21 [shape = 's32[1]{0}', space=sflag, size = 0x4, scoped, tag = 'scoped memory for seq2seq_forward.3']
    #allocation22 [shape = 'u8[28672]{0}', space=vmem, size = 0x7000, scoped, tag = 'input window, operand 12, single buffered']
    #allocation23 [shape = 'u8[28672]{0}', space=vmem, size = 0x7000, scoped, tag = 'output window, operand 0, single buffered']
    %18 = vsyncpa [#allocation3], 0
    %19 = vsyncpa [#allocation6], 0
    %20 = vsyncpa [#allocation9], 0
    %21 = vsyncpa [#allocation12], 0
    %22 = vsyncpa [#allocation15], 0
    %23 = vsyncpa [#allocation18], 0
    %24 = vsyncpa [#allocation21], 0
    %25 = vsyncpa [#allocation4], 0
    // Predicated region
    $region2: #{seq2seq_forward.3} parent=1 // pred_check
      _
    $region3: #{seq2seq_forward.3} parent=1 // pred_check_branch
      %27 = sbr.rel (0) target = $region5
    $region4: #{seq2seq_forward.3} parent=1 // pred_region
      %s29 = ssub.s32 128, 128
      %30 = vsyncadd [#allocation3], %s29
      %s32 = sshll.u32 [#allocation2], 4
      %s33 = int_to_ptr.vmem [resolvable:$true] %s32
      %35 = dma.hbm_to_vmem [thread:$0]  %s0, 128, %s33, [#allocation3]
    $region5: #{seq2seq_forward.3} parent=1 // pred_fallthru
      _
    // Predicated region
    $region6: #{seq2seq_forward.3} parent=1 // pred_check
      _
    $region7: #{seq2seq_forward.3} parent=1 // pred_check_branch
      %37 = sbr.rel (0) target = $region9
    $region8: #{seq2seq_forward.3} parent=1 // pred_region
      %s39 = ssub.s32 128, 128
      %40 = vsyncadd [#allocation6], %s39
      %s42 = sshll.u32 [#allocation5], 4
      %s43 = int_to_ptr.vmem [resolvable:$true] %s42
      %45 = dma.hbm_to_vmem [thread:$0]  %s1, 128, %s43, [#allocation6]
    $region9: #{seq2seq_forward.3} parent=1 // pred_fallthru
      _
    // Predicated region
    $region10: #{seq2seq_forward.3} parent=1 // pred_check
      _
    $region11: #{seq2seq_forward.3} parent=1 // pred_check_branch
      %47 = sbr.rel (0) target = $region13
    $region12: #{seq2seq_forward.3} parent=1 // pred_region
      %s49 = ssub.s32 2048, 2048
      %50 = vsyncadd [#allocation6], %s49
      %s51 = sshll.u32 [#allocation7], 4
      %s52 = int_to_ptr.vmem [resolvable:$true] %s51
      %57 = dma.hbm_to_vmem [thread:$0]  %s2, 2048, %s52, [#allocation6], 128, 128, 8
    $region13: #{seq2seq_forward.3} parent=1 // pred_fallthru
      _
    // Predicated region
    $region14: #{seq2seq_forward.3} parent=1 // pred_check
      _
    $region15: #{seq2seq_forward.3} parent=1 // pred_check_branch
      %59 = sbr.rel (0) target = $region17
    $region16: #{seq2seq_forward.3} parent=1 // pred_region
      %s61 = ssub.s32 6144, 6144
      %62 = vsyncadd [#allocation9], %s61
      %s63 = sshll.u32 [#allocation8], 4
      %s64 = int_to_ptr.vmem [resolvable:$true] %s63
      %69 = dma.hbm_to_vmem [thread:$0]  %s3, 6144, %s64, [#allocation9], 384, 384, 24
    $region17: #{seq2seq_forward.3} parent=1 // pred_fallthru
      _
    // Predicated region
    $region18: #{seq2seq_forward.3} parent=1 // pred_check
      _
    $region19: #{seq2seq_forward.3} parent=1 // pred_check_branch
      %71 = sbr.rel (0) target = $region21
    $region20: #{seq2seq_forward.3} parent=1 // pred_region
      %s73 = ssub.s32 6144, 6144
      %74 = vsyncadd [#allocation9], %s73
      %s75 = sshll.u32 [#allocation10], 4
      %s76 = int_to_ptr.vmem [resolvable:$true] %s75
      %81 = dma.hbm_to_vmem [thread:$0]  %s4, 6144, %s76, [#allocation9], 384, 384, 24
    $region21: #{seq2seq_forward.3} parent=1 // pred_fallthru
      _
    // Predicated region
    $region22: #{seq2seq_forward.3} parent=1 // pred_check
      _
    $region23: #{seq2seq_forward.3} parent=1 // pred_check_branch
      %83 = sbr.rel (0) target = $region25
    $region24: #{seq2seq_forward.3} parent=1 // pred_region
      %s85 = ssub.s32 6144, 6144
      %86 = vsyncadd [#allocation12], %s85
      %s87 = sshll.u32 [#allocation11], 4
      %s88 = int_to_ptr.vmem [resolvable:$true] %s87
      %93 = dma.hbm_to_vmem [thread:$0]  %s5, 6144, %s88, [#allocation12], 384, 384, 24
    $region25: #{seq2seq_forward.3} parent=1 // pred_fallthru
      _
    // Predicated region
    $region26: #{seq2seq_forward.3} parent=1 // pred_check
      _
    $region27: #{seq2seq_forward.3} parent=1 // pred_check_branch
      %95 = sbr.rel (0) target = $region29
    $region28: #{seq2seq_forward.3} parent=1 // pred_region
      %s97 = ssub.s32 48, 48
      %98 = vsyncadd [#allocation12], %s97
      %s100 = sshll.u32 [#allocation13], 4
      %s101 = int_to_ptr.vmem [resolvable:$true] %s100
      %103 = dma.hbm_to_vmem [thread:$0]  %s6, 48, %s101, [#allocation12]
    $region29: #{seq2seq_forward.3} parent=1 // pred_fallthru
      _
    // Predicated region
    $region30: #{seq2seq_forward.3} parent=1 // pred_check
      _
    $region31: #{seq2seq_forward.3} parent=1 // pred_check_branch
      %105 = sbr.rel (0) target = $region33
    $region32: #{seq2seq_forward.3} parent=1 // pred_region
      %s107 = ssub.s32 48, 48
      %108 = vsyncadd [#allocation15], %s107
      %s110 = sshll.u32 [#allocation14], 4
      %s111 = int_to_ptr.vmem [resolvable:$true] %s110
      %113 = dma.hbm_to_vmem [thread:$0]  %s7, 48, %s111, [#allocation15]
    $region33: #{seq2seq_forward.3} parent=1 // pred_fallthru
      _
    // Predicated region
    $region34: #{seq2seq_forward.3} parent=1 // pred_check
      _
    $region35: #{seq2seq_forward.3} parent=1 // pred_check_branch
      %115 = sbr.rel (0) target = $region37
    $region36: #{seq2seq_forward.3} parent=1 // pred_region
      %s117 = ssub.s32 2048, 2048
      %118 = vsyncadd [#allocation15], %s117
      %s119 = sshll.u32 [#allocation16], 4
      %s120 = int_to_ptr.vmem [resolvable:$true] %s119
      %125 = dma.hbm_to_vmem [thread:$0]  %s8, 2048, %s120, [#allocation15], 128, 128, 8
    $region37: #{seq2seq_forward.3} parent=1 // pred_fallthru
      _
    // Predicated region
    $region38: #{seq2seq_forward.3} parent=1 // pred_check
      _
    $region39: #{seq2seq_forward.3} parent=1 // pred_check_branch
      %127 = sbr.rel (0) target = $region41
    $region40: #{seq2seq_forward.3} parent=1 // pred_region
      %s129 = ssub.s32 2048, 2048
      %130 = vsyncadd [#allocation18], %s129
      %s131 = sshll.u32 [#allocation17], 4
      %s132 = int_to_ptr.vmem [resolvable:$true] %s131
      %137 = dma.hbm_to_vmem [thread:$0]  %s9, 2048, %s132, [#allocation18], 128, 128, 8
    $region41: #{seq2seq_forward.3} parent=1 // pred_fallthru
      _
    // Predicated region
    $region42: #{seq2seq_forward.3} parent=1 // pred_check
      _
    $region43: #{seq2seq_forward.3} parent=1 // pred_check_branch
      %139 = sbr.rel (0) target = $region45
    $region44: #{seq2seq_forward.3} parent=1 // pred_region
      %s141 = ssub.s32 2048, 2048
      %142 = vsyncadd [#allocation18], %s141
      %s143 = sshll.u32 [#allocation19], 4
      %s144 = int_to_ptr.vmem [resolvable:$true] %s143
      %149 = dma.hbm_to_vmem [thread:$0]  %s10, 2048, %s144, [#allocation18], 128, 128, 8
    $region45: #{seq2seq_forward.3} parent=1 // pred_fallthru
      _
    // Predicated region
    $region46: #{seq2seq_forward.3} parent=1 // pred_check
      _
    $region47: #{seq2seq_forward.3} parent=1 // pred_check_branch
      %151 = sbr.rel (0) target = $region49
    $region48: #{seq2seq_forward.3} parent=1 // pred_region
      %s153 = ssub.s32 16, 16
      %154 = vsyncadd [#allocation21], %s153
      %s156 = sshll.u32 [#allocation20], 4
      %s157 = int_to_ptr.vmem [resolvable:$true] %s156
      %159 = dma.hbm_to_vmem [thread:$0]  %s11, 16, %s157, [#allocation21]
    $region49: #{seq2seq_forward.3} parent=1 // pred_fallthru
      _
    // Predicated region
    $region50: #{seq2seq_forward.3} parent=1 // pred_check
      _
    $region51: #{seq2seq_forward.3} parent=1 // pred_check_branch
      %161 = sbr.rel (0) target = $region53
    $region52: #{seq2seq_forward.3} parent=1 // pred_region
      %s163 = ssub.s32 896, 896
      %164 = vsyncadd [#allocation21], %s163
      %s165 = sshll.u32 [#allocation22], 4
      %s166 = int_to_ptr.vmem [resolvable:$true] %s165
      %171 = dma.hbm_to_vmem [thread:$0]  %s12, 896, %s166, [#allocation21], 128, 128, 8
    $region53: #{seq2seq_forward.3} parent=1 // pred_fallthru
      _
    // Predicated region
    $region54: #{seq2seq_forward.3} parent=1 // pred_check
      _
    $region55: #{seq2seq_forward.3} parent=1 // pred_check_branch
      %173 = sbr.rel (0) target = $region57
    $region56: #{seq2seq_forward.3} parent=1 // pred_region
      %174 = dma.done [#allocation3], 128
    $region57: #{seq2seq_forward.3} parent=1 // pred_fallthru
      _
    // Predicated region
    $region58: #{seq2seq_forward.3} parent=1 // pred_check
      _
    $region59: #{seq2seq_forward.3} parent=1 // pred_check_branch
      %176 = sbr.rel (0) target = $region61
    $region60: #{seq2seq_forward.3} parent=1 // pred_region
      %177 = dma.done [#allocation6], 128
    $region61: #{seq2seq_forward.3} parent=1 // pred_fallthru
      _
    // Predicated region
    $region62: #{seq2seq_forward.3} parent=1 // pred_check
      _
    $region63: #{seq2seq_forward.3} parent=1 // pred_check_branch
      %179 = sbr.rel (0) target = $region65
    $region64: #{seq2seq_forward.3} parent=1 // pred_region
      %180 = dma.done [#allocation6], 2048
    $region65: #{seq2seq_forward.3} parent=1 // pred_fallthru
      _
    // Predicated region
    $region66: #{seq2seq_forward.3} parent=1 // pred_check
      _
    $region67: #{seq2seq_forward.3} parent=1 // pred_check_branch
      %182 = sbr.rel (0) target = $region69
    $region68: #{seq2seq_forward.3} parent=1 // pred_region
      %183 = dma.done [#allocation9], 6144
    $region69: #{seq2seq_forward.3} parent=1 // pred_fallthru
      _
    // Predicated region
    $region70: #{seq2seq_forward.3} parent=1 // pred_check
      _
    $region71: #{seq2seq_forward.3} parent=1 // pred_check_branch
      %185 = sbr.rel (0) target = $region73
    $region72: #{seq2seq_forward.3} parent=1 // pred_region
      %186 = dma.done [#allocation9], 6144
    $region73: #{seq2seq_forward.3} parent=1 // pred_fallthru
      _
    // Predicated region
    $region74: #{seq2seq_forward.3} parent=1 // pred_check
      _
    $region75: #{seq2seq_forward.3} parent=1 // pred_check_branch
      %188 = sbr.rel (0) target = $region77
    $region76: #{seq2seq_forward.3} parent=1 // pred_region
      %189 = dma.done [#allocation12], 6144
    $region77: #{seq2seq_forward.3} parent=1 // pred_fallthru
      _
    // Predicated region
    $region78: #{seq2seq_forward.3} parent=1 // pred_check
      _
    $region79: #{seq2seq_forward.3} parent=1 // pred_check_branch
      %191 = sbr.rel (0) target = $region81
    $region80: #{seq2seq_forward.3} parent=1 // pred_region
      %192 = dma.done [#allocation12], 48
    $region81: #{seq2seq_forward.3} parent=1 // pred_fallthru
      _
    // Predicated region
    $region82: #{seq2seq_forward.3} parent=1 // pred_check
      _
    $region83: #{seq2seq_forward.3} parent=1 // pred_check_branch
      %194 = sbr.rel (0) target = $region85
    $region84: #{seq2seq_forward.3} parent=1 // pred_region
      %195 = dma.done [#allocation15], 48
    $region85: #{seq2seq_forward.3} parent=1 // pred_fallthru
      _
    // Predicated region
    $region86: #{seq2seq_forward.3} parent=1 // pred_check
      _
    $region87: #{seq2seq_forward.3} parent=1 // pred_check_branch
      %197 = sbr.rel (0) target = $region89
    $region88: #{seq2seq_forward.3} parent=1 // pred_region
      %198 = dma.done [#allocation15], 2048
    $region89: #{seq2seq_forward.3} parent=1 // pred_fallthru
      _
    // Predicated region
    $region90: #{seq2seq_forward.3} parent=1 // pred_check
      _
    $region91: #{seq2seq_forward.3} parent=1 // pred_check_branch
      %200 = sbr.rel (0) target = $region93
    $region92: #{seq2seq_forward.3} parent=1 // pred_region
      %201 = dma.done [#allocation18], 2048
    $region93: #{seq2seq_forward.3} parent=1 // pred_fallthru
      _
    // Predicated region
    $region94: #{seq2seq_forward.3} parent=1 // pred_check
      _
    $region95: #{seq2seq_forward.3} parent=1 // pred_check_branch
      %203 = sbr.rel (0) target = $region97
    $region96: #{seq2seq_forward.3} parent=1 // pred_region
      %204 = dma.done [#allocation18], 2048
    $region97: #{seq2seq_forward.3} parent=1 // pred_fallthru
      _
    // Predicated region
    $region98: #{seq2seq_forward.3} parent=1 // pred_check
      _
    $region99: #{seq2seq_forward.3} parent=1 // pred_check_branch
      %206 = sbr.rel (0) target = $region101
    $region100: #{seq2seq_forward.3} parent=1 // pred_region
      %207 = dma.done [#allocation21], 16
    $region101: #{seq2seq_forward.3} parent=1 // pred_fallthru
      _
    // Predicated region
    $region102: #{seq2seq_forward.3} parent=1 // pred_check
      _
    $region103: #{seq2seq_forward.3} parent=1 // pred_check_branch
      %209 = sbr.rel (0) target = $region105
    $region104: #{seq2seq_forward.3} parent=1 // pred_region
      %210 = dma.done [#allocation21], 896
    $region105: #{seq2seq_forward.3} parent=1 // pred_fallthru
      _
    %v211 = vld [vmem:[#allocation5] sm:$0xff]
    %v212 = vld [vmem:[#allocation10] sm:$0xff]
    %v213 = vld [vmem:[#allocation10 + $0x8] sm:$0xff]
    %v214 = vld [vmem:[#allocation10 + $0x10] sm:$0xff]
    %v215 = vld [vmem:[#allocation10 + $0x18] sm:$0xff]
    %v216 = vld [vmem:[#allocation10 + $0x20] sm:$0xff]
    %v217 = vld [vmem:[#allocation10 + $0x28] sm:$0xff]
    %v218 = vld [vmem:[#allocation10 + $0x30] sm:$0xff]
    %v219 = vld [vmem:[#allocation10 + $0x38] sm:$0xff]
    %v220 = vld [vmem:[#allocation10 + $0x40] sm:$0xff]
    %v221 = vld [vmem:[#allocation10 + $0x48] sm:$0xff]
    %v222 = vld [vmem:[#allocation10 + $0x50] sm:$0xff]
    %v223 = vld [vmem:[#allocation10 + $0x58] sm:$0xff]
    %v224 = vld [vmem:[#allocation10 + $0x60] sm:$0xff]
    %v225 = vld [vmem:[#allocation10 + $0x68] sm:$0xff]
    %v226 = vld [vmem:[#allocation10 + $0x70] sm:$0xff]
    %v227 = vld [vmem:[#allocation10 + $0x78] sm:$0xff]
    %v228 = vld [vmem:[#allocation10 + $0x80] sm:$0xff]
    %v229 = vld [vmem:[#allocation10 + $0x88] sm:$0xff]
    %v230 = vld [vmem:[#allocation10 + $0x90] sm:$0xff]
    %v231 = vld [vmem:[#allocation10 + $0x98] sm:$0xff]
    %v232 = vld [vmem:[#allocation10 + $0xa0] sm:$0xff]
    %v233 = vld [vmem:[#allocation10 + $0xa8] sm:$0xff]
    %v234 = vld [vmem:[#allocation10 + $0xb0] sm:$0xff]
    %v235 = vld [vmem:[#allocation10 + $0xb8] sm:$0xff]
    %v236 = vld [vmem:[#allocation10 + $0xc0] sm:$0xff]
    %v237 = vld [vmem:[#allocation10 + $0xc8] sm:$0xff]
    %v238 = vld [vmem:[#allocation10 + $0xd0] sm:$0xff]
    %v239 = vld [vmem:[#allocation10 + $0xd8] sm:$0xff]
    %v240 = vld [vmem:[#allocation10 + $0xe0] sm:$0xff]
    %v241 = vld [vmem:[#allocation10 + $0xe8] sm:$0xff]
    %v242 = vld [vmem:[#allocation10 + $0xf0] sm:$0xff]
    %v243 = vld [vmem:[#allocation10 + $0xf8] sm:$0xff]
    %v244 = vld [vmem:[#allocation10 + $0x100] sm:$0xff]
    %v245 = vld [vmem:[#allocation10 + $0x108] sm:$0xff]
    %v246 = vld [vmem:[#allocation10 + $0x110] sm:$0xff]
    %v247 = vld [vmem:[#allocation10 + $0x118] sm:$0xff]
    %v248 = vld [vmem:[#allocation10 + $0x120] sm:$0xff]
    %v249 = vld [vmem:[#allocation10 + $0x128] sm:$0xff]
    %v250 = vld [vmem:[#allocation10 + $0x130] sm:$0xff]
    %v251 = vld [vmem:[#allocation10 + $0x138] sm:$0xff]
    %v252 = vld [vmem:[#allocation10 + $0x140] sm:$0xff]
    %v253 = vld [vmem:[#allocation10 + $0x148] sm:$0xff]
    %v254 = vld [vmem:[#allocation10 + $0x150] sm:$0xff]
    %v255 = vld [vmem:[#allocation10 + $0x158] sm:$0xff]
    %v256 = vld [vmem:[#allocation10 + $0x160] sm:$0xff]
    %v257 = vld [vmem:[#allocation10 + $0x168] sm:$0xff]
    %v258 = vld [vmem:[#allocation10 + $0x170] sm:$0xff]
    %v259 = vld [vmem:[#allocation10 + $0x178] sm:$0xff]
    %v260 = vld [vmem:[#allocation13] sm:$0x7]
    %v262 = vlaneseq
    %v263 = vshrl.u32 %v262, 7
    %v264 = vsub.s32 0, %v263
    %v265 = vrot.slane %v260, %v264
    %v266 = vlaneseq
    %v267 = vshrl.u32 %v266, 7
    %v268 = vsub.s32 1, %v267
    %v269 = vrot.slane %v260, %v268
    %v270 = vlaneseq
    %v271 = vshrl.u32 %v270, 7
    %v272 = vsub.s32 2, %v271
    %v273 = vrot.slane %v260, %v272
    %277 = vmatprep.subr.mxu0 %v213
    %278 = vmatpush1.msra.mxu0 %v212
    %279 = vmatprep.subr.mxu0 %v216
    %280 = vmatpush1.msra.mxu0 %v215
    %281 = vmatprep.subr.mxu0 %v219
    %282 = vmatpush1.msra.mxu0 %v218
    %283 = vmatprep.subr.mxu0 %v222
    %284 = vmatpush1.msra.mxu0 %v221
    %285 = vmatprep.subr.mxu0 %v225
    %286 = vmatpush1.msra.mxu0 %v224
    %287 = vmatprep.subr.mxu0 %v228
    %288 = vmatpush1.msra.mxu0 %v227
    %289 = vmatprep.subr.mxu0 %v231
    %290 = vmatpush1.msra.mxu0 %v230
    %291 = vmatprep.subr.mxu0 %v234
    %292 = vmatpush1.msra.mxu0 %v233
    %293 = vmatprep.subr.mxu0 %v237
    %294 = vmatpush1.msra.mxu0 %v236
    %295 = vmatprep.subr.mxu0 %v240
    %296 = vmatpush1.msra.mxu0 %v239
    %297 = vmatprep.subr.mxu0 %v243
    %298 = vmatpush1.msra.mxu0 %v242
    %299 = vmatprep.subr.mxu0 %v246
    %300 = vmatpush1.msra.mxu0 %v245
    %301 = vmatprep.subr.mxu0 %v249
    %302 = vmatpush1.msra.mxu0 %v248
    %303 = vmatprep.subr.mxu0 %v252
    %304 = vmatpush1.msra.mxu0 %v251
    %305 = vmatprep.subr.mxu0 %v255
    %306 = vmatpush1.msra.mxu0 %v254
    %307 = vmatprep.subr.mxu0 %v258
    %308 = vmatpush1.msra.mxu0 %v257
    %309 = vmatprep.subr.mxu0 0.0
    %310 = vmatpush1.msra.mxu0 0.0
    %311 = vmatprep.subr.mxu0 0.0
    %312 = vmatpush1.msra.mxu0 0.0
    %313 = vmatprep.subr.mxu0 0.0
    %314 = vmatpush1.msra.mxu0 0.0
    %315 = vmatprep.subr.mxu0 0.0
    %316 = vmatpush1.msra.mxu0 0.0
    %317 = vmatprep.subr.mxu0 0.0
    %318 = vmatpush1.msra.mxu0 0.0
    %319 = vmatprep.subr.mxu0 0.0
    %320 = vmatpush1.msra.mxu0 0.0
    %321 = vmatprep.subr.mxu0 0.0
    %322 = vmatpush1.msra.mxu0 0.0
    %323 = vmatprep.subr.mxu0 0.0
    %324 = vmatpush1.msra.mxu0 0.0
    %325 = vmatprep.subr.mxu0 0.0
    %326 = vmatpush1.msra.mxu0 0.0
    %327 = vmatprep.subr.mxu0 0.0
    %328 = vmatpush1.msra.mxu0 0.0
    %329 = vmatprep.subr.mxu0 0.0
    %330 = vmatpush1.msra.mxu0 0.0
    %331 = vmatprep.subr.mxu0 0.0
    %332 = vmatpush1.msra.mxu0 0.0
    %333 = vmatprep.subr.mxu0 0.0
    %334 = vmatpush1.msra.mxu0 0.0
    %335 = vmatprep.subr.mxu0 0.0
    %336 = vmatpush1.msra.mxu0 0.0
    %337 = vmatprep.subr.mxu0 0.0
    %338 = vmatpush1.msra.mxu0 0.0
    %339 = vmatprep.subr.mxu0 0.0
    %340 = vmatpush1.msra.mxu0 0.0
    %341 = vmatprep.mubr.f32.mxu0 0.0
    %342 = vmatmul.mubr.f32.gmra.mrb[0].mxu0 %v211
    %v343 = vpop.f32.mrb[0].mxu0
    %v344 = vadd.f32 %v265, %v343
    %v345 = vpop.f32.mrb[0].mxu0
    %v346 = vadd.f32 %v269, %v345
    %347 = vdwg.mxu0
    %348 = vmatprep.subr.mxu0 0.0
    %349 = vmatpush1.msra.mxu0 %v214
    %350 = vmatprep.subr.mxu0 0.0
    %351 = vmatpush1.msra.mxu0 %v217
    %352 = vmatprep.subr.mxu0 0.0
    %353 = vmatpush1.msra.mxu0 %v220
    %354 = vmatprep.subr.mxu0 0.0
    %355 = vmatpush1.msra.mxu0 %v223
    %356 = vmatprep.subr.mxu0 0.0
    %357 = vmatpush1.msra.mxu0 %v226
    %358 = vmatprep.subr.mxu0 0.0
    %359 = vmatpush1.msra.mxu0 %v229
    %360 = vmatprep.subr.mxu0 0.0
    %361 = vmatpush1.msra.mxu0 %v232
    %362 = vmatprep.subr.mxu0 0.0
    %363 = vmatpush1.msra.mxu0 %v235
    %364 = vmatprep.subr.mxu0 0.0
    %365 = vmatpush1.msra.mxu0 %v238
    %366 = vmatprep.subr.mxu0 0.0
    %367 = vmatpush1.msra.mxu0 %v241
    %368 = vmatprep.subr.mxu0 0.0
    %369 = vmatpush1.msra.mxu0 %v244
    %370 = vmatprep.subr.mxu0 0.0
    %371 = vmatpush1.msra.mxu0 %v247
    %372 = vmatprep.subr.mxu0 0.0
    %373 = vmatpush1.msra.mxu0 %v250
    %374 = vmatprep.subr.mxu0 0.0
    %375 = vmatpush1.msra.mxu0 %v253
    %376 = vmatprep.subr.mxu0 0.0
    %377 = vmatpush1.msra.mxu0 %v256
    %378 = vmatprep.subr.mxu0 0.0
    %379 = vmatpush1.msra.mxu0 %v259
    %380 = vmatprep.subr.mxu0 0.0
    %381 = vmatpush1.msra.mxu0 0.0
    %382 = vmatprep.subr.mxu0 0.0
    %383 = vmatpush1.msra.mxu0 0.0
    %384 = vmatprep.subr.mxu0 0.0
    %385 = vmatpush1.msra.mxu0 0.0
    %386 = vmatprep.subr.mxu0 0.0
    %387 = vmatpush1.msra.mxu0 0.0
    %388 = vmatprep.subr.mxu0 0.0
    %389 = vmatpush1.msra.mxu0 0.0
    %390 = vmatprep.subr.mxu0 0.0
    %391 = vmatpush1.msra.mxu0 0.0
    %392 = vmatprep.subr.mxu0 0.0
    %393 = vmatpush1.msra.mxu0 0.0
    %394 = vmatprep.subr.mxu0 0.0
    %395 = vmatpush1.msra.mxu0 0.0
    %396 = vmatprep.subr.mxu0 0.0
    %397 = vmatpush1.msra.mxu0 0.0
    %398 = vmatprep.subr.mxu0 0.0
    %399 = vmatpush1.msra.mxu0 0.0
    %400 = vmatprep.subr.mxu0 0.0
    %401 = vmatpush1.msra.mxu0 0.0
    %402 = vmatprep.subr.mxu0 0.0
    %403 = vmatpush1.msra.mxu0 0.0
    %404 = vmatprep.subr.mxu0 0.0
    %405 = vmatpush1.msra.mxu0 0.0
    %406 = vmatprep.subr.mxu0 0.0
    %407 = vmatpush1.msra.mxu0 0.0
    %408 = vmatprep.subr.mxu0 0.0
    %409 = vmatpush1.msra.mxu0 0.0
    %410 = vmatprep.subr.mxu0 0.0
    %411 = vmatpush1.msra.mxu0 0.0
    %412 = vmatprep.mubr.f32.mxu0 0.0
    %413 = vmatmul.mubr.f32.gmra.mrb[0].mxu0 %v211
    %v414 = vpop.f32.mrb[0].mxu0
    %v415 = vadd.f32 %v273, %v414
    %v416 = vpop.f32.mrb[0].mxu0
    %417 = vdwg.mxu0
    %v418 = vld [vmem:[#allocation19] sm:$0xff]
    %v419 = vld [vmem:[#allocation19 + $0x8] sm:$0xff]
    %v420 = vld [vmem:[#allocation19 + $0x10] sm:$0xff]
    %v421 = vld [vmem:[#allocation19 + $0x18] sm:$0xff]
    %v422 = vld [vmem:[#allocation19 + $0x20] sm:$0xff]
    %v423 = vld [vmem:[#allocation19 + $0x28] sm:$0xff]
    %v424 = vld [vmem:[#allocation19 + $0x30] sm:$0xff]
    %v425 = vld [vmem:[#allocation19 + $0x38] sm:$0xff]
    %v426 = vld [vmem:[#allocation19 + $0x40] sm:$0xff]
    %v427 = vld [vmem:[#allocation19 + $0x48] sm:$0xff]
    %v428 = vld [vmem:[#allocation19 + $0x50] sm:$0xff]
    %v429 = vld [vmem:[#allocation19 + $0x58] sm:$0xff]
    %v430 = vld [vmem:[#allocation19 + $0x60] sm:$0xff]
    %v431 = vld [vmem:[#allocation19 + $0x68] sm:$0xff]
    %v432 = vld [vmem:[#allocation19 + $0x70] sm:$0xff]
    %v433 = vld [vmem:[#allocation19 + $0x78] sm:$0xff]
    %v434 = vld [vmem:[#allocation20] sm:$0x1]
    %v436 = vlaneseq
    %v437 = vshrl.u32 %v436, 7
    %v438 = vsub.s32 0, %v437
    %v439 = vrot.slane %v434, %v438
    %441 = vmatprep.subr.mxu0 0.0
    %442 = vmatpush1.msra.mxu0 %v418
    %443 = vmatprep.subr.mxu0 0.0
    %444 = vmatpush1.msra.mxu0 %v419
    %445 = vmatprep.subr.mxu0 0.0
    %446 = vmatpush1.msra.mxu0 %v420
    %447 = vmatprep.subr.mxu0 0.0
    %448 = vmatpush1.msra.mxu0 %v421
    %449 = vmatprep.subr.mxu0 0.0
    %450 = vmatpush1.msra.mxu0 %v422
    %451 = vmatprep.subr.mxu0 0.0
    %452 = vmatpush1.msra.mxu0 %v423
    %453 = vmatprep.subr.mxu0 0.0
    %454 = vmatpush1.msra.mxu0 %v424
    %455 = vmatprep.subr.mxu0 0.0
    %456 = vmatpush1.msra.mxu0 %v425
    %457 = vmatprep.subr.mxu0 0.0
    %458 = vmatpush1.msra.mxu0 %v426
    %459 = vmatprep.subr.mxu0 0.0
    %460 = vmatpush1.msra.mxu0 %v427
    %461 = vmatprep.subr.mxu0 0.0
    %462 = vmatpush1.msra.mxu0 %v428
    %463 = vmatprep.subr.mxu0 0.0
    %464 = vmatpush1.msra.mxu0 %v429
    %465 = vmatprep.subr.mxu0 0.0
    %466 = vmatpush1.msra.mxu0 %v430
    %467 = vmatprep.subr.mxu0 0.0
    %468 = vmatpush1.msra.mxu0 %v431
    %469 = vmatprep.subr.mxu0 0.0
    %470 = vmatpush1.msra.mxu0 %v432
    %471 = vmatprep.subr.mxu0 0.0
    %472 = vmatpush1.msra.mxu0 %v433
    %473 = vmatprep.subr.mxu0 0.0
    %474 = vmatpush1.msra.mxu0 0.0
    %475 = vmatprep.subr.mxu0 0.0
    %476 = vmatpush1.msra.mxu0 0.0
    %477 = vmatprep.subr.mxu0 0.0
    %478 = vmatpush1.msra.mxu0 0.0
    %479 = vmatprep.subr.mxu0 0.0
    %480 = vmatpush1.msra.mxu0 0.0
    %481 = vmatprep.subr.mxu0 0.0
    %482 = vmatpush1.msra.mxu0 0.0
    %483 = vmatprep.subr.mxu0 0.0
    %484 = vmatpush1.msra.mxu0 0.0
    %485 = vmatprep.subr.mxu0 0.0
    %486 = vmatpush1.msra.mxu0 0.0
    %487 = vmatprep.subr.mxu0 0.0
    %488 = vmatpush1.msra.mxu0 0.0
    %489 = vmatprep.subr.mxu0 0.0
    %490 = vmatpush1.msra.mxu0 0.0
    %491 = vmatprep.subr.mxu0 0.0
    %492 = vmatpush1.msra.mxu0 0.0
    %493 = vmatprep.subr.mxu0 0.0
    %494 = vmatpush1.msra.mxu0 0.0
    %495 = vmatprep.subr.mxu0 0.0
    %496 = vmatpush1.msra.mxu0 0.0
    %497 = vmatprep.subr.mxu0 0.0
    %498 = vmatpush1.msra.mxu0 0.0
    %499 = vmatprep.subr.mxu0 0.0
    %500 = vmatpush1.msra.mxu0 0.0
    %501 = vmatprep.subr.mxu0 0.0
    %502 = vmatpush1.msra.mxu0 0.0
    %503 = vmatprep.subr.mxu0 0.0
    %504 = vmatpush1.msra.mxu0 0.0
    %505 = vmatprep.mubr.f32.mxu0 0.0
    %506 = vmatmul.mubr.f32.gmra.mrb[0].mxu0 %v211
    %v507 = vpop.f32.mrb[0].mxu0
    %v508 = vadd.f32 %v439, %v507
    %v509 = vpop.f32.mrb[0].mxu0
    %510 = vdwg.mxu0
    %v511 = vld [vmem:[#allocation7] sm:$0xff]
    %v512 = vld [vmem:[#allocation7 + $0x8] sm:$0xff]
    %v513 = vld [vmem:[#allocation7 + $0x10] sm:$0xff]
    %v514 = vld [vmem:[#allocation7 + $0x18] sm:$0xff]
    %v515 = vld [vmem:[#allocation7 + $0x20] sm:$0xff]
    %v516 = vld [vmem:[#allocation7 + $0x28] sm:$0xff]
    %v517 = vld [vmem:[#allocation7 + $0x30] sm:$0xff]
    %v518 = vld [vmem:[#allocation7 + $0x38] sm:$0xff]
    %v519 = vld [vmem:[#allocation7 + $0x40] sm:$0xff]
    %v520 = vld [vmem:[#allocation7 + $0x48] sm:$0xff]
    %v521 = vld [vmem:[#allocation7 + $0x50] sm:$0xff]
    %v522 = vld [vmem:[#allocation7 + $0x58] sm:$0xff]
    %v523 = vld [vmem:[#allocation7 + $0x60] sm:$0xff]
    %v524 = vld [vmem:[#allocation7 + $0x68] sm:$0xff]
    %v525 = vld [vmem:[#allocation7 + $0x70] sm:$0xff]
    %v526 = vld [vmem:[#allocation7 + $0x78] sm:$0xff]
    %v527 = vld [vmem:[#allocation8] sm:$0xff]
    %v528 = vld [vmem:[#allocation8 + $0x8] sm:$0xff]
    %v529 = vld [vmem:[#allocation8 + $0x10] sm:$0xff]
    %v530 = vld [vmem:[#allocation8 + $0x18] sm:$0xff]
    %v531 = vld [vmem:[#allocation8 + $0x20] sm:$0xff]
    %v532 = vld [vmem:[#allocation8 + $0x28] sm:$0xff]
    %v533 = vld [vmem:[#allocation8 + $0x30] sm:$0xff]
    %v534 = vld [vmem:[#allocation8 + $0x38] sm:$0xff]
    %v535 = vld [vmem:[#allocation8 + $0x40] sm:$0xff]
    %v536 = vld [vmem:[#allocation8 + $0x48] sm:$0xff]
    %v537 = vld [vmem:[#allocation8 + $0x50] sm:$0xff]
    %v538 = vld [vmem:[#allocation8 + $0x58] sm:$0xff]
    %v539 = vld [vmem:[#allocation8 + $0x60] sm:$0xff]
    %v540 = vld [vmem:[#allocation8 + $0x68] sm:$0xff]
    %v541 = vld [vmem:[#allocation8 + $0x70] sm:$0xff]
    %v542 = vld [vmem:[#allocation8 + $0x78] sm:$0xff]
    %v543 = vld [vmem:[#allocation8 + $0x80] sm:$0xff]
    %v544 = vld [vmem:[#allocation8 + $0x88] sm:$0xff]
    %v545 = vld [vmem:[#allocation8 + $0x90] sm:$0xff]
    %v546 = vld [vmem:[#allocation8 + $0x98] sm:$0xff]
    %v547 = vld [vmem:[#allocation8 + $0xa0] sm:$0xff]
    %v548 = vld [vmem:[#allocation8 + $0xa8] sm:$0xff]
    %v549 = vld [vmem:[#allocation8 + $0xb0] sm:$0xff]
    %v550 = vld [vmem:[#allocation8 + $0xb8] sm:$0xff]
    %v551 = vld [vmem:[#allocation8 + $0xc0] sm:$0xff]
    %v552 = vld [vmem:[#allocation8 + $0xc8] sm:$0xff]
    %v553 = vld [vmem:[#allocation8 + $0xd0] sm:$0xff]
    %v554 = vld [vmem:[#allocation8 + $0xd8] sm:$0xff]
    %v555 = vld [vmem:[#allocation8 + $0xe0] sm:$0xff]
    %v556 = vld [vmem:[#allocation8 + $0xe8] sm:$0xff]
    %v557 = vld [vmem:[#allocation8 + $0xf0] sm:$0xff]
    %v558 = vld [vmem:[#allocation8 + $0xf8] sm:$0xff]
    %v559 = vld [vmem:[#allocation8 + $0x100] sm:$0xff]
    %v560 = vld [vmem:[#allocation8 + $0x108] sm:$0xff]
    %v561 = vld [vmem:[#allocation8 + $0x110] sm:$0xff]
    %v562 = vld [vmem:[#allocation8 + $0x118] sm:$0xff]
    %v563 = vld [vmem:[#allocation8 + $0x120] sm:$0xff]
    %v564 = vld [vmem:[#allocation8 + $0x128] sm:$0xff]
    %v565 = vld [vmem:[#allocation8 + $0x130] sm:$0xff]
    %v566 = vld [vmem:[#allocation8 + $0x138] sm:$0xff]
    %v567 = vld [vmem:[#allocation8 + $0x140] sm:$0xff]
    %v568 = vld [vmem:[#allocation8 + $0x148] sm:$0xff]
    %v569 = vld [vmem:[#allocation8 + $0x150] sm:$0xff]
    %v570 = vld [vmem:[#allocation8 + $0x158] sm:$0xff]
    %v571 = vld [vmem:[#allocation8 + $0x160] sm:$0xff]
    %v572 = vld [vmem:[#allocation8 + $0x168] sm:$0xff]
    %v573 = vld [vmem:[#allocation8 + $0x170] sm:$0xff]
    %v574 = vld [vmem:[#allocation8 + $0x178] sm:$0xff]
    %v575 = vld [vmem:[#allocation11] sm:$0xff]
    %v576 = vld [vmem:[#allocation11 + $0x8] sm:$0xff]
    %v577 = vld [vmem:[#allocation11 + $0x10] sm:$0xff]
    %v578 = vld [vmem:[#allocation11 + $0x18] sm:$0xff]
    %v579 = vld [vmem:[#allocation11 + $0x20] sm:$0xff]
    %v580 = vld [vmem:[#allocation11 + $0x28] sm:$0xff]
    %v581 = vld [vmem:[#allocation11 + $0x30] sm:$0xff]
    %v582 = vld [vmem:[#allocation11 + $0x38] sm:$0xff]
    %v583 = vld [vmem:[#allocation11 + $0x40] sm:$0xff]
    %v584 = vld [vmem:[#allocation11 + $0x48] sm:$0xff]
    %v585 = vld [vmem:[#allocation11 + $0x50] sm:$0xff]
    %v586 = vld [vmem:[#allocation11 + $0x58] sm:$0xff]
    %v587 = vld [vmem:[#allocation11 + $0x60] sm:$0xff]
    %v588 = vld [vmem:[#allocation11 + $0x68] sm:$0xff]
    %v589 = vld [vmem:[#allocation11 + $0x70] sm:$0xff]
    %v590 = vld [vmem:[#allocation11 + $0x78] sm:$0xff]
    %v591 = vld [vmem:[#allocation11 + $0x80] sm:$0xff]
    %v592 = vld [vmem:[#allocation11 + $0x88] sm:$0xff]
    %v593 = vld [vmem:[#allocation11 + $0x90] sm:$0xff]
    %v594 = vld [vmem:[#allocation11 + $0x98] sm:$0xff]
    %v595 = vld [vmem:[#allocation11 + $0xa0] sm:$0xff]
    %v596 = vld [vmem:[#allocation11 + $0xa8] sm:$0xff]
    %v597 = vld [vmem:[#allocation11 + $0xb0] sm:$0xff]
    %v598 = vld [vmem:[#allocation11 + $0xb8] sm:$0xff]
    %v599 = vld [vmem:[#allocation11 + $0xc0] sm:$0xff]
    %v600 = vld [vmem:[#allocation11 + $0xc8] sm:$0xff]
    %v601 = vld [vmem:[#allocation11 + $0xd0] sm:$0xff]
    %v602 = vld [vmem:[#allocation11 + $0xd8] sm:$0xff]
    %v603 = vld [vmem:[#allocation11 + $0xe0] sm:$0xff]
    %v604 = vld [vmem:[#allocation11 + $0xe8] sm:$0xff]
    %v605 = vld [vmem:[#allocation11 + $0xf0] sm:$0xff]
    %v606 = vld [vmem:[#allocation11 + $0xf8] sm:$0xff]
    %v607 = vld [vmem:[#allocation11 + $0x100] sm:$0xff]
    %v608 = vld [vmem:[#allocation11 + $0x108] sm:$0xff]
    %v609 = vld [vmem:[#allocation11 + $0x110] sm:$0xff]
    %v610 = vld [vmem:[#allocation11 + $0x118] sm:$0xff]
    %v611 = vld [vmem:[#allocation11 + $0x120] sm:$0xff]
    %v612 = vld [vmem:[#allocation11 + $0x128] sm:$0xff]
    %v613 = vld [vmem:[#allocation11 + $0x130] sm:$0xff]
    %v614 = vld [vmem:[#allocation11 + $0x138] sm:$0xff]
    %v615 = vld [vmem:[#allocation11 + $0x140] sm:$0xff]
    %v616 = vld [vmem:[#allocation11 + $0x148] sm:$0xff]
    %v617 = vld [vmem:[#allocation11 + $0x150] sm:$0xff]
    %v618 = vld [vmem:[#allocation11 + $0x158] sm:$0xff]
    %v619 = vld [vmem:[#allocation11 + $0x160] sm:$0xff]
    %v620 = vld [vmem:[#allocation11 + $0x168] sm:$0xff]
    %v621 = vld [vmem:[#allocation11 + $0x170] sm:$0xff]
    %v622 = vld [vmem:[#allocation11 + $0x178] sm:$0xff]
    %v623 = vld [vmem:[#allocation14] sm:$0x7]
    %v625 = vlaneseq
    %v626 = vshrl.u32 %v625, 7
    %v627 = vsub.s32 0, %v626
    %v628 = vrot.slane %v623, %v627
    %v629 = vlaneseq
    %v630 = vshrl.u32 %v629, 7
    %v631 = vsub.s32 1, %v630
    %v632 = vrot.slane %v623, %v631
    %v633 = vlaneseq
    %v634 = vshrl.u32 %v633, 7
    %v635 = vsub.s32 2, %v634
    %v636 = vrot.slane %v623, %v635
    %v640 = vld [vmem:[#allocation16] sm:$0xff]
    %v641 = vld [vmem:[#allocation16 + $0x8] sm:$0xff]
    %v642 = vld [vmem:[#allocation16 + $0x10] sm:$0xff]
    %v643 = vld [vmem:[#allocation16 + $0x18] sm:$0xff]
    %v644 = vld [vmem:[#allocation16 + $0x20] sm:$0xff]
    %v645 = vld [vmem:[#allocation16 + $0x28] sm:$0xff]
    %v646 = vld [vmem:[#allocation16 + $0x30] sm:$0xff]
    %v647 = vld [vmem:[#allocation16 + $0x38] sm:$0xff]
    %v648 = vld [vmem:[#allocation16 + $0x40] sm:$0xff]
    %v649 = vld [vmem:[#allocation16 + $0x48] sm:$0xff]
    %v650 = vld [vmem:[#allocation16 + $0x50] sm:$0xff]
    %v651 = vld [vmem:[#allocation16 + $0x58] sm:$0xff]
    %v652 = vld [vmem:[#allocation16 + $0x60] sm:$0xff]
    %v653 = vld [vmem:[#allocation16 + $0x68] sm:$0xff]
    %v654 = vld [vmem:[#allocation16 + $0x70] sm:$0xff]
    %v655 = vld [vmem:[#allocation16 + $0x78] sm:$0xff]
    %v656 = vld [vmem:[#allocation17] sm:$0xff]
    %v657 = vld [vmem:[#allocation17 + $0x8] sm:$0xff]
    %v658 = vld [vmem:[#allocation17 + $0x10] sm:$0xff]
    %v659 = vld [vmem:[#allocation17 + $0x18] sm:$0xff]
    %v660 = vld [vmem:[#allocation17 + $0x20] sm:$0xff]
    %v661 = vld [vmem:[#allocation17 + $0x28] sm:$0xff]
    %v662 = vld [vmem:[#allocation17 + $0x30] sm:$0xff]
    %v663 = vld [vmem:[#allocation17 + $0x38] sm:$0xff]
    %v664 = vld [vmem:[#allocation17 + $0x40] sm:$0xff]
    %v665 = vld [vmem:[#allocation17 + $0x48] sm:$0xff]
    %v666 = vld [vmem:[#allocation17 + $0x50] sm:$0xff]
    %v667 = vld [vmem:[#allocation17 + $0x58] sm:$0xff]
    %v668 = vld [vmem:[#allocation17 + $0x60] sm:$0xff]
    %v669 = vld [vmem:[#allocation17 + $0x68] sm:$0xff]
    %v670 = vld [vmem:[#allocation17 + $0x70] sm:$0xff]
    %v671 = vld [vmem:[#allocation17 + $0x78] sm:$0xff]
    %v672 = vld [vmem:[#allocation2] sm:$0xff]
    %v673 = vlaneseq
    %v674 = vand.u32 %v673, 127
    %675 = vset.pattern.permute.xlu0 0
    %676 = vperm.xlu0 %675, %v672
    %v677 = vpop.permute.xlu0 %676
    %vm678 = vcmp.eq.s32.totalorder %v677, %v674
    %v679 = vsel %vm678, 1, 0
    %v680 = vcvt.s32.f32 %v679
    %681 = vmatprep.subr.mxu0 0.0
    %682 = vmatpush1.msra.mxu0 %v511
    %683 = vmatprep.subr.mxu0 0.0
    %684 = vmatpush1.msra.mxu0 %v512
    %685 = vmatprep.subr.mxu0 0.0
    %686 = vmatpush1.msra.mxu0 %v513
    %687 = vmatprep.subr.mxu0 0.0
    %688 = vmatpush1.msra.mxu0 %v514
    %689 = vmatprep.subr.mxu0 0.0
    %690 = vmatpush1.msra.mxu0 %v515
    %691 = vmatprep.subr.mxu0 0.0
    %692 = vmatpush1.msra.mxu0 %v516
    %693 = vmatprep.subr.mxu0 0.0
    %694 = vmatpush1.msra.mxu0 %v517
    %695 = vmatprep.subr.mxu0 0.0
    %696 = vmatpush1.msra.mxu0 %v518
    %697 = vmatprep.subr.mxu0 0.0
    %698 = vmatpush1.msra.mxu0 %v519
    %699 = vmatprep.subr.mxu0 0.0
    %700 = vmatpush1.msra.mxu0 %v520
    %701 = vmatprep.subr.mxu0 0.0
    %702 = vmatpush1.msra.mxu0 %v521
    %703 = vmatprep.subr.mxu0 0.0
    %704 = vmatpush1.msra.mxu0 %v522
    %705 = vmatprep.subr.mxu0 0.0
    %706 = vmatpush1.msra.mxu0 %v523
    %707 = vmatprep.subr.mxu0 0.0
    %708 = vmatpush1.msra.mxu0 %v524
    %709 = vmatprep.subr.mxu0 0.0
    %710 = vmatpush1.msra.mxu0 %v525
    %711 = vmatprep.subr.mxu0 0.0
    %712 = vmatpush1.msra.mxu0 %v526
    %713 = vmatprep.subr.mxu0 0.0
    %714 = vmatpush1.msra.mxu0 0.0
    %715 = vmatprep.subr.mxu0 0.0
    %716 = vmatpush1.msra.mxu0 0.0
    %717 = vmatprep.subr.mxu0 0.0
    %718 = vmatpush1.msra.mxu0 0.0
    %719 = vmatprep.subr.mxu0 0.0
    %720 = vmatpush1.msra.mxu0 0.0
    %721 = vmatprep.subr.mxu0 0.0
    %722 = vmatpush1.msra.mxu0 0.0
    %723 = vmatprep.subr.mxu0 0.0
    %724 = vmatpush1.msra.mxu0 0.0
    %725 = vmatprep.subr.mxu0 0.0
    %726 = vmatpush1.msra.mxu0 0.0
    %727 = vmatprep.subr.mxu0 0.0
    %728 = vmatpush1.msra.mxu0 0.0
    %729 = vmatprep.subr.mxu0 0.0
    %730 = vmatpush1.msra.mxu0 0.0
    %731 = vmatprep.subr.mxu0 0.0
    %732 = vmatpush1.msra.mxu0 0.0
    %733 = vmatprep.subr.mxu0 0.0
    %734 = vmatpush1.msra.mxu0 0.0
    %735 = vmatprep.subr.mxu0 0.0
    %736 = vmatpush1.msra.mxu0 0.0
    %737 = vmatprep.subr.mxu0 0.0
    %738 = vmatpush1.msra.mxu0 0.0
    %739 = vmatprep.subr.mxu0 0.0
    %740 = vmatpush1.msra.mxu0 0.0
    %741 = vmatprep.subr.mxu0 0.0
    %742 = vmatpush1.msra.mxu0 0.0
    %743 = vmatprep.subr.mxu0 0.0
    %744 = vmatpush1.msra.mxu0 0.0
    %745 = vmatprep.mubr.f32.mxu0 0.0
    %746 = vmatmul.mubr.f32.gmra.mrb[0].mxu0 %v680
    %v747 = vpop.f32.mrb[0].mxu0
    %v748 = vadd.f32 0.0, %v747
    %v749 = vpop.f32.mrb[0].mxu0
    %750 = vdwg.mxu0
    %751 = vmatprep.subr.mxu0 %v528
    %752 = vmatpush1.msra.mxu0 %v527
    %753 = vmatprep.subr.mxu0 %v531
    %754 = vmatpush1.msra.mxu0 %v530
    %755 = vmatprep.subr.mxu0 %v534
    %756 = vmatpush1.msra.mxu0 %v533
    %757 = vmatprep.subr.mxu0 %v537
    %758 = vmatpush1.msra.mxu0 %v536
    %759 = vmatprep.subr.mxu0 %v540
    %760 = vmatpush1.msra.mxu0 %v539
    %761 = vmatprep.subr.mxu0 %v543
    %762 = vmatpush1.msra.mxu0 %v542
    %763 = vmatprep.subr.mxu0 %v546
    %764 = vmatpush1.msra.mxu0 %v545
    %765 = vmatprep.subr.mxu0 %v549
    %766 = vmatpush1.msra.mxu0 %v548
    %767 = vmatprep.subr.mxu0 %v552
    %768 = vmatpush1.msra.mxu0 %v551
    %769 = vmatprep.subr.mxu0 %v555
    %770 = vmatpush1.msra.mxu0 %v554
    %771 = vmatprep.subr.mxu0 %v558
    %772 = vmatpush1.msra.mxu0 %v557
    %773 = vmatprep.subr.mxu0 %v561
    %774 = vmatpush1.msra.mxu0 %v560
    %775 = vmatprep.subr.mxu0 %v564
    %776 = vmatpush1.msra.mxu0 %v563
    %777 = vmatprep.subr.mxu0 %v567
    %778 = vmatpush1.msra.mxu0 %v566
    %779 = vmatprep.subr.mxu0 %v570
    %780 = vmatpush1.msra.mxu0 %v569
    %781 = vmatprep.subr.mxu0 %v573
    %782 = vmatpush1.msra.mxu0 %v572
    %783 = vmatprep.subr.mxu0 0.0
    %784 = vmatpush1.msra.mxu0 0.0
    %785 = vmatprep.subr.mxu0 0.0
    %786 = vmatpush1.msra.mxu0 0.0
    %787 = vmatprep.subr.mxu0 0.0
    %788 = vmatpush1.msra.mxu0 0.0
    %789 = vmatprep.subr.mxu0 0.0
    %790 = vmatpush1.msra.mxu0 0.0
    %791 = vmatprep.subr.mxu0 0.0
    %792 = vmatpush1.msra.mxu0 0.0
    %793 = vmatprep.subr.mxu0 0.0
    %794 = vmatpush1.msra.mxu0 0.0
    %795 = vmatprep.subr.mxu0 0.0
    %796 = vmatpush1.msra.mxu0 0.0
    %797 = vmatprep.subr.mxu0 0.0
    %798 = vmatpush1.msra.mxu0 0.0
    %799 = vmatprep.subr.mxu0 0.0
    %800 = vmatpush1.msra.mxu0 0.0
    %801 = vmatprep.subr.mxu0 0.0
    %802 = vmatpush1.msra.mxu0 0.0
    %803 = vmatprep.subr.mxu0 0.0
    %804 = vmatpush1.msra.mxu0 0.0
    %805 = vmatprep.subr.mxu0 0.0
    %806 = vmatpush1.msra.mxu0 0.0
    %807 = vmatprep.subr.mxu0 0.0
    %808 = vmatpush1.msra.mxu0 0.0
    %809 = vmatprep.subr.mxu0 0.0
    %810 = vmatpush1.msra.mxu0 0.0
    %811 = vmatprep.subr.mxu0 0.0
    %812 = vmatpush1.msra.mxu0 0.0
    %813 = vmatprep.subr.mxu0 0.0
    %814 = vmatpush1.msra.mxu0 0.0
    %815 = vmatprep.mubr.f32.mxu0 0.0
    %816 = vmatmul.mubr.f32.gmra.mrb[0].mxu0 %v748
    %v817 = vpop.f32.mrb[0].mxu0
    %v818 = vadd.f32 %v344, %v817
    %v819 = vpop.f32.mrb[0].mxu0
    %v820 = vadd.f32 %v346, %v819
    %821 = vdwg.mxu0
    %822 = vmatprep.subr.mxu0 0.0
    %823 = vmatpush1.msra.mxu0 %v529
    %824 = vmatprep.subr.mxu0 0.0
    %825 = vmatpush1.msra.mxu0 %v532
    %826 = vmatprep.subr.mxu0 0.0
    %827 = vmatpush1.msra.mxu0 %v535
    %828 = vmatprep.subr.mxu0 0.0
    %829 = vmatpush1.msra.mxu0 %v538
    %830 = vmatprep.subr.mxu0 0.0
    %831 = vmatpush1.msra.mxu0 %v541
    %832 = vmatprep.subr.mxu0 0.0
    %833 = vmatpush1.msra.mxu0 %v544
    %834 = vmatprep.subr.mxu0 0.0
    %835 = vmatpush1.msra.mxu0 %v547
    %836 = vmatprep.subr.mxu0 0.0
    %837 = vmatpush1.msra.mxu0 %v550
    %838 = vmatprep.subr.mxu0 0.0
    %839 = vmatpush1.msra.mxu0 %v553
    %840 = vmatprep.subr.mxu0 0.0
    %841 = vmatpush1.msra.mxu0 %v556
    %842 = vmatprep.subr.mxu0 0.0
    %843 = vmatpush1.msra.mxu0 %v559
    %844 = vmatprep.subr.mxu0 0.0
    %845 = vmatpush1.msra.mxu0 %v562
    %846 = vmatprep.subr.mxu0 0.0
    %847 = vmatpush1.msra.mxu0 %v565
    %848 = vmatprep.subr.mxu0 0.0
    %849 = vmatpush1.msra.mxu0 %v568
    %850 = vmatprep.subr.mxu0 0.0
    %851 = vmatpush1.msra.mxu0 %v571
    %852 = vmatprep.subr.mxu0 0.0
    %853 = vmatpush1.msra.mxu0 %v574
    %854 = vmatprep.subr.mxu0 0.0
    %855 = vmatpush1.msra.mxu0 0.0
    %856 = vmatprep.subr.mxu0 0.0
    %857 = vmatpush1.msra.mxu0 0.0
    %858 = vmatprep.subr.mxu0 0.0
    %859 = vmatpush1.msra.mxu0 0.0
    %860 = vmatprep.subr.mxu0 0.0
    %861 = vmatpush1.msra.mxu0 0.0
    %862 = vmatprep.subr.mxu0 0.0
    %863 = vmatpush1.msra.mxu0 0.0
    %864 = vmatprep.subr.mxu0 0.0
    %865 = vmatpush1.msra.mxu0 0.0
    %866 = vmatprep.subr.mxu0 0.0
    %867 = vmatpush1.msra.mxu0 0.0
    %868 = vmatprep.subr.mxu0 0.0
    %869 = vmatpush1.msra.mxu0 0.0
    %870 = vmatprep.subr.mxu0 0.0
    %871 = vmatpush1.msra.mxu0 0.0
    %872 = vmatprep.subr.mxu0 0.0
    %873 = vmatpush1.msra.mxu0 0.0
    %874 = vmatprep.subr.mxu0 0.0
    %875 = vmatpush1.msra.mxu0 0.0
    %876 = vmatprep.subr.mxu0 0.0
    %877 = vmatpush1.msra.mxu0 0.0
    %878 = vmatprep.subr.mxu0 0.0
    %879 = vmatpush1.msra.mxu0 0.0
    %880 = vmatprep.subr.mxu0 0.0
    %881 = vmatpush1.msra.mxu0 0.0
    %882 = vmatprep.subr.mxu0 0.0
    %883 = vmatpush1.msra.mxu0 0.0
    %884 = vmatprep.subr.mxu0 0.0
    %885 = vmatpush1.msra.mxu0 0.0
    %886 = vmatprep.mubr.f32.mxu0 0.0
    %887 = vmatmul.mubr.f32.gmra.mrb[0].mxu0 %v748
    %v888 = vpop.f32.mrb[0].mxu0
    %v889 = vadd.f32 %v415, %v888
    %v890 = vpop.f32.mrb[0].mxu0
    %891 = vdwg.mxu0
    %892 = vmatprep.subr.mxu0 %v576
    %893 = vmatpush1.msra.mxu0 %v575
    %894 = vmatprep.subr.mxu0 %v579
    %895 = vmatpush1.msra.mxu0 %v578
    %896 = vmatprep.subr.mxu0 %v582
    %897 = vmatpush1.msra.mxu0 %v581
    %898 = vmatprep.subr.mxu0 %v585
    %899 = vmatpush1.msra.mxu0 %v584
    %900 = vmatprep.subr.mxu0 %v588
    %901 = vmatpush1.msra.mxu0 %v587
    %902 = vmatprep.subr.mxu0 %v591
    %903 = vmatpush1.msra.mxu0 %v590
    %904 = vmatprep.subr.mxu0 %v594
    %905 = vmatpush1.msra.mxu0 %v593
    %906 = vmatprep.subr.mxu0 %v597
    %907 = vmatpush1.msra.mxu0 %v596
    %908 = vmatprep.subr.mxu0 %v600
    %909 = vmatpush1.msra.mxu0 %v599
    %910 = vmatprep.subr.mxu0 %v603
    %911 = vmatpush1.msra.mxu0 %v602
    %912 = vmatprep.subr.mxu0 %v606
    %913 = vmatpush1.msra.mxu0 %v605
    %914 = vmatprep.subr.mxu0 %v609
    %915 = vmatpush1.msra.mxu0 %v608
    %916 = vmatprep.subr.mxu0 %v612
    %917 = vmatpush1.msra.mxu0 %v611
    %918 = vmatprep.subr.mxu0 %v615
    %919 = vmatpush1.msra.mxu0 %v614
    %920 = vmatprep.subr.mxu0 %v618
    %921 = vmatpush1.msra.mxu0 %v617
    %922 = vmatprep.subr.mxu0 %v621
    %923 = vmatpush1.msra.mxu0 %v620
    %924 = vmatprep.subr.mxu0 0.0
    %925 = vmatpush1.msra.mxu0 0.0
    %926 = vmatprep.subr.mxu0 0.0
    %927 = vmatpush1.msra.mxu0 0.0
    %928 = vmatprep.subr.mxu0 0.0
    %929 = vmatpush1.msra.mxu0 0.0
    %930 = vmatprep.subr.mxu0 0.0
    %931 = vmatpush1.msra.mxu0 0.0
    %932 = vmatprep.subr.mxu0 0.0
    %933 = vmatpush1.msra.mxu0 0.0
    %934 = vmatprep.subr.mxu0 0.0
    %935 = vmatpush1.msra.mxu0 0.0
    %936 = vmatprep.subr.mxu0 0.0
    %937 = vmatpush1.msra.mxu0 0.0
    %938 = vmatprep.subr.mxu0 0.0
    %939 = vmatpush1.msra.mxu0 0.0
    %940 = vmatprep.subr.mxu0 0.0
    %941 = vmatpush1.msra.mxu0 0.0
    %942 = vmatprep.subr.mxu0 0.0
    %943 = vmatpush1.msra.mxu0 0.0
    %944 = vmatprep.subr.mxu0 0.0
    %945 = vmatpush1.msra.mxu0 0.0
    %946 = vmatprep.subr.mxu0 0.0
    %947 = vmatpush1.msra.mxu0 0.0
    %948 = vmatprep.subr.mxu0 0.0
    %949 = vmatpush1.msra.mxu0 0.0
    %950 = vmatprep.subr.mxu0 0.0
    %951 = vmatpush1.msra.mxu0 0.0
    %952 = vmatprep.subr.mxu0 0.0
    %953 = vmatpush1.msra.mxu0 0.0
    %954 = vmatprep.subr.mxu0 0.0
    %955 = vmatpush1.msra.mxu0 0.0
    %956 = vmatprep.mubr.f32.mxu0 0.0
    %957 = vmatmul.mubr.f32.gmra.mrb[0].mxu0 %v211
    %v958 = vpop.f32.mrb[0].mxu0
    %v959 = vadd.f32 %v628, %v958
    %v960 = vpop.f32.mrb[0].mxu0
    %v961 = vadd.f32 %v632, %v960
    %962 = vdwg.mxu0
    %963 = vmatprep.subr.mxu0 0.0
    %964 = vmatpush1.msra.mxu0 %v577
    %965 = vmatprep.subr.mxu0 0.0
    %966 = vmatpush1.msra.mxu0 %v580
    %967 = vmatprep.subr.mxu0 0.0
    %968 = vmatpush1.msra.mxu0 %v583
    %969 = vmatprep.subr.mxu0 0.0
    %970 = vmatpush1.msra.mxu0 %v586
    %971 = vmatprep.subr.mxu0 0.0
    %972 = vmatpush1.msra.mxu0 %v589
    %973 = vmatprep.subr.mxu0 0.0
    %974 = vmatpush1.msra.mxu0 %v592
    %975 = vmatprep.subr.mxu0 0.0
    %976 = vmatpush1.msra.mxu0 %v595
    %977 = vmatprep.subr.mxu0 0.0
    %978 = vmatpush1.msra.mxu0 %v598
    %979 = vmatprep.subr.mxu0 0.0
    %980 = vmatpush1.msra.mxu0 %v601
    %981 = vmatprep.subr.mxu0 0.0
    %982 = vmatpush1.msra.mxu0 %v604
    %983 = vmatprep.subr.mxu0 0.0
    %984 = vmatpush1.msra.mxu0 %v607
    %985 = vmatprep.subr.mxu0 0.0
    %986 = vmatpush1.msra.mxu0 %v610
    %987 = vmatprep.subr.mxu0 0.0
    %988 = vmatpush1.msra.mxu0 %v613
    %989 = vmatprep.subr.mxu0 0.0
    %990 = vmatpush1.msra.mxu0 %v616
    %991 = vmatprep.subr.mxu0 0.0
    %992 = vmatpush1.msra.mxu0 %v619
    %993 = vmatprep.subr.mxu0 0.0
    %994 = vmatpush1.msra.mxu0 %v622
    %995 = vmatprep.subr.mxu0 0.0
    %996 = vmatpush1.msra.mxu0 0.0
    %997 = vmatprep.subr.mxu0 0.0
    %998 = vmatpush1.msra.mxu0 0.0
    %999 = vmatprep.subr.mxu0 0.0
    %1000 = vmatpush1.msra.mxu0 0.0
    %1001 = vmatprep.subr.mxu0 0.0
    %1002 = vmatpush1.msra.mxu0 0.0
    %1003 = vmatprep.subr.mxu0 0.0
    %1004 = vmatpush1.msra.mxu0 0.0
    %1005 = vmatprep.subr.mxu0 0.0
    %1006 = vmatpush1.msra.mxu0 0.0
    %1007 = vmatprep.subr.mxu0 0.0
    %1008 = vmatpush1.msra.mxu0 0.0
    %1009 = vmatprep.subr.mxu0 0.0
    %1010 = vmatpush1.msra.mxu0 0.0
    %1011 = vmatprep.subr.mxu0 0.0
    %1012 = vmatpush1.msra.mxu0 0.0
    %1013 = vmatprep.subr.mxu0 0.0
    %1014 = vmatpush1.msra.mxu0 0.0
    %1015 = vmatprep.subr.mxu0 0.0
    %1016 = vmatpush1.msra.mxu0 0.0
    %1017 = vmatprep.subr.mxu0 0.0
    %1018 = vmatpush1.msra.mxu0 0.0
    %1019 = vmatprep.subr.mxu0 0.0
    %1020 = vmatpush1.msra.mxu0 0.0
    %1021 = vmatprep.subr.mxu0 0.0
    %1022 = vmatpush1.msra.mxu0 0.0
    %1023 = vmatprep.subr.mxu0 0.0
    %1024 = vmatpush1.msra.mxu0 0.0
    %1025 = vmatprep.subr.mxu0 0.0
    %1026 = vmatpush1.msra.mxu0 0.0
    %1027 = vmatprep.mubr.f32.mxu0 0.0
    %1028 = vmatmul.mubr.f32.gmra.mrb[0].mxu0 %v211
    %v1029 = vpop.f32.mrb[0].mxu0
    %v1030 = vadd.f32 %v636, %v1029
    %v1031 = vpop.f32.mrb[0].mxu0
    %1032 = vdwg.mxu0
    %v1033 = vadd.f32 %v818, %v959
    %v1034 = vxor.u32 %v1033, 2147483648
    %v1035 = vmul.f32 %v1034, 1.442695
    %v1036 = vpow.pop %v1035
    %v1037 = vadd.f32 %v1036, 1.0
    %v1038 = vrcp.pop %v1037
    %v1039 = vmul.f32 1.0, %v1038
    %v1040 = vadd.f32 %v820, %v961
    %v1041 = vxor.u32 %v1040, 2147483648
    %v1042 = vmul.f32 %v1041, 1.442695
    %v1043 = vpow.pop %v1042
    %v1044 = vadd.f32 %v1043, 1.0
    %v1045 = vrcp.pop %v1044
    %v1046 = vmul.f32 1.0, %v1045
    %v1047 = vmul.f32 %v1039, %v1030
    %v1048 = vadd.f32 %v889, %v1047
    %v1049 = vtanh.pop %v1048
    %v1050 = vsub.f32 1.0, %v1046
    %v1051 = vmul.f32 %v1050, %v1049
    %v1052 = vmul.f32 %v1046, %v211
    %v1053 = vadd.f32 %v1051, %v1052
    %1054 = vmatprep.subr.mxu0 0.0
    %1055 = vmatpush1.msra.mxu0 %v656
    %1056 = vmatprep.subr.mxu0 0.0
    %1057 = vmatpush1.msra.mxu0 %v657
    %1058 = vmatprep.subr.mxu0 0.0
    %1059 = vmatpush1.msra.mxu0 %v658
    %1060 = vmatprep.subr.mxu0 0.0
    %1061 = vmatpush1.msra.mxu0 %v659
    %1062 = vmatprep.subr.mxu0 0.0
    %1063 = vmatpush1.msra.mxu0 %v660
    %1064 = vmatprep.subr.mxu0 0.0
    %1065 = vmatpush1.msra.mxu0 %v661
    %1066 = vmatprep.subr.mxu0 0.0
    %1067 = vmatpush1.msra.mxu0 %v662
    %1068 = vmatprep.subr.mxu0 0.0
    %1069 = vmatpush1.msra.mxu0 %v663
    %1070 = vmatprep.subr.mxu0 0.0
    %1071 = vmatpush1.msra.mxu0 %v664
    %1072 = vmatprep.subr.mxu0 0.0
    %1073 = vmatpush1.msra.mxu0 %v665
    %1074 = vmatprep.subr.mxu0 0.0
    %1075 = vmatpush1.msra.mxu0 %v666
    %1076 = vmatprep.subr.mxu0 0.0
    %1077 = vmatpush1.msra.mxu0 %v667
    %1078 = vmatprep.subr.mxu0 0.0
    %1079 = vmatpush1.msra.mxu0 %v668
    %1080 = vmatprep.subr.mxu0 0.0
    %1081 = vmatpush1.msra.mxu0 %v669
    %1082 = vmatprep.subr.mxu0 0.0
    %1083 = vmatpush1.msra.mxu0 %v670
    %1084 = vmatprep.subr.mxu0 0.0
    %1085 = vmatpush1.msra.mxu0 %v671
    %1086 = vmatprep.subr.mxu0 0.0
    %1087 = vmatpush1.msra.mxu0 0.0
    %1088 = vmatprep.subr.mxu0 0.0
    %1089 = vmatpush1.msra.mxu0 0.0
    %1090 = vmatprep.subr.mxu0 0.0
    %1091 = vmatpush1.msra.mxu0 0.0
    %1092 = vmatprep.subr.mxu0 0.0
    %1093 = vmatpush1.msra.mxu0 0.0
    %1094 = vmatprep.subr.mxu0 0.0
    %1095 = vmatpush1.msra.mxu0 0.0
    %1096 = vmatprep.subr.mxu0 0.0
    %1097 = vmatpush1.msra.mxu0 0.0
    %1098 = vmatprep.subr.mxu0 0.0
    %1099 = vmatpush1.msra.mxu0 0.0
    %1100 = vmatprep.subr.mxu0 0.0
    %1101 = vmatpush1.msra.mxu0 0.0
    %1102 = vmatprep.subr.mxu0 0.0
    %1103 = vmatpush1.msra.mxu0 0.0
    %1104 = vmatprep.subr.mxu0 0.0
    %1105 = vmatpush1.msra.mxu0 0.0
    %1106 = vmatprep.subr.mxu0 0.0
    %1107 = vmatpush1.msra.mxu0 0.0
    %1108 = vmatprep.subr.mxu0 0.0
    %1109 = vmatpush1.msra.mxu0 0.0
    %1110 = vmatprep.subr.mxu0 0.0
    %1111 = vmatpush1.msra.mxu0 0.0
    %1112 = vmatprep.subr.mxu0 0.0
    %1113 = vmatpush1.msra.mxu0 0.0
    %1114 = vmatprep.subr.mxu0 0.0
    %1115 = vmatpush1.msra.mxu0 0.0
    %1116 = vmatprep.subr.mxu0 0.0
    %1117 = vmatpush1.msra.mxu0 0.0
    %1118 = vmatprep.mubr.f32.mxu0 0.0
    %1119 = vmatmul.mubr.f32.gmra.mrb[0].mxu0 %v1053
    %v1120 = vpop.f32.mrb[0].mxu0
    %v1121 = vadd.f32 0.0, %v1120
    %v1122 = vpop.f32.mrb[0].mxu0
    %1123 = vdwg.mxu0
    %1124 = vmatprep.subr.mxu0 0.0
    %1125 = vmatpush1.msra.mxu0 %v640
    %1126 = vmatprep.subr.mxu0 0.0
    %1127 = vmatpush1.msra.mxu0 %v641
    %1128 = vmatprep.subr.mxu0 0.0
    %1129 = vmatpush1.msra.mxu0 %v642
    %1130 = vmatprep.subr.mxu0 0.0
    %1131 = vmatpush1.msra.mxu0 %v643
    %1132 = vmatprep.subr.mxu0 0.0
    %1133 = vmatpush1.msra.mxu0 %v644
    %1134 = vmatprep.subr.mxu0 0.0
    %1135 = vmatpush1.msra.mxu0 %v645
    %1136 = vmatprep.subr.mxu0 0.0
    %1137 = vmatpush1.msra.mxu0 %v646
    %1138 = vmatprep.subr.mxu0 0.0
    %1139 = vmatpush1.msra.mxu0 %v647
    %1140 = vmatprep.subr.mxu0 0.0
    %1141 = vmatpush1.msra.mxu0 %v648
    %1142 = vmatprep.subr.mxu0 0.0
    %1143 = vmatpush1.msra.mxu0 %v649
    %1144 = vmatprep.subr.mxu0 0.0
    %1145 = vmatpush1.msra.mxu0 %v650
    %1146 = vmatprep.subr.mxu0 0.0
    %1147 = vmatpush1.msra.mxu0 %v651
    %1148 = vmatprep.subr.mxu0 0.0
    %1149 = vmatpush1.msra.mxu0 %v652
    %1150 = vmatprep.subr.mxu0 0.0
    %1151 = vmatpush1.msra.mxu0 %v653
    %1152 = vmatprep.subr.mxu0 0.0
    %1153 = vmatpush1.msra.mxu0 %v654
    %1154 = vmatprep.subr.mxu0 0.0
    %1155 = vmatpush1.msra.mxu0 %v655
    %1156 = vmatprep.subr.mxu0 0.0
    %1157 = vmatpush1.msra.mxu0 0.0
    %1158 = vmatprep.subr.mxu0 0.0
    %1159 = vmatpush1.msra.mxu0 0.0
    %1160 = vmatprep.subr.mxu0 0.0
    %1161 = vmatpush1.msra.mxu0 0.0
    %1162 = vmatprep.subr.mxu0 0.0
    %1163 = vmatpush1.msra.mxu0 0.0
    %1164 = vmatprep.subr.mxu0 0.0
    %1165 = vmatpush1.msra.mxu0 0.0
    %1166 = vmatprep.subr.mxu0 0.0
    %1167 = vmatpush1.msra.mxu0 0.0
    %1168 = vmatprep.subr.mxu0 0.0
    %1169 = vmatpush1.msra.mxu0 0.0
    %1170 = vmatprep.subr.mxu0 0.0
    %1171 = vmatpush1.msra.mxu0 0.0
    %1172 = vmatprep.subr.mxu0 0.0
    %1173 = vmatpush1.msra.mxu0 0.0
    %1174 = vmatprep.subr.mxu0 0.0
    %1175 = vmatpush1.msra.mxu0 0.0
    %1176 = vmatprep.subr.mxu0 0.0
    %1177 = vmatpush1.msra.mxu0 0.0
    %1178 = vmatprep.subr.mxu0 0.0
    %1179 = vmatpush1.msra.mxu0 0.0
    %1180 = vmatprep.subr.mxu0 0.0
    %1181 = vmatpush1.msra.mxu0 0.0
    %1182 = vmatprep.subr.mxu0 0.0
    %1183 = vmatpush1.msra.mxu0 0.0
    %1184 = vmatprep.subr.mxu0 0.0
    %1185 = vmatpush1.msra.mxu0 0.0
    %1186 = vmatprep.subr.mxu0 0.0
    %1187 = vmatpush1.msra.mxu0 0.0
    %1188 = vmatprep.mubr.f32.mxu0 0.0
    %1189 = vmatmul.mubr.f32.gmra.mrb[0].mxu0 %v748
    %v1190 = vpop.f32.mrb[0].mxu0
    %v1191 = vadd.f32 %v1121, %v1190
    %v1192 = vpop.f32.mrb[0].mxu0
    %1193 = vdwg.mxu0
    %v1194 = vadd.f32 %v1191, %v508
    %1195 = vst [vmem:[#allocation23] sm:$0xff] %v1194
    %v1196 = vld [vmem:[#allocation22] sm:$0xff]
    %v1197 = vadd.f32 %v1194, %v1196
    %1198 = vmax.xlane.f32.xlu0 %v1197
    %v1199 = vpop.xlane.xlu0 %1198
    %vm1200 = vcmp.eq.f32.partialorder %v1197, %v1199
    %v1201 = vsel %vm1200, %v674, 128
    %v1202 = vand.u32 %v1201, 65535
    %v1203 = vshra.s32 %v1201, 16
    %v1204 = vcvt.s32.f32 %v1202
    %v1205 = vcvt.s32.f32 %v1203
    %1206 = vmin.xlane.f32.xlu0 %v1205
    %v1207 = vpop.xlane.xlu0 %1206
    %vm1208 = vcmp.eq.f32.partialorder %v1205, %v1207
    %v1209 = vsel %vm1208, %v1204, inf
    %1210 = vmin.xlane.f32.xlu0 %v1209
    %v1211 = vpop.xlane.xlu0 %1210
    %v1212 = vcvt.f32.s32 %v1211
    %v1213 = vcvt.f32.s32 %v1207
    %v1214 = vshll.u32 %v1213, 16
    %v1215 = vadd.s32 %v1214, %v1212
    %vm1216 = vcmp.eq.s32.totalorder %v1215, %v674
    %v1217 = vsel %vm1216, 1, 0
    %v1218 = vcvt.s32.f32 %v1217
    %1219 = vmatprep.subr.mxu0 0.0
    %1220 = vmatpush1.msra.mxu0 %v511
    %1221 = vmatprep.subr.mxu0 0.0
    %1222 = vmatpush1.msra.mxu0 %v512
    %1223 = vmatprep.subr.mxu0 0.0
    %1224 = vmatpush1.msra.mxu0 %v513
    %1225 = vmatprep.subr.mxu0 0.0
    %1226 = vmatpush1.msra.mxu0 %v514
    %1227 = vmatprep.subr.mxu0 0.0
    %1228 = vmatpush1.msra.mxu0 %v515
    %1229 = vmatprep.subr.mxu0 0.0
    %1230 = vmatpush1.msra.mxu0 %v516
    %1231 = vmatprep.subr.mxu0 0.0
    %1232 = vmatpush1.msra.mxu0 %v517
    %1233 = vmatprep.subr.mxu0 0.0
    %1234 = vmatpush1.msra.mxu0 %v518
    %1235 = vmatprep.subr.mxu0 0.0
    %1236 = vmatpush1.msra.mxu0 %v519
    %1237 = vmatprep.subr.mxu0 0.0
    %1238 = vmatpush1.msra.mxu0 %v520
    %1239 = vmatprep.subr.mxu0 0.0
    %1240 = vmatpush1.msra.mxu0 %v521
    %1241 = vmatprep.subr.mxu0 0.0
    %1242 = vmatpush1.msra.mxu0 %v522
    %1243 = vmatprep.subr.mxu0 0.0
    %1244 = vmatpush1.msra.mxu0 %v523
    %1245 = vmatprep.subr.mxu0 0.0
    %1246 = vmatpush1.msra.mxu0 %v524
    %1247 = vmatprep.subr.mxu0 0.0
    %1248 = vmatpush1.msra.mxu0 %v525
    %1249 = vmatprep.subr.mxu0 0.0
    %1250 = vmatpush1.msra.mxu0 %v526
    %1251 = vmatprep.subr.mxu0 0.0
    %1252 = vmatpush1.msra.mxu0 0.0
    %1253 = vmatprep.subr.mxu0 0.0
    %1254 = vmatpush1.msra.mxu0 0.0
    %1255 = vmatprep.subr.mxu0 0.0
    %1256 = vmatpush1.msra.mxu0 0.0
    %1257 = vmatprep.subr.mxu0 0.0
    %1258 = vmatpush1.msra.mxu0 0.0
    %1259 = vmatprep.subr.mxu0 0.0
    %1260 = vmatpush1.msra.mxu0 0.0
    %1261 = vmatprep.subr.mxu0 0.0
    %1262 = vmatpush1.msra.mxu0 0.0
    %1263 = vmatprep.subr.mxu0 0.0
    %1264 = vmatpush1.msra.mxu0 0.0
    %1265 = vmatprep.subr.mxu0 0.0
    %1266 = vmatpush1.msra.mxu0 0.0
    %1267 = vmatprep.subr.mxu0 0.0
    %1268 = vmatpush1.msra.mxu0 0.0
    %1269 = vmatprep.subr.mxu0 0.0
    %1270 = vmatpush1.msra.mxu0 0.0
    %1271 = vmatprep.subr.mxu0 0.0
    %1272 = vmatpush1.msra.mxu0 0.0
    %1273 = vmatprep.subr.mxu0 0.0
    %1274 = vmatpush1.msra.mxu0 0.0
    %1275 = vmatprep.subr.mxu0 0.0
    %1276 = vmatpush1.msra.mxu0 0.0
    %1277 = vmatprep.subr.mxu0 0.0
    %1278 = vmatpush1.msra.mxu0 0.0
    %1279 = vmatprep.subr.mxu0 0.0
    %1280 = vmatpush1.msra.mxu0 0.0
    %1281 = vmatprep.subr.mxu0 0.0
    %1282 = vmatpush1.msra.mxu0 0.0
    %1283 = vmatprep.mubr.f32.mxu0 0.0
    %1284 = vmatmul.mubr.f32.gmra.mrb[0].mxu0 %v1218
    %v1285 = vpop.f32.mrb[0].mxu0
    %v1286 = vadd.f32 0.0, %v1285
    %v1287 = vpop.f32.mrb[0].mxu0
    %1288 = vdwg.mxu0
    %1289 = vmatprep.subr.mxu0 %v528
    %1290 = vmatpush1.msra.mxu0 %v527
    %1291 = vmatprep.subr.mxu0 %v531
    %1292 = vmatpush1.msra.mxu0 %v530
    %1293 = vmatprep.subr.mxu0 %v534
    %1294 = vmatpush1.msra.mxu0 %v533
    %1295 = vmatprep.subr.mxu0 %v537
    %1296 = vmatpush1.msra.mxu0 %v536
    %1297 = vmatprep.subr.mxu0 %v540
    %1298 = vmatpush1.msra.mxu0 %v539
    %1299 = vmatprep.subr.mxu0 %v543
    %1300 = vmatpush1.msra.mxu0 %v542
    %1301 = vmatprep.subr.mxu0 %v546
    %1302 = vmatpush1.msra.mxu0 %v545
    %1303 = vmatprep.subr.mxu0 %v549
    %1304 = vmatpush1.msra.mxu0 %v548
    %1305 = vmatprep.subr.mxu0 %v552
    %1306 = vmatpush1.msra.mxu0 %v551
    %1307 = vmatprep.subr.mxu0 %v555
    %1308 = vmatpush1.msra.mxu0 %v554
    %1309 = vmatprep.subr.mxu0 %v558
    %1310 = vmatpush1.msra.mxu0 %v557
    %1311 = vmatprep.subr.mxu0 %v561
    %1312 = vmatpush1.msra.mxu0 %v560
    %1313 = vmatprep.subr.mxu0 %v564
    %1314 = vmatpush1.msra.mxu0 %v563
    %1315 = vmatprep.subr.mxu0 %v567
    %1316 = vmatpush1.msra.mxu0 %v566
    %1317 = vmatprep.subr.mxu0 %v570
    %1318 = vmatpush1.msra.mxu0 %v569
    %1319 = vmatprep.subr.mxu0 %v573
    %1320 = vmatpush1.msra.mxu0 %v572
    %1321 = vmatprep.subr.mxu0 0.0
    %1322 = vmatpush1.msra.mxu0 0.0
    %1323 = vmatprep.subr.mxu0 0.0
    %1324 = vmatpush1.msra.mxu0 0.0
    %1325 = vmatprep.subr.mxu0 0.0
    %1326 = vmatpush1.msra.mxu0 0.0
    %1327 = vmatprep.subr.mxu0 0.0
    %1328 = vmatpush1.msra.mxu0 0.0
    %1329 = vmatprep.subr.mxu0 0.0
    %1330 = vmatpush1.msra.mxu0 0.0
    %1331 = vmatprep.subr.mxu0 0.0
    %1332 = vmatpush1.msra.mxu0 0.0
    %1333 = vmatprep.subr.mxu0 0.0
    %1334 = vmatpush1.msra.mxu0 0.0
    %1335 = vmatprep.subr.mxu0 0.0
    %1336 = vmatpush1.msra.mxu0 0.0
    %1337 = vmatprep.subr.mxu0 0.0
    %1338 = vmatpush1.msra.mxu0 0.0
    %1339 = vmatprep.subr.mxu0 0.0
    %1340 = vmatpush1.msra.mxu0 0.0
    %1341 = vmatprep.subr.mxu0 0.0
    %1342 = vmatpush1.msra.mxu0 0.0
    %1343 = vmatprep.subr.mxu0 0.0
    %1344 = vmatpush1.msra.mxu0 0.0
    %1345 = vmatprep.subr.mxu0 0.0
    %1346 = vmatpush1.msra.mxu0 0.0
    %1347 = vmatprep.subr.mxu0 0.0
    %1348 = vmatpush1.msra.mxu0 0.0
    %1349 = vmatprep.subr.mxu0 0.0
    %1350 = vmatpush1.msra.mxu0 0.0
    %1351 = vmatprep.subr.mxu0 0.0
    %1352 = vmatpush1.msra.mxu0 0.0
    %1353 = vmatprep.mubr.f32.mxu0 0.0
    %1354 = vmatmul.mubr.f32.gmra.mrb[0].mxu0 %v1286
    %v1355 = vpop.f32.mrb[0].mxu0
    %v1356 = vadd.f32 %v344, %v1355
    %v1357 = vpop.f32.mrb[0].mxu0
    %v1358 = vadd.f32 %v346, %v1357
    %1359 = vdwg.mxu0
    %1360 = vmatprep.subr.mxu0 0.0
    %1361 = vmatpush1.msra.mxu0 %v529
    %1362 = vmatprep.subr.mxu0 0.0
    %1363 = vmatpush1.msra.mxu0 %v532
    %1364 = vmatprep.subr.mxu0 0.0
    %1365 = vmatpush1.msra.mxu0 %v535
    %1366 = vmatprep.subr.mxu0 0.0
    %1367 = vmatpush1.msra.mxu0 %v538
    %1368 = vmatprep.subr.mxu0 0.0
    %1369 = vmatpush1.msra.mxu0 %v541
    %1370 = vmatprep.subr.mxu0 0.0
    %1371 = vmatpush1.msra.mxu0 %v544
    %1372 = vmatprep.subr.mxu0 0.0
    %1373 = vmatpush1.msra.mxu0 %v547
    %1374 = vmatprep.subr.mxu0 0.0
    %1375 = vmatpush1.msra.mxu0 %v550
    %1376 = vmatprep.subr.mxu0 0.0
    %1377 = vmatpush1.msra.mxu0 %v553
    %1378 = vmatprep.subr.mxu0 0.0
    %1379 = vmatpush1.msra.mxu0 %v556
    %1380 = vmatprep.subr.mxu0 0.0
    %1381 = vmatpush1.msra.mxu0 %v559
    %1382 = vmatprep.subr.mxu0 0.0
    %1383 = vmatpush1.msra.mxu0 %v562
    %1384 = vmatprep.subr.mxu0 0.0
    %1385 = vmatpush1.msra.mxu0 %v565
    %1386 = vmatprep.subr.mxu0 0.0
    %1387 = vmatpush1.msra.mxu0 %v568
    %1388 = vmatprep.subr.mxu0 0.0
    %1389 = vmatpush1.msra.mxu0 %v571
    %1390 = vmatprep.subr.mxu0 0.0
    %1391 = vmatpush1.msra.mxu0 %v574
    %1392 = vmatprep.subr.mxu0 0.0
    %1393 = vmatpush1.msra.mxu0 0.0
    %1394 = vmatprep.subr.mxu0 0.0
    %1395 = vmatpush1.msra.mxu0 0.0
    %1396 = vmatprep.subr.mxu0 0.0
    %1397 = vmatpush1.msra.mxu0 0.0
    %1398 = vmatprep.subr.mxu0 0.0
    %1399 = vmatpush1.msra.mxu0 0.0
    %1400 = vmatprep.subr.mxu0 0.0
    %1401 = vmatpush1.msra.mxu0 0.0
    %1402 = vmatprep.subr.mxu0 0.0
    %1403 = vmatpush1.msra.mxu0 0.0
    %1404 = vmatprep.subr.mxu0 0.0
    %1405 = vmatpush1.msra.mxu0 0.0
    %1406 = vmatprep.subr.mxu0 0.0
    %1407 = vmatpush1.msra.mxu0 0.0
    %1408 = vmatprep.subr.mxu0 0.0
    %1409 = vmatpush1.msra.mxu0 0.0
    %1410 = vmatprep.subr.mxu0 0.0
    %1411 = vmatpush1.msra.mxu0 0.0
    %1412 = vmatprep.subr.mxu0 0.0
    %1413 = vmatpush1.msra.mxu0 0.0
    %1414 = vmatprep.subr.mxu0 0.0
    %1415 = vmatpush1.msra.mxu0 0.0
    %1416 = vmatprep.subr.mxu0 0.0
    %1417 = vmatpush1.msra.mxu0 0.0
    %1418 = vmatprep.subr.mxu0 0.0
    %1419 = vmatpush1.msra.mxu0 0.0
    %1420 = vmatprep.subr.mxu0 0.0
    %1421 = vmatpush1.msra.mxu0 0.0
    %1422 = vmatprep.subr.mxu0 0.0
    %1423 = vmatpush1.msra.mxu0 0.0
    %1424 = vmatprep.mubr.f32.mxu0 0.0
    %1425 = vmatmul.mubr.f32.gmra.mrb[0].mxu0 %v1286
    %v1426 = vpop.f32.mrb[0].mxu0
    %v1427 = vadd.f32 %v415, %v1426
    %v1428 = vpop.f32.mrb[0].mxu0
    %1429 = vdwg.mxu0
    %1430 = vmatprep.subr.mxu0 %v576
    %1431 = vmatpush1.msra.mxu0 %v575
    %1432 = vmatprep.subr.mxu0 %v579
    %1433 = vmatpush1.msra.mxu0 %v578
    %1434 = vmatprep.subr.mxu0 %v582
    %1435 = vmatpush1.msra.mxu0 %v581
    %1436 = vmatprep.subr.mxu0 %v585
    %1437 = vmatpush1.msra.mxu0 %v584
    %1438 = vmatprep.subr.mxu0 %v588
    %1439 = vmatpush1.msra.mxu0 %v587
    %1440 = vmatprep.subr.mxu0 %v591
    %1441 = vmatpush1.msra.mxu0 %v590
    %1442 = vmatprep.subr.mxu0 %v594
    %1443 = vmatpush1.msra.mxu0 %v593
    %1444 = vmatprep.subr.mxu0 %v597
    %1445 = vmatpush1.msra.mxu0 %v596
    %1446 = vmatprep.subr.mxu0 %v600
    %1447 = vmatpush1.msra.mxu0 %v599
    %1448 = vmatprep.subr.mxu0 %v603
    %1449 = vmatpush1.msra.mxu0 %v602
    %1450 = vmatprep.subr.mxu0 %v606
    %1451 = vmatpush1.msra.mxu0 %v605
    %1452 = vmatprep.subr.mxu0 %v609
    %1453 = vmatpush1.msra.mxu0 %v608
    %1454 = vmatprep.subr.mxu0 %v612
    %1455 = vmatpush1.msra.mxu0 %v611
    %1456 = vmatprep.subr.mxu0 %v615
    %1457 = vmatpush1.msra.mxu0 %v614
    %1458 = vmatprep.subr.mxu0 %v618
    %1459 = vmatpush1.msra.mxu0 %v617
    %1460 = vmatprep.subr.mxu0 %v621
    %1461 = vmatpush1.msra.mxu0 %v620
    %1462 = vmatprep.subr.mxu0 0.0
    %1463 = vmatpush1.msra.mxu0 0.0
    %1464 = vmatprep.subr.mxu0 0.0
    %1465 = vmatpush1.msra.mxu0 0.0
    %1466 = vmatprep.subr.mxu0 0.0
    %1467 = vmatpush1.msra.mxu0 0.0
    %1468 = vmatprep.subr.mxu0 0.0
    %1469 = vmatpush1.msra.mxu0 0.0
    %1470 = vmatprep.subr.mxu0 0.0
    %1471 = vmatpush1.msra.mxu0 0.0
    %1472 = vmatprep.subr.mxu0 0.0
    %1473 = vmatpush1.msra.mxu0 0.0
    %1474 = vmatprep.subr.mxu0 0.0
    %1475 = vmatpush1.msra.mxu0 0.0
    %1476 = vmatprep.subr.mxu0 0.0
    %1477 = vmatpush1.msra.mxu0 0.0
    %1478 = vmatprep.subr.mxu0 0.0
    %1479 = vmatpush1.msra.mxu0 0.0
    %1480 = vmatprep.subr.mxu0 0.0
    %1481 = vmatpush1.msra.mxu0 0.0
    %1482 = vmatprep.subr.mxu0 0.0
    %1483 = vmatpush1.msra.mxu0 0.0
    %1484 = vmatprep.subr.mxu0 0.0
    %1485 = vmatpush1.msra.mxu0 0.0
    %1486 = vmatprep.subr.mxu0 0.0
    %1487 = vmatpush1.msra.mxu0 0.0
    %1488 = vmatprep.subr.mxu0 0.0
    %1489 = vmatpush1.msra.mxu0 0.0
    %1490 = vmatprep.subr.mxu0 0.0
    %1491 = vmatpush1.msra.mxu0 0.0
    %1492 = vmatprep.subr.mxu0 0.0
    %1493 = vmatpush1.msra.mxu0 0.0
    %1494 = vmatprep.mubr.f32.mxu0 0.0
    %1495 = vmatmul.mubr.f32.gmra.mrb[0].mxu0 %v1053
    %v1496 = vpop.f32.mrb[0].mxu0
    %v1497 = vadd.f32 %v628, %v1496
    %v1498 = vpop.f32.mrb[0].mxu0
    %v1499 = vadd.f32 %v632, %v1498
    %1500 = vdwg.mxu0
    %1501 = vmatprep.subr.mxu0 0.0
    %1502 = vmatpush1.msra.mxu0 %v577
    %1503 = vmatprep.subr.mxu0 0.0
    %1504 = vmatpush1.msra.mxu0 %v580
    %1505 = vmatprep.subr.mxu0 0.0
    %1506 = vmatpush1.msra.mxu0 %v583
    %1507 = vmatprep.subr.mxu0 0.0
    %1508 = vmatpush1.msra.mxu0 %v586
    %1509 = vmatprep.subr.mxu0 0.0
    %1510 = vmatpush1.msra.mxu0 %v589
    %1511 = vmatprep.subr.mxu0 0.0
    %1512 = vmatpush1.msra.mxu0 %v592
    %1513 = vmatprep.subr.mxu0 0.0
    %1514 = vmatpush1.msra.mxu0 %v595
    %1515 = vmatprep.subr.mxu0 0.0
    %1516 = vmatpush1.msra.mxu0 %v598
    %1517 = vmatprep.subr.mxu0 0.0
    %1518 = vmatpush1.msra.mxu0 %v601
    %1519 = vmatprep.subr.mxu0 0.0
    %1520 = vmatpush1.msra.mxu0 %v604
    %1521 = vmatprep.subr.mxu0 0.0
    %1522 = vmatpush1.msra.mxu0 %v607
    %1523 = vmatprep.subr.mxu0 0.0
    %1524 = vmatpush1.msra.mxu0 %v610
    %1525 = vmatprep.subr.mxu0 0.0
    %1526 = vmatpush1.msra.mxu0 %v613
    %1527 = vmatprep.subr.mxu0 0.0
    %1528 = vmatpush1.msra.mxu0 %v616
    %1529 = vmatprep.subr.mxu0 0.0
    %1530 = vmatpush1.msra.mxu0 %v619
    %1531 = vmatprep.subr.mxu0 0.0
    %1532 = vmatpush1.msra.mxu0 %v622
    %1533 = vmatprep.subr.mxu0 0.0
    %1534 = vmatpush1.msra.mxu0 0.0
    %1535 = vmatprep.subr.mxu0 0.0
    %1536 = vmatpush1.msra.mxu0 0.0
    %1537 = vmatprep.subr.mxu0 0.0
    %1538 = vmatpush1.msra.mxu0 0.0
    %1539 = vmatprep.subr.mxu0 0.0
    %1540 = vmatpush1.msra.mxu0 0.0
    %1541 = vmatprep.subr.mxu0 0.0
    %1542 = vmatpush1.msra.mxu0 0.0
    %1543 = vmatprep.subr.mxu0 0.0
    %1544 = vmatpush1.msra.mxu0 0.0
    %1545 = vmatprep.subr.mxu0 0.0
    %1546 = vmatpush1.msra.mxu0 0.0
    %1547 = vmatprep.subr.mxu0 0.0
    %1548 = vmatpush1.msra.mxu0 0.0
    %1549 = vmatprep.subr.mxu0 0.0
    %1550 = vmatpush1.msra.mxu0 0.0
    %1551 = vmatprep.subr.mxu0 0.0
    %1552 = vmatpush1.msra.mxu0 0.0
    %1553 = vmatprep.subr.mxu0 0.0
    %1554 = vmatpush1.msra.mxu0 0.0
    %1555 = vmatprep.subr.mxu0 0.0
    %1556 = vmatpush1.msra.mxu0 0.0
    %1557 = vmatprep.subr.mxu0 0.0
    %1558 = vmatpush1.msra.mxu0 0.0
    %1559 = vmatprep.subr.mxu0 0.0
    %1560 = vmatpush1.msra.mxu0 0.0
    %1561 = vmatprep.subr.mxu0 0.0
    %1562 = vmatpush1.msra.mxu0 0.0
    %1563 = vmatprep.subr.mxu0 0.0
    %1564 = vmatpush1.msra.mxu0 0.0
    %1565 = vmatprep.mubr.f32.mxu0 0.0
    %1566 = vmatmul.mubr.f32.gmra.mrb[0].mxu0 %v1053
    %v1567 = vpop.f32.mrb[0].mxu0
    %v1568 = vadd.f32 %v636, %v1567
    %v1569 = vpop.f32.mrb[0].mxu0
    %1570 = vdwg.mxu0
    %v1571 = vadd.f32 %v1356, %v1497
    %v1572 = vxor.u32 %v1571, 2147483648
    %v1573 = vmul.f32 %v1572, 1.442695
    %v1574 = vpow.pop %v1573
    %v1575 = vadd.f32 %v1574, 1.0
    %v1576 = vrcp.pop %v1575
    %v1577 = vmul.f32 1.0, %v1576
    %v1578 = vadd.f32 %v1358, %v1499
    %v1579 = vxor.u32 %v1578, 2147483648
    %v1580 = vmul.f32 %v1579, 1.442695
    %v1581 = vpow.pop %v1580
    %v1582 = vadd.f32 %v1581, 1.0
    %v1583 = vrcp.pop %v1582
    %v1584 = vmul.f32 1.0, %v1583
    %v1585 = vmul.f32 %v1577, %v1568
    %v1586 = vadd.f32 %v1427, %v1585
    %v1587 = vtanh.pop %v1586
    %v1588 = vsub.f32 1.0, %v1584
    %v1589 = vmul.f32 %v1588, %v1587
    %v1590 = vmul.f32 %v1584, %v1053
    %v1591 = vadd.f32 %v1589, %v1590
    %1592 = vmatprep.subr.mxu0 0.0
    %1593 = vmatpush1.msra.mxu0 %v656
    %1594 = vmatprep.subr.mxu0 0.0
    %1595 = vmatpush1.msra.mxu0 %v657
    %1596 = vmatprep.subr.mxu0 0.0
    %1597 = vmatpush1.msra.mxu0 %v658
    %1598 = vmatprep.subr.mxu0 0.0
    %1599 = vmatpush1.msra.mxu0 %v659
    %1600 = vmatprep.subr.mxu0 0.0
    %1601 = vmatpush1.msra.mxu0 %v660
    %1602 = vmatprep.subr.mxu0 0.0
    %1603 = vmatpush1.msra.mxu0 %v661
    %1604 = vmatprep.subr.mxu0 0.0
    %1605 = vmatpush1.msra.mxu0 %v662
    %1606 = vmatprep.subr.mxu0 0.0
    %1607 = vmatpush1.msra.mxu0 %v663
    %1608 = vmatprep.subr.mxu0 0.0
    %1609 = vmatpush1.msra.mxu0 %v664
    %1610 = vmatprep.subr.mxu0 0.0
    %1611 = vmatpush1.msra.mxu0 %v665
    %1612 = vmatprep.subr.mxu0 0.0
    %1613 = vmatpush1.msra.mxu0 %v666
    %1614 = vmatprep.subr.mxu0 0.0
    %1615 = vmatpush1.msra.mxu0 %v667
    %1616 = vmatprep.subr.mxu0 0.0
    %1617 = vmatpush1.msra.mxu0 %v668
    %1618 = vmatprep.subr.mxu0 0.0
    %1619 = vmatpush1.msra.mxu0 %v669
    %1620 = vmatprep.subr.mxu0 0.0
    %1621 = vmatpush1.msra.mxu0 %v670
    %1622 = vmatprep.subr.mxu0 0.0
    %1623 = vmatpush1.msra.mxu0 %v671
    %1624 = vmatprep.subr.mxu0 0.0
    %1625 = vmatpush1.msra.mxu0 0.0
    %1626 = vmatprep.subr.mxu0 0.0
    %1627 = vmatpush1.msra.mxu0 0.0
    %1628 = vmatprep.subr.mxu0 0.0
    %1629 = vmatpush1.msra.mxu0 0.0
    %1630 = vmatprep.subr.mxu0 0.0
    %1631 = vmatpush1.msra.mxu0 0.0
    %1632 = vmatprep.subr.mxu0 0.0
    %1633 = vmatpush1.msra.mxu0 0.0
    %1634 = vmatprep.subr.mxu0 0.0
    %1635 = vmatpush1.msra.mxu0 0.0
    %1636 = vmatprep.subr.mxu0 0.0
    %1637 = vmatpush1.msra.mxu0 0.0
    %1638 = vmatprep.subr.mxu0 0.0
    %1639 = vmatpush1.msra.mxu0 0.0
    %1640 = vmatprep.subr.mxu0 0.0
    %1641 = vmatpush1.msra.mxu0 0.0
    %1642 = vmatprep.subr.mxu0 0.0
    %1643 = vmatpush1.msra.mxu0 0.0
    %1644 = vmatprep.subr.mxu0 0.0
    %1645 = vmatpush1.msra.mxu0 0.0
    %1646 = vmatprep.subr.mxu0 0.0
    %1647 = vmatpush1.msra.mxu0 0.0
    %1648 = vmatprep.subr.mxu0 0.0
    %1649 = vmatpush1.msra.mxu0 0.0
    %1650 = vmatprep.subr.mxu0 0.0
    %1651 = vmatpush1.msra.mxu0 0.0
    %1652 = vmatprep.subr.mxu0 0.0
    %1653 = vmatpush1.msra.mxu0 0.0
    %1654 = vmatprep.subr.mxu0 0.0
    %1655 = vmatpush1.msra.mxu0 0.0
    %1656 = vmatprep.mubr.f32.mxu0 0.0
    %1657 = vmatmul.mubr.f32.gmra.mrb[0].mxu0 %v1591
    %v1658 = vpop.f32.mrb[0].mxu0
    %v1659 = vadd.f32 0.0, %v1658
    %v1660 = vpop.f32.mrb[0].mxu0
    %1661 = vdwg.mxu0
    %1662 = vmatprep.subr.mxu0 0.0
    %1663 = vmatpush1.msra.mxu0 %v640
    %1664 = vmatprep.subr.mxu0 0.0
    %1665 = vmatpush1.msra.mxu0 %v641
    %1666 = vmatprep.subr.mxu0 0.0
    %1667 = vmatpush1.msra.mxu0 %v642
    %1668 = vmatprep.subr.mxu0 0.0
    %1669 = vmatpush1.msra.mxu0 %v643
    %1670 = vmatprep.subr.mxu0 0.0
    %1671 = vmatpush1.msra.mxu0 %v644
    %1672 = vmatprep.subr.mxu0 0.0
    %1673 = vmatpush1.msra.mxu0 %v645
    %1674 = vmatprep.subr.mxu0 0.0
    %1675 = vmatpush1.msra.mxu0 %v646
    %1676 = vmatprep.subr.mxu0 0.0
    %1677 = vmatpush1.msra.mxu0 %v647
    %1678 = vmatprep.subr.mxu0 0.0
    %1679 = vmatpush1.msra.mxu0 %v648
    %1680 = vmatprep.subr.mxu0 0.0
    %1681 = vmatpush1.msra.mxu0 %v649
    %1682 = vmatprep.subr.mxu0 0.0
    %1683 = vmatpush1.msra.mxu0 %v650
    %1684 = vmatprep.subr.mxu0 0.0
    %1685 = vmatpush1.msra.mxu0 %v651
    %1686 = vmatprep.subr.mxu0 0.0
    %1687 = vmatpush1.msra.mxu0 %v652
    %1688 = vmatprep.subr.mxu0 0.0
    %1689 = vmatpush1.msra.mxu0 %v653
    %1690 = vmatprep.subr.mxu0 0.0
    %1691 = vmatpush1.msra.mxu0 %v654
    %1692 = vmatprep.subr.mxu0 0.0
    %1693 = vmatpush1.msra.mxu0 %v655
    %1694 = vmatprep.subr.mxu0 0.0
    %1695 = vmatpush1.msra.mxu0 0.0
    %1696 = vmatprep.subr.mxu0 0.0
    %1697 = vmatpush1.msra.mxu0 0.0
    %1698 = vmatprep.subr.mxu0 0.0
    %1699 = vmatpush1.msra.mxu0 0.0
    %1700 = vmatprep.subr.mxu0 0.0
    %1701 = vmatpush1.msra.mxu0 0.0
    %1702 = vmatprep.subr.mxu0 0.0
    %1703 = vmatpush1.msra.mxu0 0.0
    %1704 = vmatprep.subr.mxu0 0.0
    %1705 = vmatpush1.msra.mxu0 0.0
    %1706 = vmatprep.subr.mxu0 0.0
    %1707 = vmatpush1.msra.mxu0 0.0
    %1708 = vmatprep.subr.mxu0 0.0
    %1709 = vmatpush1.msra.mxu0 0.0
    %1710 = vmatprep.subr.mxu0 0.0
    %1711 = vmatpush1.msra.mxu0 0.0
    %1712 = vmatprep.subr.mxu0 0.0
    %1713 = vmatpush1.msra.mxu0 0.0
    %1714 = vmatprep.subr.mxu0 0.0
    %1715 = vmatpush1.msra.mxu0 0.0
    %1716 = vmatprep.subr.mxu0 0.0
    %1717 = vmatpush1.msra.mxu0 0.0
    %1718 = vmatprep.subr.mxu0 0.0
    %1719 = vmatpush1.msra.mxu0 0.0
    %1720 = vmatprep.subr.mxu0 0.0
    %1721 = vmatpush1.msra.mxu0 0.0
    %1722 = vmatprep.subr.mxu0 0.0
    %1723 = vmatpush1.msra.mxu0 0.0
    %1724 = vmatprep.subr.mxu0 0.0
    %1725 = vmatpush1.msra.mxu0 0.0
    %1726 = vmatprep.mubr.f32.mxu0 0.0
    %1727 = vmatmul.mubr.f32.gmra.mrb[0].mxu0 %v1286
    %v1728 = vpop.f32.mrb[0].mxu0
    %v1729 = vadd.f32 %v1659, %v1728
    %v1730 = vpop.f32.mrb[0].mxu0
    %1731 = vdwg.mxu0
    %v1732 = vadd.f32 %v1729, %v508
    %s1733 = scalar_lea.vmem [#allocation23], 8
    %1734 = vst [vmem:[%s1733] sm:$0xff] %v1732
    %s1735 = scalar_lea.vmem [#allocation22], 8
    %v1736 = vld [vmem:[%s1735] sm:$0xff]
    %v1737 = vadd.f32 %v1732, %v1736
    %1738 = vmax.xlane.f32.xlu0 %v1737
    %v1739 = vpop.xlane.xlu0 %1738
    %vm1740 = vcmp.eq.f32.partialorder %v1737, %v1739
    %v1741 = vsel %vm1740, %v674, 128
    %v1742 = vand.u32 %v1741, 65535
    %v1743 = vshra.s32 %v1741, 16
    %v1744 = vcvt.s32.f32 %v1742
    %v1745 = vcvt.s32.f32 %v1743
    %1746 = vmin.xlane.f32.xlu0 %v1745
    %v1747 = vpop.xlane.xlu0 %1746
    %vm1748 = vcmp.eq.f32.partialorder %v1745, %v1747
    %v1749 = vsel %vm1748, %v1744, inf
    %1750 = vmin.xlane.f32.xlu0 %v1749
    %v1751 = vpop.xlane.xlu0 %1750
    %v1752 = vcvt.f32.s32 %v1751
    %v1753 = vcvt.f32.s32 %v1747
    %v1754 = vshll.u32 %v1753, 16
    %v1755 = vadd.s32 %v1754, %v1752
    %vm1756 = vcmp.eq.s32.totalorder %v1755, %v674
    %v1757 = vsel %vm1756, 1, 0
    %v1758 = vcvt.s32.f32 %v1757
    %1759 = vmatprep.subr.mxu0 0.0
    %1760 = vmatpush1.msra.mxu0 %v511
    %1761 = vmatprep.subr.mxu0 0.0
    %1762 = vmatpush1.msra.mxu0 %v512
    %1763 = vmatprep.subr.mxu0 0.0
    %1764 = vmatpush1.msra.mxu0 %v513
    %1765 = vmatprep.subr.mxu0 0.0
    %1766 = vmatpush1.msra.mxu0 %v514
    %1767 = vmatprep.subr.mxu0 0.0
    %1768 = vmatpush1.msra.mxu0 %v515
    %1769 = vmatprep.subr.mxu0 0.0
    %1770 = vmatpush1.msra.mxu0 %v516
    %1771 = vmatprep.subr.mxu0 0.0
    %1772 = vmatpush1.msra.mxu0 %v517
    %1773 = vmatprep.subr.mxu0 0.0
    %1774 = vmatpush1.msra.mxu0 %v518
    %1775 = vmatprep.subr.mxu0 0.0
    %1776 = vmatpush1.msra.mxu0 %v519
    %1777 = vmatprep.subr.mxu0 0.0
    %1778 = vmatpush1.msra.mxu0 %v520
    %1779 = vmatprep.subr.mxu0 0.0
    %1780 = vmatpush1.msra.mxu0 %v521
    %1781 = vmatprep.subr.mxu0 0.0
    %1782 = vmatpush1.msra.mxu0 %v522
    %1783 = vmatprep.subr.mxu0 0.0
    %1784 = vmatpush1.msra.mxu0 %v523
    %1785 = vmatprep.subr.mxu0 0.0
    %1786 = vmatpush1.msra.mxu0 %v524
    %1787 = vmatprep.subr.mxu0 0.0
    %1788 = vmatpush1.msra.mxu0 %v525
    %1789 = vmatprep.subr.mxu0 0.0
    %1790 = vmatpush1.msra.mxu0 %v526
    %1791 = vmatprep.subr.mxu0 0.0
    %1792 = vmatpush1.msra.mxu0 0.0
    %1793 = vmatprep.subr.mxu0 0.0
    %1794 = vmatpush1.msra.mxu0 0.0
    %1795 = vmatprep.subr.mxu0 0.0
    %1796 = vmatpush1.msra.mxu0 0.0
    %1797 = vmatprep.subr.mxu0 0.0
    %1798 = vmatpush1.msra.mxu0 0.0
    %1799 = vmatprep.subr.mxu0 0.0
    %1800 = vmatpush1.msra.mxu0 0.0
    %1801 = vmatprep.subr.mxu0 0.0
    %1802 = vmatpush1.msra.mxu0 0.0
    %1803 = vmatprep.subr.mxu0 0.0
    %1804 = vmatpush1.msra.mxu0 0.0
    %1805 = vmatprep.subr.mxu0 0.0
    %1806 = vmatpush1.msra.mxu0 0.0
    %1807 = vmatprep.subr.mxu0 0.0
    %1808 = vmatpush1.msra.mxu0 0.0
    %1809 = vmatprep.subr.mxu0 0.0
    %1810 = vmatpush1.msra.mxu0 0.0
    %1811 = vmatprep.subr.mxu0 0.0
    %1812 = vmatpush1.msra.mxu0 0.0
    %1813 = vmatprep.subr.mxu0 0.0
    %1814 = vmatpush1.msra.mxu0 0.0
    %1815 = vmatprep.subr.mxu0 0.0
    %1816 = vmatpush1.msra.mxu0 0.0
    %1817 = vmatprep.subr.mxu0 0.0
    %1818 = vmatpush1.msra.mxu0 0.0
    %1819 = vmatprep.subr.mxu0 0.0
    %1820 = vmatpush1.msra.mxu0 0.0
    %1821 = vmatprep.subr.mxu0 0.0
    %1822 = vmatpush1.msra.mxu0 0.0
    %1823 = vmatprep.mubr.f32.mxu0 0.0
    %1824 = vmatmul.mubr.f32.gmra.mrb[0].mxu0 %v1758
    %v1825 = vpop.f32.mrb[0].mxu0
    %v1826 = vadd.f32 0.0, %v1825
    %v1827 = vpop.f32.mrb[0].mxu0
    %1828 = vdwg.mxu0
    %1829 = vmatprep.subr.mxu0 %v528
    %1830 = vmatpush1.msra.mxu0 %v527
    %1831 = vmatprep.subr.mxu0 %v531
    %1832 = vmatpush1.msra.mxu0 %v530
    %1833 = vmatprep.subr.mxu0 %v534
    %1834 = vmatpush1.msra.mxu0 %v533
    %1835 = vmatprep.subr.mxu0 %v537
    %1836 = vmatpush1.msra.mxu0 %v536
    %1837 = vmatprep.subr.mxu0 %v540
    %1838 = vmatpush1.msra.mxu0 %v539
    %1839 = vmatprep.subr.mxu0 %v543
    %1840 = vmatpush1.msra.mxu0 %v542
    %1841 = vmatprep.subr.mxu0 %v546
    %1842 = vmatpush1.msra.mxu0 %v545
    %1843 = vmatprep.subr.mxu0 %v549
    %1844 = vmatpush1.msra.mxu0 %v548
    %1845 = vmatprep.subr.mxu0 %v552
    %1846 = vmatpush1.msra.mxu0 %v551
    %1847 = vmatprep.subr.mxu0 %v555
    %1848 = vmatpush1.msra.mxu0 %v554
    %1849 = vmatprep.subr.mxu0 %v558
    %1850 = vmatpush1.msra.mxu0 %v557
    %1851 = vmatprep.subr.mxu0 %v561
    %1852 = vmatpush1.msra.mxu0 %v560
    %1853 = vmatprep.subr.mxu0 %v564
    %1854 = vmatpush1.msra.mxu0 %v563
    %1855 = vmatprep.subr.mxu0 %v567
    %1856 = vmatpush1.msra.mxu0 %v566
    %1857 = vmatprep.subr.mxu0 %v570
    %1858 = vmatpush1.msra.mxu0 %v569
    %1859 = vmatprep.subr.mxu0 %v573
    %1860 = vmatpush1.msra.mxu0 %v572
    %1861 = vmatprep.subr.mxu0 0.0
    %1862 = vmatpush1.msra.mxu0 0.0
    %1863 = vmatprep.subr.mxu0 0.0
    %1864 = vmatpush1.msra.mxu0 0.0
    %1865 = vmatprep.subr.mxu0 0.0
    %1866 = vmatpush1.msra.mxu0 0.0
    %1867 = vmatprep.subr.mxu0 0.0
    %1868 = vmatpush1.msra.mxu0 0.0
    %1869 = vmatprep.subr.mxu0 0.0
    %1870 = vmatpush1.msra.mxu0 0.0
    %1871 = vmatprep.subr.mxu0 0.0
    %1872 = vmatpush1.msra.mxu0 0.0
    %1873 = vmatprep.subr.mxu0 0.0
    %1874 = vmatpush1.msra.mxu0 0.0
    %1875 = vmatprep.subr.mxu0 0.0
    %1876 = vmatpush1.msra.mxu0 0.0
    %1877 = vmatprep.subr.mxu0 0.0
    %1878 = vmatpush1.msra.mxu0 0.0
    %1879 = vmatprep.subr.mxu0 0.0
    %1880 = vmatpush1.msra.mxu0 0.0
    %1881 = vmatprep.subr.mxu0 0.0
    %1882 = vmatpush1.msra.mxu0 0.0
    %1883 = vmatprep.subr.mxu0 0.0
    %1884 = vmatpush1.msra.mxu0 0.0
    %1885 = vmatprep.subr.mxu0 0.0
    %1886 = vmatpush1.msra.mxu0 0.0
    %1887 = vmatprep.subr.mxu0 0.0
    %1888 = vmatpush1.msra.mxu0 0.0
    %1889 = vmatprep.subr.mxu0 0.0
    %1890 = vmatpush1.msra.mxu0 0.0
    %1891 = vmatprep.subr.mxu0 0.0
    %1892 = vmatpush1.msra.mxu0 0.0
    %1893 = vmatprep.mubr.f32.mxu0 0.0
    %1894 = vmatmul.mubr.f32.gmra.mrb[0].mxu0 %v1826
    %v1895 = vpop.f32.mrb[0].mxu0
    %v1896 = vadd.f32 %v344, %v1895
    %v1897 = vpop.f32.mrb[0].mxu0
    %v1898 = vadd.f32 %v346, %v1897
    %1899 = vdwg.mxu0
    %1900 = vmatprep.subr.mxu0 0.0
    %1901 = vmatpush1.msra.mxu0 %v529
    %1902 = vmatprep.subr.mxu0 0.0
    %1903 = vmatpush1.msra.mxu0 %v532
    %1904 = vmatprep.subr.mxu0 0.0
    %1905 = vmatpush1.msra.mxu0 %v535
    %1906 = vmatprep.subr.mxu0 0.0
    %1907 = vmatpush1.msra.mxu0 %v538
    %1908 = vmatprep.subr.mxu0 0.0
    %1909 = vmatpush1.msra.mxu0 %v541
    %1910 = vmatprep.subr.mxu0 0.0
    %1911 = vmatpush1.msra.mxu0 %v544
    %1912 = vmatprep.subr.mxu0 0.0
    %1913 = vmatpush1.msra.mxu0 %v547
    %1914 = vmatprep.subr.mxu0 0.0
    %1915 = vmatpush1.msra.mxu0 %v550
    %1916 = vmatprep.subr.mxu0 0.0
    %1917 = vmatpush1.msra.mxu0 %v553
    %1918 = vmatprep.subr.mxu0 0.0
    %1919 = vmatpush1.msra.mxu0 %v556
    %1920 = vmatprep.subr.mxu0 0.0
    %1921 = vmatpush1.msra.mxu0 %v559
    %1922 = vmatprep.subr.mxu0 0.0
    %1923 = vmatpush1.msra.mxu0 %v562
    %1924 = vmatprep.subr.mxu0 0.0
    %1925 = vmatpush1.msra.mxu0 %v565
    %1926 = vmatprep.subr.mxu0 0.0
    %1927 = vmatpush1.msra.mxu0 %v568
    %1928 = vmatprep.subr.mxu0 0.0
    %1929 = vmatpush1.msra.mxu0 %v571
    %1930 = vmatprep.subr.mxu0 0.0
    %1931 = vmatpush1.msra.mxu0 %v574
    %1932 = vmatprep.subr.mxu0 0.0
    %1933 = vmatpush1.msra.mxu0 0.0
    %1934 = vmatprep.subr.mxu0 0.0
    %1935 = vmatpush1.msra.mxu0 0.0
    %1936 = vmatprep.subr.mxu0 0.0
    %1937 = vmatpush1.msra.mxu0 0.0
    %1938 = vmatprep.subr.mxu0 0.0
    %1939 = vmatpush1.msra.mxu0 0.0
    %1940 = vmatprep.subr.mxu0 0.0
    %1941 = vmatpush1.msra.mxu0 0.0
    %1942 = vmatprep.subr.mxu0 0.0
    %1943 = vmatpush1.msra.mxu0 0.0
    %1944 = vmatprep.subr.mxu0 0.0
    %1945 = vmatpush1.msra.mxu0 0.0
    %1946 = vmatprep.subr.mxu0 0.0
    %1947 = vmatpush1.msra.mxu0 0.0
    %1948 = vmatprep.subr.mxu0 0.0
    %1949 = vmatpush1.msra.mxu0 0.0
    %1950 = vmatprep.subr.mxu0 0.0
    %1951 = vmatpush1.msra.mxu0 0.0
    %1952 = vmatprep.subr.mxu0 0.0
    %1953 = vmatpush1.msra.mxu0 0.0
    %1954 = vmatprep.subr.mxu0 0.0
    %1955 = vmatpush1.msra.mxu0 0.0
    %1956 = vmatprep.subr.mxu0 0.0
    %1957 = vmatpush1.msra.mxu0 0.0
    %1958 = vmatprep.subr.mxu0 0.0
    %1959 = vmatpush1.msra.mxu0 0.0
    %1960 = vmatprep.subr.mxu0 0.0
    %1961 = vmatpush1.msra.mxu0 0.0
    %1962 = vmatprep.subr.mxu0 0.0
    %1963 = vmatpush1.msra.mxu0 0.0
    %1964 = vmatprep.mubr.f32.mxu0 0.0
    %1965 = vmatmul.mubr.f32.gmra.mrb[0].mxu0 %v1826
    %v1966 = vpop.f32.mrb[0].mxu0
    %v1967 = vadd.f32 %v415, %v1966
    %v1968 = vpop.f32.mrb[0].mxu0
    %1969 = vdwg.mxu0
    %1970 = vmatprep.subr.mxu0 %v576
    %1971 = vmatpush1.msra.mxu0 %v575
    %1972 = vmatprep.subr.mxu0 %v579
    %1973 = vmatpush1.msra.mxu0 %v578
    %1974 = vmatprep.subr.mxu0 %v582
    %1975 = vmatpush1.msra.mxu0 %v581
    %1976 = vmatprep.subr.mxu0 %v585
    %1977 = vmatpush1.msra.mxu0 %v584
    %1978 = vmatprep.subr.mxu0 %v588
    %1979 = vmatpush1.msra.mxu0 %v587
    %1980 = vmatprep.subr.mxu0 %v591
    %1981 = vmatpush1.msra.mxu0 %v590
    %1982 = vmatprep.subr.mxu0 %v594
    %1983 = vmatpush1.msra.mxu0 %v593
    %1984 = vmatprep.subr.mxu0 %v597
    %1985 = vmatpush1.msra.mxu0 %v596
    %1986 = vmatprep.subr.mxu0 %v600
    %1987 = vmatpush1.msra.mxu0 %v599
    %1988 = vmatprep.subr.mxu0 %v603
    %1989 = vmatpush1.msra.mxu0 %v602
    %1990 = vmatprep.subr.mxu0 %v606
    %1991 = vmatpush1.msra.mxu0 %v605
    %1992 = vmatprep.subr.mxu0 %v609
    %1993 = vmatpush1.msra.mxu0 %v608
    %1994 = vmatprep.subr.mxu0 %v612
    %1995 = vmatpush1.msra.mxu0 %v611
    %1996 = vmatprep.subr.mxu0 %v615
    %1997 = vmatpush1.msra.mxu0 %v614
    %1998 = vmatprep.subr.mxu0 %v618
    %1999 = vmatpush1.msra.mxu0 %v617
    %2000 = vmatprep.subr.mxu0 %v621
    %2001 = vmatpush1.msra.mxu0 %v620
    %2002 = vmatprep.subr.mxu0 0.0
    %2003 = vmatpush1.msra.mxu0 0.0
    %2004 = vmatprep.subr.mxu0 0.0
    %2005 = vmatpush1.msra.mxu0 0.0
    %2006 = vmatprep.subr.mxu0 0.0
    %2007 = vmatpush1.msra.mxu0 0.0
    %2008 = vmatprep.subr.mxu0 0.0
    %2009 = vmatpush1.msra.mxu0 0.0
    %2010 = vmatprep.subr.mxu0 0.0
    %2011 = vmatpush1.msra.mxu0 0.0
    %2012 = vmatprep.subr.mxu0 0.0
    %2013 = vmatpush1.msra.mxu0 0.0
    %2014 = vmatprep.subr.mxu0 0.0
    %2015 = vmatpush1.msra.mxu0 0.0
    %2016 = vmatprep.subr.mxu0 0.0
    %2017 = vmatpush1.msra.mxu0 0.0
    %2018 = vmatprep.subr.mxu0 0.0
    %2019 = vmatpush1.msra.mxu0 0.0
    %2020 = vmatprep.subr.mxu0 0.0
    %2021 = vmatpush1.msra.mxu0 0.0
    %2022 = vmatprep.subr.mxu0 0.0
    %2023 = vmatpush1.msra.mxu0 0.0
    %2024 = vmatprep.subr.mxu0 0.0
    %2025 = vmatpush1.msra.mxu0 0.0
    %2026 = vmatprep.subr.mxu0 0.0
    %2027 = vmatpush1.msra.mxu0 0.0
    %2028 = vmatprep.subr.mxu0 0.0
    %2029 = vmatpush1.msra.mxu0 0.0
    %2030 = vmatprep.subr.mxu0 0.0
    %2031 = vmatpush1.msra.mxu0 0.0
    %2032 = vmatprep.subr.mxu0 0.0
    %2033 = vmatpush1.msra.mxu0 0.0
    %2034 = vmatprep.mubr.f32.mxu0 0.0
    %2035 = vmatmul.mubr.f32.gmra.mrb[0].mxu0 %v1591
    %v2036 = vpop.f32.mrb[0].mxu0
    %v2037 = vadd.f32 %v628, %v2036
    %v2038 = vpop.f32.mrb[0].mxu0
    %v2039 = vadd.f32 %v632, %v2038
    %2040 = vdwg.mxu0
    %2041 = vmatprep.subr.mxu0 0.0
    %2042 = vmatpush1.msra.mxu0 %v577
    %2043 = vmatprep.subr.mxu0 0.0
    %2044 = vmatpush1.msra.mxu0 %v580
    %2045 = vmatprep.subr.mxu0 0.0
    %2046 = vmatpush1.msra.mxu0 %v583
    %2047 = vmatprep.subr.mxu0 0.0
    %2048 = vmatpush1.msra.mxu0 %v586
    %2049 = vmatprep.subr.mxu0 0.0
    %2050 = vmatpush1.msra.mxu0 %v589
    %2051 = vmatprep.subr.mxu0 0.0
    %2052 = vmatpush1.msra.mxu0 %v592
    %2053 = vmatprep.subr.mxu0 0.0
    %2054 = vmatpush1.msra.mxu0 %v595
    %2055 = vmatprep.subr.mxu0 0.0
    %2056 = vmatpush1.msra.mxu0 %v598
    %2057 = vmatprep.subr.mxu0 0.0
    %2058 = vmatpush1.msra.mxu0 %v601
    %2059 = vmatprep.subr.mxu0 0.0
    %2060 = vmatpush1.msra.mxu0 %v604
    %2061 = vmatprep.subr.mxu0 0.0
    %2062 = vmatpush1.msra.mxu0 %v607
    %2063 = vmatprep.subr.mxu0 0.0
    %2064 = vmatpush1.msra.mxu0 %v610
    %2065 = vmatprep.subr.mxu0 0.0
    %2066 = vmatpush1.msra.mxu0 %v613
    %2067 = vmatprep.subr.mxu0 0.0
    %2068 = vmatpush1.msra.mxu0 %v616
    %2069 = vmatprep.subr.mxu0 0.0
    %2070 = vmatpush1.msra.mxu0 %v619
    %2071 = vmatprep.subr.mxu0 0.0
    %2072 = vmatpush1.msra.mxu0 %v622
    %2073 = vmatprep.subr.mxu0 0.0
    %2074 = vmatpush1.msra.mxu0 0.0
    %2075 = vmatprep.subr.mxu0 0.0
    %2076 = vmatpush1.msra.mxu0 0.0
    %2077 = vmatprep.subr.mxu0 0.0
    %2078 = vmatpush1.msra.mxu0 0.0
    %2079 = vmatprep.subr.mxu0 0.0
    %2080 = vmatpush1.msra.mxu0 0.0
    %2081 = vmatprep.subr.mxu0 0.0
    %2082 = vmatpush1.msra.mxu0 0.0
    %2083 = vmatprep.subr.mxu0 0.0
    %2084 = vmatpush1.msra.mxu0 0.0
    %2085 = vmatprep.subr.mxu0 0.0
    %2086 = vmatpush1.msra.mxu0 0.0
    %2087 = vmatprep.subr.mxu0 0.0
    %2088 = vmatpush1.msra.mxu0 0.0
    %2089 = vmatprep.subr.mxu0 0.0
    %2090 = vmatpush1.msra.mxu0 0.0
    %2091 = vmatprep.subr.mxu0 0.0
    %2092 = vmatpush1.msra.mxu0 0.0
    %2093 = vmatprep.subr.mxu0 0.0
    %2094 = vmatpush1.msra.mxu0 0.0
    %2095 = vmatprep.subr.mxu0 0.0
    %2096 = vmatpush1.msra.mxu0 0.0
    %2097 = vmatprep.subr.mxu0 0.0
    %2098 = vmatpush1.msra.mxu0 0.0
    %2099 = vmatprep.subr.mxu0 0.0
    %2100 = vmatpush1.msra.mxu0 0.0
    %2101 = vmatprep.subr.mxu0 0.0
    %2102 = vmatpush1.msra.mxu0 0.0
    %2103 = vmatprep.subr.mxu0 0.0
    %2104 = vmatpush1.msra.mxu0 0.0
    %2105 = vmatprep.mubr.f32.mxu0 0.0
    %2106 = vmatmul.mubr.f32.gmra.mrb[0].mxu0 %v1591
    %v2107 = vpop.f32.mrb[0].mxu0
    %v2108 = vadd.f32 %v636, %v2107
    %v2109 = vpop.f32.mrb[0].mxu0
    %2110 = vdwg.mxu0
    %v2111 = vadd.f32 %v1896, %v2037
    %v2112 = vxor.u32 %v2111, 2147483648
    %v2113 = vmul.f32 %v2112, 1.442695
    %v2114 = vpow.pop %v2113
    %v2115 = vadd.f32 %v2114, 1.0
    %v2116 = vrcp.pop %v2115
    %v2117 = vmul.f32 1.0, %v2116
    %v2118 = vadd.f32 %v1898, %v2039
    %v2119 = vxor.u32 %v2118, 2147483648
    %v2120 = vmul.f32 %v2119, 1.442695
    %v2121 = vpow.pop %v2120
    %v2122 = vadd.f32 %v2121, 1.0
    %v2123 = vrcp.pop %v2122
    %v2124 = vmul.f32 1.0, %v2123
    %v2125 = vmul.f32 %v2117, %v2108
    %v2126 = vadd.f32 %v1967, %v2125
    %v2127 = vtanh.pop %v2126
    %v2128 = vsub.f32 1.0, %v2124
    %v2129 = vmul.f32 %v2128, %v2127
    %v2130 = vmul.f32 %v2124, %v1591
    %v2131 = vadd.f32 %v2129, %v2130
    %2132 = vmatprep.subr.mxu0 0.0
    %2133 = vmatpush1.msra.mxu0 %v656
    %2134 = vmatprep.subr.mxu0 0.0
    %2135 = vmatpush1.msra.mxu0 %v657
    %2136 = vmatprep.subr.mxu0 0.0
    %2137 = vmatpush1.msra.mxu0 %v658
    %2138 = vmatprep.subr.mxu0 0.0
    %2139 = vmatpush1.msra.mxu0 %v659
    %2140 = vmatprep.subr.mxu0 0.0
    %2141 = vmatpush1.msra.mxu0 %v660
    %2142 = vmatprep.subr.mxu0 0.0
    %2143 = vmatpush1.msra.mxu0 %v661
    %2144 = vmatprep.subr.mxu0 0.0
    %2145 = vmatpush1.msra.mxu0 %v662
    %2146 = vmatprep.subr.mxu0 0.0
    %2147 = vmatpush1.msra.mxu0 %v663
    %2148 = vmatprep.subr.mxu0 0.0
    %2149 = vmatpush1.msra.mxu0 %v664
    %2150 = vmatprep.subr.mxu0 0.0
    %2151 = vmatpush1.msra.mxu0 %v665
    %2152 = vmatprep.subr.mxu0 0.0
    %2153 = vmatpush1.msra.mxu0 %v666
    %2154 = vmatprep.subr.mxu0 0.0
    %2155 = vmatpush1.msra.mxu0 %v667
    %2156 = vmatprep.subr.mxu0 0.0
    %2157 = vmatpush1.msra.mxu0 %v668
    %2158 = vmatprep.subr.mxu0 0.0
    %2159 = vmatpush1.msra.mxu0 %v669
    %2160 = vmatprep.subr.mxu0 0.0
    %2161 = vmatpush1.msra.mxu0 %v670
    %2162 = vmatprep.subr.mxu0 0.0
    %2163 = vmatpush1.msra.mxu0 %v671
    %2164 = vmatprep.subr.mxu0 0.0
    %2165 = vmatpush1.msra.mxu0 0.0
    %2166 = vmatprep.subr.mxu0 0.0
    %2167 = vmatpush1.msra.mxu0 0.0
    %2168 = vmatprep.subr.mxu0 0.0
    %2169 = vmatpush1.msra.mxu0 0.0
    %2170 = vmatprep.subr.mxu0 0.0
    %2171 = vmatpush1.msra.mxu0 0.0
    %2172 = vmatprep.subr.mxu0 0.0
    %2173 = vmatpush1.msra.mxu0 0.0
    %2174 = vmatprep.subr.mxu0 0.0
    %2175 = vmatpush1.msra.mxu0 0.0
    %2176 = vmatprep.subr.mxu0 0.0
    %2177 = vmatpush1.msra.mxu0 0.0
    %2178 = vmatprep.subr.mxu0 0.0
    %2179 = vmatpush1.msra.mxu0 0.0
    %2180 = vmatprep.subr.mxu0 0.0
    %2181 = vmatpush1.msra.mxu0 0.0
    %2182 = vmatprep.subr.mxu0 0.0
    %2183 = vmatpush1.msra.mxu0 0.0
    %2184 = vmatprep.subr.mxu0 0.0
    %2185 = vmatpush1.msra.mxu0 0.0
    %2186 = vmatprep.subr.mxu0 0.0
    %2187 = vmatpush1.msra.mxu0 0.0
    %2188 = vmatprep.subr.mxu0 0.0
    %2189 = vmatpush1.msra.mxu0 0.0
    %2190 = vmatprep.subr.mxu0 0.0
    %2191 = vmatpush1.msra.mxu0 0.0
    %2192 = vmatprep.subr.mxu0 0.0
    %2193 = vmatpush1.msra.mxu0 0.0
    %2194 = vmatprep.subr.mxu0 0.0
    %2195 = vmatpush1.msra.mxu0 0.0
    %2196 = vmatprep.mubr.f32.mxu0 0.0
    %2197 = vmatmul.mubr.f32.gmra.mrb[0].mxu0 %v2131
    %v2198 = vpop.f32.mrb[0].mxu0
    %v2199 = vadd.f32 0.0, %v2198
    %v2200 = vpop.f32.mrb[0].mxu0
    %2201 = vdwg.mxu0
    %2202 = vmatprep.subr.mxu0 0.0
    %2203 = vmatpush1.msra.mxu0 %v640
    %2204 = vmatprep.subr.mxu0 0.0
    %2205 = vmatpush1.msra.mxu0 %v641
    %2206 = vmatprep.subr.mxu0 0.0
    %2207 = vmatpush1.msra.mxu0 %v642
    %2208 = vmatprep.subr.mxu0 0.0
    %2209 = vmatpush1.msra.mxu0 %v643
    %2210 = vmatprep.subr.mxu0 0.0
    %2211 = vmatpush1.msra.mxu0 %v644
    %2212 = vmatprep.subr.mxu0 0.0
    %2213 = vmatpush1.msra.mxu0 %v645
    %2214 = vmatprep.subr.mxu0 0.0
    %2215 = vmatpush1.msra.mxu0 %v646
    %2216 = vmatprep.subr.mxu0 0.0
    %2217 = vmatpush1.msra.mxu0 %v647
    %2218 = vmatprep.subr.mxu0 0.0
    %2219 = vmatpush1.msra.mxu0 %v648
    %2220 = vmatprep.subr.mxu0 0.0
    %2221 = vmatpush1.msra.mxu0 %v649
    %2222 = vmatprep.subr.mxu0 0.0
    %2223 = vmatpush1.msra.mxu0 %v650
    %2224 = vmatprep.subr.mxu0 0.0
    %2225 = vmatpush1.msra.mxu0 %v651
    %2226 = vmatprep.subr.mxu0 0.0
    %2227 = vmatpush1.msra.mxu0 %v652
    %2228 = vmatprep.subr.mxu0 0.0
    %2229 = vmatpush1.msra.mxu0 %v653
    %2230 = vmatprep.subr.mxu0 0.0
    %2231 = vmatpush1.msra.mxu0 %v654
    %2232 = vmatprep.subr.mxu0 0.0
    %2233 = vmatpush1.msra.mxu0 %v655
    %2234 = vmatprep.subr.mxu0 0.0
    %2235 = vmatpush1.msra.mxu0 0.0
    %2236 = vmatprep.subr.mxu0 0.0
    %2237 = vmatpush1.msra.mxu0 0.0
    %2238 = vmatprep.subr.mxu0 0.0
    %2239 = vmatpush1.msra.mxu0 0.0
    %2240 = vmatprep.subr.mxu0 0.0
    %2241 = vmatpush1.msra.mxu0 0.0
    %2242 = vmatprep.subr.mxu0 0.0
    %2243 = vmatpush1.msra.mxu0 0.0
    %2244 = vmatprep.subr.mxu0 0.0
    %2245 = vmatpush1.msra.mxu0 0.0
    %2246 = vmatprep.subr.mxu0 0.0
    %2247 = vmatpush1.msra.mxu0 0.0
    %2248 = vmatprep.subr.mxu0 0.0
    %2249 = vmatpush1.msra.mxu0 0.0
    %2250 = vmatprep.subr.mxu0 0.0
    %2251 = vmatpush1.msra.mxu0 0.0
    %2252 = vmatprep.subr.mxu0 0.0
    %2253 = vmatpush1.msra.mxu0 0.0
    %2254 = vmatprep.subr.mxu0 0.0
    %2255 = vmatpush1.msra.mxu0 0.0
    %2256 = vmatprep.subr.mxu0 0.0
    %2257 = vmatpush1.msra.mxu0 0.0
    %2258 = vmatprep.subr.mxu0 0.0
    %2259 = vmatpush1.msra.mxu0 0.0
    %2260 = vmatprep.subr.mxu0 0.0
    %2261 = vmatpush1.msra.mxu0 0.0
    %2262 = vmatprep.subr.mxu0 0.0
    %2263 = vmatpush1.msra.mxu0 0.0
    %2264 = vmatprep.subr.mxu0 0.0
    %2265 = vmatpush1.msra.mxu0 0.0
    %2266 = vmatprep.mubr.f32.mxu0 0.0
    %2267 = vmatmul.mubr.f32.gmra.mrb[0].mxu0 %v1826
    %v2268 = vpop.f32.mrb[0].mxu0
    %v2269 = vadd.f32 %v2199, %v2268
    %v2270 = vpop.f32.mrb[0].mxu0
    %2271 = vdwg.mxu0
    %v2272 = vadd.f32 %v2269, %v508
    %s2273 = scalar_lea.vmem [#allocation23], 16
    %2274 = vst [vmem:[%s2273] sm:$0xff] %v2272
    %s2275 = scalar_lea.vmem [#allocation22], 16
    %v2276 = vld [vmem:[%s2275] sm:$0xff]
    %v2277 = vadd.f32 %v2272, %v2276
    %2278 = vmax.xlane.f32.xlu0 %v2277
    %v2279 = vpop.xlane.xlu0 %2278
    %vm2280 = vcmp.eq.f32.partialorder %v2277, %v2279
    %v2281 = vsel %vm2280, %v674, 128
    %v2282 = vand.u32 %v2281, 65535
    %v2283 = vshra.s32 %v2281, 16
    %v2284 = vcvt.s32.f32 %v2282
    %v2285 = vcvt.s32.f32 %v2283
    %2286 = vmin.xlane.f32.xlu0 %v2285
    %v2287 = vpop.xlane.xlu0 %2286
    %vm2288 = vcmp.eq.f32.partialorder %v2285, %v2287
    %v2289 = vsel %vm2288, %v2284, inf
    %2290 = vmin.xlane.f32.xlu0 %v2289
    %v2291 = vpop.xlane.xlu0 %2290
    %v2292 = vcvt.f32.s32 %v2291
    %v2293 = vcvt.f32.s32 %v2287
    %v2294 = vshll.u32 %v2293, 16
    %v2295 = vadd.s32 %v2294, %v2292
    %vm2296 = vcmp.eq.s32.totalorder %v2295, %v674
    %v2297 = vsel %vm2296, 1, 0
    %v2298 = vcvt.s32.f32 %v2297
    %2299 = vmatprep.subr.mxu0 0.0
    %2300 = vmatpush1.msra.mxu0 %v511
    %2301 = vmatprep.subr.mxu0 0.0
    %2302 = vmatpush1.msra.mxu0 %v512
    %2303 = vmatprep.subr.mxu0 0.0
    %2304 = vmatpush1.msra.mxu0 %v513
    %2305 = vmatprep.subr.mxu0 0.0
    %2306 = vmatpush1.msra.mxu0 %v514
    %2307 = vmatprep.subr.mxu0 0.0
    %2308 = vmatpush1.msra.mxu0 %v515
    %2309 = vmatprep.subr.mxu0 0.0
    %2310 = vmatpush1.msra.mxu0 %v516
    %2311 = vmatprep.subr.mxu0 0.0
    %2312 = vmatpush1.msra.mxu0 %v517
    %2313 = vmatprep.subr.mxu0 0.0
    %2314 = vmatpush1.msra.mxu0 %v518
    %2315 = vmatprep.subr.mxu0 0.0
    %2316 = vmatpush1.msra.mxu0 %v519
    %2317 = vmatprep.subr.mxu0 0.0
    %2318 = vmatpush1.msra.mxu0 %v520
    %2319 = vmatprep.subr.mxu0 0.0
    %2320 = vmatpush1.msra.mxu0 %v521
    %2321 = vmatprep.subr.mxu0 0.0
    %2322 = vmatpush1.msra.mxu0 %v522
    %2323 = vmatprep.subr.mxu0 0.0
    %2324 = vmatpush1.msra.mxu0 %v523
    %2325 = vmatprep.subr.mxu0 0.0
    %2326 = vmatpush1.msra.mxu0 %v524
    %2327 = vmatprep.subr.mxu0 0.0
    %2328 = vmatpush1.msra.mxu0 %v525
    %2329 = vmatprep.subr.mxu0 0.0
    %2330 = vmatpush1.msra.mxu0 %v526
    %2331 = vmatprep.subr.mxu0 0.0
    %2332 = vmatpush1.msra.mxu0 0.0
    %2333 = vmatprep.subr.mxu0 0.0
    %2334 = vmatpush1.msra.mxu0 0.0
    %2335 = vmatprep.subr.mxu0 0.0
    %2336 = vmatpush1.msra.mxu0 0.0
    %2337 = vmatprep.subr.mxu0 0.0
    %2338 = vmatpush1.msra.mxu0 0.0
    %2339 = vmatprep.subr.mxu0 0.0
    %2340 = vmatpush1.msra.mxu0 0.0
    %2341 = vmatprep.subr.mxu0 0.0
    %2342 = vmatpush1.msra.mxu0 0.0
    %2343 = vmatprep.subr.mxu0 0.0
    %2344 = vmatpush1.msra.mxu0 0.0
    %2345 = vmatprep.subr.mxu0 0.0
    %2346 = vmatpush1.msra.mxu0 0.0
    %2347 = vmatprep.subr.mxu0 0.0
    %2348 = vmatpush1.msra.mxu0 0.0
    %2349 = vmatprep.subr.mxu0 0.0
    %2350 = vmatpush1.msra.mxu0 0.0
    %2351 = vmatprep.subr.mxu0 0.0
    %2352 = vmatpush1.msra.mxu0 0.0
    %2353 = vmatprep.subr.mxu0 0.0
    %2354 = vmatpush1.msra.mxu0 0.0
    %2355 = vmatprep.subr.mxu0 0.0
    %2356 = vmatpush1.msra.mxu0 0.0
    %2357 = vmatprep.subr.mxu0 0.0
    %2358 = vmatpush1.msra.mxu0 0.0
    %2359 = vmatprep.subr.mxu0 0.0
    %2360 = vmatpush1.msra.mxu0 0.0
    %2361 = vmatprep.subr.mxu0 0.0
    %2362 = vmatpush1.msra.mxu0 0.0
    %2363 = vmatprep.mubr.f32.mxu0 0.0
    %2364 = vmatmul.mubr.f32.gmra.mrb[0].mxu0 %v2298
    %v2365 = vpop.f32.mrb[0].mxu0
    %v2366 = vadd.f32 0.0, %v2365
    %v2367 = vpop.f32.mrb[0].mxu0
    %2368 = vdwg.mxu0
    %2369 = vmatprep.subr.mxu0 %v528
    %2370 = vmatpush1.msra.mxu0 %v527
    %2371 = vmatprep.subr.mxu0 %v531
    %2372 = vmatpush1.msra.mxu0 %v530
    %2373 = vmatprep.subr.mxu0 %v534
    %2374 = vmatpush1.msra.mxu0 %v533
    %2375 = vmatprep.subr.mxu0 %v537
    %2376 = vmatpush1.msra.mxu0 %v536
    %2377 = vmatprep.subr.mxu0 %v540
    %2378 = vmatpush1.msra.mxu0 %v539
    %2379 = vmatprep.subr.mxu0 %v543
    %2380 = vmatpush1.msra.mxu0 %v542
    %2381 = vmatprep.subr.mxu0 %v546
    %2382 = vmatpush1.msra.mxu0 %v545
    %2383 = vmatprep.subr.mxu0 %v549
    %2384 = vmatpush1.msra.mxu0 %v548
    %2385 = vmatprep.subr.mxu0 %v552
    %2386 = vmatpush1.msra.mxu0 %v551
    %2387 = vmatprep.subr.mxu0 %v555
    %2388 = vmatpush1.msra.mxu0 %v554
    %2389 = vmatprep.subr.mxu0 %v558
    %2390 = vmatpush1.msra.mxu0 %v557
    %2391 = vmatprep.subr.mxu0 %v561
    %2392 = vmatpush1.msra.mxu0 %v560
    %2393 = vmatprep.subr.mxu0 %v564
    %2394 = vmatpush1.msra.mxu0 %v563
    %2395 = vmatprep.subr.mxu0 %v567
    %2396 = vmatpush1.msra.mxu0 %v566
    %2397 = vmatprep.subr.mxu0 %v570
    %2398 = vmatpush1.msra.mxu0 %v569
    %2399 = vmatprep.subr.mxu0 %v573
    %2400 = vmatpush1.msra.mxu0 %v572
    %2401 = vmatprep.subr.mxu0 0.0
    %2402 = vmatpush1.msra.mxu0 0.0
    %2403 = vmatprep.subr.mxu0 0.0
    %2404 = vmatpush1.msra.mxu0 0.0
    %2405 = vmatprep.subr.mxu0 0.0
    %2406 = vmatpush1.msra.mxu0 0.0
    %2407 = vmatprep.subr.mxu0 0.0
    %2408 = vmatpush1.msra.mxu0 0.0
    %2409 = vmatprep.subr.mxu0 0.0
    %2410 = vmatpush1.msra.mxu0 0.0
    %2411 = vmatprep.subr.mxu0 0.0
    %2412 = vmatpush1.msra.mxu0 0.0
    %2413 = vmatprep.subr.mxu0 0.0
    %2414 = vmatpush1.msra.mxu0 0.0
    %2415 = vmatprep.subr.mxu0 0.0
    %2416 = vmatpush1.msra.mxu0 0.0
    %2417 = vmatprep.subr.mxu0 0.0
    %2418 = vmatpush1.msra.mxu0 0.0
    %2419 = vmatprep.subr.mxu0 0.0
    %2420 = vmatpush1.msra.mxu0 0.0
    %2421 = vmatprep.subr.mxu0 0.0
    %2422 = vmatpush1.msra.mxu0 0.0
    %2423 = vmatprep.subr.mxu0 0.0
    %2424 = vmatpush1.msra.mxu0 0.0
    %2425 = vmatprep.subr.mxu0 0.0
    %2426 = vmatpush1.msra.mxu0 0.0
    %2427 = vmatprep.subr.mxu0 0.0
    %2428 = vmatpush1.msra.mxu0 0.0
    %2429 = vmatprep.subr.mxu0 0.0
    %2430 = vmatpush1.msra.mxu0 0.0
    %2431 = vmatprep.subr.mxu0 0.0
    %2432 = vmatpush1.msra.mxu0 0.0
    %2433 = vmatprep.mubr.f32.mxu0 0.0
    %2434 = vmatmul.mubr.f32.gmra.mrb[0].mxu0 %v2366
    %v2435 = vpop.f32.mrb[0].mxu0
    %v2436 = vadd.f32 %v344, %v2435
    %v2437 = vpop.f32.mrb[0].mxu0
    %v2438 = vadd.f32 %v346, %v2437
    %2439 = vdwg.mxu0
    %2440 = vmatprep.subr.mxu0 0.0
    %2441 = vmatpush1.msra.mxu0 %v529
    %2442 = vmatprep.subr.mxu0 0.0
    %2443 = vmatpush1.msra.mxu0 %v532
    %2444 = vmatprep.subr.mxu0 0.0
    %2445 = vmatpush1.msra.mxu0 %v535
    %2446 = vmatprep.subr.mxu0 0.0
    %2447 = vmatpush1.msra.mxu0 %v538
    %2448 = vmatprep.subr.mxu0 0.0
    %2449 = vmatpush1.msra.mxu0 %v541
    %2450 = vmatprep.subr.mxu0 0.0
    %2451 = vmatpush1.msra.mxu0 %v544
    %2452 = vmatprep.subr.mxu0 0.0
    %2453 = vmatpush1.msra.mxu0 %v547
    %2454 = vmatprep.subr.mxu0 0.0
    %2455 = vmatpush1.msra.mxu0 %v550
    %2456 = vmatprep.subr.mxu0 0.0
    %2457 = vmatpush1.msra.mxu0 %v553
    %2458 = vmatprep.subr.mxu0 0.0
    %2459 = vmatpush1.msra.mxu0 %v556
    %2460 = vmatprep.subr.mxu0 0.0
    %2461 = vmatpush1.msra.mxu0 %v559
    %2462 = vmatprep.subr.mxu0 0.0
    %2463 = vmatpush1.msra.mxu0 %v562
    %2464 = vmatprep.subr.mxu0 0.0
    %2465 = vmatpush1.msra.mxu0 %v565
    %2466 = vmatprep.subr.mxu0 0.0
    %2467 = vmatpush1.msra.mxu0 %v568
    %2468 = vmatprep.subr.mxu0 0.0
    %2469 = vmatpush1.msra.mxu0 %v571
    %2470 = vmatprep.subr.mxu0 0.0
    %2471 = vmatpush1.msra.mxu0 %v574
    %2472 = vmatprep.subr.mxu0 0.0
    %2473 = vmatpush1.msra.mxu0 0.0
    %2474 = vmatprep.subr.mxu0 0.0
    %2475 = vmatpush1.msra.mxu0 0.0
    %2476 = vmatprep.subr.mxu0 0.0
    %2477 = vmatpush1.msra.mxu0 0.0
    %2478 = vmatprep.subr.mxu0 0.0
    %2479 = vmatpush1.msra.mxu0 0.0
    %2480 = vmatprep.subr.mxu0 0.0
    %2481 = vmatpush1.msra.mxu0 0.0
    %2482 = vmatprep.subr.mxu0 0.0
    %2483 = vmatpush1.msra.mxu0 0.0
    %2484 = vmatprep.subr.mxu0 0.0
    %2485 = vmatpush1.msra.mxu0 0.0
    %2486 = vmatprep.subr.mxu0 0.0
    %2487 = vmatpush1.msra.mxu0 0.0
    %2488 = vmatprep.subr.mxu0 0.0
    %2489 = vmatpush1.msra.mxu0 0.0
    %2490 = vmatprep.subr.mxu0 0.0
    %2491 = vmatpush1.msra.mxu0 0.0
    %2492 = vmatprep.subr.mxu0 0.0
    %2493 = vmatpush1.msra.mxu0 0.0
    %2494 = vmatprep.subr.mxu0 0.0
    %2495 = vmatpush1.msra.mxu0 0.0
    %2496 = vmatprep.subr.mxu0 0.0
    %2497 = vmatpush1.msra.mxu0 0.0
    %2498 = vmatprep.subr.mxu0 0.0
    %2499 = vmatpush1.msra.mxu0 0.0
    %2500 = vmatprep.subr.mxu0 0.0
    %2501 = vmatpush1.msra.mxu0 0.0
    %2502 = vmatprep.subr.mxu0 0.0
    %2503 = vmatpush1.msra.mxu0 0.0
    %2504 = vmatprep.mubr.f32.mxu0 0.0
    %2505 = vmatmul.mubr.f32.gmra.mrb[0].mxu0 %v2366
    %v2506 = vpop.f32.mrb[0].mxu0
    %v2507 = vadd.f32 %v415, %v2506
    %v2508 = vpop.f32.mrb[0].mxu0
    %2509 = vdwg.mxu0
    %2510 = vmatprep.subr.mxu0 %v576
    %2511 = vmatpush1.msra.mxu0 %v575
    %2512 = vmatprep.subr.mxu0 %v579
    %2513 = vmatpush1.msra.mxu0 %v578
    %2514 = vmatprep.subr.mxu0 %v582
    %2515 = vmatpush1.msra.mxu0 %v581
    %2516 = vmatprep.subr.mxu0 %v585
    %2517 = vmatpush1.msra.mxu0 %v584
    %2518 = vmatprep.subr.mxu0 %v588
    %2519 = vmatpush1.msra.mxu0 %v587
    %2520 = vmatprep.subr.mxu0 %v591
    %2521 = vmatpush1.msra.mxu0 %v590
    %2522 = vmatprep.subr.mxu0 %v594
    %2523 = vmatpush1.msra.mxu0 %v593
    %2524 = vmatprep.subr.mxu0 %v597
    %2525 = vmatpush1.msra.mxu0 %v596
    %2526 = vmatprep.subr.mxu0 %v600
    %2527 = vmatpush1.msra.mxu0 %v599
    %2528 = vmatprep.subr.mxu0 %v603
    %2529 = vmatpush1.msra.mxu0 %v602
    %2530 = vmatprep.subr.mxu0 %v606
    %2531 = vmatpush1.msra.mxu0 %v605
    %2532 = vmatprep.subr.mxu0 %v609
    %2533 = vmatpush1.msra.mxu0 %v608
    %2534 = vmatprep.subr.mxu0 %v612
    %2535 = vmatpush1.msra.mxu0 %v611
    %2536 = vmatprep.subr.mxu0 %v615
    %2537 = vmatpush1.msra.mxu0 %v614
    %2538 = vmatprep.subr.mxu0 %v618
    %2539 = vmatpush1.msra.mxu0 %v617
    %2540 = vmatprep.subr.mxu0 %v621
    %2541 = vmatpush1.msra.mxu0 %v620
    %2542 = vmatprep.subr.mxu0 0.0
    %2543 = vmatpush1.msra.mxu0 0.0
    %2544 = vmatprep.subr.mxu0 0.0
    %2545 = vmatpush1.msra.mxu0 0.0
    %2546 = vmatprep.subr.mxu0 0.0
    %2547 = vmatpush1.msra.mxu0 0.0
    %2548 = vmatprep.subr.mxu0 0.0
    %2549 = vmatpush1.msra.mxu0 0.0
    %2550 = vmatprep.subr.mxu0 0.0
    %2551 = vmatpush1.msra.mxu0 0.0
    %2552 = vmatprep.subr.mxu0 0.0
    %2553 = vmatpush1.msra.mxu0 0.0
    %2554 = vmatprep.subr.mxu0 0.0
    %2555 = vmatpush1.msra.mxu0 0.0
    %2556 = vmatprep.subr.mxu0 0.0
    %2557 = vmatpush1.msra.mxu0 0.0
    %2558 = vmatprep.subr.mxu0 0.0
    %2559 = vmatpush1.msra.mxu0 0.0
    %2560 = vmatprep.subr.mxu0 0.0
    %2561 = vmatpush1.msra.mxu0 0.0
    %2562 = vmatprep.subr.mxu0 0.0
    %2563 = vmatpush1.msra.mxu0 0.0
    %2564 = vmatprep.subr.mxu0 0.0
    %2565 = vmatpush1.msra.mxu0 0.0
    %2566 = vmatprep.subr.mxu0 0.0
    %2567 = vmatpush1.msra.mxu0 0.0
    %2568 = vmatprep.subr.mxu0 0.0
    %2569 = vmatpush1.msra.mxu0 0.0
    %2570 = vmatprep.subr.mxu0 0.0
    %2571 = vmatpush1.msra.mxu0 0.0
    %2572 = vmatprep.subr.mxu0 0.0
    %2573 = vmatpush1.msra.mxu0 0.0
    %2574 = vmatprep.mubr.f32.mxu0 0.0
    %2575 = vmatmul.mubr.f32.gmra.mrb[0].mxu0 %v2131
    %v2576 = vpop.f32.mrb[0].mxu0
    %v2577 = vadd.f32 %v628, %v2576
    %v2578 = vpop.f32.mrb[0].mxu0
    %v2579 = vadd.f32 %v632, %v2578
    %2580 = vdwg.mxu0
    %2581 = vmatprep.subr.mxu0 0.0
    %2582 = vmatpush1.msra.mxu0 %v577
    %2583 = vmatprep.subr.mxu0 0.0
    %2584 = vmatpush1.msra.mxu0 %v580
    %2585 = vmatprep.subr.mxu0 0.0
    %2586 = vmatpush1.msra.mxu0 %v583
    %2587 = vmatprep.subr.mxu0 0.0
    %2588 = vmatpush1.msra.mxu0 %v586
    %2589 = vmatprep.subr.mxu0 0.0
    %2590 = vmatpush1.msra.mxu0 %v589
    %2591 = vmatprep.subr.mxu0 0.0
    %2592 = vmatpush1.msra.mxu0 %v592
    %2593 = vmatprep.subr.mxu0 0.0
    %2594 = vmatpush1.msra.mxu0 %v595
    %2595 = vmatprep.subr.mxu0 0.0
    %2596 = vmatpush1.msra.mxu0 %v598
    %2597 = vmatprep.subr.mxu0 0.0
    %2598 = vmatpush1.msra.mxu0 %v601
    %2599 = vmatprep.subr.mxu0 0.0
    %2600 = vmatpush1.msra.mxu0 %v604
    %2601 = vmatprep.subr.mxu0 0.0
    %2602 = vmatpush1.msra.mxu0 %v607
    %2603 = vmatprep.subr.mxu0 0.0
    %2604 = vmatpush1.msra.mxu0 %v610
    %2605 = vmatprep.subr.mxu0 0.0
    %2606 = vmatpush1.msra.mxu0 %v613
    %2607 = vmatprep.subr.mxu0 0.0
    %2608 = vmatpush1.msra.mxu0 %v616
    %2609 = vmatprep.subr.mxu0 0.0
    %2610 = vmatpush1.msra.mxu0 %v619
    %2611 = vmatprep.subr.mxu0 0.0
    %2612 = vmatpush1.msra.mxu0 %v622
    %2613 = vmatprep.subr.mxu0 0.0
    %2614 = vmatpush1.msra.mxu0 0.0
    %2615 = vmatprep.subr.mxu0 0.0
    %2616 = vmatpush1.msra.mxu0 0.0
    %2617 = vmatprep.subr.mxu0 0.0
    %2618 = vmatpush1.msra.mxu0 0.0
    %2619 = vmatprep.subr.mxu0 0.0
    %2620 = vmatpush1.msra.mxu0 0.0
    %2621 = vmatprep.subr.mxu0 0.0
    %2622 = vmatpush1.msra.mxu0 0.0
    %2623 = vmatprep.subr.mxu0 0.0
    %2624 = vmatpush1.msra.mxu0 0.0
    %2625 = vmatprep.subr.mxu0 0.0
    %2626 = vmatpush1.msra.mxu0 0.0
    %2627 = vmatprep.subr.mxu0 0.0
    %2628 = vmatpush1.msra.mxu0 0.0
    %2629 = vmatprep.subr.mxu0 0.0
    %2630 = vmatpush1.msra.mxu0 0.0
    %2631 = vmatprep.subr.mxu0 0.0
    %2632 = vmatpush1.msra.mxu0 0.0
    %2633 = vmatprep.subr.mxu0 0.0
    %2634 = vmatpush1.msra.mxu0 0.0
    %2635 = vmatprep.subr.mxu0 0.0
    %2636 = vmatpush1.msra.mxu0 0.0
    %2637 = vmatprep.subr.mxu0 0.0
    %2638 = vmatpush1.msra.mxu0 0.0
    %2639 = vmatprep.subr.mxu0 0.0
    %2640 = vmatpush1.msra.mxu0 0.0
    %2641 = vmatprep.subr.mxu0 0.0
    %2642 = vmatpush1.msra.mxu0 0.0
    %2643 = vmatprep.subr.mxu0 0.0
    %2644 = vmatpush1.msra.mxu0 0.0
    %2645 = vmatprep.mubr.f32.mxu0 0.0
    %2646 = vmatmul.mubr.f32.gmra.mrb[0].mxu0 %v2131
    %v2647 = vpop.f32.mrb[0].mxu0
    %v2648 = vadd.f32 %v636, %v2647
    %v2649 = vpop.f32.mrb[0].mxu0
    %2650 = vdwg.mxu0
    %v2651 = vadd.f32 %v2436, %v2577
    %v2652 = vxor.u32 %v2651, 2147483648
    %v2653 = vmul.f32 %v2652, 1.442695
    %v2654 = vpow.pop %v2653
    %v2655 = vadd.f32 %v2654, 1.0
    %v2656 = vrcp.pop %v2655
    %v2657 = vmul.f32 1.0, %v2656
    %v2658 = vadd.f32 %v2438, %v2579
    %v2659 = vxor.u32 %v2658, 2147483648
    %v2660 = vmul.f32 %v2659, 1.442695
    %v2661 = vpow.pop %v2660
    %v2662 = vadd.f32 %v2661, 1.0
    %v2663 = vrcp.pop %v2662
    %v2664 = vmul.f32 1.0, %v2663
    %v2665 = vmul.f32 %v2657, %v2648
    %v2666 = vadd.f32 %v2507, %v2665
    %v2667 = vtanh.pop %v2666
    %v2668 = vsub.f32 1.0, %v2664
    %v2669 = vmul.f32 %v2668, %v2667
    %v2670 = vmul.f32 %v2664, %v2131
    %v2671 = vadd.f32 %v2669, %v2670
    %2672 = vmatprep.subr.mxu0 0.0
    %2673 = vmatpush1.msra.mxu0 %v656
    %2674 = vmatprep.subr.mxu0 0.0
    %2675 = vmatpush1.msra.mxu0 %v657
    %2676 = vmatprep.subr.mxu0 0.0
    %2677 = vmatpush1.msra.mxu0 %v658
    %2678 = vmatprep.subr.mxu0 0.0
    %2679 = vmatpush1.msra.mxu0 %v659
    %2680 = vmatprep.subr.mxu0 0.0
    %2681 = vmatpush1.msra.mxu0 %v660
    %2682 = vmatprep.subr.mxu0 0.0
    %2683 = vmatpush1.msra.mxu0 %v661
    %2684 = vmatprep.subr.mxu0 0.0
    %2685 = vmatpush1.msra.mxu0 %v662
    %2686 = vmatprep.subr.mxu0 0.0
    %2687 = vmatpush1.msra.mxu0 %v663
    %2688 = vmatprep.subr.mxu0 0.0
    %2689 = vmatpush1.msra.mxu0 %v664
    %2690 = vmatprep.subr.mxu0 0.0
    %2691 = vmatpush1.msra.mxu0 %v665
    %2692 = vmatprep.subr.mxu0 0.0
    %2693 = vmatpush1.msra.mxu0 %v666
    %2694 = vmatprep.subr.mxu0 0.0
    %2695 = vmatpush1.msra.mxu0 %v667
    %2696 = vmatprep.subr.mxu0 0.0
    %2697 = vmatpush1.msra.mxu0 %v668
    %2698 = vmatprep.subr.mxu0 0.0
    %2699 = vmatpush1.msra.mxu0 %v669
    %2700 = vmatprep.subr.mxu0 0.0
    %2701 = vmatpush1.msra.mxu0 %v670
    %2702 = vmatprep.subr.mxu0 0.0
    %2703 = vmatpush1.msra.mxu0 %v671
    %2704 = vmatprep.subr.mxu0 0.0
    %2705 = vmatpush1.msra.mxu0 0.0
    %2706 = vmatprep.subr.mxu0 0.0
    %2707 = vmatpush1.msra.mxu0 0.0
    %2708 = vmatprep.subr.mxu0 0.0
    %2709 = vmatpush1.msra.mxu0 0.0
    %2710 = vmatprep.subr.mxu0 0.0
    %2711 = vmatpush1.msra.mxu0 0.0
    %2712 = vmatprep.subr.mxu0 0.0
    %2713 = vmatpush1.msra.mxu0 0.0
    %2714 = vmatprep.subr.mxu0 0.0
    %2715 = vmatpush1.msra.mxu0 0.0
    %2716 = vmatprep.subr.mxu0 0.0
    %2717 = vmatpush1.msra.mxu0 0.0
    %2718 = vmatprep.subr.mxu0 0.0
    %2719 = vmatpush1.msra.mxu0 0.0
    %2720 = vmatprep.subr.mxu0 0.0
    %2721 = vmatpush1.msra.mxu0 0.0
    %2722 = vmatprep.subr.mxu0 0.0
    %2723 = vmatpush1.msra.mxu0 0.0
    %2724 = vmatprep.subr.mxu0 0.0
    %2725 = vmatpush1.msra.mxu0 0.0
    %2726 = vmatprep.subr.mxu0 0.0
    %2727 = vmatpush1.msra.mxu0 0.0
    %2728 = vmatprep.subr.mxu0 0.0
    %2729 = vmatpush1.msra.mxu0 0.0
    %2730 = vmatprep.subr.mxu0 0.0
    %2731 = vmatpush1.msra.mxu0 0.0
    %2732 = vmatprep.subr.mxu0 0.0
    %2733 = vmatpush1.msra.mxu0 0.0
    %2734 = vmatprep.subr.mxu0 0.0
    %2735 = vmatpush1.msra.mxu0 0.0
    %2736 = vmatprep.mubr.f32.mxu0 0.0
    %2737 = vmatmul.mubr.f32.gmra.mrb[0].mxu0 %v2671
    %v2738 = vpop.f32.mrb[0].mxu0
    %v2739 = vadd.f32 0.0, %v2738
    %v2740 = vpop.f32.mrb[0].mxu0
    %2741 = vdwg.mxu0
    %2742 = vmatprep.subr.mxu0 0.0
    %2743 = vmatpush1.msra.mxu0 %v640
    %2744 = vmatprep.subr.mxu0 0.0
    %2745 = vmatpush1.msra.mxu0 %v641
    %2746 = vmatprep.subr.mxu0 0.0
    %2747 = vmatpush1.msra.mxu0 %v642
    %2748 = vmatprep.subr.mxu0 0.0
    %2749 = vmatpush1.msra.mxu0 %v643
    %2750 = vmatprep.subr.mxu0 0.0
    %2751 = vmatpush1.msra.mxu0 %v644
    %2752 = vmatprep.subr.mxu0 0.0
    %2753 = vmatpush1.msra.mxu0 %v645
    %2754 = vmatprep.subr.mxu0 0.0
    %2755 = vmatpush1.msra.mxu0 %v646
    %2756 = vmatprep.subr.mxu0 0.0
    %2757 = vmatpush1.msra.mxu0 %v647
    %2758 = vmatprep.subr.mxu0 0.0
    %2759 = vmatpush1.msra.mxu0 %v648
    %2760 = vmatprep.subr.mxu0 0.0
    %2761 = vmatpush1.msra.mxu0 %v649
    %2762 = vmatprep.subr.mxu0 0.0
    %2763 = vmatpush1.msra.mxu0 %v650
    %2764 = vmatprep.subr.mxu0 0.0
    %2765 = vmatpush1.msra.mxu0 %v651
    %2766 = vmatprep.subr.mxu0 0.0
    %2767 = vmatpush1.msra.mxu0 %v652
    %2768 = vmatprep.subr.mxu0 0.0
    %2769 = vmatpush1.msra.mxu0 %v653
    %2770 = vmatprep.subr.mxu0 0.0
    %2771 = vmatpush1.msra.mxu0 %v654
    %2772 = vmatprep.subr.mxu0 0.0
    %2773 = vmatpush1.msra.mxu0 %v655
    %2774 = vmatprep.subr.mxu0 0.0
    %2775 = vmatpush1.msra.mxu0 0.0
    %2776 = vmatprep.subr.mxu0 0.0
    %2777 = vmatpush1.msra.mxu0 0.0
    %2778 = vmatprep.subr.mxu0 0.0
    %2779 = vmatpush1.msra.mxu0 0.0
    %2780 = vmatprep.subr.mxu0 0.0
    %2781 = vmatpush1.msra.mxu0 0.0
    %2782 = vmatprep.subr.mxu0 0.0
    %2783 = vmatpush1.msra.mxu0 0.0
    %2784 = vmatprep.subr.mxu0 0.0
    %2785 = vmatpush1.msra.mxu0 0.0
    %2786 = vmatprep.subr.mxu0 0.0
    %2787 = vmatpush1.msra.mxu0 0.0
    %2788 = vmatprep.subr.mxu0 0.0
    %2789 = vmatpush1.msra.mxu0 0.0
    %2790 = vmatprep.subr.mxu0 0.0
    %2791 = vmatpush1.msra.mxu0 0.0
    %2792 = vmatprep.subr.mxu0 0.0
    %2793 = vmatpush1.msra.mxu0 0.0
    %2794 = vmatprep.subr.mxu0 0.0
    %2795 = vmatpush1.msra.mxu0 0.0
    %2796 = vmatprep.subr.mxu0 0.0
    %2797 = vmatpush1.msra.mxu0 0.0
    %2798 = vmatprep.subr.mxu0 0.0
    %2799 = vmatpush1.msra.mxu0 0.0
    %2800 = vmatprep.subr.mxu0 0.0
    %2801 = vmatpush1.msra.mxu0 0.0
    %2802 = vmatprep.subr.mxu0 0.0
    %2803 = vmatpush1.msra.mxu0 0.0
    %2804 = vmatprep.subr.mxu0 0.0
    %2805 = vmatpush1.msra.mxu0 0.0
    %2806 = vmatprep.mubr.f32.mxu0 0.0
    %2807 = vmatmul.mubr.f32.gmra.mrb[0].mxu0 %v2366
    %v2808 = vpop.f32.mrb[0].mxu0
    %v2809 = vadd.f32 %v2739, %v2808
    %v2810 = vpop.f32.mrb[0].mxu0
    %2811 = vdwg.mxu0
    %v2812 = vadd.f32 %v2809, %v508
    %s2813 = scalar_lea.vmem [#allocation23], 24
    %2814 = vst [vmem:[%s2813] sm:$0xff] %v2812
    %s2815 = scalar_lea.vmem [#allocation22], 24
    %v2816 = vld [vmem:[%s2815] sm:$0xff]
    %v2817 = vadd.f32 %v2812, %v2816
    %2818 = vmax.xlane.f32.xlu0 %v2817
    %v2819 = vpop.xlane.xlu0 %2818
    %vm2820 = vcmp.eq.f32.partialorder %v2817, %v2819
    %v2821 = vsel %vm2820, %v674, 128
    %v2822 = vand.u32 %v2821, 65535
    %v2823 = vshra.s32 %v2821, 16
    %v2824 = vcvt.s32.f32 %v2822
    %v2825 = vcvt.s32.f32 %v2823
    %2826 = vmin.xlane.f32.xlu0 %v2825
    %v2827 = vpop.xlane.xlu0 %2826
    %vm2828 = vcmp.eq.f32.partialorder %v2825, %v2827
    %v2829 = vsel %vm2828, %v2824, inf
    %2830 = vmin.xlane.f32.xlu0 %v2829
    %v2831 = vpop.xlane.xlu0 %2830
    %v2832 = vcvt.f32.s32 %v2831
    %v2833 = vcvt.f32.s32 %v2827
    %v2834 = vshll.u32 %v2833, 16
    %v2835 = vadd.s32 %v2834, %v2832
    %vm2836 = vcmp.eq.s32.totalorder %v2835, %v674
    %v2837 = vsel %vm2836, 1, 0
    %v2838 = vcvt.s32.f32 %v2837
    %2839 = vmatprep.subr.mxu0 0.0
    %2840 = vmatpush1.msra.mxu0 %v511
    %2841 = vmatprep.subr.mxu0 0.0
    %2842 = vmatpush1.msra.mxu0 %v512
    %2843 = vmatprep.subr.mxu0 0.0
    %2844 = vmatpush1.msra.mxu0 %v513
    %2845 = vmatprep.subr.mxu0 0.0
    %2846 = vmatpush1.msra.mxu0 %v514
    %2847 = vmatprep.subr.mxu0 0.0
    %2848 = vmatpush1.msra.mxu0 %v515
    %2849 = vmatprep.subr.mxu0 0.0
    %2850 = vmatpush1.msra.mxu0 %v516
    %2851 = vmatprep.subr.mxu0 0.0
    %2852 = vmatpush1.msra.mxu0 %v517
    %2853 = vmatprep.subr.mxu0 0.0
    %2854 = vmatpush1.msra.mxu0 %v518
    %2855 = vmatprep.subr.mxu0 0.0
    %2856 = vmatpush1.msra.mxu0 %v519
    %2857 = vmatprep.subr.mxu0 0.0
    %2858 = vmatpush1.msra.mxu0 %v520
    %2859 = vmatprep.subr.mxu0 0.0
    %2860 = vmatpush1.msra.mxu0 %v521
    %2861 = vmatprep.subr.mxu0 0.0
    %2862 = vmatpush1.msra.mxu0 %v522
    %2863 = vmatprep.subr.mxu0 0.0
    %2864 = vmatpush1.msra.mxu0 %v523
    %2865 = vmatprep.subr.mxu0 0.0
    %2866 = vmatpush1.msra.mxu0 %v524
    %2867 = vmatprep.subr.mxu0 0.0
    %2868 = vmatpush1.msra.mxu0 %v525
    %2869 = vmatprep.subr.mxu0 0.0
    %2870 = vmatpush1.msra.mxu0 %v526
    %2871 = vmatprep.subr.mxu0 0.0
    %2872 = vmatpush1.msra.mxu0 0.0
    %2873 = vmatprep.subr.mxu0 0.0
    %2874 = vmatpush1.msra.mxu0 0.0
    %2875 = vmatprep.subr.mxu0 0.0
    %2876 = vmatpush1.msra.mxu0 0.0
    %2877 = vmatprep.subr.mxu0 0.0
    %2878 = vmatpush1.msra.mxu0 0.0
    %2879 = vmatprep.subr.mxu0 0.0
    %2880 = vmatpush1.msra.mxu0 0.0
    %2881 = vmatprep.subr.mxu0 0.0
    %2882 = vmatpush1.msra.mxu0 0.0
    %2883 = vmatprep.subr.mxu0 0.0
    %2884 = vmatpush1.msra.mxu0 0.0
    %2885 = vmatprep.subr.mxu0 0.0
    %2886 = vmatpush1.msra.mxu0 0.0
    %2887 = vmatprep.subr.mxu0 0.0
    %2888 = vmatpush1.msra.mxu0 0.0
    %2889 = vmatprep.subr.mxu0 0.0
    %2890 = vmatpush1.msra.mxu0 0.0
    %2891 = vmatprep.subr.mxu0 0.0
    %2892 = vmatpush1.msra.mxu0 0.0
    %2893 = vmatprep.subr.mxu0 0.0
    %2894 = vmatpush1.msra.mxu0 0.0
    %2895 = vmatprep.subr.mxu0 0.0
    %2896 = vmatpush1.msra.mxu0 0.0
    %2897 = vmatprep.subr.mxu0 0.0
    %2898 = vmatpush1.msra.mxu0 0.0
    %2899 = vmatprep.subr.mxu0 0.0
    %2900 = vmatpush1.msra.mxu0 0.0
    %2901 = vmatprep.subr.mxu0 0.0
    %2902 = vmatpush1.msra.mxu0 0.0
    %2903 = vmatprep.mubr.f32.mxu0 0.0
    %2904 = vmatmul.mubr.f32.gmra.mrb[0].mxu0 %v2838
    %v2905 = vpop.f32.mrb[0].mxu0
    %v2906 = vadd.f32 0.0, %v2905
    %v2907 = vpop.f32.mrb[0].mxu0
    %2908 = vdwg.mxu0
    %2909 = vmatprep.subr.mxu0 %v528
    %2910 = vmatpush1.msra.mxu0 %v527
    %2911 = vmatprep.subr.mxu0 %v531
    %2912 = vmatpush1.msra.mxu0 %v530
    %2913 = vmatprep.subr.mxu0 %v534
    %2914 = vmatpush1.msra.mxu0 %v533
    %2915 = vmatprep.subr.mxu0 %v537
    %2916 = vmatpush1.msra.mxu0 %v536
    %2917 = vmatprep.subr.mxu0 %v540
    %2918 = vmatpush1.msra.mxu0 %v539
    %2919 = vmatprep.subr.mxu0 %v543
    %2920 = vmatpush1.msra.mxu0 %v542
    %2921 = vmatprep.subr.mxu0 %v546
    %2922 = vmatpush1.msra.mxu0 %v545
    %2923 = vmatprep.subr.mxu0 %v549
    %2924 = vmatpush1.msra.mxu0 %v548
    %2925 = vmatprep.subr.mxu0 %v552
    %2926 = vmatpush1.msra.mxu0 %v551
    %2927 = vmatprep.subr.mxu0 %v555
    %2928 = vmatpush1.msra.mxu0 %v554
    %2929 = vmatprep.subr.mxu0 %v558
    %2930 = vmatpush1.msra.mxu0 %v557
    %2931 = vmatprep.subr.mxu0 %v561
    %2932 = vmatpush1.msra.mxu0 %v560
    %2933 = vmatprep.subr.mxu0 %v564
    %2934 = vmatpush1.msra.mxu0 %v563
    %2935 = vmatprep.subr.mxu0 %v567
    %2936 = vmatpush1.msra.mxu0 %v566
    %2937 = vmatprep.subr.mxu0 %v570
    %2938 = vmatpush1.msra.mxu0 %v569
    %2939 = vmatprep.subr.mxu0 %v573
    %2940 = vmatpush1.msra.mxu0 %v572
    %2941 = vmatprep.subr.mxu0 0.0
    %2942 = vmatpush1.msra.mxu0 0.0
    %2943 = vmatprep.subr.mxu0 0.0
    %2944 = vmatpush1.msra.mxu0 0.0
    %2945 = vmatprep.subr.mxu0 0.0
    %2946 = vmatpush1.msra.mxu0 0.0
    %2947 = vmatprep.subr.mxu0 0.0
    %2948 = vmatpush1.msra.mxu0 0.0
    %2949 = vmatprep.subr.mxu0 0.0
    %2950 = vmatpush1.msra.mxu0 0.0
    %2951 = vmatprep.subr.mxu0 0.0
    %2952 = vmatpush1.msra.mxu0 0.0
    %2953 = vmatprep.subr.mxu0 0.0
    %2954 = vmatpush1.msra.mxu0 0.0
    %2955 = vmatprep.subr.mxu0 0.0
    %2956 = vmatpush1.msra.mxu0 0.0
    %2957 = vmatprep.subr.mxu0 0.0
    %2958 = vmatpush1.msra.mxu0 0.0
    %2959 = vmatprep.subr.mxu0 0.0
    %2960 = vmatpush1.msra.mxu0 0.0
    %2961 = vmatprep.subr.mxu0 0.0
    %2962 = vmatpush1.msra.mxu0 0.0
    %2963 = vmatprep.subr.mxu0 0.0
    %2964 = vmatpush1.msra.mxu0 0.0
    %2965 = vmatprep.subr.mxu0 0.0
    %2966 = vmatpush1.msra.mxu0 0.0
    %2967 = vmatprep.subr.mxu0 0.0
    %2968 = vmatpush1.msra.mxu0 0.0
    %2969 = vmatprep.subr.mxu0 0.0
    %2970 = vmatpush1.msra.mxu0 0.0
    %2971 = vmatprep.subr.mxu0 0.0
    %2972 = vmatpush1.msra.mxu0 0.0
    %2973 = vmatprep.mubr.f32.mxu0 0.0
    %2974 = vmatmul.mubr.f32.gmra.mrb[0].mxu0 %v2906
    %v2975 = vpop.f32.mrb[0].mxu0
    %v2976 = vadd.f32 %v344, %v2975
    %v2977 = vpop.f32.mrb[0].mxu0
    %v2978 = vadd.f32 %v346, %v2977
    %2979 = vdwg.mxu0
    %2980 = vmatprep.subr.mxu0 0.0
    %2981 = vmatpush1.msra.mxu0 %v529
    %2982 = vmatprep.subr.mxu0 0.0
    %2983 = vmatpush1.msra.mxu0 %v532
    %2984 = vmatprep.subr.mxu0 0.0
    %2985 = vmatpush1.msra.mxu0 %v535
    %2986 = vmatprep.subr.mxu0 0.0
    %2987 = vmatpush1.msra.mxu0 %v538
    %2988 = vmatprep.subr.mxu0 0.0
    %2989 = vmatpush1.msra.mxu0 %v541
    %2990 = vmatprep.subr.mxu0 0.0
    %2991 = vmatpush1.msra.mxu0 %v544
    %2992 = vmatprep.subr.mxu0 0.0
    %2993 = vmatpush1.msra.mxu0 %v547
    %2994 = vmatprep.subr.mxu0 0.0
    %2995 = vmatpush1.msra.mxu0 %v550
    %2996 = vmatprep.subr.mxu0 0.0
    %2997 = vmatpush1.msra.mxu0 %v553
    %2998 = vmatprep.subr.mxu0 0.0
    %2999 = vmatpush1.msra.mxu0 %v556
    %3000 = vmatprep.subr.mxu0 0.0
    %3001 = vmatpush1.msra.mxu0 %v559
    %3002 = vmatprep.subr.mxu0 0.0
    %3003 = vmatpush1.msra.mxu0 %v562
    %3004 = vmatprep.subr.mxu0 0.0
    %3005 = vmatpush1.msra.mxu0 %v565
    %3006 = vmatprep.subr.mxu0 0.0
    %3007 = vmatpush1.msra.mxu0 %v568
    %3008 = vmatprep.subr.mxu0 0.0
    %3009 = vmatpush1.msra.mxu0 %v571
    %3010 = vmatprep.subr.mxu0 0.0
    %3011 = vmatpush1.msra.mxu0 %v574
    %3012 = vmatprep.subr.mxu0 0.0
    %3013 = vmatpush1.msra.mxu0 0.0
    %3014 = vmatprep.subr.mxu0 0.0
    %3015 = vmatpush1.msra.mxu0 0.0
    %3016 = vmatprep.subr.mxu0 0.0
    %3017 = vmatpush1.msra.mxu0 0.0
    %3018 = vmatprep.subr.mxu0 0.0
    %3019 = vmatpush1.msra.mxu0 0.0
    %3020 = vmatprep.subr.mxu0 0.0
    %3021 = vmatpush1.msra.mxu0 0.0
    %3022 = vmatprep.subr.mxu0 0.0
    %3023 = vmatpush1.msra.mxu0 0.0
    %3024 = vmatprep.subr.mxu0 0.0
    %3025 = vmatpush1.msra.mxu0 0.0
    %3026 = vmatprep.subr.mxu0 0.0
    %3027 = vmatpush1.msra.mxu0 0.0
    %3028 = vmatprep.subr.mxu0 0.0
    %3029 = vmatpush1.msra.mxu0 0.0
    %3030 = vmatprep.subr.mxu0 0.0
    %3031 = vmatpush1.msra.mxu0 0.0
    %3032 = vmatprep.subr.mxu0 0.0
    %3033 = vmatpush1.msra.mxu0 0.0
    %3034 = vmatprep.subr.mxu0 0.0
    %3035 = vmatpush1.msra.mxu0 0.0
    %3036 = vmatprep.subr.mxu0 0.0
    %3037 = vmatpush1.msra.mxu0 0.0
    %3038 = vmatprep.subr.mxu0 0.0
    %3039 = vmatpush1.msra.mxu0 0.0
    %3040 = vmatprep.subr.mxu0 0.0
    %3041 = vmatpush1.msra.mxu0 0.0
    %3042 = vmatprep.subr.mxu0 0.0
    %3043 = vmatpush1.msra.mxu0 0.0
    %3044 = vmatprep.mubr.f32.mxu0 0.0
    %3045 = vmatmul.mubr.f32.gmra.mrb[0].mxu0 %v2906
    %v3046 = vpop.f32.mrb[0].mxu0
    %v3047 = vadd.f32 %v415, %v3046
    %v3048 = vpop.f32.mrb[0].mxu0
    %3049 = vdwg.mxu0
    %3050 = vmatprep.subr.mxu0 %v576
    %3051 = vmatpush1.msra.mxu0 %v575
    %3052 = vmatprep.subr.mxu0 %v579
    %3053 = vmatpush1.msra.mxu0 %v578
    %3054 = vmatprep.subr.mxu0 %v582
    %3055 = vmatpush1.msra.mxu0 %v581
    %3056 = vmatprep.subr.mxu0 %v585
    %3057 = vmatpush1.msra.mxu0 %v584
    %3058 = vmatprep.subr.mxu0 %v588
    %3059 = vmatpush1.msra.mxu0 %v587
    %3060 = vmatprep.subr.mxu0 %v591
    %3061 = vmatpush1.msra.mxu0 %v590
    %3062 = vmatprep.subr.mxu0 %v594
    %3063 = vmatpush1.msra.mxu0 %v593
    %3064 = vmatprep.subr.mxu0 %v597
    %3065 = vmatpush1.msra.mxu0 %v596
    %3066 = vmatprep.subr.mxu0 %v600
    %3067 = vmatpush1.msra.mxu0 %v599
    %3068 = vmatprep.subr.mxu0 %v603
    %3069 = vmatpush1.msra.mxu0 %v602
    %3070 = vmatprep.subr.mxu0 %v606
    %3071 = vmatpush1.msra.mxu0 %v605
    %3072 = vmatprep.subr.mxu0 %v609
    %3073 = vmatpush1.msra.mxu0 %v608
    %3074 = vmatprep.subr.mxu0 %v612
    %3075 = vmatpush1.msra.mxu0 %v611
    %3076 = vmatprep.subr.mxu0 %v615
    %3077 = vmatpush1.msra.mxu0 %v614
    %3078 = vmatprep.subr.mxu0 %v618
    %3079 = vmatpush1.msra.mxu0 %v617
    %3080 = vmatprep.subr.mxu0 %v621
    %3081 = vmatpush1.msra.mxu0 %v620
    %3082 = vmatprep.subr.mxu0 0.0
    %3083 = vmatpush1.msra.mxu0 0.0
    %3084 = vmatprep.subr.mxu0 0.0
    %3085 = vmatpush1.msra.mxu0 0.0
    %3086 = vmatprep.subr.mxu0 0.0
    %3087 = vmatpush1.msra.mxu0 0.0
    %3088 = vmatprep.subr.mxu0 0.0
    %3089 = vmatpush1.msra.mxu0 0.0
    %3090 = vmatprep.subr.mxu0 0.0
    %3091 = vmatpush1.msra.mxu0 0.0
    %3092 = vmatprep.subr.mxu0 0.0
    %3093 = vmatpush1.msra.mxu0 0.0
    %3094 = vmatprep.subr.mxu0 0.0
    %3095 = vmatpush1.msra.mxu0 0.0
    %3096 = vmatprep.subr.mxu0 0.0
    %3097 = vmatpush1.msra.mxu0 0.0
    %3098 = vmatprep.subr.mxu0 0.0
    %3099 = vmatpush1.msra.mxu0 0.0
    %3100 = vmatprep.subr.mxu0 0.0
    %3101 = vmatpush1.msra.mxu0 0.0
    %3102 = vmatprep.subr.mxu0 0.0
    %3103 = vmatpush1.msra.mxu0 0.0
    %3104 = vmatprep.subr.mxu0 0.0
    %3105 = vmatpush1.msra.mxu0 0.0
    %3106 = vmatprep.subr.mxu0 0.0
    %3107 = vmatpush1.msra.mxu0 0.0
    %3108 = vmatprep.subr.mxu0 0.0
    %3109 = vmatpush1.msra.mxu0 0.0
    %3110 = vmatprep.subr.mxu0 0.0
    %3111 = vmatpush1.msra.mxu0 0.0
    %3112 = vmatprep.subr.mxu0 0.0
    %3113 = vmatpush1.msra.mxu0 0.0
    %3114 = vmatprep.mubr.f32.mxu0 0.0
    %3115 = vmatmul.mubr.f32.gmra.mrb[0].mxu0 %v2671
    %v3116 = vpop.f32.mrb[0].mxu0
    %v3117 = vadd.f32 %v628, %v3116
    %v3118 = vpop.f32.mrb[0].mxu0
    %v3119 = vadd.f32 %v632, %v3118
    %3120 = vdwg.mxu0
    %3121 = vmatprep.subr.mxu0 0.0
    %3122 = vmatpush1.msra.mxu0 %v577
    %3123 = vmatprep.subr.mxu0 0.0
    %3124 = vmatpush1.msra.mxu0 %v580
    %3125 = vmatprep.subr.mxu0 0.0
    %3126 = vmatpush1.msra.mxu0 %v583
    %3127 = vmatprep.subr.mxu0 0.0
    %3128 = vmatpush1.msra.mxu0 %v586
    %3129 = vmatprep.subr.mxu0 0.0
    %3130 = vmatpush1.msra.mxu0 %v589
    %3131 = vmatprep.subr.mxu0 0.0
    %3132 = vmatpush1.msra.mxu0 %v592
    %3133 = vmatprep.subr.mxu0 0.0
    %3134 = vmatpush1.msra.mxu0 %v595
    %3135 = vmatprep.subr.mxu0 0.0
    %3136 = vmatpush1.msra.mxu0 %v598
    %3137 = vmatprep.subr.mxu0 0.0
    %3138 = vmatpush1.msra.mxu0 %v601
    %3139 = vmatprep.subr.mxu0 0.0
    %3140 = vmatpush1.msra.mxu0 %v604
    %3141 = vmatprep.subr.mxu0 0.0
    %3142 = vmatpush1.msra.mxu0 %v607
    %3143 = vmatprep.subr.mxu0 0.0
    %3144 = vmatpush1.msra.mxu0 %v610
    %3145 = vmatprep.subr.mxu0 0.0
    %3146 = vmatpush1.msra.mxu0 %v613
    %3147 = vmatprep.subr.mxu0 0.0
    %3148 = vmatpush1.msra.mxu0 %v616
    %3149 = vmatprep.subr.mxu0 0.0
    %3150 = vmatpush1.msra.mxu0 %v619
    %3151 = vmatprep.subr.mxu0 0.0
    %3152 = vmatpush1.msra.mxu0 %v622
    %3153 = vmatprep.subr.mxu0 0.0
    %3154 = vmatpush1.msra.mxu0 0.0
    %3155 = vmatprep.subr.mxu0 0.0
    %3156 = vmatpush1.msra.mxu0 0.0
    %3157 = vmatprep.subr.mxu0 0.0
    %3158 = vmatpush1.msra.mxu0 0.0
    %3159 = vmatprep.subr.mxu0 0.0
    %3160 = vmatpush1.msra.mxu0 0.0
    %3161 = vmatprep.subr.mxu0 0.0
    %3162 = vmatpush1.msra.mxu0 0.0
    %3163 = vmatprep.subr.mxu0 0.0
    %3164 = vmatpush1.msra.mxu0 0.0
    %3165 = vmatprep.subr.mxu0 0.0
    %3166 = vmatpush1.msra.mxu0 0.0
    %3167 = vmatprep.subr.mxu0 0.0
    %3168 = vmatpush1.msra.mxu0 0.0
    %3169 = vmatprep.subr.mxu0 0.0
    %3170 = vmatpush1.msra.mxu0 0.0
    %3171 = vmatprep.subr.mxu0 0.0
    %3172 = vmatpush1.msra.mxu0 0.0
    %3173 = vmatprep.subr.mxu0 0.0
    %3174 = vmatpush1.msra.mxu0 0.0
    %3175 = vmatprep.subr.mxu0 0.0
    %3176 = vmatpush1.msra.mxu0 0.0
    %3177 = vmatprep.subr.mxu0 0.0
    %3178 = vmatpush1.msra.mxu0 0.0
    %3179 = vmatprep.subr.mxu0 0.0
    %3180 = vmatpush1.msra.mxu0 0.0
    %3181 = vmatprep.subr.mxu0 0.0
    %3182 = vmatpush1.msra.mxu0 0.0
    %3183 = vmatprep.subr.mxu0 0.0
    %3184 = vmatpush1.msra.mxu0 0.0
    %3185 = vmatprep.mubr.f32.mxu0 0.0
    %3186 = vmatmul.mubr.f32.gmra.mrb[0].mxu0 %v2671
    %v3187 = vpop.f32.mrb[0].mxu0
    %v3188 = vadd.f32 %v636, %v3187
    %v3189 = vpop.f32.mrb[0].mxu0
    %3190 = vdwg.mxu0
    %v3191 = vadd.f32 %v2976, %v3117
    %v3192 = vxor.u32 %v3191, 2147483648
    %v3193 = vmul.f32 %v3192, 1.442695
    %v3194 = vpow.pop %v3193
    %v3195 = vadd.f32 %v3194, 1.0
    %v3196 = vrcp.pop %v3195
    %v3197 = vmul.f32 1.0, %v3196
    %v3198 = vadd.f32 %v2978, %v3119
    %v3199 = vxor.u32 %v3198, 2147483648
    %v3200 = vmul.f32 %v3199, 1.442695
    %v3201 = vpow.pop %v3200
    %v3202 = vadd.f32 %v3201, 1.0
    %v3203 = vrcp.pop %v3202
    %v3204 = vmul.f32 1.0, %v3203
    %v3205 = vmul.f32 %v3197, %v3188
    %v3206 = vadd.f32 %v3047, %v3205
    %v3207 = vtanh.pop %v3206
    %v3208 = vsub.f32 1.0, %v3204
    %v3209 = vmul.f32 %v3208, %v3207
    %v3210 = vmul.f32 %v3204, %v2671
    %v3211 = vadd.f32 %v3209, %v3210
    %3212 = vmatprep.subr.mxu0 0.0
    %3213 = vmatpush1.msra.mxu0 %v656
    %3214 = vmatprep.subr.mxu0 0.0
    %3215 = vmatpush1.msra.mxu0 %v657
    %3216 = vmatprep.subr.mxu0 0.0
    %3217 = vmatpush1.msra.mxu0 %v658
    %3218 = vmatprep.subr.mxu0 0.0
    %3219 = vmatpush1.msra.mxu0 %v659
    %3220 = vmatprep.subr.mxu0 0.0
    %3221 = vmatpush1.msra.mxu0 %v660
    %3222 = vmatprep.subr.mxu0 0.0
    %3223 = vmatpush1.msra.mxu0 %v661
    %3224 = vmatprep.subr.mxu0 0.0
    %3225 = vmatpush1.msra.mxu0 %v662
    %3226 = vmatprep.subr.mxu0 0.0
    %3227 = vmatpush1.msra.mxu0 %v663
    %3228 = vmatprep.subr.mxu0 0.0
    %3229 = vmatpush1.msra.mxu0 %v664
    %3230 = vmatprep.subr.mxu0 0.0
    %3231 = vmatpush1.msra.mxu0 %v665
    %3232 = vmatprep.subr.mxu0 0.0
    %3233 = vmatpush1.msra.mxu0 %v666
    %3234 = vmatprep.subr.mxu0 0.0
    %3235 = vmatpush1.msra.mxu0 %v667
    %3236 = vmatprep.subr.mxu0 0.0
    %3237 = vmatpush1.msra.mxu0 %v668
    %3238 = vmatprep.subr.mxu0 0.0
    %3239 = vmatpush1.msra.mxu0 %v669
    %3240 = vmatprep.subr.mxu0 0.0
    %3241 = vmatpush1.msra.mxu0 %v670
    %3242 = vmatprep.subr.mxu0 0.0
    %3243 = vmatpush1.msra.mxu0 %v671
    %3244 = vmatprep.subr.mxu0 0.0
    %3245 = vmatpush1.msra.mxu0 0.0
    %3246 = vmatprep.subr.mxu0 0.0
    %3247 = vmatpush1.msra.mxu0 0.0
    %3248 = vmatprep.subr.mxu0 0.0
    %3249 = vmatpush1.msra.mxu0 0.0
    %3250 = vmatprep.subr.mxu0 0.0
    %3251 = vmatpush1.msra.mxu0 0.0
    %3252 = vmatprep.subr.mxu0 0.0
    %3253 = vmatpush1.msra.mxu0 0.0
    %3254 = vmatprep.subr.mxu0 0.0
    %3255 = vmatpush1.msra.mxu0 0.0
    %3256 = vmatprep.subr.mxu0 0.0
    %3257 = vmatpush1.msra.mxu0 0.0
    %3258 = vmatprep.subr.mxu0 0.0
    %3259 = vmatpush1.msra.mxu0 0.0
    %3260 = vmatprep.subr.mxu0 0.0
    %3261 = vmatpush1.msra.mxu0 0.0
    %3262 = vmatprep.subr.mxu0 0.0
    %3263 = vmatpush1.msra.mxu0 0.0
    %3264 = vmatprep.subr.mxu0 0.0
    %3265 = vmatpush1.msra.mxu0 0.0
    %3266 = vmatprep.subr.mxu0 0.0
    %3267 = vmatpush1.msra.mxu0 0.0
    %3268 = vmatprep.subr.mxu0 0.0
    %3269 = vmatpush1.msra.mxu0 0.0
    %3270 = vmatprep.subr.mxu0 0.0
    %3271 = vmatpush1.msra.mxu0 0.0
    %3272 = vmatprep.subr.mxu0 0.0
    %3273 = vmatpush1.msra.mxu0 0.0
    %3274 = vmatprep.subr.mxu0 0.0
    %3275 = vmatpush1.msra.mxu0 0.0
    %3276 = vmatprep.mubr.f32.mxu0 0.0
    %3277 = vmatmul.mubr.f32.gmra.mrb[0].mxu0 %v3211
    %v3278 = vpop.f32.mrb[0].mxu0
    %v3279 = vadd.f32 0.0, %v3278
    %v3280 = vpop.f32.mrb[0].mxu0
    %3281 = vdwg.mxu0
    %3282 = vmatprep.subr.mxu0 0.0
    %3283 = vmatpush1.msra.mxu0 %v640
    %3284 = vmatprep.subr.mxu0 0.0
    %3285 = vmatpush1.msra.mxu0 %v641
    %3286 = vmatprep.subr.mxu0 0.0
    %3287 = vmatpush1.msra.mxu0 %v642
    %3288 = vmatprep.subr.mxu0 0.0
    %3289 = vmatpush1.msra.mxu0 %v643
    %3290 = vmatprep.subr.mxu0 0.0
    %3291 = vmatpush1.msra.mxu0 %v644
    %3292 = vmatprep.subr.mxu0 0.0
    %3293 = vmatpush1.msra.mxu0 %v645
    %3294 = vmatprep.subr.mxu0 0.0
    %3295 = vmatpush1.msra.mxu0 %v646
    %3296 = vmatprep.subr.mxu0 0.0
    %3297 = vmatpush1.msra.mxu0 %v647
    %3298 = vmatprep.subr.mxu0 0.0
    %3299 = vmatpush1.msra.mxu0 %v648
    %3300 = vmatprep.subr.mxu0 0.0
    %3301 = vmatpush1.msra.mxu0 %v649
    %3302 = vmatprep.subr.mxu0 0.0
    %3303 = vmatpush1.msra.mxu0 %v650
    %3304 = vmatprep.subr.mxu0 0.0
    %3305 = vmatpush1.msra.mxu0 %v651
    %3306 = vmatprep.subr.mxu0 0.0
    %3307 = vmatpush1.msra.mxu0 %v652
    %3308 = vmatprep.subr.mxu0 0.0
    %3309 = vmatpush1.msra.mxu0 %v653
    %3310 = vmatprep.subr.mxu0 0.0
    %3311 = vmatpush1.msra.mxu0 %v654
    %3312 = vmatprep.subr.mxu0 0.0
    %3313 = vmatpush1.msra.mxu0 %v655
    %3314 = vmatprep.subr.mxu0 0.0
    %3315 = vmatpush1.msra.mxu0 0.0
    %3316 = vmatprep.subr.mxu0 0.0
    %3317 = vmatpush1.msra.mxu0 0.0
    %3318 = vmatprep.subr.mxu0 0.0
    %3319 = vmatpush1.msra.mxu0 0.0
    %3320 = vmatprep.subr.mxu0 0.0
    %3321 = vmatpush1.msra.mxu0 0.0
    %3322 = vmatprep.subr.mxu0 0.0
    %3323 = vmatpush1.msra.mxu0 0.0
    %3324 = vmatprep.subr.mxu0 0.0
    %3325 = vmatpush1.msra.mxu0 0.0
    %3326 = vmatprep.subr.mxu0 0.0
    %3327 = vmatpush1.msra.mxu0 0.0
    %3328 = vmatprep.subr.mxu0 0.0
    %3329 = vmatpush1.msra.mxu0 0.0
    %3330 = vmatprep.subr.mxu0 0.0
    %3331 = vmatpush1.msra.mxu0 0.0
    %3332 = vmatprep.subr.mxu0 0.0
    %3333 = vmatpush1.msra.mxu0 0.0
    %3334 = vmatprep.subr.mxu0 0.0
    %3335 = vmatpush1.msra.mxu0 0.0
    %3336 = vmatprep.subr.mxu0 0.0
    %3337 = vmatpush1.msra.mxu0 0.0
    %3338 = vmatprep.subr.mxu0 0.0
    %3339 = vmatpush1.msra.mxu0 0.0
    %3340 = vmatprep.subr.mxu0 0.0
    %3341 = vmatpush1.msra.mxu0 0.0
    %3342 = vmatprep.subr.mxu0 0.0
    %3343 = vmatpush1.msra.mxu0 0.0
    %3344 = vmatprep.subr.mxu0 0.0
    %3345 = vmatpush1.msra.mxu0 0.0
    %3346 = vmatprep.mubr.f32.mxu0 0.0
    %3347 = vmatmul.mubr.f32.gmra.mrb[0].mxu0 %v2906
    %v3348 = vpop.f32.mrb[0].mxu0
    %v3349 = vadd.f32 %v3279, %v3348
    %v3350 = vpop.f32.mrb[0].mxu0
    %3351 = vdwg.mxu0
    %v3352 = vadd.f32 %v3349, %v508
    %s3353 = scalar_lea.vmem [#allocation23], 32
    %3354 = vst [vmem:[%s3353] sm:$0xff] %v3352
    %s3355 = scalar_lea.vmem [#allocation22], 32
    %v3356 = vld [vmem:[%s3355] sm:$0xff]
    %v3357 = vadd.f32 %v3352, %v3356
    %3358 = vmax.xlane.f32.xlu0 %v3357
    %v3359 = vpop.xlane.xlu0 %3358
    %vm3360 = vcmp.eq.f32.partialorder %v3357, %v3359
    %v3361 = vsel %vm3360, %v674, 128
    %v3362 = vand.u32 %v3361, 65535
    %v3363 = vshra.s32 %v3361, 16
    %v3364 = vcvt.s32.f32 %v3362
    %v3365 = vcvt.s32.f32 %v3363
    %3366 = vmin.xlane.f32.xlu0 %v3365
    %v3367 = vpop.xlane.xlu0 %3366
    %vm3368 = vcmp.eq.f32.partialorder %v3365, %v3367
    %v3369 = vsel %vm3368, %v3364, inf
    %3370 = vmin.xlane.f32.xlu0 %v3369
    %v3371 = vpop.xlane.xlu0 %3370
    %v3372 = vcvt.f32.s32 %v3371
    %v3373 = vcvt.f32.s32 %v3367
    %v3374 = vshll.u32 %v3373, 16
    %v3375 = vadd.s32 %v3374, %v3372
    %vm3376 = vcmp.eq.s32.totalorder %v3375, %v674
    %v3377 = vsel %vm3376, 1, 0
    %v3378 = vcvt.s32.f32 %v3377
    %3379 = vmatprep.subr.mxu0 0.0
    %3380 = vmatpush1.msra.mxu0 %v511
    %3381 = vmatprep.subr.mxu0 0.0
    %3382 = vmatpush1.msra.mxu0 %v512
    %3383 = vmatprep.subr.mxu0 0.0
    %3384 = vmatpush1.msra.mxu0 %v513
    %3385 = vmatprep.subr.mxu0 0.0
    %3386 = vmatpush1.msra.mxu0 %v514
    %3387 = vmatprep.subr.mxu0 0.0
    %3388 = vmatpush1.msra.mxu0 %v515
    %3389 = vmatprep.subr.mxu0 0.0
    %3390 = vmatpush1.msra.mxu0 %v516
    %3391 = vmatprep.subr.mxu0 0.0
    %3392 = vmatpush1.msra.mxu0 %v517
    %3393 = vmatprep.subr.mxu0 0.0
    %3394 = vmatpush1.msra.mxu0 %v518
    %3395 = vmatprep.subr.mxu0 0.0
    %3396 = vmatpush1.msra.mxu0 %v519
    %3397 = vmatprep.subr.mxu0 0.0
    %3398 = vmatpush1.msra.mxu0 %v520
    %3399 = vmatprep.subr.mxu0 0.0
    %3400 = vmatpush1.msra.mxu0 %v521
    %3401 = vmatprep.subr.mxu0 0.0
    %3402 = vmatpush1.msra.mxu0 %v522
    %3403 = vmatprep.subr.mxu0 0.0
    %3404 = vmatpush1.msra.mxu0 %v523
    %3405 = vmatprep.subr.mxu0 0.0
    %3406 = vmatpush1.msra.mxu0 %v524
    %3407 = vmatprep.subr.mxu0 0.0
    %3408 = vmatpush1.msra.mxu0 %v525
    %3409 = vmatprep.subr.mxu0 0.0
    %3410 = vmatpush1.msra.mxu0 %v526
    %3411 = vmatprep.subr.mxu0 0.0
    %3412 = vmatpush1.msra.mxu0 0.0
    %3413 = vmatprep.subr.mxu0 0.0
    %3414 = vmatpush1.msra.mxu0 0.0
    %3415 = vmatprep.subr.mxu0 0.0
    %3416 = vmatpush1.msra.mxu0 0.0
    %3417 = vmatprep.subr.mxu0 0.0
    %3418 = vmatpush1.msra.mxu0 0.0
    %3419 = vmatprep.subr.mxu0 0.0
    %3420 = vmatpush1.msra.mxu0 0.0
    %3421 = vmatprep.subr.mxu0 0.0
    %3422 = vmatpush1.msra.mxu0 0.0
    %3423 = vmatprep.subr.mxu0 0.0
    %3424 = vmatpush1.msra.mxu0 0.0
    %3425 = vmatprep.subr.mxu0 0.0
    %3426 = vmatpush1.msra.mxu0 0.0
    %3427 = vmatprep.subr.mxu0 0.0
    %3428 = vmatpush1.msra.mxu0 0.0
    %3429 = vmatprep.subr.mxu0 0.0
    %3430 = vmatpush1.msra.mxu0 0.0
    %3431 = vmatprep.subr.mxu0 0.0
    %3432 = vmatpush1.msra.mxu0 0.0
    %3433 = vmatprep.subr.mxu0 0.0
    %3434 = vmatpush1.msra.mxu0 0.0
    %3435 = vmatprep.subr.mxu0 0.0
    %3436 = vmatpush1.msra.mxu0 0.0
    %3437 = vmatprep.subr.mxu0 0.0
    %3438 = vmatpush1.msra.mxu0 0.0
    %3439 = vmatprep.subr.mxu0 0.0
    %3440 = vmatpush1.msra.mxu0 0.0
    %3441 = vmatprep.subr.mxu0 0.0
    %3442 = vmatpush1.msra.mxu0 0.0
    %3443 = vmatprep.mubr.f32.mxu0 0.0
    %3444 = vmatmul.mubr.f32.gmra.mrb[0].mxu0 %v3378
    %v3445 = vpop.f32.mrb[0].mxu0
    %v3446 = vadd.f32 0.0, %v3445
    %v3447 = vpop.f32.mrb[0].mxu0
    %3448 = vdwg.mxu0
    %3449 = vmatprep.subr.mxu0 %v528
    %3450 = vmatpush1.msra.mxu0 %v527
    %3451 = vmatprep.subr.mxu0 %v531
    %3452 = vmatpush1.msra.mxu0 %v530
    %3453 = vmatprep.subr.mxu0 %v534
    %3454 = vmatpush1.msra.mxu0 %v533
    %3455 = vmatprep.subr.mxu0 %v537
    %3456 = vmatpush1.msra.mxu0 %v536
    %3457 = vmatprep.subr.mxu0 %v540
    %3458 = vmatpush1.msra.mxu0 %v539
    %3459 = vmatprep.subr.mxu0 %v543
    %3460 = vmatpush1.msra.mxu0 %v542
    %3461 = vmatprep.subr.mxu0 %v546
    %3462 = vmatpush1.msra.mxu0 %v545
    %3463 = vmatprep.subr.mxu0 %v549
    %3464 = vmatpush1.msra.mxu0 %v548
    %3465 = vmatprep.subr.mxu0 %v552
    %3466 = vmatpush1.msra.mxu0 %v551
    %3467 = vmatprep.subr.mxu0 %v555
    %3468 = vmatpush1.msra.mxu0 %v554
    %3469 = vmatprep.subr.mxu0 %v558
    %3470 = vmatpush1.msra.mxu0 %v557
    %3471 = vmatprep.subr.mxu0 %v561
    %3472 = vmatpush1.msra.mxu0 %v560
    %3473 = vmatprep.subr.mxu0 %v564
    %3474 = vmatpush1.msra.mxu0 %v563
    %3475 = vmatprep.subr.mxu0 %v567
    %3476 = vmatpush1.msra.mxu0 %v566
    %3477 = vmatprep.subr.mxu0 %v570
    %3478 = vmatpush1.msra.mxu0 %v569
    %3479 = vmatprep.subr.mxu0 %v573
    %3480 = vmatpush1.msra.mxu0 %v572
    %3481 = vmatprep.subr.mxu0 0.0
    %3482 = vmatpush1.msra.mxu0 0.0
    %3483 = vmatprep.subr.mxu0 0.0
    %3484 = vmatpush1.msra.mxu0 0.0
    %3485 = vmatprep.subr.mxu0 0.0
    %3486 = vmatpush1.msra.mxu0 0.0
    %3487 = vmatprep.subr.mxu0 0.0
    %3488 = vmatpush1.msra.mxu0 0.0
    %3489 = vmatprep.subr.mxu0 0.0
    %3490 = vmatpush1.msra.mxu0 0.0
    %3491 = vmatprep.subr.mxu0 0.0
    %3492 = vmatpush1.msra.mxu0 0.0
    %3493 = vmatprep.subr.mxu0 0.0
    %3494 = vmatpush1.msra.mxu0 0.0
    %3495 = vmatprep.subr.mxu0 0.0
    %3496 = vmatpush1.msra.mxu0 0.0
    %3497 = vmatprep.subr.mxu0 0.0
    %3498 = vmatpush1.msra.mxu0 0.0
    %3499 = vmatprep.subr.mxu0 0.0
    %3500 = vmatpush1.msra.mxu0 0.0
    %3501 = vmatprep.subr.mxu0 0.0
    %3502 = vmatpush1.msra.mxu0 0.0
    %3503 = vmatprep.subr.mxu0 0.0
    %3504 = vmatpush1.msra.mxu0 0.0
    %3505 = vmatprep.subr.mxu0 0.0
    %3506 = vmatpush1.msra.mxu0 0.0
    %3507 = vmatprep.subr.mxu0 0.0
    %3508 = vmatpush1.msra.mxu0 0.0
    %3509 = vmatprep.subr.mxu0 0.0
    %3510 = vmatpush1.msra.mxu0 0.0
    %3511 = vmatprep.subr.mxu0 0.0
    %3512 = vmatpush1.msra.mxu0 0.0
    %3513 = vmatprep.mubr.f32.mxu0 0.0
    %3514 = vmatmul.mubr.f32.gmra.mrb[0].mxu0 %v3446
    %v3515 = vpop.f32.mrb[0].mxu0
    %v3516 = vadd.f32 %v344, %v3515
    %v3517 = vpop.f32.mrb[0].mxu0
    %v3518 = vadd.f32 %v346, %v3517
    %3519 = vdwg.mxu0
    %3520 = vmatprep.subr.mxu0 0.0
    %3521 = vmatpush1.msra.mxu0 %v529
    %3522 = vmatprep.subr.mxu0 0.0
    %3523 = vmatpush1.msra.mxu0 %v532
    %3524 = vmatprep.subr.mxu0 0.0
    %3525 = vmatpush1.msra.mxu0 %v535
    %3526 = vmatprep.subr.mxu0 0.0
    %3527 = vmatpush1.msra.mxu0 %v538
    %3528 = vmatprep.subr.mxu0 0.0
    %3529 = vmatpush1.msra.mxu0 %v541
    %3530 = vmatprep.subr.mxu0 0.0
    %3531 = vmatpush1.msra.mxu0 %v544
    %3532 = vmatprep.subr.mxu0 0.0
    %3533 = vmatpush1.msra.mxu0 %v547
    %3534 = vmatprep.subr.mxu0 0.0
    %3535 = vmatpush1.msra.mxu0 %v550
    %3536 = vmatprep.subr.mxu0 0.0
    %3537 = vmatpush1.msra.mxu0 %v553
    %3538 = vmatprep.subr.mxu0 0.0
    %3539 = vmatpush1.msra.mxu0 %v556
    %3540 = vmatprep.subr.mxu0 0.0
    %3541 = vmatpush1.msra.mxu0 %v559
    %3542 = vmatprep.subr.mxu0 0.0
    %3543 = vmatpush1.msra.mxu0 %v562
    %3544 = vmatprep.subr.mxu0 0.0
    %3545 = vmatpush1.msra.mxu0 %v565
    %3546 = vmatprep.subr.mxu0 0.0
    %3547 = vmatpush1.msra.mxu0 %v568
    %3548 = vmatprep.subr.mxu0 0.0
    %3549 = vmatpush1.msra.mxu0 %v571
    %3550 = vmatprep.subr.mxu0 0.0
    %3551 = vmatpush1.msra.mxu0 %v574
    %3552 = vmatprep.subr.mxu0 0.0
    %3553 = vmatpush1.msra.mxu0 0.0
    %3554 = vmatprep.subr.mxu0 0.0
    %3555 = vmatpush1.msra.mxu0 0.0
    %3556 = vmatprep.subr.mxu0 0.0
    %3557 = vmatpush1.msra.mxu0 0.0
    %3558 = vmatprep.subr.mxu0 0.0
    %3559 = vmatpush1.msra.mxu0 0.0
    %3560 = vmatprep.subr.mxu0 0.0
    %3561 = vmatpush1.msra.mxu0 0.0
    %3562 = vmatprep.subr.mxu0 0.0
    %3563 = vmatpush1.msra.mxu0 0.0
    %3564 = vmatprep.subr.mxu0 0.0
    %3565 = vmatpush1.msra.mxu0 0.0
    %3566 = vmatprep.subr.mxu0 0.0
    %3567 = vmatpush1.msra.mxu0 0.0
    %3568 = vmatprep.subr.mxu0 0.0
    %3569 = vmatpush1.msra.mxu0 0.0
    %3570 = vmatprep.subr.mxu0 0.0
    %3571 = vmatpush1.msra.mxu0 0.0
    %3572 = vmatprep.subr.mxu0 0.0
    %3573 = vmatpush1.msra.mxu0 0.0
    %3574 = vmatprep.subr.mxu0 0.0
    %3575 = vmatpush1.msra.mxu0 0.0
    %3576 = vmatprep.subr.mxu0 0.0
    %3577 = vmatpush1.msra.mxu0 0.0
    %3578 = vmatprep.subr.mxu0 0.0
    %3579 = vmatpush1.msra.mxu0 0.0
    %3580 = vmatprep.subr.mxu0 0.0
    %3581 = vmatpush1.msra.mxu0 0.0
    %3582 = vmatprep.subr.mxu0 0.0
    %3583 = vmatpush1.msra.mxu0 0.0
    %3584 = vmatprep.mubr.f32.mxu0 0.0
    %3585 = vmatmul.mubr.f32.gmra.mrb[0].mxu0 %v3446
    %v3586 = vpop.f32.mrb[0].mxu0
    %v3587 = vadd.f32 %v415, %v3586
    %v3588 = vpop.f32.mrb[0].mxu0
    %3589 = vdwg.mxu0
    %3590 = vmatprep.subr.mxu0 %v576
    %3591 = vmatpush1.msra.mxu0 %v575
    %3592 = vmatprep.subr.mxu0 %v579
    %3593 = vmatpush1.msra.mxu0 %v578
    %3594 = vmatprep.subr.mxu0 %v582
    %3595 = vmatpush1.msra.mxu0 %v581
    %3596 = vmatprep.subr.mxu0 %v585
    %3597 = vmatpush1.msra.mxu0 %v584
    %3598 = vmatprep.subr.mxu0 %v588
    %3599 = vmatpush1.msra.mxu0 %v587
    %3600 = vmatprep.subr.mxu0 %v591
    %3601 = vmatpush1.msra.mxu0 %v590
    %3602 = vmatprep.subr.mxu0 %v594
    %3603 = vmatpush1.msra.mxu0 %v593
    %3604 = vmatprep.subr.mxu0 %v597
    %3605 = vmatpush1.msra.mxu0 %v596
    %3606 = vmatprep.subr.mxu0 %v600
    %3607 = vmatpush1.msra.mxu0 %v599
    %3608 = vmatprep.subr.mxu0 %v603
    %3609 = vmatpush1.msra.mxu0 %v602
    %3610 = vmatprep.subr.mxu0 %v606
    %3611 = vmatpush1.msra.mxu0 %v605
    %3612 = vmatprep.subr.mxu0 %v609
    %3613 = vmatpush1.msra.mxu0 %v608
    %3614 = vmatprep.subr.mxu0 %v612
    %3615 = vmatpush1.msra.mxu0 %v611
    %3616 = vmatprep.subr.mxu0 %v615
    %3617 = vmatpush1.msra.mxu0 %v614
    %3618 = vmatprep.subr.mxu0 %v618
    %3619 = vmatpush1.msra.mxu0 %v617
    %3620 = vmatprep.subr.mxu0 %v621
    %3621 = vmatpush1.msra.mxu0 %v620
    %3622 = vmatprep.subr.mxu0 0.0
    %3623 = vmatpush1.msra.mxu0 0.0
    %3624 = vmatprep.subr.mxu0 0.0
    %3625 = vmatpush1.msra.mxu0 0.0
    %3626 = vmatprep.subr.mxu0 0.0
    %3627 = vmatpush1.msra.mxu0 0.0
    %3628 = vmatprep.subr.mxu0 0.0
    %3629 = vmatpush1.msra.mxu0 0.0
    %3630 = vmatprep.subr.mxu0 0.0
    %3631 = vmatpush1.msra.mxu0 0.0
    %3632 = vmatprep.subr.mxu0 0.0
    %3633 = vmatpush1.msra.mxu0 0.0
    %3634 = vmatprep.subr.mxu0 0.0
    %3635 = vmatpush1.msra.mxu0 0.0
    %3636 = vmatprep.subr.mxu0 0.0
    %3637 = vmatpush1.msra.mxu0 0.0
    %3638 = vmatprep.subr.mxu0 0.0
    %3639 = vmatpush1.msra.mxu0 0.0
    %3640 = vmatprep.subr.mxu0 0.0
    %3641 = vmatpush1.msra.mxu0 0.0
    %3642 = vmatprep.subr.mxu0 0.0
    %3643 = vmatpush1.msra.mxu0 0.0
    %3644 = vmatprep.subr.mxu0 0.0
    %3645 = vmatpush1.msra.mxu0 0.0
    %3646 = vmatprep.subr.mxu0 0.0
    %3647 = vmatpush1.msra.mxu0 0.0
    %3648 = vmatprep.subr.mxu0 0.0
    %3649 = vmatpush1.msra.mxu0 0.0
    %3650 = vmatprep.subr.mxu0 0.0
    %3651 = vmatpush1.msra.mxu0 0.0
    %3652 = vmatprep.subr.mxu0 0.0
    %3653 = vmatpush1.msra.mxu0 0.0
    %3654 = vmatprep.mubr.f32.mxu0 0.0
    %3655 = vmatmul.mubr.f32.gmra.mrb[0].mxu0 %v3211
    %v3656 = vpop.f32.mrb[0].mxu0
    %v3657 = vadd.f32 %v628, %v3656
    %v3658 = vpop.f32.mrb[0].mxu0
    %v3659 = vadd.f32 %v632, %v3658
    %3660 = vdwg.mxu0
    %3661 = vmatprep.subr.mxu0 0.0
    %3662 = vmatpush1.msra.mxu0 %v577
    %3663 = vmatprep.subr.mxu0 0.0
    %3664 = vmatpush1.msra.mxu0 %v580
    %3665 = vmatprep.subr.mxu0 0.0
    %3666 = vmatpush1.msra.mxu0 %v583
    %3667 = vmatprep.subr.mxu0 0.0
    %3668 = vmatpush1.msra.mxu0 %v586
    %3669 = vmatprep.subr.mxu0 0.0
    %3670 = vmatpush1.msra.mxu0 %v589
    %3671 = vmatprep.subr.mxu0 0.0
    %3672 = vmatpush1.msra.mxu0 %v592
    %3673 = vmatprep.subr.mxu0 0.0
    %3674 = vmatpush1.msra.mxu0 %v595
    %3675 = vmatprep.subr.mxu0 0.0
    %3676 = vmatpush1.msra.mxu0 %v598
    %3677 = vmatprep.subr.mxu0 0.0
    %3678 = vmatpush1.msra.mxu0 %v601
    %3679 = vmatprep.subr.mxu0 0.0
    %3680 = vmatpush1.msra.mxu0 %v604
    %3681 = vmatprep.subr.mxu0 0.0
    %3682 = vmatpush1.msra.mxu0 %v607
    %3683 = vmatprep.subr.mxu0 0.0
    %3684 = vmatpush1.msra.mxu0 %v610
    %3685 = vmatprep.subr.mxu0 0.0
    %3686 = vmatpush1.msra.mxu0 %v613
    %3687 = vmatprep.subr.mxu0 0.0
    %3688 = vmatpush1.msra.mxu0 %v616
    %3689 = vmatprep.subr.mxu0 0.0
    %3690 = vmatpush1.msra.mxu0 %v619
    %3691 = vmatprep.subr.mxu0 0.0
    %3692 = vmatpush1.msra.mxu0 %v622
    %3693 = vmatprep.subr.mxu0 0.0
    %3694 = vmatpush1.msra.mxu0 0.0
    %3695 = vmatprep.subr.mxu0 0.0
    %3696 = vmatpush1.msra.mxu0 0.0
    %3697 = vmatprep.subr.mxu0 0.0
    %3698 = vmatpush1.msra.mxu0 0.0
    %3699 = vmatprep.subr.mxu0 0.0
    %3700 = vmatpush1.msra.mxu0 0.0
    %3701 = vmatprep.subr.mxu0 0.0
    %3702 = vmatpush1.msra.mxu0 0.0
    %3703 = vmatprep.subr.mxu0 0.0
    %3704 = vmatpush1.msra.mxu0 0.0
    %3705 = vmatprep.subr.mxu0 0.0
    %3706 = vmatpush1.msra.mxu0 0.0
    %3707 = vmatprep.subr.mxu0 0.0
    %3708 = vmatpush1.msra.mxu0 0.0
    %3709 = vmatprep.subr.mxu0 0.0
    %3710 = vmatpush1.msra.mxu0 0.0
    %3711 = vmatprep.subr.mxu0 0.0
    %3712 = vmatpush1.msra.mxu0 0.0
    %3713 = vmatprep.subr.mxu0 0.0
    %3714 = vmatpush1.msra.mxu0 0.0
    %3715 = vmatprep.subr.mxu0 0.0
    %3716 = vmatpush1.msra.mxu0 0.0
    %3717 = vmatprep.subr.mxu0 0.0
    %3718 = vmatpush1.msra.mxu0 0.0
    %3719 = vmatprep.subr.mxu0 0.0
    %3720 = vmatpush1.msra.mxu0 0.0
    %3721 = vmatprep.subr.mxu0 0.0
    %3722 = vmatpush1.msra.mxu0 0.0
    %3723 = vmatprep.subr.mxu0 0.0
    %3724 = vmatpush1.msra.mxu0 0.0
    %3725 = vmatprep.mubr.f32.mxu0 0.0
    %3726 = vmatmul.mubr.f32.gmra.mrb[0].mxu0 %v3211
    %v3727 = vpop.f32.mrb[0].mxu0
    %v3728 = vadd.f32 %v636, %v3727
    %v3729 = vpop.f32.mrb[0].mxu0
    %3730 = vdwg.mxu0
    %v3731 = vadd.f32 %v3516, %v3657
    %v3732 = vxor.u32 %v3731, 2147483648
    %v3733 = vmul.f32 %v3732, 1.442695
    %v3734 = vpow.pop %v3733
    %v3735 = vadd.f32 %v3734, 1.0
    %v3736 = vrcp.pop %v3735
    %v3737 = vmul.f32 1.0, %v3736
    %v3738 = vadd.f32 %v3518, %v3659
    %v3739 = vxor.u32 %v3738, 2147483648
    %v3740 = vmul.f32 %v3739, 1.442695
    %v3741 = vpow.pop %v3740
    %v3742 = vadd.f32 %v3741, 1.0
    %v3743 = vrcp.pop %v3742
    %v3744 = vmul.f32 1.0, %v3743
    %v3745 = vmul.f32 %v3737, %v3728
    %v3746 = vadd.f32 %v3587, %v3745
    %v3747 = vtanh.pop %v3746
    %v3748 = vsub.f32 1.0, %v3744
    %v3749 = vmul.f32 %v3748, %v3747
    %v3750 = vmul.f32 %v3744, %v3211
    %v3751 = vadd.f32 %v3749, %v3750
    %3752 = vmatprep.subr.mxu0 0.0
    %3753 = vmatpush1.msra.mxu0 %v656
    %3754 = vmatprep.subr.mxu0 0.0
    %3755 = vmatpush1.msra.mxu0 %v657
    %3756 = vmatprep.subr.mxu0 0.0
    %3757 = vmatpush1.msra.mxu0 %v658
    %3758 = vmatprep.subr.mxu0 0.0
    %3759 = vmatpush1.msra.mxu0 %v659
    %3760 = vmatprep.subr.mxu0 0.0
    %3761 = vmatpush1.msra.mxu0 %v660
    %3762 = vmatprep.subr.mxu0 0.0
    %3763 = vmatpush1.msra.mxu0 %v661
    %3764 = vmatprep.subr.mxu0 0.0
    %3765 = vmatpush1.msra.mxu0 %v662
    %3766 = vmatprep.subr.mxu0 0.0
    %3767 = vmatpush1.msra.mxu0 %v663
    %3768 = vmatprep.subr.mxu0 0.0
    %3769 = vmatpush1.msra.mxu0 %v664
    %3770 = vmatprep.subr.mxu0 0.0
    %3771 = vmatpush1.msra.mxu0 %v665
    %3772 = vmatprep.subr.mxu0 0.0
    %3773 = vmatpush1.msra.mxu0 %v666
    %3774 = vmatprep.subr.mxu0 0.0
    %3775 = vmatpush1.msra.mxu0 %v667
    %3776 = vmatprep.subr.mxu0 0.0
    %3777 = vmatpush1.msra.mxu0 %v668
    %3778 = vmatprep.subr.mxu0 0.0
    %3779 = vmatpush1.msra.mxu0 %v669
    %3780 = vmatprep.subr.mxu0 0.0
    %3781 = vmatpush1.msra.mxu0 %v670
    %3782 = vmatprep.subr.mxu0 0.0
    %3783 = vmatpush1.msra.mxu0 %v671
    %3784 = vmatprep.subr.mxu0 0.0
    %3785 = vmatpush1.msra.mxu0 0.0
    %3786 = vmatprep.subr.mxu0 0.0
    %3787 = vmatpush1.msra.mxu0 0.0
    %3788 = vmatprep.subr.mxu0 0.0
    %3789 = vmatpush1.msra.mxu0 0.0
    %3790 = vmatprep.subr.mxu0 0.0
    %3791 = vmatpush1.msra.mxu0 0.0
    %3792 = vmatprep.subr.mxu0 0.0
    %3793 = vmatpush1.msra.mxu0 0.0
    %3794 = vmatprep.subr.mxu0 0.0
    %3795 = vmatpush1.msra.mxu0 0.0
    %3796 = vmatprep.subr.mxu0 0.0
    %3797 = vmatpush1.msra.mxu0 0.0
    %3798 = vmatprep.subr.mxu0 0.0
    %3799 = vmatpush1.msra.mxu0 0.0
    %3800 = vmatprep.subr.mxu0 0.0
    %3801 = vmatpush1.msra.mxu0 0.0
    %3802 = vmatprep.subr.mxu0 0.0
    %3803 = vmatpush1.msra.mxu0 0.0
    %3804 = vmatprep.subr.mxu0 0.0
    %3805 = vmatpush1.msra.mxu0 0.0
    %3806 = vmatprep.subr.mxu0 0.0
    %3807 = vmatpush1.msra.mxu0 0.0
    %3808 = vmatprep.subr.mxu0 0.0
    %3809 = vmatpush1.msra.mxu0 0.0
    %3810 = vmatprep.subr.mxu0 0.0
    %3811 = vmatpush1.msra.mxu0 0.0
    %3812 = vmatprep.subr.mxu0 0.0
    %3813 = vmatpush1.msra.mxu0 0.0
    %3814 = vmatprep.subr.mxu0 0.0
    %3815 = vmatpush1.msra.mxu0 0.0
    %3816 = vmatprep.mubr.f32.mxu0 0.0
    %3817 = vmatmul.mubr.f32.gmra.mrb[0].mxu0 %v3751
    %v3818 = vpop.f32.mrb[0].mxu0
    %v3819 = vadd.f32 0.0, %v3818
    %v3820 = vpop.f32.mrb[0].mxu0
    %3821 = vdwg.mxu0
    %3822 = vmatprep.subr.mxu0 0.0
    %3823 = vmatpush1.msra.mxu0 %v640
    %3824 = vmatprep.subr.mxu0 0.0
    %3825 = vmatpush1.msra.mxu0 %v641
    %3826 = vmatprep.subr.mxu0 0.0
    %3827 = vmatpush1.msra.mxu0 %v642
    %3828 = vmatprep.subr.mxu0 0.0
    %3829 = vmatpush1.msra.mxu0 %v643
    %3830 = vmatprep.subr.mxu0 0.0
    %3831 = vmatpush1.msra.mxu0 %v644
    %3832 = vmatprep.subr.mxu0 0.0
    %3833 = vmatpush1.msra.mxu0 %v645
    %3834 = vmatprep.subr.mxu0 0.0
    %3835 = vmatpush1.msra.mxu0 %v646
    %3836 = vmatprep.subr.mxu0 0.0
    %3837 = vmatpush1.msra.mxu0 %v647
    %3838 = vmatprep.subr.mxu0 0.0
    %3839 = vmatpush1.msra.mxu0 %v648
    %3840 = vmatprep.subr.mxu0 0.0
    %3841 = vmatpush1.msra.mxu0 %v649
    %3842 = vmatprep.subr.mxu0 0.0
    %3843 = vmatpush1.msra.mxu0 %v650
    %3844 = vmatprep.subr.mxu0 0.0
    %3845 = vmatpush1.msra.mxu0 %v651
    %3846 = vmatprep.subr.mxu0 0.0
    %3847 = vmatpush1.msra.mxu0 %v652
    %3848 = vmatprep.subr.mxu0 0.0
    %3849 = vmatpush1.msra.mxu0 %v653
    %3850 = vmatprep.subr.mxu0 0.0
    %3851 = vmatpush1.msra.mxu0 %v654
    %3852 = vmatprep.subr.mxu0 0.0
    %3853 = vmatpush1.msra.mxu0 %v655
    %3854 = vmatprep.subr.mxu0 0.0
    %3855 = vmatpush1.msra.mxu0 0.0
    %3856 = vmatprep.subr.mxu0 0.0
    %3857 = vmatpush1.msra.mxu0 0.0
    %3858 = vmatprep.subr.mxu0 0.0
    %3859 = vmatpush1.msra.mxu0 0.0
    %3860 = vmatprep.subr.mxu0 0.0
    %3861 = vmatpush1.msra.mxu0 0.0
    %3862 = vmatprep.subr.mxu0 0.0
    %3863 = vmatpush1.msra.mxu0 0.0
    %3864 = vmatprep.subr.mxu0 0.0
    %3865 = vmatpush1.msra.mxu0 0.0
    %3866 = vmatprep.subr.mxu0 0.0
    %3867 = vmatpush1.msra.mxu0 0.0
    %3868 = vmatprep.subr.mxu0 0.0
    %3869 = vmatpush1.msra.mxu0 0.0
    %3870 = vmatprep.subr.mxu0 0.0
    %3871 = vmatpush1.msra.mxu0 0.0
    %3872 = vmatprep.subr.mxu0 0.0
    %3873 = vmatpush1.msra.mxu0 0.0
    %3874 = vmatprep.subr.mxu0 0.0
    %3875 = vmatpush1.msra.mxu0 0.0
    %3876 = vmatprep.subr.mxu0 0.0
    %3877 = vmatpush1.msra.mxu0 0.0
    %3878 = vmatprep.subr.mxu0 0.0
    %3879 = vmatpush1.msra.mxu0 0.0
    %3880 = vmatprep.subr.mxu0 0.0
    %3881 = vmatpush1.msra.mxu0 0.0
    %3882 = vmatprep.subr.mxu0 0.0
    %3883 = vmatpush1.msra.mxu0 0.0
    %3884 = vmatprep.subr.mxu0 0.0
    %3885 = vmatpush1.msra.mxu0 0.0
    %3886 = vmatprep.mubr.f32.mxu0 0.0
    %3887 = vmatmul.mubr.f32.gmra.mrb[0].mxu0 %v3446
    %v3888 = vpop.f32.mrb[0].mxu0
    %v3889 = vadd.f32 %v3819, %v3888
    %v3890 = vpop.f32.mrb[0].mxu0
    %3891 = vdwg.mxu0
    %v3892 = vadd.f32 %v3889, %v508
    %s3893 = scalar_lea.vmem [#allocation23], 40
    %3894 = vst [vmem:[%s3893] sm:$0xff] %v3892
    %s3895 = scalar_lea.vmem [#allocation22], 40
    %v3896 = vld [vmem:[%s3895] sm:$0xff]
    %v3897 = vadd.f32 %v3892, %v3896
    %3898 = vmax.xlane.f32.xlu0 %v3897
    %v3899 = vpop.xlane.xlu0 %3898
    %vm3900 = vcmp.eq.f32.partialorder %v3897, %v3899
    %v3901 = vsel %vm3900, %v674, 128
    %v3902 = vand.u32 %v3901, 65535
    %v3903 = vshra.s32 %v3901, 16
    %v3904 = vcvt.s32.f32 %v3902
    %v3905 = vcvt.s32.f32 %v3903
    %3906 = vmin.xlane.f32.xlu0 %v3905
    %v3907 = vpop.xlane.xlu0 %3906
    %vm3908 = vcmp.eq.f32.partialorder %v3905, %v3907
    %v3909 = vsel %vm3908, %v3904, inf
    %3910 = vmin.xlane.f32.xlu0 %v3909
    %v3911 = vpop.xlane.xlu0 %3910
    %v3912 = vcvt.f32.s32 %v3911
    %v3913 = vcvt.f32.s32 %v3907
    %v3914 = vshll.u32 %v3913, 16
    %v3915 = vadd.s32 %v3914, %v3912
    %vm3916 = vcmp.eq.s32.totalorder %v3915, %v674
    %v3917 = vsel %vm3916, 1, 0
    %v3918 = vcvt.s32.f32 %v3917
    %3919 = vmatprep.subr.mxu0 0.0
    %3920 = vmatpush1.msra.mxu0 %v511
    %3921 = vmatprep.subr.mxu0 0.0
    %3922 = vmatpush1.msra.mxu0 %v512
    %3923 = vmatprep.subr.mxu0 0.0
    %3924 = vmatpush1.msra.mxu0 %v513
    %3925 = vmatprep.subr.mxu0 0.0
    %3926 = vmatpush1.msra.mxu0 %v514
    %3927 = vmatprep.subr.mxu0 0.0
    %3928 = vmatpush1.msra.mxu0 %v515
    %3929 = vmatprep.subr.mxu0 0.0
    %3930 = vmatpush1.msra.mxu0 %v516
    %3931 = vmatprep.subr.mxu0 0.0
    %3932 = vmatpush1.msra.mxu0 %v517
    %3933 = vmatprep.subr.mxu0 0.0
    %3934 = vmatpush1.msra.mxu0 %v518
    %3935 = vmatprep.subr.mxu0 0.0
    %3936 = vmatpush1.msra.mxu0 %v519
    %3937 = vmatprep.subr.mxu0 0.0
    %3938 = vmatpush1.msra.mxu0 %v520
    %3939 = vmatprep.subr.mxu0 0.0
    %3940 = vmatpush1.msra.mxu0 %v521
    %3941 = vmatprep.subr.mxu0 0.0
    %3942 = vmatpush1.msra.mxu0 %v522
    %3943 = vmatprep.subr.mxu0 0.0
    %3944 = vmatpush1.msra.mxu0 %v523
    %3945 = vmatprep.subr.mxu0 0.0
    %3946 = vmatpush1.msra.mxu0 %v524
    %3947 = vmatprep.subr.mxu0 0.0
    %3948 = vmatpush1.msra.mxu0 %v525
    %3949 = vmatprep.subr.mxu0 0.0
    %3950 = vmatpush1.msra.mxu0 %v526
    %3951 = vmatprep.subr.mxu0 0.0
    %3952 = vmatpush1.msra.mxu0 0.0
    %3953 = vmatprep.subr.mxu0 0.0
    %3954 = vmatpush1.msra.mxu0 0.0
    %3955 = vmatprep.subr.mxu0 0.0
    %3956 = vmatpush1.msra.mxu0 0.0
    %3957 = vmatprep.subr.mxu0 0.0
    %3958 = vmatpush1.msra.mxu0 0.0
    %3959 = vmatprep.subr.mxu0 0.0
    %3960 = vmatpush1.msra.mxu0 0.0
    %3961 = vmatprep.subr.mxu0 0.0
    %3962 = vmatpush1.msra.mxu0 0.0
    %3963 = vmatprep.subr.mxu0 0.0
    %3964 = vmatpush1.msra.mxu0 0.0
    %3965 = vmatprep.subr.mxu0 0.0
    %3966 = vmatpush1.msra.mxu0 0.0
    %3967 = vmatprep.subr.mxu0 0.0
    %3968 = vmatpush1.msra.mxu0 0.0
    %3969 = vmatprep.subr.mxu0 0.0
    %3970 = vmatpush1.msra.mxu0 0.0
    %3971 = vmatprep.subr.mxu0 0.0
    %3972 = vmatpush1.msra.mxu0 0.0
    %3973 = vmatprep.subr.mxu0 0.0
    %3974 = vmatpush1.msra.mxu0 0.0
    %3975 = vmatprep.subr.mxu0 0.0
    %3976 = vmatpush1.msra.mxu0 0.0
    %3977 = vmatprep.subr.mxu0 0.0
    %3978 = vmatpush1.msra.mxu0 0.0
    %3979 = vmatprep.subr.mxu0 0.0
    %3980 = vmatpush1.msra.mxu0 0.0
    %3981 = vmatprep.subr.mxu0 0.0
    %3982 = vmatpush1.msra.mxu0 0.0
    %3983 = vmatprep.mubr.f32.mxu0 0.0
    %3984 = vmatmul.mubr.f32.gmra.mrb[0].mxu0 %v3918
    %v3985 = vpop.f32.mrb[0].mxu0
    %v3986 = vadd.f32 0.0, %v3985
    %v3987 = vpop.f32.mrb[0].mxu0
    %3988 = vdwg.mxu0
    %3989 = vmatprep.subr.mxu0 %v528
    %3990 = vmatpush1.msra.mxu0 %v527
    %3991 = vmatprep.subr.mxu0 %v531
    %3992 = vmatpush1.msra.mxu0 %v530
    %3993 = vmatprep.subr.mxu0 %v534
    %3994 = vmatpush1.msra.mxu0 %v533
    %3995 = vmatprep.subr.mxu0 %v537
    %3996 = vmatpush1.msra.mxu0 %v536
    %3997 = vmatprep.subr.mxu0 %v540
    %3998 = vmatpush1.msra.mxu0 %v539
    %3999 = vmatprep.subr.mxu0 %v543
    %4000 = vmatpush1.msra.mxu0 %v542
    %4001 = vmatprep.subr.mxu0 %v546
    %4002 = vmatpush1.msra.mxu0 %v545
    %4003 = vmatprep.subr.mxu0 %v549
    %4004 = vmatpush1.msra.mxu0 %v548
    %4005 = vmatprep.subr.mxu0 %v552
    %4006 = vmatpush1.msra.mxu0 %v551
    %4007 = vmatprep.subr.mxu0 %v555
    %4008 = vmatpush1.msra.mxu0 %v554
    %4009 = vmatprep.subr.mxu0 %v558
    %4010 = vmatpush1.msra.mxu0 %v557
    %4011 = vmatprep.subr.mxu0 %v561
    %4012 = vmatpush1.msra.mxu0 %v560
    %4013 = vmatprep.subr.mxu0 %v564
    %4014 = vmatpush1.msra.mxu0 %v563
    %4015 = vmatprep.subr.mxu0 %v567
    %4016 = vmatpush1.msra.mxu0 %v566
    %4017 = vmatprep.subr.mxu0 %v570
    %4018 = vmatpush1.msra.mxu0 %v569
    %4019 = vmatprep.subr.mxu0 %v573
    %4020 = vmatpush1.msra.mxu0 %v572
    %4021 = vmatprep.subr.mxu0 0.0
    %4022 = vmatpush1.msra.mxu0 0.0
    %4023 = vmatprep.subr.mxu0 0.0
    %4024 = vmatpush1.msra.mxu0 0.0
    %4025 = vmatprep.subr.mxu0 0.0
    %4026 = vmatpush1.msra.mxu0 0.0
    %4027 = vmatprep.subr.mxu0 0.0
    %4028 = vmatpush1.msra.mxu0 0.0
    %4029 = vmatprep.subr.mxu0 0.0
    %4030 = vmatpush1.msra.mxu0 0.0
    %4031 = vmatprep.subr.mxu0 0.0
    %4032 = vmatpush1.msra.mxu0 0.0
    %4033 = vmatprep.subr.mxu0 0.0
    %4034 = vmatpush1.msra.mxu0 0.0
    %4035 = vmatprep.subr.mxu0 0.0
    %4036 = vmatpush1.msra.mxu0 0.0
    %4037 = vmatprep.subr.mxu0 0.0
    %4038 = vmatpush1.msra.mxu0 0.0
    %4039 = vmatprep.subr.mxu0 0.0
    %4040 = vmatpush1.msra.mxu0 0.0
    %4041 = vmatprep.subr.mxu0 0.0
    %4042 = vmatpush1.msra.mxu0 0.0
    %4043 = vmatprep.subr.mxu0 0.0
    %4044 = vmatpush1.msra.mxu0 0.0
    %4045 = vmatprep.subr.mxu0 0.0
    %4046 = vmatpush1.msra.mxu0 0.0
    %4047 = vmatprep.subr.mxu0 0.0
    %4048 = vmatpush1.msra.mxu0 0.0
    %4049 = vmatprep.subr.mxu0 0.0
    %4050 = vmatpush1.msra.mxu0 0.0
    %4051 = vmatprep.subr.mxu0 0.0
    %4052 = vmatpush1.msra.mxu0 0.0
    %4053 = vmatprep.mubr.f32.mxu0 0.0
    %4054 = vmatmul.mubr.f32.gmra.mrb[0].mxu0 %v3986
    %v4055 = vpop.f32.mrb[0].mxu0
    %v4056 = vadd.f32 %v344, %v4055
    %v4057 = vpop.f32.mrb[0].mxu0
    %v4058 = vadd.f32 %v346, %v4057
    %4059 = vdwg.mxu0
    %4060 = vmatprep.subr.mxu0 0.0
    %4061 = vmatpush1.msra.mxu0 %v529
    %4062 = vmatprep.subr.mxu0 0.0
    %4063 = vmatpush1.msra.mxu0 %v532
    %4064 = vmatprep.subr.mxu0 0.0
    %4065 = vmatpush1.msra.mxu0 %v535
    %4066 = vmatprep.subr.mxu0 0.0
    %4067 = vmatpush1.msra.mxu0 %v538
    %4068 = vmatprep.subr.mxu0 0.0
    %4069 = vmatpush1.msra.mxu0 %v541
    %4070 = vmatprep.subr.mxu0 0.0
    %4071 = vmatpush1.msra.mxu0 %v544
    %4072 = vmatprep.subr.mxu0 0.0
    %4073 = vmatpush1.msra.mxu0 %v547
    %4074 = vmatprep.subr.mxu0 0.0
    %4075 = vmatpush1.msra.mxu0 %v550
    %4076 = vmatprep.subr.mxu0 0.0
    %4077 = vmatpush1.msra.mxu0 %v553
    %4078 = vmatprep.subr.mxu0 0.0
    %4079 = vmatpush1.msra.mxu0 %v556
    %4080 = vmatprep.subr.mxu0 0.0
    %4081 = vmatpush1.msra.mxu0 %v559
    %4082 = vmatprep.subr.mxu0 0.0
    %4083 = vmatpush1.msra.mxu0 %v562
    %4084 = vmatprep.subr.mxu0 0.0
    %4085 = vmatpush1.msra.mxu0 %v565
    %4086 = vmatprep.subr.mxu0 0.0
    %4087 = vmatpush1.msra.mxu0 %v568
    %4088 = vmatprep.subr.mxu0 0.0
    %4089 = vmatpush1.msra.mxu0 %v571
    %4090 = vmatprep.subr.mxu0 0.0
    %4091 = vmatpush1.msra.mxu0 %v574
    %4092 = vmatprep.subr.mxu0 0.0
    %4093 = vmatpush1.msra.mxu0 0.0
    %4094 = vmatprep.subr.mxu0 0.0
    %4095 = vmatpush1.msra.mxu0 0.0
    %4096 = vmatprep.subr.mxu0 0.0
    %4097 = vmatpush1.msra.mxu0 0.0
    %4098 = vmatprep.subr.mxu0 0.0
    %4099 = vmatpush1.msra.mxu0 0.0
    %4100 = vmatprep.subr.mxu0 0.0
    %4101 = vmatpush1.msra.mxu0 0.0
    %4102 = vmatprep.subr.mxu0 0.0
    %4103 = vmatpush1.msra.mxu0 0.0
    %4104 = vmatprep.subr.mxu0 0.0
    %4105 = vmatpush1.msra.mxu0 0.0
    %4106 = vmatprep.subr.mxu0 0.0
    %4107 = vmatpush1.msra.mxu0 0.0
    %4108 = vmatprep.subr.mxu0 0.0
    %4109 = vmatpush1.msra.mxu0 0.0
    %4110 = vmatprep.subr.mxu0 0.0
    %4111 = vmatpush1.msra.mxu0 0.0
    %4112 = vmatprep.subr.mxu0 0.0
    %4113 = vmatpush1.msra.mxu0 0.0
    %4114 = vmatprep.subr.mxu0 0.0
    %4115 = vmatpush1.msra.mxu0 0.0
    %4116 = vmatprep.subr.mxu0 0.0
    %4117 = vmatpush1.msra.mxu0 0.0
    %4118 = vmatprep.subr.mxu0 0.0
    %4119 = vmatpush1.msra.mxu0 0.0
    %4120 = vmatprep.subr.mxu0 0.0
    %4121 = vmatpush1.msra.mxu0 0.0
    %4122 = vmatprep.subr.mxu0 0.0
    %4123 = vmatpush1.msra.mxu0 0.0
    %4124 = vmatprep.mubr.f32.mxu0 0.0
    %4125 = vmatmul.mubr.f32.gmra.mrb[0].mxu0 %v3986
    %v4126 = vpop.f32.mrb[0].mxu0
    %v4127 = vadd.f32 %v415, %v4126
    %v4128 = vpop.f32.mrb[0].mxu0
    %4129 = vdwg.mxu0
    %4130 = vmatprep.subr.mxu0 %v576
    %4131 = vmatpush1.msra.mxu0 %v575
    %4132 = vmatprep.subr.mxu0 %v579
    %4133 = vmatpush1.msra.mxu0 %v578
    %4134 = vmatprep.subr.mxu0 %v582
    %4135 = vmatpush1.msra.mxu0 %v581
    %4136 = vmatprep.subr.mxu0 %v585
    %4137 = vmatpush1.msra.mxu0 %v584
    %4138 = vmatprep.subr.mxu0 %v588
    %4139 = vmatpush1.msra.mxu0 %v587
    %4140 = vmatprep.subr.mxu0 %v591
    %4141 = vmatpush1.msra.mxu0 %v590
    %4142 = vmatprep.subr.mxu0 %v594
    %4143 = vmatpush1.msra.mxu0 %v593
    %4144 = vmatprep.subr.mxu0 %v597
    %4145 = vmatpush1.msra.mxu0 %v596
    %4146 = vmatprep.subr.mxu0 %v600
    %4147 = vmatpush1.msra.mxu0 %v599
    %4148 = vmatprep.subr.mxu0 %v603
    %4149 = vmatpush1.msra.mxu0 %v602
    %4150 = vmatprep.subr.mxu0 %v606
    %4151 = vmatpush1.msra.mxu0 %v605
    %4152 = vmatprep.subr.mxu0 %v609
    %4153 = vmatpush1.msra.mxu0 %v608
    %4154 = vmatprep.subr.mxu0 %v612
    %4155 = vmatpush1.msra.mxu0 %v611
    %4156 = vmatprep.subr.mxu0 %v615
    %4157 = vmatpush1.msra.mxu0 %v614
    %4158 = vmatprep.subr.mxu0 %v618
    %4159 = vmatpush1.msra.mxu0 %v617
    %4160 = vmatprep.subr.mxu0 %v621
    %4161 = vmatpush1.msra.mxu0 %v620
    %4162 = vmatprep.subr.mxu0 0.0
    %4163 = vmatpush1.msra.mxu0 0.0
    %4164 = vmatprep.subr.mxu0 0.0
    %4165 = vmatpush1.msra.mxu0 0.0
    %4166 = vmatprep.subr.mxu0 0.0
    %4167 = vmatpush1.msra.mxu0 0.0
    %4168 = vmatprep.subr.mxu0 0.0
    %4169 = vmatpush1.msra.mxu0 0.0
    %4170 = vmatprep.subr.mxu0 0.0
    %4171 = vmatpush1.msra.mxu0 0.0
    %4172 = vmatprep.subr.mxu0 0.0
    %4173 = vmatpush1.msra.mxu0 0.0
    %4174 = vmatprep.subr.mxu0 0.0
    %4175 = vmatpush1.msra.mxu0 0.0
    %4176 = vmatprep.subr.mxu0 0.0
    %4177 = vmatpush1.msra.mxu0 0.0
    %4178 = vmatprep.subr.mxu0 0.0
    %4179 = vmatpush1.msra.mxu0 0.0
    %4180 = vmatprep.subr.mxu0 0.0
    %4181 = vmatpush1.msra.mxu0 0.0
    %4182 = vmatprep.subr.mxu0 0.0
    %4183 = vmatpush1.msra.mxu0 0.0
    %4184 = vmatprep.subr.mxu0 0.0
    %4185 = vmatpush1.msra.mxu0 0.0
    %4186 = vmatprep.subr.mxu0 0.0
    %4187 = vmatpush1.msra.mxu0 0.0
    %4188 = vmatprep.subr.mxu0 0.0
    %4189 = vmatpush1.msra.mxu0 0.0
    %4190 = vmatprep.subr.mxu0 0.0
    %4191 = vmatpush1.msra.mxu0 0.0
    %4192 = vmatprep.subr.mxu0 0.0
    %4193 = vmatpush1.msra.mxu0 0.0
    %4194 = vmatprep.mubr.f32.mxu0 0.0
    %4195 = vmatmul.mubr.f32.gmra.mrb[0].mxu0 %v3751
    %v4196 = vpop.f32.mrb[0].mxu0
    %v4197 = vadd.f32 %v628, %v4196
    %v4198 = vpop.f32.mrb[0].mxu0
    %v4199 = vadd.f32 %v632, %v4198
    %4200 = vdwg.mxu0
    %4201 = vmatprep.subr.mxu0 0.0
    %4202 = vmatpush1.msra.mxu0 %v577
    %4203 = vmatprep.subr.mxu0 0.0
    %4204 = vmatpush1.msra.mxu0 %v580
    %4205 = vmatprep.subr.mxu0 0.0
    %4206 = vmatpush1.msra.mxu0 %v583
    %4207 = vmatprep.subr.mxu0 0.0
    %4208 = vmatpush1.msra.mxu0 %v586
    %4209 = vmatprep.subr.mxu0 0.0
    %4210 = vmatpush1.msra.mxu0 %v589
    %4211 = vmatprep.subr.mxu0 0.0
    %4212 = vmatpush1.msra.mxu0 %v592
    %4213 = vmatprep.subr.mxu0 0.0
    %4214 = vmatpush1.msra.mxu0 %v595
    %4215 = vmatprep.subr.mxu0 0.0
    %4216 = vmatpush1.msra.mxu0 %v598
    %4217 = vmatprep.subr.mxu0 0.0
    %4218 = vmatpush1.msra.mxu0 %v601
    %4219 = vmatprep.subr.mxu0 0.0
    %4220 = vmatpush1.msra.mxu0 %v604
    %4221 = vmatprep.subr.mxu0 0.0
    %4222 = vmatpush1.msra.mxu0 %v607
    %4223 = vmatprep.subr.mxu0 0.0
    %4224 = vmatpush1.msra.mxu0 %v610
    %4225 = vmatprep.subr.mxu0 0.0
    %4226 = vmatpush1.msra.mxu0 %v613
    %4227 = vmatprep.subr.mxu0 0.0
    %4228 = vmatpush1.msra.mxu0 %v616
    %4229 = vmatprep.subr.mxu0 0.0
    %4230 = vmatpush1.msra.mxu0 %v619
    %4231 = vmatprep.subr.mxu0 0.0
    %4232 = vmatpush1.msra.mxu0 %v622
    %4233 = vmatprep.subr.mxu0 0.0
    %4234 = vmatpush1.msra.mxu0 0.0
    %4235 = vmatprep.subr.mxu0 0.0
    %4236 = vmatpush1.msra.mxu0 0.0
    %4237 = vmatprep.subr.mxu0 0.0
    %4238 = vmatpush1.msra.mxu0 0.0
    %4239 = vmatprep.subr.mxu0 0.0
    %4240 = vmatpush1.msra.mxu0 0.0
    %4241 = vmatprep.subr.mxu0 0.0
    %4242 = vmatpush1.msra.mxu0 0.0
    %4243 = vmatprep.subr.mxu0 0.0
    %4244 = vmatpush1.msra.mxu0 0.0
    %4245 = vmatprep.subr.mxu0 0.0
    %4246 = vmatpush1.msra.mxu0 0.0
    %4247 = vmatprep.subr.mxu0 0.0
    %4248 = vmatpush1.msra.mxu0 0.0
    %4249 = vmatprep.subr.mxu0 0.0
    %4250 = vmatpush1.msra.mxu0 0.0
    %4251 = vmatprep.subr.mxu0 0.0
    %4252 = vmatpush1.msra.mxu0 0.0
    %4253 = vmatprep.subr.mxu0 0.0
    %4254 = vmatpush1.msra.mxu0 0.0
    %4255 = vmatprep.subr.mxu0 0.0
    %4256 = vmatpush1.msra.mxu0 0.0
    %4257 = vmatprep.subr.mxu0 0.0
    %4258 = vmatpush1.msra.mxu0 0.0
    %4259 = vmatprep.subr.mxu0 0.0
    %4260 = vmatpush1.msra.mxu0 0.0
    %4261 = vmatprep.subr.mxu0 0.0
    %4262 = vmatpush1.msra.mxu0 0.0
    %4263 = vmatprep.subr.mxu0 0.0
    %4264 = vmatpush1.msra.mxu0 0.0
    %4265 = vmatprep.mubr.f32.mxu0 0.0
    %4266 = vmatmul.mubr.f32.gmra.mrb[0].mxu0 %v3751
    %v4267 = vpop.f32.mrb[0].mxu0
    %v4268 = vadd.f32 %v636, %v4267
    %v4269 = vpop.f32.mrb[0].mxu0
    %4270 = vdwg.mxu0
    %v4271 = vadd.f32 %v4056, %v4197
    %v4272 = vxor.u32 %v4271, 2147483648
    %v4273 = vmul.f32 %v4272, 1.442695
    %v4274 = vpow.pop %v4273
    %v4275 = vadd.f32 %v4274, 1.0
    %v4276 = vrcp.pop %v4275
    %v4277 = vmul.f32 1.0, %v4276
    %v4278 = vadd.f32 %v4058, %v4199
    %v4279 = vxor.u32 %v4278, 2147483648
    %v4280 = vmul.f32 %v4279, 1.442695
    %v4281 = vpow.pop %v4280
    %v4282 = vadd.f32 %v4281, 1.0
    %v4283 = vrcp.pop %v4282
    %v4284 = vmul.f32 1.0, %v4283
    %v4285 = vmul.f32 %v4277, %v4268
    %v4286 = vadd.f32 %v4127, %v4285
    %v4287 = vtanh.pop %v4286
    %v4288 = vsub.f32 1.0, %v4284
    %v4289 = vmul.f32 %v4288, %v4287
    %v4290 = vmul.f32 %v4284, %v3751
    %v4291 = vadd.f32 %v4289, %v4290
    %4292 = vmatprep.subr.mxu0 0.0
    %4293 = vmatpush1.msra.mxu0 %v656
    %4294 = vmatprep.subr.mxu0 0.0
    %4295 = vmatpush1.msra.mxu0 %v657
    %4296 = vmatprep.subr.mxu0 0.0
    %4297 = vmatpush1.msra.mxu0 %v658
    %4298 = vmatprep.subr.mxu0 0.0
    %4299 = vmatpush1.msra.mxu0 %v659
    %4300 = vmatprep.subr.mxu0 0.0
    %4301 = vmatpush1.msra.mxu0 %v660
    %4302 = vmatprep.subr.mxu0 0.0
    %4303 = vmatpush1.msra.mxu0 %v661
    %4304 = vmatprep.subr.mxu0 0.0
    %4305 = vmatpush1.msra.mxu0 %v662
    %4306 = vmatprep.subr.mxu0 0.0
    %4307 = vmatpush1.msra.mxu0 %v663
    %4308 = vmatprep.subr.mxu0 0.0
    %4309 = vmatpush1.msra.mxu0 %v664
    %4310 = vmatprep.subr.mxu0 0.0
    %4311 = vmatpush1.msra.mxu0 %v665
    %4312 = vmatprep.subr.mxu0 0.0
    %4313 = vmatpush1.msra.mxu0 %v666
    %4314 = vmatprep.subr.mxu0 0.0
    %4315 = vmatpush1.msra.mxu0 %v667
    %4316 = vmatprep.subr.mxu0 0.0
    %4317 = vmatpush1.msra.mxu0 %v668
    %4318 = vmatprep.subr.mxu0 0.0
    %4319 = vmatpush1.msra.mxu0 %v669
    %4320 = vmatprep.subr.mxu0 0.0
    %4321 = vmatpush1.msra.mxu0 %v670
    %4322 = vmatprep.subr.mxu0 0.0
    %4323 = vmatpush1.msra.mxu0 %v671
    %4324 = vmatprep.subr.mxu0 0.0
    %4325 = vmatpush1.msra.mxu0 0.0
    %4326 = vmatprep.subr.mxu0 0.0
    %4327 = vmatpush1.msra.mxu0 0.0
    %4328 = vmatprep.subr.mxu0 0.0
    %4329 = vmatpush1.msra.mxu0 0.0
    %4330 = vmatprep.subr.mxu0 0.0
    %4331 = vmatpush1.msra.mxu0 0.0
    %4332 = vmatprep.subr.mxu0 0.0
    %4333 = vmatpush1.msra.mxu0 0.0
    %4334 = vmatprep.subr.mxu0 0.0
    %4335 = vmatpush1.msra.mxu0 0.0
    %4336 = vmatprep.subr.mxu0 0.0
    %4337 = vmatpush1.msra.mxu0 0.0
    %4338 = vmatprep.subr.mxu0 0.0
    %4339 = vmatpush1.msra.mxu0 0.0
    %4340 = vmatprep.subr.mxu0 0.0
    %4341 = vmatpush1.msra.mxu0 0.0
    %4342 = vmatprep.subr.mxu0 0.0
    %4343 = vmatpush1.msra.mxu0 0.0
    %4344 = vmatprep.subr.mxu0 0.0
    %4345 = vmatpush1.msra.mxu0 0.0
    %4346 = vmatprep.subr.mxu0 0.0
    %4347 = vmatpush1.msra.mxu0 0.0
    %4348 = vmatprep.subr.mxu0 0.0
    %4349 = vmatpush1.msra.mxu0 0.0
    %4350 = vmatprep.subr.mxu0 0.0
    %4351 = vmatpush1.msra.mxu0 0.0
    %4352 = vmatprep.subr.mxu0 0.0
    %4353 = vmatpush1.msra.mxu0 0.0
    %4354 = vmatprep.subr.mxu0 0.0
    %4355 = vmatpush1.msra.mxu0 0.0
    %4356 = vmatprep.mubr.f32.mxu0 0.0
    %4357 = vmatmul.mubr.f32.gmra.mrb[0].mxu0 %v4291
    %v4358 = vpop.f32.mrb[0].mxu0
    %v4359 = vadd.f32 0.0, %v4358
    %v4360 = vpop.f32.mrb[0].mxu0
    %4361 = vdwg.mxu0
    %4362 = vmatprep.subr.mxu0 0.0
    %4363 = vmatpush1.msra.mxu0 %v640
    %4364 = vmatprep.subr.mxu0 0.0
    %4365 = vmatpush1.msra.mxu0 %v641
    %4366 = vmatprep.subr.mxu0 0.0
    %4367 = vmatpush1.msra.mxu0 %v642
    %4368 = vmatprep.subr.mxu0 0.0
    %4369 = vmatpush1.msra.mxu0 %v643
    %4370 = vmatprep.subr.mxu0 0.0
    %4371 = vmatpush1.msra.mxu0 %v644
    %4372 = vmatprep.subr.mxu0 0.0
    %4373 = vmatpush1.msra.mxu0 %v645
    %4374 = vmatprep.subr.mxu0 0.0
    %4375 = vmatpush1.msra.mxu0 %v646
    %4376 = vmatprep.subr.mxu0 0.0
    %4377 = vmatpush1.msra.mxu0 %v647
    %4378 = vmatprep.subr.mxu0 0.0
    %4379 = vmatpush1.msra.mxu0 %v648
    %4380 = vmatprep.subr.mxu0 0.0
    %4381 = vmatpush1.msra.mxu0 %v649
    %4382 = vmatprep.subr.mxu0 0.0
    %4383 = vmatpush1.msra.mxu0 %v650
    %4384 = vmatprep.subr.mxu0 0.0
    %4385 = vmatpush1.msra.mxu0 %v651
    %4386 = vmatprep.subr.mxu0 0.0
    %4387 = vmatpush1.msra.mxu0 %v652
    %4388 = vmatprep.subr.mxu0 0.0
    %4389 = vmatpush1.msra.mxu0 %v653
    %4390 = vmatprep.subr.mxu0 0.0
    %4391 = vmatpush1.msra.mxu0 %v654
    %4392 = vmatprep.subr.mxu0 0.0
    %4393 = vmatpush1.msra.mxu0 %v655
    %4394 = vmatprep.subr.mxu0 0.0
    %4395 = vmatpush1.msra.mxu0 0.0
    %4396 = vmatprep.subr.mxu0 0.0
    %4397 = vmatpush1.msra.mxu0 0.0
    %4398 = vmatprep.subr.mxu0 0.0
    %4399 = vmatpush1.msra.mxu0 0.0
    %4400 = vmatprep.subr.mxu0 0.0
    %4401 = vmatpush1.msra.mxu0 0.0
    %4402 = vmatprep.subr.mxu0 0.0
    %4403 = vmatpush1.msra.mxu0 0.0
    %4404 = vmatprep.subr.mxu0 0.0
    %4405 = vmatpush1.msra.mxu0 0.0
    %4406 = vmatprep.subr.mxu0 0.0
    %4407 = vmatpush1.msra.mxu0 0.0
    %4408 = vmatprep.subr.mxu0 0.0
    %4409 = vmatpush1.msra.mxu0 0.0
    %4410 = vmatprep.subr.mxu0 0.0
    %4411 = vmatpush1.msra.mxu0 0.0
    %4412 = vmatprep.subr.mxu0 0.0
    %4413 = vmatpush1.msra.mxu0 0.0
    %4414 = vmatprep.subr.mxu0 0.0
    %4415 = vmatpush1.msra.mxu0 0.0
    %4416 = vmatprep.subr.mxu0 0.0
    %4417 = vmatpush1.msra.mxu0 0.0
    %4418 = vmatprep.subr.mxu0 0.0
    %4419 = vmatpush1.msra.mxu0 0.0
    %4420 = vmatprep.subr.mxu0 0.0
    %4421 = vmatpush1.msra.mxu0 0.0
    %4422 = vmatprep.subr.mxu0 0.0
    %4423 = vmatpush1.msra.mxu0 0.0
    %4424 = vmatprep.subr.mxu0 0.0
    %4425 = vmatpush1.msra.mxu0 0.0
    %4426 = vmatprep.mubr.f32.mxu0 0.0
    %4427 = vmatmul.mubr.f32.gmra.mrb[0].mxu0 %v3986
    %v4428 = vpop.f32.mrb[0].mxu0
    %v4429 = vadd.f32 %v4359, %v4428
    %v4430 = vpop.f32.mrb[0].mxu0
    %4431 = vdwg.mxu0
    %v4432 = vadd.f32 %v4429, %v508
    %s4433 = scalar_lea.vmem [#allocation23], 48
    %4434 = vst [vmem:[%s4433] sm:$0xff] %v4432
    // Predicated region
    $region106: #{seq2seq_forward.3} parent=1 // pred_check
      _
    $region107: #{seq2seq_forward.3} parent=1 // pred_check_branch
      %4436 = sbr.rel (0) target = $region109
    $region108: #{seq2seq_forward.3} parent=1 // pred_region
      %s4438 = ssub.s32 896, 896
      %4439 = vsyncadd [#allocation4], %s4438
      %s4440 = sshll.u32 [#allocation23], 4
      %s4441 = int_to_ptr.vmem [resolvable:$true] %s4440
      %4446 = dma.vmem_to_hbm [thread:$0]  %s4441, 896, %s13, [#allocation4], 128, 128, 8
    $region109: #{seq2seq_forward.3} parent=1 // pred_fallthru
      _
    // Predicated region
    $region110: #{seq2seq_forward.3} parent=1 // pred_check
      _
    $region111: #{seq2seq_forward.3} parent=1 // pred_check_branch
      %4448 = sbr.rel (0) target = $region113
    $region112: #{seq2seq_forward.3} parent=1 // pred_region
      %4449 = dma.done [#allocation4], 896
    $region113: #{seq2seq_forward.3} parent=1 // pred_fallthru
      _
    %4450 = vsyncpa [#allocation3], 1
    %4451 = vsyncpa [#allocation6], 1
    %4452 = vsyncpa [#allocation9], 1
    %4453 = vsyncpa [#allocation12], 1
    %4454 = vsyncpa [#allocation15], 1
    %4455 = vsyncpa [#allocation18], 1
    %4456 = vsyncpa [#allocation21], 1
    %4457 = vsyncpa [#allocation4], 1

</llo_original>
